<compile_context>
chip_gen: v5e
topology: v5e:2x2
jax: 0.10.0
libtpu: 0.0.40
codegen_flags: <defaults>
</compile_context>

<pallas_src>
import functools

import jax
import jax.numpy as jnp
from jax import lax
from jax.experimental import pallas as pl
from jax.experimental.pallas import tpu as pltpu


# -----------------------------------------------------------------------------
# Static architecture constants (kept OUT of the params pytree so they remain
# Python ints under jit).
# -----------------------------------------------------------------------------
_CHANNELS = [32, 64, 64]
_KERNELS = [3, 2, 2]
_STRIDES = [2, 1, 1]
_HIDDEN = 256
_TAPS_2X2 = ((0, 0), (0, 1), (1, 0), (1, 1))


def _vmem_capacity_bytes():
    try:
        return int(pltpu.get_tpu_info().vmem_capacity_bytes)
    except Exception:
        return 64 * 1024 * 1024      # conservative (v7x per-core VMEM)


def _pick_batch_tile(n):
    """Images (rows) per grid step.

    n <= 16: a single un-padded block (block == array dim, no wasted work).
    Larger n: at least two blocks so megacore / v7x's two TensorCores both get
    work from the "parallel" grid axis; row count a multiple of 8 (sublane
    tiling); capped so the working set stays comfortably inside VMEM even on
    v7x (64 MiB).  The ragged last block is masked by Pallas (no jnp.pad).
    """
    if n <= 16:
        return n
    cap = 256 if _vmem_capacity_bytes() >= (100 << 20) else 128
    nb = min(cap, pl.cdiv(n, 2))
    return ((nb + 7) // 8) * 8


# -----------------------------------------------------------------------------
# The fused forward kernel.
#   p1_ref : (P1, nb, K1)  conv1 im2col patches, position-major leading axis
#   w*/b*  : conv GEMM weights (K-major bf16) and biases (1, C) f32
#   hw1/hb1: fused head layer 1  (conv_out, 512) / (1, 512)
#   hw2/hb2: fused head layer 2  block-diagonal (512, NPAD) / (1, NPAD)
#   o_ref  : (nb, NPAD) f32 — lanes [0,A): softmax(pi), lane A: value, rest 0
#   pat2/pat3/feat: VMEM scratch used to pack taps / features for deep-K dots
# -----------------------------------------------------------------------------
def _fused_kernel(p1_ref, w1_ref, b1_ref, w2_ref, b2_ref, w3_ref, b3_ref,
                  hw1_ref, hb1_ref, hw2_ref, hb2_ref, o_ref,
                  pat2_ref, pat3_ref, feat_ref,
                  *, oh1, ow1, c1, c2, c3, action_size):
    oh2, ow2 = oh1 - 1, ow1 - 1
    oh3, ow3 = oh2 - 1, ow2 - 1

    w1 = w1_ref[...]
    b1 = b1_ref[...]

    # --- conv1 (k=3, s=2) + ReLU: one (nb, 9*Cin)@(9*Cin, 32) GEMM per output
    # position; all images of the batch tile share the GEMM M (row) axis. ---
    h1 = []
    for p in range(oh1 * ow1):
        acc = jnp.dot(p1_ref[p], w1, preferred_element_type=jnp.float32)
        h1.append(jnp.maximum(acc + b1, 0.0).astype(jnp.bfloat16))

    def conv_k2s1(h_in, ow_in, oh_out, ow_out, cin, pat_ref, w_ref, b_ref):
        # k=2/s=1 conv + ReLU.  The 4 shifted taps are packed into one
        # (nb, 4*cin) VMEM matrix so each output position is a single
        # full-depth dot: K=128 (conv2) / K=256 (conv3, fills the 256-deep
        # MXU on v6e/v7x) instead of four shallow dots.
        w = w_ref[...]
        b = b_ref[...]
        out = []
        for i in range(oh_out):
            for j in range(ow_out):
                for t, (di, dj) in enumerate(_TAPS_2X2):
                    pat_ref[:, t * cin:(t + 1) * cin] = h_in[(i + di) * ow_in + (j + dj)]
                acc = jnp.dot(pat_ref[...], w, preferred_element_type=jnp.float32)
                out.append(jnp.maximum(acc + b, 0.0).astype(jnp.bfloat16))
        return out

    h2 = conv_k2s1(h1, ow1, oh2, ow2, c1, pat2_ref, w2_ref, b2_ref)
    h3 = conv_k2s1(h2, ow2, oh3, ow3, c2, pat3_ref, w3_ref, b3_ref)

    # --- feature flatten in (h, w, c) order straight into VMEM (head W1 rows
    # were permuted from PyTorch's (c, h, w) order at init to match). ---
    for p in range(oh3 * ow3):
        feat_ref[:, p * c3:(p + 1) * c3] = h3[p]

    # --- fused pi / value heads ---
    # TODO(synk): hidden is cast to bf16 for the second MXU pass; the value
    # head loses a little precision vs the f32 PyTorch reference.
    hdn = jnp.dot(feat_ref[...], hw1_ref[...], preferred_element_type=jnp.float32)
    hdn = jnp.maximum(hdn + hb1_ref[...], 0.0).astype(jnp.bfloat16)
    z = jnp.dot(hdn, hw2_ref[...], preferred_element_type=jnp.float32) + hb2_ref[...]

    lane = lax.broadcasted_iota(jnp.int32, z.shape, 1)
    is_pi = lane < action_size
    zm = jnp.where(is_pi, z, -1e30)                 # mask value + padded lanes
    zmax = jnp.max(zm, axis=-1, keepdims=True)
    e = jnp.exp(zm - zmax)                          # masked lanes underflow to 0
    # Exact normalization (VMPO consumes log-probs downstream); the divide is
    # cheap and hides under the MXU work of the neighbouring grid steps.
    pi = e / jnp.sum(e, axis=-1, keepdims=True)
    val = jnp.where(lane == action_size, z, 0.0)    # padded lanes -> exact zeros
    o_ref[...] = jnp.where(is_pi, pi, val)


# -----------------------------------------------------------------------------
# Wrapper around the single pallas_call.
# -----------------------------------------------------------------------------
def _fused_forward(patches, params, *, oh1, ow1, action_size):
    assert _KERNELS[1:] == [2, 2] and _STRIDES[1:] == [1, 1], (
        "fused kernel implements the default [3,2,2]/[2,1,1] conv stack")
    p1_count, n, k1 = patches.shape
    c1, c2, c3 = _CHANNELS
    oh2, ow2 = oh1 - 1, ow1 - 1
    oh3, ow3 = oh2 - 1, ow2 - 1
    feat_dim = oh3 * ow3 * c3

    w1, w2, w3 = params["conv_w"]
    b1, b2, b3 = params["conv_b"]
    hw1, hb1 = params["head_w1"], params["head_b1"]
    hw2, hb2 = params["head_w2"], params["head_b2"]
    npad = hw2.shape[1]
    h2dim = hw1.shape[1]
    assert hw1.shape[0] == feat_dim

    nb = _pick_batch_tile(n)
    grid = (pl.cdiv(n, nb),)

    def _full(shape):
        nd = len(shape)
        return pl.BlockSpec(shape, lambda i, _nd=nd: (0,) * _nd)

    flops = 2 * n * (p1_count * k1 * c1
                     + oh2 * ow2 * 4 * c1 * c2
                     + oh3 * ow3 * 4 * c2 * c3
                     + feat_dim * h2dim
                     + h2dim * npad)
    bytes_acc = sum(a.size * a.dtype.itemsize
                    for a in (patches, w1, b1, w2, b2, w3, b3,
                              hw1, hb1, hw2, hb2))
    bytes_acc += n * npad * 4

    kernel = functools.partial(_fused_kernel, oh1=oh1, ow1=ow1,
                               c1=c1, c2=c2, c3=c3, action_size=action_size)

    out = pl.pallas_call(
        kernel,
        out_shape=jax.ShapeDtypeStruct((n, npad), jnp.float32),
        grid=grid,
        in_specs=[
            pl.BlockSpec((p1_count, nb, k1), lambda i: (0, i, 0)),
            _full(w1.shape), _full(b1.shape),
            _full(w2.shape), _full(b2.shape),
            _full(w3.shape), _full(b3.shape),
            _full(hw1.shape), _full(hb1.shape),
            _full(hw2.shape), _full(hb2.shape),
        ],
        out_specs=pl.BlockSpec((nb, npad), lambda i: (i, 0)),
        scratch_shapes=[
            pltpu.VMEM((nb, 4 * c1), jnp.bfloat16),     # conv2 tap pack (K=128)
            pltpu.VMEM((nb, 4 * c2), jnp.bfloat16),     # conv3 tap pack (K=256)
            pltpu.VMEM((nb, feat_dim), jnp.bfloat16),   # flattened features
        ],
        compiler_params=pltpu.CompilerParams(
            dimension_semantics=("parallel",),
            vmem_limit_bytes=32 * 1024 * 1024),
        cost_estimate=pl.CostEstimate(flops=flops, transcendentals=n * npad,
                                      bytes_accessed=bytes_acc),
    )(patches, w1, b1, w2, b2, w3, b3, hw1, hb1, hw2, hb2)
    return out


# -----------------------------------------------------------------------------
# im2col (conv1 only) — static slices on a tiny NHWC tensor, columns ordered
# (kh, kw, c) to match the pre-flattened weights.
# -----------------------------------------------------------------------------
def _im2col_nhwc(x, k, s):
    n, h, w, c = x.shape
    oh = (h - k) // s + 1
    ow = (w - k) // s + 1
    cols = [x[:, di:di + s * oh:s, dj:dj + s * ow:s, :]
            for di in range(k) for dj in range(k)]
    p = jnp.concatenate(cols, axis=-1)                 # (n, oh, ow, k*k*c)
    return p.reshape(n * oh * ow, k * k * c), oh, ow


def _conv1_patches(x_nhwc, k, s):
    n = x_nhwc.shape[0]
    p, oh, ow = _im2col_nhwc(x_nhwc, k, s)
    p = p.reshape(n, oh * ow, k * k * x_nhwc.shape[-1])
    return jnp.transpose(p, (1, 0, 2)), oh, ow         # (oh*ow, n, k*k*c)


# -----------------------------------------------------------------------------
# Parameters: deterministic init; all weights pre-laid-out for the kernel.
# -----------------------------------------------------------------------------
def init_params(observation_shape, action_size, seed=42):
    c, h, w = observation_shape
    keys = jax.random.split(jax.random.PRNGKey(seed), 16)
    ki = iter(range(16))

    def uinit(fan_in, shape):
        scale = float(fan_in) ** -0.5
        return jax.random.uniform(keys[next(ki)], shape, jnp.float32,
                                  minval=-scale, maxval=scale)

    conv_w, conv_b = [], []
    in_c, hh, ww = c, h, w
    for out_c, k, s in zip(_CHANNELS, _KERNELS, _STRIDES):
        fan_in = in_c * k * k
        wgt = uinit(fan_in, (out_c, in_c, k, k))            # PyTorch (O, C, kh, kw)
        bias = uinit(fan_in, (out_c,))
        # K-major GEMM layout for NHWC patches, rows ordered (kh, kw, c_in).
        w_mat = jnp.transpose(wgt, (2, 3, 1, 0)).reshape(k * k * in_c, out_c)
        conv_w.append(w_mat.astype(jnp.bfloat16))
        conv_b.append(bias.reshape(1, -1).astype(jnp.float32))
        hh = (hh - k) // s + 1
        ww = (ww - k) // s + 1
        in_c = out_c
    conv_out = in_c * hh * ww

    def chw_to_hwc_rows(w_):
        # Permute Linear input features from PyTorch's (C, H, W) flatten order
        # to the kernel's (H, W, C) order; returns a K-major (conv_out, out).
        return (w_.reshape(-1, in_c, hh, ww).transpose(0, 2, 3, 1)
                .reshape(-1, conv_out).T)

    pi_w1 = uinit(conv_out, (_HIDDEN, conv_out)); pi_b1 = uinit(conv_out, (_HIDDEN,))
    pi_w2 = uinit(_HIDDEN, (action_size, _HIDDEN)); pi_b2 = uinit(_HIDDEN, (action_size,))
    v_w1 = uinit(conv_out, (_HIDDEN, conv_out)); v_b1 = uinit(conv_out, (_HIDDEN,))
    v_w2 = uinit(_HIDDEN, (1, _HIDDEN)); v_b2 = uinit(_HIDDEN, (1,))

    # Fused head layer 1: (conv_out, 512) = [pi hidden | value hidden].
    w1cat = jnp.concatenate([chw_to_hwc_rows(pi_w1), chw_to_hwc_rows(v_w1)], axis=1)
    b1cat = jnp.concatenate([pi_b1, v_b1]).reshape(1, -1)

    # Fused head layer 2: block-diagonal, lane-dense (>=128 lanes).  Pi logits
    # land in lanes [0, A), the value in lane A, everything else stays zero.
    npad = max(128, ((action_size + 1 + 127) // 128) * 128)
    w2blk = jnp.zeros((2 * _HIDDEN, npad), jnp.float32)
    w2blk = w2blk.at[:_HIDDEN, :action_size].set(pi_w2.T)
    w2blk = w2blk.at[_HIDDEN:, action_size].set(v_w2.reshape(-1))
    b2cat = jnp.zeros((1, npad), jnp.float32)
    b2cat = b2cat.at[0, :action_size].set(pi_b2)
    b2cat = b2cat.at[0, action_size].set(v_b2[0])

    return {
        "conv_w": conv_w,
        "conv_b": conv_b,
        "head_w1": w1cat.astype(jnp.bfloat16),
        "head_b1": b1cat.astype(jnp.float32),
        "head_w2": w2blk.astype(jnp.bfloat16),
        "head_b2": b2cat.astype(jnp.float32),
    }


# -----------------------------------------------------------------------------
# Forward pass (mirrors VmpoQECModel.forward).
# -----------------------------------------------------------------------------
def vmpo_qec_forward(params, observation, prev_action=None, prev_reward=None,
                     init_rnn_state=None, *, action_size):
    img = observation
    # infer_leading_dims(img, 3)
    if img.ndim == 3:
        lead_dim, T, B = 0, 1, 1
    elif img.ndim == 4:
        lead_dim, T, B = 1, 1, img.shape[0]
    elif img.ndim == 5:
        lead_dim, T, B = 2, img.shape[0], img.shape[1]
    else:
        raise ValueError("observation must have 3, 4 or 5 dims")
    c, h, w = img.shape[-3:]

    # Cast to bf16 *before* the single NCHW -> NHWC layout change (halves the
    # bytes moved by the transpose copy); channels sit on the lane axis.
    x = img.reshape(T * B, c, h, w).astype(jnp.bfloat16)
    x = jnp.transpose(x, (0, 2, 3, 1))

    patches, oh1, ow1 = _conv1_patches(x, _KERNELS[0], _STRIDES[0])
    out = _fused_forward(patches, params, oh1=oh1, ow1=ow1,
                         action_size=action_size)

    pi = out[:, :action_size]
    value = out[:, action_size]

    # restore_leading_dims
    if lead_dim == 0:
        pi = pi.reshape(action_size)
        value = value.reshape(())
    elif lead_dim == 2:
        pi = pi.reshape(T, B, action_size)
        value = value.reshape(T, B)
    # lead_dim == 1: already (B, A) / (B,)

    rnn_state_out = jnp.zeros((1, B, 1), jnp.float32)
    return pi, value, rnn_state_out


# -----------------------------------------------------------------------------
# Pure-JAX reference (identical dtype casts) for a numerical cross-check.
# -----------------------------------------------------------------------------
def _reference_forward(params, observation, *, action_size):
    n = observation.shape[0]
    x = jnp.transpose(observation.astype(jnp.bfloat16), (0, 2, 3, 1))
    for idx in range(len(_CHANNELS)):
        k, s = _KERNELS[idx], _STRIDES[idx]
        w_mat = params["conv_w"][idx]
        b = params["conv_b"][idx]
        p, oh, ow = _im2col_nhwc(x, k, s)
        y = jnp.dot(p, w_mat, preferred_element_type=jnp.float32) + b
        x = jnp.maximum(y, 0.0).astype(jnp.bfloat16).reshape(n, oh, ow, -1)
    feats = x.reshape(n, -1)
    hdn = jnp.dot(feats, params["head_w1"],
                  preferred_element_type=jnp.float32) + params["head_b1"]
    hdn = jnp.maximum(hdn, 0.0).astype(jnp.bfloat16)
    z = jnp.dot(hdn, params["head_w2"],
                preferred_element_type=jnp.float32) + params["head_b2"]
    pi = jax.nn.softmax(z[:, :action_size], axis=-1)
    return pi, z[:, action_size]


# -----------------------------------------------------------------------------
if __name__ == "__main__":
    observation_shape = (4, 16, 16)
    action_size = 6
    batch = 2

    params = init_params(observation_shape, action_size, seed=42)

    key = jax.random.PRNGKey(0)
    k_obs, k_act, k_rew = jax.random.split(key, 3)
    observation = jax.random.uniform(k_obs, (batch,) + observation_shape,
                                     jnp.float32)
    prev_action = jax.random.randint(k_act, (batch,), 0, action_size)
    prev_reward = jax.random.normal(k_rew, (batch,), jnp.float32)
    init_rnn_state = jnp.zeros((1, batch, 1), jnp.float32)

    fwd = jax.jit(functools.partial(vmpo_qec_forward, action_size=action_size))
    pi, value, rnn_state = fwd(params, observation, prev_action, prev_reward,
                               init_rnn_state)
    jax.block_until_ready((pi, value, rnn_state))

    assert pi.shape == (batch, action_size), pi.shape
    assert value.shape == (batch,), value.shape
    assert rnn_state.shape == (1, batch, 1), rnn_state.shape
    assert bool(jnp.all(jnp.isfinite(pi))) and bool(jnp.all(jnp.isfinite(value)))
    assert jnp.allclose(jnp.sum(pi, axis=-1), 1.0, atol=1e-3)

    # Cross-check against a pure-JAX reference with identical dtype casts.
    pi_ref, value_ref = jax.jit(
        functools.partial(_reference_forward, action_size=action_size))(
            params, observation)
    assert jnp.allclose(pi, pi_ref, atol=2e-2), (pi, pi_ref)
    assert jnp.allclose(value, value_ref, atol=2e-2), (value, value_ref)

    print("KERNEL_OK")
</pallas_src>

<mosaic_0001>
module attributes {stable_mosaic.version = 11 : i64} {
  func.func @_fused_kernel(%arg0: i32, %arg1: memref<49x2x36xbf16, #tpu.memory_space<vmem>>, %arg2: memref<36x32xbf16, #tpu.memory_space<vmem>>, %arg3: memref<1x32xf32, #tpu.memory_space<vmem>>, %arg4: memref<128x64xbf16, #tpu.memory_space<vmem>>, %arg5: memref<1x64xf32, #tpu.memory_space<vmem>>, %arg6: memref<256x64xbf16, #tpu.memory_space<vmem>>, %arg7: memref<1x64xf32, #tpu.memory_space<vmem>>, %arg8: memref<1600x512xbf16, #tpu.memory_space<vmem>>, %arg9: memref<1x512xf32, #tpu.memory_space<vmem>>, %arg10: memref<512x128xbf16, #tpu.memory_space<vmem>>, %arg11: memref<1x128xf32, #tpu.memory_space<vmem>>, %arg12: memref<2x128xf32, #tpu.memory_space<vmem>>, %arg13: memref<2x128xbf16, #tpu.memory_space<vmem>>, %arg14: memref<2x256xbf16, #tpu.memory_space<vmem>>, %arg15: memref<2x1600xbf16, #tpu.memory_space<vmem>>) attributes {dimension_semantics = [#tpu.dimension_semantics<parallel>], iteration_bounds = array<i64: 1>, scalar_prefetch = 0 : i64, scratch_operands = 3 : i64, tpu.core_type = #tpu.core_type<tc>, window_params = [{transform_indices = @transform_0, window_bounds = array<i64: 49, 2, 36>}, {pipeline_mode = #tpu.pipeline_mode<synchronous>, transform_indices = @transform_1, window_bounds = array<i64: 36, 32>}, {pipeline_mode = #tpu.pipeline_mode<synchronous>, transform_indices = @transform_2, window_bounds = array<i64: 1, 32>}, {pipeline_mode = #tpu.pipeline_mode<synchronous>, transform_indices = @transform_3, window_bounds = array<i64: 128, 64>}, {pipeline_mode = #tpu.pipeline_mode<synchronous>, transform_indices = @transform_4, window_bounds = array<i64: 1, 64>}, {pipeline_mode = #tpu.pipeline_mode<synchronous>, transform_indices = @transform_5, window_bounds = array<i64: 256, 64>}, {pipeline_mode = #tpu.pipeline_mode<synchronous>, transform_indices = @transform_6, window_bounds = array<i64: 1, 64>}, {pipeline_mode = #tpu.pipeline_mode<synchronous>, transform_indices = @transform_7, window_bounds = array<i64: 1600, 512>}, {pipeline_mode = #tpu.pipeline_mode<synchronous>, transform_indices = @transform_8, window_bounds = array<i64: 1, 512>}, {pipeline_mode = #tpu.pipeline_mode<synchronous>, transform_indices = @transform_9, window_bounds = array<i64: 512, 128>}, {pipeline_mode = #tpu.pipeline_mode<synchronous>, transform_indices = @transform_10, window_bounds = array<i64: 1, 128>}, {transform_indices = @transform_11, window_bounds = array<i64: 2, 128>}]} {
    %c0 = arith.constant 0 : index
    %c0_0 = arith.constant 0 : index
    %0 = vector.load %arg2[%c0, %c0_0] : memref<36x32xbf16, #tpu.memory_space<vmem>>, vector<36x32xbf16>
    %c0_1 = arith.constant 0 : index
    %c0_2 = arith.constant 0 : index
    %1 = vector.load %arg3[%c0_1, %c0_2] : memref<1x32xf32, #tpu.memory_space<vmem>>, vector<1x32xf32>
    %c0_3 = arith.constant 0 : index
    %c0_4 = arith.constant 0 : index
    %c0_5 = arith.constant 0 : index
    %2 = vector.load %arg1[%c0_3, %c0_4, %c0_5] : memref<49x2x36xbf16, #tpu.memory_space<vmem>>, vector<1x2x36xbf16>
    %3 = vector.shape_cast %2 : vector<1x2x36xbf16> to vector<2x36xbf16>
    %cst = arith.constant dense<0.000000e+00> : vector<2x32xf32>
    %4 = tpu.matmul %3, %0, %cst {dimension_numbers = #tpu.dot_dimension_numbers<[1], [0], [0], [1], [0, 0, 1, 1], [], []>} : vector<2x36xbf16>, vector<36x32xbf16>, vector<2x32xf32> -> vector<2x32xf32>
    %5 = vector.broadcast %1 : vector<1x32xf32> to vector<2x32xf32>
    %6 = arith.addf %4, %5 : vector<2x32xf32>
    %cst_6 = arith.constant 0.000000e+00 : f32
    %7 = vector.broadcast %cst_6 : f32 to vector<2x32xf32>
    %8 = arith.maximumf %6, %7 : vector<2x32xf32>
    %9 = arith.truncf %8 : vector<2x32xf32> to vector<2x32xbf16>
    %c1 = arith.constant 1 : index
    %c0_7 = arith.constant 0 : index
    %c0_8 = arith.constant 0 : index
    %10 = vector.load %arg1[%c1, %c0_7, %c0_8] : memref<49x2x36xbf16, #tpu.memory_space<vmem>>, vector<1x2x36xbf16>
    %11 = vector.shape_cast %10 : vector<1x2x36xbf16> to vector<2x36xbf16>
    %cst_9 = arith.constant dense<0.000000e+00> : vector<2x32xf32>
    %12 = tpu.matmul %11, %0, %cst_9 {dimension_numbers = #tpu.dot_dimension_numbers<[1], [0], [0], [1], [0, 0, 1, 1], [], []>} : vector<2x36xbf16>, vector<36x32xbf16>, vector<2x32xf32> -> vector<2x32xf32>
    %13 = vector.broadcast %1 : vector<1x32xf32> to vector<2x32xf32>
    %14 = arith.addf %12, %13 : vector<2x32xf32>
    %cst_10 = arith.constant 0.000000e+00 : f32
    %15 = vector.broadcast %cst_10 : f32 to vector<2x32xf32>
    %16 = arith.maximumf %14, %15 : vector<2x32xf32>
    %17 = arith.truncf %16 : vector<2x32xf32> to vector<2x32xbf16>
    %c2 = arith.constant 2 : index
    %c0_11 = arith.constant 0 : index
    %c0_12 = arith.constant 0 : index
    %18 = vector.load %arg1[%c2, %c0_11, %c0_12] : memref<49x2x36xbf16, #tpu.memory_space<vmem>>, vector<1x2x36xbf16>
    %19 = vector.shape_cast %18 : vector<1x2x36xbf16> to vector<2x36xbf16>
    %cst_13 = arith.constant dense<0.000000e+00> : vector<2x32xf32>
    %20 = tpu.matmul %19, %0, %cst_13 {dimension_numbers = #tpu.dot_dimension_numbers<[1], [0], [0], [1], [0, 0, 1, 1], [], []>} : vector<2x36xbf16>, vector<36x32xbf16>, vector<2x32xf32> -> vector<2x32xf32>
    %21 = vector.broadcast %1 : vector<1x32xf32> to vector<2x32xf32>
    %22 = arith.addf %20, %21 : vector<2x32xf32>
    %cst_14 = arith.constant 0.000000e+00 : f32
    %23 = vector.broadcast %cst_14 : f32 to vector<2x32xf32>
    %24 = arith.maximumf %22, %23 : vector<2x32xf32>
    %25 = arith.truncf %24 : vector<2x32xf32> to vector<2x32xbf16>
    %c3 = arith.constant 3 : index
    %c0_15 = arith.constant 0 : index
    %c0_16 = arith.constant 0 : index
    %26 = vector.load %arg1[%c3, %c0_15, %c0_16] : memref<49x2x36xbf16, #tpu.memory_space<vmem>>, vector<1x2x36xbf16>
    %27 = vector.shape_cast %26 : vector<1x2x36xbf16> to vector<2x36xbf16>
    %cst_17 = arith.constant dense<0.000000e+00> : vector<2x32xf32>
    %28 = tpu.matmul %27, %0, %cst_17 {dimension_numbers = #tpu.dot_dimension_numbers<[1], [0], [0], [1], [0, 0, 1, 1], [], []>} : vector<2x36xbf16>, vector<36x32xbf16>, vector<2x32xf32> -> vector<2x32xf32>
    %29 = vector.broadcast %1 : vector<1x32xf32> to vector<2x32xf32>
    %30 = arith.addf %28, %29 : vector<2x32xf32>
    %cst_18 = arith.constant 0.000000e+00 : f32
    %31 = vector.broadcast %cst_18 : f32 to vector<2x32xf32>
    %32 = arith.maximumf %30, %31 : vector<2x32xf32>
    %33 = arith.truncf %32 : vector<2x32xf32> to vector<2x32xbf16>
    %c4 = arith.constant 4 : index
    %c0_19 = arith.constant 0 : index
    %c0_20 = arith.constant 0 : index
    %34 = vector.load %arg1[%c4, %c0_19, %c0_20] : memref<49x2x36xbf16, #tpu.memory_space<vmem>>, vector<1x2x36xbf16>
    %35 = vector.shape_cast %34 : vector<1x2x36xbf16> to vector<2x36xbf16>
    %cst_21 = arith.constant dense<0.000000e+00> : vector<2x32xf32>
    %36 = tpu.matmul %35, %0, %cst_21 {dimension_numbers = #tpu.dot_dimension_numbers<[1], [0], [0], [1], [0, 0, 1, 1], [], []>} : vector<2x36xbf16>, vector<36x32xbf16>, vector<2x32xf32> -> vector<2x32xf32>
    %37 = vector.broadcast %1 : vector<1x32xf32> to vector<2x32xf32>
    %38 = arith.addf %36, %37 : vector<2x32xf32>
    %cst_22 = arith.constant 0.000000e+00 : f32
    %39 = vector.broadcast %cst_22 : f32 to vector<2x32xf32>
    %40 = arith.maximumf %38, %39 : vector<2x32xf32>
    %41 = arith.truncf %40 : vector<2x32xf32> to vector<2x32xbf16>
    %c5 = arith.constant 5 : index
    %c0_23 = arith.constant 0 : index
    %c0_24 = arith.constant 0 : index
    %42 = vector.load %arg1[%c5, %c0_23, %c0_24] : memref<49x2x36xbf16, #tpu.memory_space<vmem>>, vector<1x2x36xbf16>
    %43 = vector.shape_cast %42 : vector<1x2x36xbf16> to vector<2x36xbf16>
    %cst_25 = arith.constant dense<0.000000e+00> : vector<2x32xf32>
    %44 = tpu.matmul %43, %0, %cst_25 {dimension_numbers = #tpu.dot_dimension_numbers<[1], [0], [0], [1], [0, 0, 1, 1], [], []>} : vector<2x36xbf16>, vector<36x32xbf16>, vector<2x32xf32> -> vector<2x32xf32>
    %45 = vector.broadcast %1 : vector<1x32xf32> to vector<2x32xf32>
    %46 = arith.addf %44, %45 : vector<2x32xf32>
    %cst_26 = arith.constant 0.000000e+00 : f32
    %47 = vector.broadcast %cst_26 : f32 to vector<2x32xf32>
    %48 = arith.maximumf %46, %47 : vector<2x32xf32>
    %49 = arith.truncf %48 : vector<2x32xf32> to vector<2x32xbf16>
    %c6 = arith.constant 6 : index
    %c0_27 = arith.constant 0 : index
    %c0_28 = arith.constant 0 : index
    %50 = vector.load %arg1[%c6, %c0_27, %c0_28] : memref<49x2x36xbf16, #tpu.memory_space<vmem>>, vector<1x2x36xbf16>
    %51 = vector.shape_cast %50 : vector<1x2x36xbf16> to vector<2x36xbf16>
    %cst_29 = arith.constant dense<0.000000e+00> : vector<2x32xf32>
    %52 = tpu.matmul %51, %0, %cst_29 {dimension_numbers = #tpu.dot_dimension_numbers<[1], [0], [0], [1], [0, 0, 1, 1], [], []>} : vector<2x36xbf16>, vector<36x32xbf16>, vector<2x32xf32> -> vector<2x32xf32>
    %53 = vector.broadcast %1 : vector<1x32xf32> to vector<2x32xf32>
    %54 = arith.addf %52, %53 : vector<2x32xf32>
    %cst_30 = arith.constant 0.000000e+00 : f32
    %55 = vector.broadcast %cst_30 : f32 to vector<2x32xf32>
    %56 = arith.maximumf %54, %55 : vector<2x32xf32>
    %57 = arith.truncf %56 : vector<2x32xf32> to vector<2x32xbf16>
    %c7 = arith.constant 7 : index
    %c0_31 = arith.constant 0 : index
    %c0_32 = arith.constant 0 : index
    %58 = vector.load %arg1[%c7, %c0_31, %c0_32] : memref<49x2x36xbf16, #tpu.memory_space<vmem>>, vector<1x2x36xbf16>
    %59 = vector.shape_cast %58 : vector<1x2x36xbf16> to vector<2x36xbf16>
    %cst_33 = arith.constant dense<0.000000e+00> : vector<2x32xf32>
    %60 = tpu.matmul %59, %0, %cst_33 {dimension_numbers = #tpu.dot_dimension_numbers<[1], [0], [0], [1], [0, 0, 1, 1], [], []>} : vector<2x36xbf16>, vector<36x32xbf16>, vector<2x32xf32> -> vector<2x32xf32>
    %61 = vector.broadcast %1 : vector<1x32xf32> to vector<2x32xf32>
    %62 = arith.addf %60, %61 : vector<2x32xf32>
    %cst_34 = arith.constant 0.000000e+00 : f32
    %63 = vector.broadcast %cst_34 : f32 to vector<2x32xf32>
    %64 = arith.maximumf %62, %63 : vector<2x32xf32>
    %65 = arith.truncf %64 : vector<2x32xf32> to vector<2x32xbf16>
    %c8 = arith.constant 8 : index
    %c0_35 = arith.constant 0 : index
    %c0_36 = arith.constant 0 : index
    %66 = vector.load %arg1[%c8, %c0_35, %c0_36] : memref<49x2x36xbf16, #tpu.memory_space<vmem>>, vector<1x2x36xbf16>
    %67 = vector.shape_cast %66 : vector<1x2x36xbf16> to vector<2x36xbf16>
    %cst_37 = arith.constant dense<0.000000e+00> : vector<2x32xf32>
    %68 = tpu.matmul %67, %0, %cst_37 {dimension_numbers = #tpu.dot_dimension_numbers<[1], [0], [0], [1], [0, 0, 1, 1], [], []>} : vector<2x36xbf16>, vector<36x32xbf16>, vector<2x32xf32> -> vector<2x32xf32>
    %69 = vector.broadcast %1 : vector<1x32xf32> to vector<2x32xf32>
    %70 = arith.addf %68, %69 : vector<2x32xf32>
    %cst_38 = arith.constant 0.000000e+00 : f32
    %71 = vector.broadcast %cst_38 : f32 to vector<2x32xf32>
    %72 = arith.maximumf %70, %71 : vector<2x32xf32>
    %73 = arith.truncf %72 : vector<2x32xf32> to vector<2x32xbf16>
    %c9 = arith.constant 9 : index
    %c0_39 = arith.constant 0 : index
    %c0_40 = arith.constant 0 : index
    %74 = vector.load %arg1[%c9, %c0_39, %c0_40] : memref<49x2x36xbf16, #tpu.memory_space<vmem>>, vector<1x2x36xbf16>
    %75 = vector.shape_cast %74 : vector<1x2x36xbf16> to vector<2x36xbf16>
    %cst_41 = arith.constant dense<0.000000e+00> : vector<2x32xf32>
    %76 = tpu.matmul %75, %0, %cst_41 {dimension_numbers = #tpu.dot_dimension_numbers<[1], [0], [0], [1], [0, 0, 1, 1], [], []>} : vector<2x36xbf16>, vector<36x32xbf16>, vector<2x32xf32> -> vector<2x32xf32>
    %77 = vector.broadcast %1 : vector<1x32xf32> to vector<2x32xf32>
    %78 = arith.addf %76, %77 : vector<2x32xf32>
    %cst_42 = arith.constant 0.000000e+00 : f32
    %79 = vector.broadcast %cst_42 : f32 to vector<2x32xf32>
    %80 = arith.maximumf %78, %79 : vector<2x32xf32>
    %81 = arith.truncf %80 : vector<2x32xf32> to vector<2x32xbf16>
    %c10 = arith.constant 10 : index
    %c0_43 = arith.constant 0 : index
    %c0_44 = arith.constant 0 : index
    %82 = vector.load %arg1[%c10, %c0_43, %c0_44] : memref<49x2x36xbf16, #tpu.memory_space<vmem>>, vector<1x2x36xbf16>
    %83 = vector.shape_cast %82 : vector<1x2x36xbf16> to vector<2x36xbf16>
    %cst_45 = arith.constant dense<0.000000e+00> : vector<2x32xf32>
    %84 = tpu.matmul %83, %0, %cst_45 {dimension_numbers = #tpu.dot_dimension_numbers<[1], [0], [0], [1], [0, 0, 1, 1], [], []>} : vector<2x36xbf16>, vector<36x32xbf16>, vector<2x32xf32> -> vector<2x32xf32>
    %85 = vector.broadcast %1 : vector<1x32xf32> to vector<2x32xf32>
    %86 = arith.addf %84, %85 : vector<2x32xf32>
    %cst_46 = arith.constant 0.000000e+00 : f32
    %87 = vector.broadcast %cst_46 : f32 to vector<2x32xf32>
    %88 = arith.maximumf %86, %87 : vector<2x32xf32>
    %89 = arith.truncf %88 : vector<2x32xf32> to vector<2x32xbf16>
    %c11 = arith.constant 11 : index
    %c0_47 = arith.constant 0 : index
    %c0_48 = arith.constant 0 : index
    %90 = vector.load %arg1[%c11, %c0_47, %c0_48] : memref<49x2x36xbf16, #tpu.memory_space<vmem>>, vector<1x2x36xbf16>
    %91 = vector.shape_cast %90 : vector<1x2x36xbf16> to vector<2x36xbf16>
    %cst_49 = arith.constant dense<0.000000e+00> : vector<2x32xf32>
    %92 = tpu.matmul %91, %0, %cst_49 {dimension_numbers = #tpu.dot_dimension_numbers<[1], [0], [0], [1], [0, 0, 1, 1], [], []>} : vector<2x36xbf16>, vector<36x32xbf16>, vector<2x32xf32> -> vector<2x32xf32>
    %93 = vector.broadcast %1 : vector<1x32xf32> to vector<2x32xf32>
    %94 = arith.addf %92, %93 : vector<2x32xf32>
    %cst_50 = arith.constant 0.000000e+00 : f32
    %95 = vector.broadcast %cst_50 : f32 to vector<2x32xf32>
    %96 = arith.maximumf %94, %95 : vector<2x32xf32>
    %97 = arith.truncf %96 : vector<2x32xf32> to vector<2x32xbf16>
    %c12 = arith.constant 12 : index
    %c0_51 = arith.constant 0 : index
    %c0_52 = arith.constant 0 : index
    %98 = vector.load %arg1[%c12, %c0_51, %c0_52] : memref<49x2x36xbf16, #tpu.memory_space<vmem>>, vector<1x2x36xbf16>
    %99 = vector.shape_cast %98 : vector<1x2x36xbf16> to vector<2x36xbf16>
    %cst_53 = arith.constant dense<0.000000e+00> : vector<2x32xf32>
    %100 = tpu.matmul %99, %0, %cst_53 {dimension_numbers = #tpu.dot_dimension_numbers<[1], [0], [0], [1], [0, 0, 1, 1], [], []>} : vector<2x36xbf16>, vector<36x32xbf16>, vector<2x32xf32> -> vector<2x32xf32>
    %101 = vector.broadcast %1 : vector<1x32xf32> to vector<2x32xf32>
    %102 = arith.addf %100, %101 : vector<2x32xf32>
    %cst_54 = arith.constant 0.000000e+00 : f32
    %103 = vector.broadcast %cst_54 : f32 to vector<2x32xf32>
    %104 = arith.maximumf %102, %103 : vector<2x32xf32>
    %105 = arith.truncf %104 : vector<2x32xf32> to vector<2x32xbf16>
    %c13 = arith.constant 13 : index
    %c0_55 = arith.constant 0 : index
    %c0_56 = arith.constant 0 : index
    %106 = vector.load %arg1[%c13, %c0_55, %c0_56] : memref<49x2x36xbf16, #tpu.memory_space<vmem>>, vector<1x2x36xbf16>
    %107 = vector.shape_cast %106 : vector<1x2x36xbf16> to vector<2x36xbf16>
    %cst_57 = arith.constant dense<0.000000e+00> : vector<2x32xf32>
    %108 = tpu.matmul %107, %0, %cst_57 {dimension_numbers = #tpu.dot_dimension_numbers<[1], [0], [0], [1], [0, 0, 1, 1], [], []>} : vector<2x36xbf16>, vector<36x32xbf16>, vector<2x32xf32> -> vector<2x32xf32>
    %109 = vector.broadcast %1 : vector<1x32xf32> to vector<2x32xf32>
    %110 = arith.addf %108, %109 : vector<2x32xf32>
    %cst_58 = arith.constant 0.000000e+00 : f32
    %111 = vector.broadcast %cst_58 : f32 to vector<2x32xf32>
    %112 = arith.maximumf %110, %111 : vector<2x32xf32>
    %113 = arith.truncf %112 : vector<2x32xf32> to vector<2x32xbf16>
    %c14 = arith.constant 14 : index
    %c0_59 = arith.constant 0 : index
    %c0_60 = arith.constant 0 : index
    %114 = vector.load %arg1[%c14, %c0_59, %c0_60] : memref<49x2x36xbf16, #tpu.memory_space<vmem>>, vector<1x2x36xbf16>
    %115 = vector.shape_cast %114 : vector<1x2x36xbf16> to vector<2x36xbf16>
    %cst_61 = arith.constant dense<0.000000e+00> : vector<2x32xf32>
    %116 = tpu.matmul %115, %0, %cst_61 {dimension_numbers = #tpu.dot_dimension_numbers<[1], [0], [0], [1], [0, 0, 1, 1], [], []>} : vector<2x36xbf16>, vector<36x32xbf16>, vector<2x32xf32> -> vector<2x32xf32>
    %117 = vector.broadcast %1 : vector<1x32xf32> to vector<2x32xf32>
    %118 = arith.addf %116, %117 : vector<2x32xf32>
    %cst_62 = arith.constant 0.000000e+00 : f32
    %119 = vector.broadcast %cst_62 : f32 to vector<2x32xf32>
    %120 = arith.maximumf %118, %119 : vector<2x32xf32>
    %121 = arith.truncf %120 : vector<2x32xf32> to vector<2x32xbf16>
    %c15 = arith.constant 15 : index
    %c0_63 = arith.constant 0 : index
    %c0_64 = arith.constant 0 : index
    %122 = vector.load %arg1[%c15, %c0_63, %c0_64] : memref<49x2x36xbf16, #tpu.memory_space<vmem>>, vector<1x2x36xbf16>
    %123 = vector.shape_cast %122 : vector<1x2x36xbf16> to vector<2x36xbf16>
    %cst_65 = arith.constant dense<0.000000e+00> : vector<2x32xf32>
    %124 = tpu.matmul %123, %0, %cst_65 {dimension_numbers = #tpu.dot_dimension_numbers<[1], [0], [0], [1], [0, 0, 1, 1], [], []>} : vector<2x36xbf16>, vector<36x32xbf16>, vector<2x32xf32> -> vector<2x32xf32>
    %125 = vector.broadcast %1 : vector<1x32xf32> to vector<2x32xf32>
    %126 = arith.addf %124, %125 : vector<2x32xf32>
    %cst_66 = arith.constant 0.000000e+00 : f32
    %127 = vector.broadcast %cst_66 : f32 to vector<2x32xf32>
    %128 = arith.maximumf %126, %127 : vector<2x32xf32>
    %129 = arith.truncf %128 : vector<2x32xf32> to vector<2x32xbf16>
    %c16 = arith.constant 16 : index
    %c0_67 = arith.constant 0 : index
    %c0_68 = arith.constant 0 : index
    %130 = vector.load %arg1[%c16, %c0_67, %c0_68] : memref<49x2x36xbf16, #tpu.memory_space<vmem>>, vector<1x2x36xbf16>
    %131 = vector.shape_cast %130 : vector<1x2x36xbf16> to vector<2x36xbf16>
    %cst_69 = arith.constant dense<0.000000e+00> : vector<2x32xf32>
    %132 = tpu.matmul %131, %0, %cst_69 {dimension_numbers = #tpu.dot_dimension_numbers<[1], [0], [0], [1], [0, 0, 1, 1], [], []>} : vector<2x36xbf16>, vector<36x32xbf16>, vector<2x32xf32> -> vector<2x32xf32>
    %133 = vector.broadcast %1 : vector<1x32xf32> to vector<2x32xf32>
    %134 = arith.addf %132, %133 : vector<2x32xf32>
    %cst_70 = arith.constant 0.000000e+00 : f32
    %135 = vector.broadcast %cst_70 : f32 to vector<2x32xf32>
    %136 = arith.maximumf %134, %135 : vector<2x32xf32>
    %137 = arith.truncf %136 : vector<2x32xf32> to vector<2x32xbf16>
    %c17 = arith.constant 17 : index
    %c0_71 = arith.constant 0 : index
    %c0_72 = arith.constant 0 : index
    %138 = vector.load %arg1[%c17, %c0_71, %c0_72] : memref<49x2x36xbf16, #tpu.memory_space<vmem>>, vector<1x2x36xbf16>
    %139 = vector.shape_cast %138 : vector<1x2x36xbf16> to vector<2x36xbf16>
    %cst_73 = arith.constant dense<0.000000e+00> : vector<2x32xf32>
    %140 = tpu.matmul %139, %0, %cst_73 {dimension_numbers = #tpu.dot_dimension_numbers<[1], [0], [0], [1], [0, 0, 1, 1], [], []>} : vector<2x36xbf16>, vector<36x32xbf16>, vector<2x32xf32> -> vector<2x32xf32>
    %141 = vector.broadcast %1 : vector<1x32xf32> to vector<2x32xf32>
    %142 = arith.addf %140, %141 : vector<2x32xf32>
    %cst_74 = arith.constant 0.000000e+00 : f32
    %143 = vector.broadcast %cst_74 : f32 to vector<2x32xf32>
    %144 = arith.maximumf %142, %143 : vector<2x32xf32>
    %145 = arith.truncf %144 : vector<2x32xf32> to vector<2x32xbf16>
    %c18 = arith.constant 18 : index
    %c0_75 = arith.constant 0 : index
    %c0_76 = arith.constant 0 : index
    %146 = vector.load %arg1[%c18, %c0_75, %c0_76] : memref<49x2x36xbf16, #tpu.memory_space<vmem>>, vector<1x2x36xbf16>
    %147 = vector.shape_cast %146 : vector<1x2x36xbf16> to vector<2x36xbf16>
    %cst_77 = arith.constant dense<0.000000e+00> : vector<2x32xf32>
    %148 = tpu.matmul %147, %0, %cst_77 {dimension_numbers = #tpu.dot_dimension_numbers<[1], [0], [0], [1], [0, 0, 1, 1], [], []>} : vector<2x36xbf16>, vector<36x32xbf16>, vector<2x32xf32> -> vector<2x32xf32>
    %149 = vector.broadcast %1 : vector<1x32xf32> to vector<2x32xf32>
    %150 = arith.addf %148, %149 : vector<2x32xf32>
    %cst_78 = arith.constant 0.000000e+00 : f32
    %151 = vector.broadcast %cst_78 : f32 to vector<2x32xf32>
    %152 = arith.maximumf %150, %151 : vector<2x32xf32>
    %153 = arith.truncf %152 : vector<2x32xf32> to vector<2x32xbf16>
    %c19 = arith.constant 19 : index
    %c0_79 = arith.constant 0 : index
    %c0_80 = arith.constant 0 : index
    %154 = vector.load %arg1[%c19, %c0_79, %c0_80] : memref<49x2x36xbf16, #tpu.memory_space<vmem>>, vector<1x2x36xbf16>
    %155 = vector.shape_cast %154 : vector<1x2x36xbf16> to vector<2x36xbf16>
    %cst_81 = arith.constant dense<0.000000e+00> : vector<2x32xf32>
    %156 = tpu.matmul %155, %0, %cst_81 {dimension_numbers = #tpu.dot_dimension_numbers<[1], [0], [0], [1], [0, 0, 1, 1], [], []>} : vector<2x36xbf16>, vector<36x32xbf16>, vector<2x32xf32> -> vector<2x32xf32>
    %157 = vector.broadcast %1 : vector<1x32xf32> to vector<2x32xf32>
    %158 = arith.addf %156, %157 : vector<2x32xf32>
    %cst_82 = arith.constant 0.000000e+00 : f32
    %159 = vector.broadcast %cst_82 : f32 to vector<2x32xf32>
    %160 = arith.maximumf %158, %159 : vector<2x32xf32>
    %161 = arith.truncf %160 : vector<2x32xf32> to vector<2x32xbf16>
    %c20 = arith.constant 20 : index
    %c0_83 = arith.constant 0 : index
    %c0_84 = arith.constant 0 : index
    %162 = vector.load %arg1[%c20, %c0_83, %c0_84] : memref<49x2x36xbf16, #tpu.memory_space<vmem>>, vector<1x2x36xbf16>
    %163 = vector.shape_cast %162 : vector<1x2x36xbf16> to vector<2x36xbf16>
    %cst_85 = arith.constant dense<0.000000e+00> : vector<2x32xf32>
    %164 = tpu.matmul %163, %0, %cst_85 {dimension_numbers = #tpu.dot_dimension_numbers<[1], [0], [0], [1], [0, 0, 1, 1], [], []>} : vector<2x36xbf16>, vector<36x32xbf16>, vector<2x32xf32> -> vector<2x32xf32>
    %165 = vector.broadcast %1 : vector<1x32xf32> to vector<2x32xf32>
    %166 = arith.addf %164, %165 : vector<2x32xf32>
    %cst_86 = arith.constant 0.000000e+00 : f32
    %167 = vector.broadcast %cst_86 : f32 to vector<2x32xf32>
    %168 = arith.maximumf %166, %167 : vector<2x32xf32>
    %169 = arith.truncf %168 : vector<2x32xf32> to vector<2x32xbf16>
    %c21 = arith.constant 21 : index
    %c0_87 = arith.constant 0 : index
    %c0_88 = arith.constant 0 : index
    %170 = vector.load %arg1[%c21, %c0_87, %c0_88] : memref<49x2x36xbf16, #tpu.memory_space<vmem>>, vector<1x2x36xbf16>
    %171 = vector.shape_cast %170 : vector<1x2x36xbf16> to vector<2x36xbf16>
    %cst_89 = arith.constant dense<0.000000e+00> : vector<2x32xf32>
    %172 = tpu.matmul %171, %0, %cst_89 {dimension_numbers = #tpu.dot_dimension_numbers<[1], [0], [0], [1], [0, 0, 1, 1], [], []>} : vector<2x36xbf16>, vector<36x32xbf16>, vector<2x32xf32> -> vector<2x32xf32>
    %173 = vector.broadcast %1 : vector<1x32xf32> to vector<2x32xf32>
    %174 = arith.addf %172, %173 : vector<2x32xf32>
    %cst_90 = arith.constant 0.000000e+00 : f32
    %175 = vector.broadcast %cst_90 : f32 to vector<2x32xf32>
    %176 = arith.maximumf %174, %175 : vector<2x32xf32>
    %177 = arith.truncf %176 : vector<2x32xf32> to vector<2x32xbf16>
    %c22 = arith.constant 22 : index
    %c0_91 = arith.constant 0 : index
    %c0_92 = arith.constant 0 : index
    %178 = vector.load %arg1[%c22, %c0_91, %c0_92] : memref<49x2x36xbf16, #tpu.memory_space<vmem>>, vector<1x2x36xbf16>
    %179 = vector.shape_cast %178 : vector<1x2x36xbf16> to vector<2x36xbf16>
    %cst_93 = arith.constant dense<0.000000e+00> : vector<2x32xf32>
    %180 = tpu.matmul %179, %0, %cst_93 {dimension_numbers = #tpu.dot_dimension_numbers<[1], [0], [0], [1], [0, 0, 1, 1], [], []>} : vector<2x36xbf16>, vector<36x32xbf16>, vector<2x32xf32> -> vector<2x32xf32>
    %181 = vector.broadcast %1 : vector<1x32xf32> to vector<2x32xf32>
    %182 = arith.addf %180, %181 : vector<2x32xf32>
    %cst_94 = arith.constant 0.000000e+00 : f32
    %183 = vector.broadcast %cst_94 : f32 to vector<2x32xf32>
    %184 = arith.maximumf %182, %183 : vector<2x32xf32>
    %185 = arith.truncf %184 : vector<2x32xf32> to vector<2x32xbf16>
    %c23 = arith.constant 23 : index
    %c0_95 = arith.constant 0 : index
    %c0_96 = arith.constant 0 : index
    %186 = vector.load %arg1[%c23, %c0_95, %c0_96] : memref<49x2x36xbf16, #tpu.memory_space<vmem>>, vector<1x2x36xbf16>
    %187 = vector.shape_cast %186 : vector<1x2x36xbf16> to vector<2x36xbf16>
    %cst_97 = arith.constant dense<0.000000e+00> : vector<2x32xf32>
    %188 = tpu.matmul %187, %0, %cst_97 {dimension_numbers = #tpu.dot_dimension_numbers<[1], [0], [0], [1], [0, 0, 1, 1], [], []>} : vector<2x36xbf16>, vector<36x32xbf16>, vector<2x32xf32> -> vector<2x32xf32>
    %189 = vector.broadcast %1 : vector<1x32xf32> to vector<2x32xf32>
    %190 = arith.addf %188, %189 : vector<2x32xf32>
    %cst_98 = arith.constant 0.000000e+00 : f32
    %191 = vector.broadcast %cst_98 : f32 to vector<2x32xf32>
    %192 = arith.maximumf %190, %191 : vector<2x32xf32>
    %193 = arith.truncf %192 : vector<2x32xf32> to vector<2x32xbf16>
    %c24 = arith.constant 24 : index
    %c0_99 = arith.constant 0 : index
    %c0_100 = arith.constant 0 : index
    %194 = vector.load %arg1[%c24, %c0_99, %c0_100] : memref<49x2x36xbf16, #tpu.memory_space<vmem>>, vector<1x2x36xbf16>
    %195 = vector.shape_cast %194 : vector<1x2x36xbf16> to vector<2x36xbf16>
    %cst_101 = arith.constant dense<0.000000e+00> : vector<2x32xf32>
    %196 = tpu.matmul %195, %0, %cst_101 {dimension_numbers = #tpu.dot_dimension_numbers<[1], [0], [0], [1], [0, 0, 1, 1], [], []>} : vector<2x36xbf16>, vector<36x32xbf16>, vector<2x32xf32> -> vector<2x32xf32>
    %197 = vector.broadcast %1 : vector<1x32xf32> to vector<2x32xf32>
    %198 = arith.addf %196, %197 : vector<2x32xf32>
    %cst_102 = arith.constant 0.000000e+00 : f32
    %199 = vector.broadcast %cst_102 : f32 to vector<2x32xf32>
    %200 = arith.maximumf %198, %199 : vector<2x32xf32>
    %201 = arith.truncf %200 : vector<2x32xf32> to vector<2x32xbf16>
    %c25 = arith.constant 25 : index
    %c0_103 = arith.constant 0 : index
    %c0_104 = arith.constant 0 : index
    %202 = vector.load %arg1[%c25, %c0_103, %c0_104] : memref<49x2x36xbf16, #tpu.memory_space<vmem>>, vector<1x2x36xbf16>
    %203 = vector.shape_cast %202 : vector<1x2x36xbf16> to vector<2x36xbf16>
    %cst_105 = arith.constant dense<0.000000e+00> : vector<2x32xf32>
    %204 = tpu.matmul %203, %0, %cst_105 {dimension_numbers = #tpu.dot_dimension_numbers<[1], [0], [0], [1], [0, 0, 1, 1], [], []>} : vector<2x36xbf16>, vector<36x32xbf16>, vector<2x32xf32> -> vector<2x32xf32>
    %205 = vector.broadcast %1 : vector<1x32xf32> to vector<2x32xf32>
    %206 = arith.addf %204, %205 : vector<2x32xf32>
    %cst_106 = arith.constant 0.000000e+00 : f32
    %207 = vector.broadcast %cst_106 : f32 to vector<2x32xf32>
    %208 = arith.maximumf %206, %207 : vector<2x32xf32>
    %209 = arith.truncf %208 : vector<2x32xf32> to vector<2x32xbf16>
    %c26 = arith.constant 26 : index
    %c0_107 = arith.constant 0 : index
    %c0_108 = arith.constant 0 : index
    %210 = vector.load %arg1[%c26, %c0_107, %c0_108] : memref<49x2x36xbf16, #tpu.memory_space<vmem>>, vector<1x2x36xbf16>
    %211 = vector.shape_cast %210 : vector<1x2x36xbf16> to vector<2x36xbf16>
    %cst_109 = arith.constant dense<0.000000e+00> : vector<2x32xf32>
    %212 = tpu.matmul %211, %0, %cst_109 {dimension_numbers = #tpu.dot_dimension_numbers<[1], [0], [0], [1], [0, 0, 1, 1], [], []>} : vector<2x36xbf16>, vector<36x32xbf16>, vector<2x32xf32> -> vector<2x32xf32>
    %213 = vector.broadcast %1 : vector<1x32xf32> to vector<2x32xf32>
    %214 = arith.addf %212, %213 : vector<2x32xf32>
    %cst_110 = arith.constant 0.000000e+00 : f32
    %215 = vector.broadcast %cst_110 : f32 to vector<2x32xf32>
    %216 = arith.maximumf %214, %215 : vector<2x32xf32>
    %217 = arith.truncf %216 : vector<2x32xf32> to vector<2x32xbf16>
    %c27 = arith.constant 27 : index
    %c0_111 = arith.constant 0 : index
    %c0_112 = arith.constant 0 : index
    %218 = vector.load %arg1[%c27, %c0_111, %c0_112] : memref<49x2x36xbf16, #tpu.memory_space<vmem>>, vector<1x2x36xbf16>
    %219 = vector.shape_cast %218 : vector<1x2x36xbf16> to vector<2x36xbf16>
    %cst_113 = arith.constant dense<0.000000e+00> : vector<2x32xf32>
    %220 = tpu.matmul %219, %0, %cst_113 {dimension_numbers = #tpu.dot_dimension_numbers<[1], [0], [0], [1], [0, 0, 1, 1], [], []>} : vector<2x36xbf16>, vector<36x32xbf16>, vector<2x32xf32> -> vector<2x32xf32>
    %221 = vector.broadcast %1 : vector<1x32xf32> to vector<2x32xf32>
    %222 = arith.addf %220, %221 : vector<2x32xf32>
    %cst_114 = arith.constant 0.000000e+00 : f32
    %223 = vector.broadcast %cst_114 : f32 to vector<2x32xf32>
    %224 = arith.maximumf %222, %223 : vector<2x32xf32>
    %225 = arith.truncf %224 : vector<2x32xf32> to vector<2x32xbf16>
    %c28 = arith.constant 28 : index
    %c0_115 = arith.constant 0 : index
    %c0_116 = arith.constant 0 : index
    %226 = vector.load %arg1[%c28, %c0_115, %c0_116] : memref<49x2x36xbf16, #tpu.memory_space<vmem>>, vector<1x2x36xbf16>
    %227 = vector.shape_cast %226 : vector<1x2x36xbf16> to vector<2x36xbf16>
    %cst_117 = arith.constant dense<0.000000e+00> : vector<2x32xf32>
    %228 = tpu.matmul %227, %0, %cst_117 {dimension_numbers = #tpu.dot_dimension_numbers<[1], [0], [0], [1], [0, 0, 1, 1], [], []>} : vector<2x36xbf16>, vector<36x32xbf16>, vector<2x32xf32> -> vector<2x32xf32>
    %229 = vector.broadcast %1 : vector<1x32xf32> to vector<2x32xf32>
    %230 = arith.addf %228, %229 : vector<2x32xf32>
    %cst_118 = arith.constant 0.000000e+00 : f32
    %231 = vector.broadcast %cst_118 : f32 to vector<2x32xf32>
    %232 = arith.maximumf %230, %231 : vector<2x32xf32>
    %233 = arith.truncf %232 : vector<2x32xf32> to vector<2x32xbf16>
    %c29 = arith.constant 29 : index
    %c0_119 = arith.constant 0 : index
    %c0_120 = arith.constant 0 : index
    %234 = vector.load %arg1[%c29, %c0_119, %c0_120] : memref<49x2x36xbf16, #tpu.memory_space<vmem>>, vector<1x2x36xbf16>
    %235 = vector.shape_cast %234 : vector<1x2x36xbf16> to vector<2x36xbf16>
    %cst_121 = arith.constant dense<0.000000e+00> : vector<2x32xf32>
    %236 = tpu.matmul %235, %0, %cst_121 {dimension_numbers = #tpu.dot_dimension_numbers<[1], [0], [0], [1], [0, 0, 1, 1], [], []>} : vector<2x36xbf16>, vector<36x32xbf16>, vector<2x32xf32> -> vector<2x32xf32>
    %237 = vector.broadcast %1 : vector<1x32xf32> to vector<2x32xf32>
    %238 = arith.addf %236, %237 : vector<2x32xf32>
    %cst_122 = arith.constant 0.000000e+00 : f32
    %239 = vector.broadcast %cst_122 : f32 to vector<2x32xf32>
    %240 = arith.maximumf %238, %239 : vector<2x32xf32>
    %241 = arith.truncf %240 : vector<2x32xf32> to vector<2x32xbf16>
    %c30 = arith.constant 30 : index
    %c0_123 = arith.constant 0 : index
    %c0_124 = arith.constant 0 : index
    %242 = vector.load %arg1[%c30, %c0_123, %c0_124] : memref<49x2x36xbf16, #tpu.memory_space<vmem>>, vector<1x2x36xbf16>
    %243 = vector.shape_cast %242 : vector<1x2x36xbf16> to vector<2x36xbf16>
    %cst_125 = arith.constant dense<0.000000e+00> : vector<2x32xf32>
    %244 = tpu.matmul %243, %0, %cst_125 {dimension_numbers = #tpu.dot_dimension_numbers<[1], [0], [0], [1], [0, 0, 1, 1], [], []>} : vector<2x36xbf16>, vector<36x32xbf16>, vector<2x32xf32> -> vector<2x32xf32>
    %245 = vector.broadcast %1 : vector<1x32xf32> to vector<2x32xf32>
    %246 = arith.addf %244, %245 : vector<2x32xf32>
    %cst_126 = arith.constant 0.000000e+00 : f32
    %247 = vector.broadcast %cst_126 : f32 to vector<2x32xf32>
    %248 = arith.maximumf %246, %247 : vector<2x32xf32>
    %249 = arith.truncf %248 : vector<2x32xf32> to vector<2x32xbf16>
    %c31 = arith.constant 31 : index
    %c0_127 = arith.constant 0 : index
    %c0_128 = arith.constant 0 : index
    %250 = vector.load %arg1[%c31, %c0_127, %c0_128] : memref<49x2x36xbf16, #tpu.memory_space<vmem>>, vector<1x2x36xbf16>
    %251 = vector.shape_cast %250 : vector<1x2x36xbf16> to vector<2x36xbf16>
    %cst_129 = arith.constant dense<0.000000e+00> : vector<2x32xf32>
    %252 = tpu.matmul %251, %0, %cst_129 {dimension_numbers = #tpu.dot_dimension_numbers<[1], [0], [0], [1], [0, 0, 1, 1], [], []>} : vector<2x36xbf16>, vector<36x32xbf16>, vector<2x32xf32> -> vector<2x32xf32>
    %253 = vector.broadcast %1 : vector<1x32xf32> to vector<2x32xf32>
    %254 = arith.addf %252, %253 : vector<2x32xf32>
    %cst_130 = arith.constant 0.000000e+00 : f32
    %255 = vector.broadcast %cst_130 : f32 to vector<2x32xf32>
    %256 = arith.maximumf %254, %255 : vector<2x32xf32>
    %257 = arith.truncf %256 : vector<2x32xf32> to vector<2x32xbf16>
    %c32 = arith.constant 32 : index
    %c0_131 = arith.constant 0 : index
    %c0_132 = arith.constant 0 : index
    %258 = vector.load %arg1[%c32, %c0_131, %c0_132] : memref<49x2x36xbf16, #tpu.memory_space<vmem>>, vector<1x2x36xbf16>
    %259 = vector.shape_cast %258 : vector<1x2x36xbf16> to vector<2x36xbf16>
    %cst_133 = arith.constant dense<0.000000e+00> : vector<2x32xf32>
    %260 = tpu.matmul %259, %0, %cst_133 {dimension_numbers = #tpu.dot_dimension_numbers<[1], [0], [0], [1], [0, 0, 1, 1], [], []>} : vector<2x36xbf16>, vector<36x32xbf16>, vector<2x32xf32> -> vector<2x32xf32>
    %261 = vector.broadcast %1 : vector<1x32xf32> to vector<2x32xf32>
    %262 = arith.addf %260, %261 : vector<2x32xf32>
    %cst_134 = arith.constant 0.000000e+00 : f32
    %263 = vector.broadcast %cst_134 : f32 to vector<2x32xf32>
    %264 = arith.maximumf %262, %263 : vector<2x32xf32>
    %265 = arith.truncf %264 : vector<2x32xf32> to vector<2x32xbf16>
    %c33 = arith.constant 33 : index
    %c0_135 = arith.constant 0 : index
    %c0_136 = arith.constant 0 : index
    %266 = vector.load %arg1[%c33, %c0_135, %c0_136] : memref<49x2x36xbf16, #tpu.memory_space<vmem>>, vector<1x2x36xbf16>
    %267 = vector.shape_cast %266 : vector<1x2x36xbf16> to vector<2x36xbf16>
    %cst_137 = arith.constant dense<0.000000e+00> : vector<2x32xf32>
    %268 = tpu.matmul %267, %0, %cst_137 {dimension_numbers = #tpu.dot_dimension_numbers<[1], [0], [0], [1], [0, 0, 1, 1], [], []>} : vector<2x36xbf16>, vector<36x32xbf16>, vector<2x32xf32> -> vector<2x32xf32>
    %269 = vector.broadcast %1 : vector<1x32xf32> to vector<2x32xf32>
    %270 = arith.addf %268, %269 : vector<2x32xf32>
    %cst_138 = arith.constant 0.000000e+00 : f32
    %271 = vector.broadcast %cst_138 : f32 to vector<2x32xf32>
    %272 = arith.maximumf %270, %271 : vector<2x32xf32>
    %273 = arith.truncf %272 : vector<2x32xf32> to vector<2x32xbf16>
    %c34 = arith.constant 34 : index
    %c0_139 = arith.constant 0 : index
    %c0_140 = arith.constant 0 : index
    %274 = vector.load %arg1[%c34, %c0_139, %c0_140] : memref<49x2x36xbf16, #tpu.memory_space<vmem>>, vector<1x2x36xbf16>
    %275 = vector.shape_cast %274 : vector<1x2x36xbf16> to vector<2x36xbf16>
    %cst_141 = arith.constant dense<0.000000e+00> : vector<2x32xf32>
    %276 = tpu.matmul %275, %0, %cst_141 {dimension_numbers = #tpu.dot_dimension_numbers<[1], [0], [0], [1], [0, 0, 1, 1], [], []>} : vector<2x36xbf16>, vector<36x32xbf16>, vector<2x32xf32> -> vector<2x32xf32>
    %277 = vector.broadcast %1 : vector<1x32xf32> to vector<2x32xf32>
    %278 = arith.addf %276, %277 : vector<2x32xf32>
    %cst_142 = arith.constant 0.000000e+00 : f32
    %279 = vector.broadcast %cst_142 : f32 to vector<2x32xf32>
    %280 = arith.maximumf %278, %279 : vector<2x32xf32>
    %281 = arith.truncf %280 : vector<2x32xf32> to vector<2x32xbf16>
    %c35 = arith.constant 35 : index
    %c0_143 = arith.constant 0 : index
    %c0_144 = arith.constant 0 : index
    %282 = vector.load %arg1[%c35, %c0_143, %c0_144] : memref<49x2x36xbf16, #tpu.memory_space<vmem>>, vector<1x2x36xbf16>
    %283 = vector.shape_cast %282 : vector<1x2x36xbf16> to vector<2x36xbf16>
    %cst_145 = arith.constant dense<0.000000e+00> : vector<2x32xf32>
    %284 = tpu.matmul %283, %0, %cst_145 {dimension_numbers = #tpu.dot_dimension_numbers<[1], [0], [0], [1], [0, 0, 1, 1], [], []>} : vector<2x36xbf16>, vector<36x32xbf16>, vector<2x32xf32> -> vector<2x32xf32>
    %285 = vector.broadcast %1 : vector<1x32xf32> to vector<2x32xf32>
    %286 = arith.addf %284, %285 : vector<2x32xf32>
    %cst_146 = arith.constant 0.000000e+00 : f32
    %287 = vector.broadcast %cst_146 : f32 to vector<2x32xf32>
    %288 = arith.maximumf %286, %287 : vector<2x32xf32>
    %289 = arith.truncf %288 : vector<2x32xf32> to vector<2x32xbf16>
    %c36 = arith.constant 36 : index
    %c0_147 = arith.constant 0 : index
    %c0_148 = arith.constant 0 : index
    %290 = vector.load %arg1[%c36, %c0_147, %c0_148] : memref<49x2x36xbf16, #tpu.memory_space<vmem>>, vector<1x2x36xbf16>
    %291 = vector.shape_cast %290 : vector<1x2x36xbf16> to vector<2x36xbf16>
    %cst_149 = arith.constant dense<0.000000e+00> : vector<2x32xf32>
    %292 = tpu.matmul %291, %0, %cst_149 {dimension_numbers = #tpu.dot_dimension_numbers<[1], [0], [0], [1], [0, 0, 1, 1], [], []>} : vector<2x36xbf16>, vector<36x32xbf16>, vector<2x32xf32> -> vector<2x32xf32>
    %293 = vector.broadcast %1 : vector<1x32xf32> to vector<2x32xf32>
    %294 = arith.addf %292, %293 : vector<2x32xf32>
    %cst_150 = arith.constant 0.000000e+00 : f32
    %295 = vector.broadcast %cst_150 : f32 to vector<2x32xf32>
    %296 = arith.maximumf %294, %295 : vector<2x32xf32>
    %297 = arith.truncf %296 : vector<2x32xf32> to vector<2x32xbf16>
    %c37 = arith.constant 37 : index
    %c0_151 = arith.constant 0 : index
    %c0_152 = arith.constant 0 : index
    %298 = vector.load %arg1[%c37, %c0_151, %c0_152] : memref<49x2x36xbf16, #tpu.memory_space<vmem>>, vector<1x2x36xbf16>
    %299 = vector.shape_cast %298 : vector<1x2x36xbf16> to vector<2x36xbf16>
    %cst_153 = arith.constant dense<0.000000e+00> : vector<2x32xf32>
    %300 = tpu.matmul %299, %0, %cst_153 {dimension_numbers = #tpu.dot_dimension_numbers<[1], [0], [0], [1], [0, 0, 1, 1], [], []>} : vector<2x36xbf16>, vector<36x32xbf16>, vector<2x32xf32> -> vector<2x32xf32>
    %301 = vector.broadcast %1 : vector<1x32xf32> to vector<2x32xf32>
    %302 = arith.addf %300, %301 : vector<2x32xf32>
    %cst_154 = arith.constant 0.000000e+00 : f32
    %303 = vector.broadcast %cst_154 : f32 to vector<2x32xf32>
    %304 = arith.maximumf %302, %303 : vector<2x32xf32>
    %305 = arith.truncf %304 : vector<2x32xf32> to vector<2x32xbf16>
    %c38 = arith.constant 38 : index
    %c0_155 = arith.constant 0 : index
    %c0_156 = arith.constant 0 : index
    %306 = vector.load %arg1[%c38, %c0_155, %c0_156] : memref<49x2x36xbf16, #tpu.memory_space<vmem>>, vector<1x2x36xbf16>
    %307 = vector.shape_cast %306 : vector<1x2x36xbf16> to vector<2x36xbf16>
    %cst_157 = arith.constant dense<0.000000e+00> : vector<2x32xf32>
    %308 = tpu.matmul %307, %0, %cst_157 {dimension_numbers = #tpu.dot_dimension_numbers<[1], [0], [0], [1], [0, 0, 1, 1], [], []>} : vector<2x36xbf16>, vector<36x32xbf16>, vector<2x32xf32> -> vector<2x32xf32>
    %309 = vector.broadcast %1 : vector<1x32xf32> to vector<2x32xf32>
    %310 = arith.addf %308, %309 : vector<2x32xf32>
    %cst_158 = arith.constant 0.000000e+00 : f32
    %311 = vector.broadcast %cst_158 : f32 to vector<2x32xf32>
    %312 = arith.maximumf %310, %311 : vector<2x32xf32>
    %313 = arith.truncf %312 : vector<2x32xf32> to vector<2x32xbf16>
    %c39 = arith.constant 39 : index
    %c0_159 = arith.constant 0 : index
    %c0_160 = arith.constant 0 : index
    %314 = vector.load %arg1[%c39, %c0_159, %c0_160] : memref<49x2x36xbf16, #tpu.memory_space<vmem>>, vector<1x2x36xbf16>
    %315 = vector.shape_cast %314 : vector<1x2x36xbf16> to vector<2x36xbf16>
    %cst_161 = arith.constant dense<0.000000e+00> : vector<2x32xf32>
    %316 = tpu.matmul %315, %0, %cst_161 {dimension_numbers = #tpu.dot_dimension_numbers<[1], [0], [0], [1], [0, 0, 1, 1], [], []>} : vector<2x36xbf16>, vector<36x32xbf16>, vector<2x32xf32> -> vector<2x32xf32>
    %317 = vector.broadcast %1 : vector<1x32xf32> to vector<2x32xf32>
    %318 = arith.addf %316, %317 : vector<2x32xf32>
    %cst_162 = arith.constant 0.000000e+00 : f32
    %319 = vector.broadcast %cst_162 : f32 to vector<2x32xf32>
    %320 = arith.maximumf %318, %319 : vector<2x32xf32>
    %321 = arith.truncf %320 : vector<2x32xf32> to vector<2x32xbf16>
    %c40 = arith.constant 40 : index
    %c0_163 = arith.constant 0 : index
    %c0_164 = arith.constant 0 : index
    %322 = vector.load %arg1[%c40, %c0_163, %c0_164] : memref<49x2x36xbf16, #tpu.memory_space<vmem>>, vector<1x2x36xbf16>
    %323 = vector.shape_cast %322 : vector<1x2x36xbf16> to vector<2x36xbf16>
    %cst_165 = arith.constant dense<0.000000e+00> : vector<2x32xf32>
    %324 = tpu.matmul %323, %0, %cst_165 {dimension_numbers = #tpu.dot_dimension_numbers<[1], [0], [0], [1], [0, 0, 1, 1], [], []>} : vector<2x36xbf16>, vector<36x32xbf16>, vector<2x32xf32> -> vector<2x32xf32>
    %325 = vector.broadcast %1 : vector<1x32xf32> to vector<2x32xf32>
    %326 = arith.addf %324, %325 : vector<2x32xf32>
    %cst_166 = arith.constant 0.000000e+00 : f32
    %327 = vector.broadcast %cst_166 : f32 to vector<2x32xf32>
    %328 = arith.maximumf %326, %327 : vector<2x32xf32>
    %329 = arith.truncf %328 : vector<2x32xf32> to vector<2x32xbf16>
    %c41 = arith.constant 41 : index
    %c0_167 = arith.constant 0 : index
    %c0_168 = arith.constant 0 : index
    %330 = vector.load %arg1[%c41, %c0_167, %c0_168] : memref<49x2x36xbf16, #tpu.memory_space<vmem>>, vector<1x2x36xbf16>
    %331 = vector.shape_cast %330 : vector<1x2x36xbf16> to vector<2x36xbf16>
    %cst_169 = arith.constant dense<0.000000e+00> : vector<2x32xf32>
    %332 = tpu.matmul %331, %0, %cst_169 {dimension_numbers = #tpu.dot_dimension_numbers<[1], [0], [0], [1], [0, 0, 1, 1], [], []>} : vector<2x36xbf16>, vector<36x32xbf16>, vector<2x32xf32> -> vector<2x32xf32>
    %333 = vector.broadcast %1 : vector<1x32xf32> to vector<2x32xf32>
    %334 = arith.addf %332, %333 : vector<2x32xf32>
    %cst_170 = arith.constant 0.000000e+00 : f32
    %335 = vector.broadcast %cst_170 : f32 to vector<2x32xf32>
    %336 = arith.maximumf %334, %335 : vector<2x32xf32>
    %337 = arith.truncf %336 : vector<2x32xf32> to vector<2x32xbf16>
    %c42 = arith.constant 42 : index
    %c0_171 = arith.constant 0 : index
    %c0_172 = arith.constant 0 : index
    %338 = vector.load %arg1[%c42, %c0_171, %c0_172] : memref<49x2x36xbf16, #tpu.memory_space<vmem>>, vector<1x2x36xbf16>
    %339 = vector.shape_cast %338 : vector<1x2x36xbf16> to vector<2x36xbf16>
    %cst_173 = arith.constant dense<0.000000e+00> : vector<2x32xf32>
    %340 = tpu.matmul %339, %0, %cst_173 {dimension_numbers = #tpu.dot_dimension_numbers<[1], [0], [0], [1], [0, 0, 1, 1], [], []>} : vector<2x36xbf16>, vector<36x32xbf16>, vector<2x32xf32> -> vector<2x32xf32>
    %341 = vector.broadcast %1 : vector<1x32xf32> to vector<2x32xf32>
    %342 = arith.addf %340, %341 : vector<2x32xf32>
    %cst_174 = arith.constant 0.000000e+00 : f32
    %343 = vector.broadcast %cst_174 : f32 to vector<2x32xf32>
    %344 = arith.maximumf %342, %343 : vector<2x32xf32>
    %345 = arith.truncf %344 : vector<2x32xf32> to vector<2x32xbf16>
    %c43 = arith.constant 43 : index
    %c0_175 = arith.constant 0 : index
    %c0_176 = arith.constant 0 : index
    %346 = vector.load %arg1[%c43, %c0_175, %c0_176] : memref<49x2x36xbf16, #tpu.memory_space<vmem>>, vector<1x2x36xbf16>
    %347 = vector.shape_cast %346 : vector<1x2x36xbf16> to vector<2x36xbf16>
    %cst_177 = arith.constant dense<0.000000e+00> : vector<2x32xf32>
    %348 = tpu.matmul %347, %0, %cst_177 {dimension_numbers = #tpu.dot_dimension_numbers<[1], [0], [0], [1], [0, 0, 1, 1], [], []>} : vector<2x36xbf16>, vector<36x32xbf16>, vector<2x32xf32> -> vector<2x32xf32>
    %349 = vector.broadcast %1 : vector<1x32xf32> to vector<2x32xf32>
    %350 = arith.addf %348, %349 : vector<2x32xf32>
    %cst_178 = arith.constant 0.000000e+00 : f32
    %351 = vector.broadcast %cst_178 : f32 to vector<2x32xf32>
    %352 = arith.maximumf %350, %351 : vector<2x32xf32>
    %353 = arith.truncf %352 : vector<2x32xf32> to vector<2x32xbf16>
    %c44 = arith.constant 44 : index
    %c0_179 = arith.constant 0 : index
    %c0_180 = arith.constant 0 : index
    %354 = vector.load %arg1[%c44, %c0_179, %c0_180] : memref<49x2x36xbf16, #tpu.memory_space<vmem>>, vector<1x2x36xbf16>
    %355 = vector.shape_cast %354 : vector<1x2x36xbf16> to vector<2x36xbf16>
    %cst_181 = arith.constant dense<0.000000e+00> : vector<2x32xf32>
    %356 = tpu.matmul %355, %0, %cst_181 {dimension_numbers = #tpu.dot_dimension_numbers<[1], [0], [0], [1], [0, 0, 1, 1], [], []>} : vector<2x36xbf16>, vector<36x32xbf16>, vector<2x32xf32> -> vector<2x32xf32>
    %357 = vector.broadcast %1 : vector<1x32xf32> to vector<2x32xf32>
    %358 = arith.addf %356, %357 : vector<2x32xf32>
    %cst_182 = arith.constant 0.000000e+00 : f32
    %359 = vector.broadcast %cst_182 : f32 to vector<2x32xf32>
    %360 = arith.maximumf %358, %359 : vector<2x32xf32>
    %361 = arith.truncf %360 : vector<2x32xf32> to vector<2x32xbf16>
    %c45 = arith.constant 45 : index
    %c0_183 = arith.constant 0 : index
    %c0_184 = arith.constant 0 : index
    %362 = vector.load %arg1[%c45, %c0_183, %c0_184] : memref<49x2x36xbf16, #tpu.memory_space<vmem>>, vector<1x2x36xbf16>
    %363 = vector.shape_cast %362 : vector<1x2x36xbf16> to vector<2x36xbf16>
    %cst_185 = arith.constant dense<0.000000e+00> : vector<2x32xf32>
    %364 = tpu.matmul %363, %0, %cst_185 {dimension_numbers = #tpu.dot_dimension_numbers<[1], [0], [0], [1], [0, 0, 1, 1], [], []>} : vector<2x36xbf16>, vector<36x32xbf16>, vector<2x32xf32> -> vector<2x32xf32>
    %365 = vector.broadcast %1 : vector<1x32xf32> to vector<2x32xf32>
    %366 = arith.addf %364, %365 : vector<2x32xf32>
    %cst_186 = arith.constant 0.000000e+00 : f32
    %367 = vector.broadcast %cst_186 : f32 to vector<2x32xf32>
    %368 = arith.maximumf %366, %367 : vector<2x32xf32>
    %369 = arith.truncf %368 : vector<2x32xf32> to vector<2x32xbf16>
    %c46 = arith.constant 46 : index
    %c0_187 = arith.constant 0 : index
    %c0_188 = arith.constant 0 : index
    %370 = vector.load %arg1[%c46, %c0_187, %c0_188] : memref<49x2x36xbf16, #tpu.memory_space<vmem>>, vector<1x2x36xbf16>
    %371 = vector.shape_cast %370 : vector<1x2x36xbf16> to vector<2x36xbf16>
    %cst_189 = arith.constant dense<0.000000e+00> : vector<2x32xf32>
    %372 = tpu.matmul %371, %0, %cst_189 {dimension_numbers = #tpu.dot_dimension_numbers<[1], [0], [0], [1], [0, 0, 1, 1], [], []>} : vector<2x36xbf16>, vector<36x32xbf16>, vector<2x32xf32> -> vector<2x32xf32>
    %373 = vector.broadcast %1 : vector<1x32xf32> to vector<2x32xf32>
    %374 = arith.addf %372, %373 : vector<2x32xf32>
    %cst_190 = arith.constant 0.000000e+00 : f32
    %375 = vector.broadcast %cst_190 : f32 to vector<2x32xf32>
    %376 = arith.maximumf %374, %375 : vector<2x32xf32>
    %377 = arith.truncf %376 : vector<2x32xf32> to vector<2x32xbf16>
    %c47 = arith.constant 47 : index
    %c0_191 = arith.constant 0 : index
    %c0_192 = arith.constant 0 : index
    %378 = vector.load %arg1[%c47, %c0_191, %c0_192] : memref<49x2x36xbf16, #tpu.memory_space<vmem>>, vector<1x2x36xbf16>
    %379 = vector.shape_cast %378 : vector<1x2x36xbf16> to vector<2x36xbf16>
    %cst_193 = arith.constant dense<0.000000e+00> : vector<2x32xf32>
    %380 = tpu.matmul %379, %0, %cst_193 {dimension_numbers = #tpu.dot_dimension_numbers<[1], [0], [0], [1], [0, 0, 1, 1], [], []>} : vector<2x36xbf16>, vector<36x32xbf16>, vector<2x32xf32> -> vector<2x32xf32>
    %381 = vector.broadcast %1 : vector<1x32xf32> to vector<2x32xf32>
    %382 = arith.addf %380, %381 : vector<2x32xf32>
    %cst_194 = arith.constant 0.000000e+00 : f32
    %383 = vector.broadcast %cst_194 : f32 to vector<2x32xf32>
    %384 = arith.maximumf %382, %383 : vector<2x32xf32>
    %385 = arith.truncf %384 : vector<2x32xf32> to vector<2x32xbf16>
    %c48 = arith.constant 48 : index
    %c0_195 = arith.constant 0 : index
    %c0_196 = arith.constant 0 : index
    %386 = vector.load %arg1[%c48, %c0_195, %c0_196] : memref<49x2x36xbf16, #tpu.memory_space<vmem>>, vector<1x2x36xbf16>
    %387 = vector.shape_cast %386 : vector<1x2x36xbf16> to vector<2x36xbf16>
    %cst_197 = arith.constant dense<0.000000e+00> : vector<2x32xf32>
    %388 = tpu.matmul %387, %0, %cst_197 {dimension_numbers = #tpu.dot_dimension_numbers<[1], [0], [0], [1], [0, 0, 1, 1], [], []>} : vector<2x36xbf16>, vector<36x32xbf16>, vector<2x32xf32> -> vector<2x32xf32>
    %389 = vector.broadcast %1 : vector<1x32xf32> to vector<2x32xf32>
    %390 = arith.addf %388, %389 : vector<2x32xf32>
    %cst_198 = arith.constant 0.000000e+00 : f32
    %391 = vector.broadcast %cst_198 : f32 to vector<2x32xf32>
    %392 = arith.maximumf %390, %391 : vector<2x32xf32>
    %393 = arith.truncf %392 : vector<2x32xf32> to vector<2x32xbf16>
    %c0_199 = arith.constant 0 : index
    %c0_200 = arith.constant 0 : index
    %394 = vector.load %arg4[%c0_199, %c0_200] : memref<128x64xbf16, #tpu.memory_space<vmem>>, vector<128x64xbf16>
    %c0_201 = arith.constant 0 : index
    %c0_202 = arith.constant 0 : index
    %395 = vector.load %arg5[%c0_201, %c0_202] : memref<1x64xf32, #tpu.memory_space<vmem>>, vector<1x64xf32>
    %c0_203 = arith.constant 0 : index
    %c0_204 = arith.constant 0 : index
    %396 = vector.load %arg13[%c0_203, %c0_204] : memref<2x128xbf16, #tpu.memory_space<vmem>>, vector<2x32xbf16>
    tpu.vector_store %arg13[%c0_203, %c0_204], %9 {strides = array<i32>} : memref<2x128xbf16, #tpu.memory_space<vmem>>, vector<2x32xbf16>,
    %c0_205 = arith.constant 0 : index
    %c32_206 = arith.constant 32 : index
    %397 = vector.load %arg13[%c0_205, %c32_206] : memref<2x128xbf16, #tpu.memory_space<vmem>>, vector<2x32xbf16>
    tpu.vector_store %arg13[%c0_205, %c32_206], %17 {strides = array<i32>} : memref<2x128xbf16, #tpu.memory_space<vmem>>, vector<2x32xbf16>,
    %c0_207 = arith.constant 0 : index
    %c64 = arith.constant 64 : index
    %398 = vector.load %arg13[%c0_207, %c64] : memref<2x128xbf16, #tpu.memory_space<vmem>>, vector<2x32xbf16>
    tpu.vector_store %arg13[%c0_207, %c64], %65 {strides = array<i32>} : memref<2x128xbf16, #tpu.memory_space<vmem>>, vector<2x32xbf16>,
    %c0_208 = arith.constant 0 : index
    %c96 = arith.constant 96 : index
    %399 = vector.load %arg13[%c0_208, %c96] : memref<2x128xbf16, #tpu.memory_space<vmem>>, vector<2x32xbf16>
    tpu.vector_store %arg13[%c0_208, %c96], %73 {strides = array<i32>} : memref<2x128xbf16, #tpu.memory_space<vmem>>, vector<2x32xbf16>,
    %c0_209 = arith.constant 0 : index
    %c0_210 = arith.constant 0 : index
    %400 = vector.load %arg13[%c0_209, %c0_210] : memref<2x128xbf16, #tpu.memory_space<vmem>>, vector<2x128xbf16>
    %cst_211 = arith.constant dense<0.000000e+00> : vector<2x64xf32>
    %401 = tpu.matmul %400, %394, %cst_211 {dimension_numbers = #tpu.dot_dimension_numbers<[1], [0], [0], [1], [0, 0, 1, 1], [], []>} : vector<2x128xbf16>, vector<128x64xbf16>, vector<2x64xf32> -> vector<2x64xf32>
    %402 = vector.broadcast %395 : vector<1x64xf32> to vector<2x64xf32>
    %403 = arith.addf %401, %402 : vector<2x64xf32>
    %cst_212 = arith.constant 0.000000e+00 : f32
    %404 = vector.broadcast %cst_212 : f32 to vector<2x64xf32>
    %405 = arith.maximumf %403, %404 : vector<2x64xf32>
    %406 = arith.truncf %405 : vector<2x64xf32> to vector<2x64xbf16>
    %c0_213 = arith.constant 0 : index
    %c0_214 = arith.constant 0 : index
    %407 = vector.load %arg13[%c0_213, %c0_214] : memref<2x128xbf16, #tpu.memory_space<vmem>>, vector<2x32xbf16>
    tpu.vector_store %arg13[%c0_213, %c0_214], %17 {strides = array<i32>} : memref<2x128xbf16, #tpu.memory_space<vmem>>, vector<2x32xbf16>,
    %c0_215 = arith.constant 0 : index
    %c32_216 = arith.constant 32 : index
    %408 = vector.load %arg13[%c0_215, %c32_216] : memref<2x128xbf16, #tpu.memory_space<vmem>>, vector<2x32xbf16>
    tpu.vector_store %arg13[%c0_215, %c32_216], %25 {strides = array<i32>} : memref<2x128xbf16, #tpu.memory_space<vmem>>, vector<2x32xbf16>,
    %c0_217 = arith.constant 0 : index
    %c64_218 = arith.constant 64 : index
    %409 = vector.load %arg13[%c0_217, %c64_218] : memref<2x128xbf16, #tpu.memory_space<vmem>>, vector<2x32xbf16>
    tpu.vector_store %arg13[%c0_217, %c64_218], %73 {strides = array<i32>} : memref<2x128xbf16, #tpu.memory_space<vmem>>, vector<2x32xbf16>,
    %c0_219 = arith.constant 0 : index
    %c96_220 = arith.constant 96 : index
    %410 = vector.load %arg13[%c0_219, %c96_220] : memref<2x128xbf16, #tpu.memory_space<vmem>>, vector<2x32xbf16>
    tpu.vector_store %arg13[%c0_219, %c96_220], %81 {strides = array<i32>} : memref<2x128xbf16, #tpu.memory_space<vmem>>, vector<2x32xbf16>,
    %c0_221 = arith.constant 0 : index
    %c0_222 = arith.constant 0 : index
    %411 = vector.load %arg13[%c0_221, %c0_222] : memref<2x128xbf16, #tpu.memory_space<vmem>>, vector<2x128xbf16>
    %cst_223 = arith.constant dense<0.000000e+00> : vector<2x64xf32>
    %412 = tpu.matmul %411, %394, %cst_223 {dimension_numbers = #tpu.dot_dimension_numbers<[1], [0], [0], [1], [0, 0, 1, 1], [], []>} : vector<2x128xbf16>, vector<128x64xbf16>, vector<2x64xf32> -> vector<2x64xf32>
    %413 = vector.broadcast %395 : vector<1x64xf32> to vector<2x64xf32>
    %414 = arith.addf %412, %413 : vector<2x64xf32>
    %cst_224 = arith.constant 0.000000e+00 : f32
    %415 = vector.broadcast %cst_224 : f32 to vector<2x64xf32>
    %416 = arith.maximumf %414, %415 : vector<2x64xf32>
    %417 = arith.truncf %416 : vector<2x64xf32> to vector<2x64xbf16>
    %c0_225 = arith.constant 0 : index
    %c0_226 = arith.constant 0 : index
    %418 = vector.load %arg13[%c0_225, %c0_226] : memref<2x128xbf16, #tpu.memory_space<vmem>>, vector<2x32xbf16>
    tpu.vector_store %arg13[%c0_225, %c0_226], %25 {strides = array<i32>} : memref<2x128xbf16, #tpu.memory_space<vmem>>, vector<2x32xbf16>,
    %c0_227 = arith.constant 0 : index
    %c32_228 = arith.constant 32 : index
    %419 = vector.load %arg13[%c0_227, %c32_228] : memref<2x128xbf16, #tpu.memory_space<vmem>>, vector<2x32xbf16>
    tpu.vector_store %arg13[%c0_227, %c32_228], %33 {strides = array<i32>} : memref<2x128xbf16, #tpu.memory_space<vmem>>, vector<2x32xbf16>,
    %c0_229 = arith.constant 0 : index
    %c64_230 = arith.constant 64 : index
    %420 = vector.load %arg13[%c0_229, %c64_230] : memref<2x128xbf16, #tpu.memory_space<vmem>>, vector<2x32xbf16>
    tpu.vector_store %arg13[%c0_229, %c64_230], %81 {strides = array<i32>} : memref<2x128xbf16, #tpu.memory_space<vmem>>, vector<2x32xbf16>,
    %c0_231 = arith.constant 0 : index
    %c96_232 = arith.constant 96 : index
    %421 = vector.load %arg13[%c0_231, %c96_232] : memref<2x128xbf16, #tpu.memory_space<vmem>>, vector<2x32xbf16>
    tpu.vector_store %arg13[%c0_231, %c96_232], %89 {strides = array<i32>} : memref<2x128xbf16, #tpu.memory_space<vmem>>, vector<2x32xbf16>,
    %c0_233 = arith.constant 0 : index
    %c0_234 = arith.constant 0 : index
    %422 = vector.load %arg13[%c0_233, %c0_234] : memref<2x128xbf16, #tpu.memory_space<vmem>>, vector<2x128xbf16>
    %cst_235 = arith.constant dense<0.000000e+00> : vector<2x64xf32>
    %423 = tpu.matmul %422, %394, %cst_235 {dimension_numbers = #tpu.dot_dimension_numbers<[1], [0], [0], [1], [0, 0, 1, 1], [], []>} : vector<2x128xbf16>, vector<128x64xbf16>, vector<2x64xf32> -> vector<2x64xf32>
    %424 = vector.broadcast %395 : vector<1x64xf32> to vector<2x64xf32>
    %425 = arith.addf %423, %424 : vector<2x64xf32>
    %cst_236 = arith.constant 0.000000e+00 : f32
    %426 = vector.broadcast %cst_236 : f32 to vector<2x64xf32>
    %427 = arith.maximumf %425, %426 : vector<2x64xf32>
    %428 = arith.truncf %427 : vector<2x64xf32> to vector<2x64xbf16>
    %c0_237 = arith.constant 0 : index
    %c0_238 = arith.constant 0 : index
    %429 = vector.load %arg13[%c0_237, %c0_238] : memref<2x128xbf16, #tpu.memory_space<vmem>>, vector<2x32xbf16>
    tpu.vector_store %arg13[%c0_237, %c0_238], %33 {strides = array<i32>} : memref<2x128xbf16, #tpu.memory_space<vmem>>, vector<2x32xbf16>,
    %c0_239 = arith.constant 0 : index
    %c32_240 = arith.constant 32 : index
    %430 = vector.load %arg13[%c0_239, %c32_240] : memref<2x128xbf16, #tpu.memory_space<vmem>>, vector<2x32xbf16>
    tpu.vector_store %arg13[%c0_239, %c32_240], %41 {strides = array<i32>} : memref<2x128xbf16, #tpu.memory_space<vmem>>, vector<2x32xbf16>,
    %c0_241 = arith.constant 0 : index
    %c64_242 = arith.constant 64 : index
    %431 = vector.load %arg13[%c0_241, %c64_242] : memref<2x128xbf16, #tpu.memory_space<vmem>>, vector<2x32xbf16>
    tpu.vector_store %arg13[%c0_241, %c64_242], %89 {strides = array<i32>} : memref<2x128xbf16, #tpu.memory_space<vmem>>, vector<2x32xbf16>,
    %c0_243 = arith.constant 0 : index
    %c96_244 = arith.constant 96 : index
    %432 = vector.load %arg13[%c0_243, %c96_244] : memref<2x128xbf16, #tpu.memory_space<vmem>>, vector<2x32xbf16>
    tpu.vector_store %arg13[%c0_243, %c96_244], %97 {strides = array<i32>} : memref<2x128xbf16, #tpu.memory_space<vmem>>, vector<2x32xbf16>,
    %c0_245 = arith.constant 0 : index
    %c0_246 = arith.constant 0 : index
    %433 = vector.load %arg13[%c0_245, %c0_246] : memref<2x128xbf16, #tpu.memory_space<vmem>>, vector<2x128xbf16>
    %cst_247 = arith.constant dense<0.000000e+00> : vector<2x64xf32>
    %434 = tpu.matmul %433, %394, %cst_247 {dimension_numbers = #tpu.dot_dimension_numbers<[1], [0], [0], [1], [0, 0, 1, 1], [], []>} : vector<2x128xbf16>, vector<128x64xbf16>, vector<2x64xf32> -> vector<2x64xf32>
    %435 = vector.broadcast %395 : vector<1x64xf32> to vector<2x64xf32>
    %436 = arith.addf %434, %435 : vector<2x64xf32>
    %cst_248 = arith.constant 0.000000e+00 : f32
    %437 = vector.broadcast %cst_248 : f32 to vector<2x64xf32>
    %438 = arith.maximumf %436, %437 : vector<2x64xf32>
    %439 = arith.truncf %438 : vector<2x64xf32> to vector<2x64xbf16>
    %c0_249 = arith.constant 0 : index
    %c0_250 = arith.constant 0 : index
    %440 = vector.load %arg13[%c0_249, %c0_250] : memref<2x128xbf16, #tpu.memory_space<vmem>>, vector<2x32xbf16>
    tpu.vector_store %arg13[%c0_249, %c0_250], %41 {strides = array<i32>} : memref<2x128xbf16, #tpu.memory_space<vmem>>, vector<2x32xbf16>,
    %c0_251 = arith.constant 0 : index
    %c32_252 = arith.constant 32 : index
    %441 = vector.load %arg13[%c0_251, %c32_252] : memref<2x128xbf16, #tpu.memory_space<vmem>>, vector<2x32xbf16>
    tpu.vector_store %arg13[%c0_251, %c32_252], %49 {strides = array<i32>} : memref<2x128xbf16, #tpu.memory_space<vmem>>, vector<2x32xbf16>,
    %c0_253 = arith.constant 0 : index
    %c64_254 = arith.constant 64 : index
    %442 = vector.load %arg13[%c0_253, %c64_254] : memref<2x128xbf16, #tpu.memory_space<vmem>>, vector<2x32xbf16>
    tpu.vector_store %arg13[%c0_253, %c64_254], %97 {strides = array<i32>} : memref<2x128xbf16, #tpu.memory_space<vmem>>, vector<2x32xbf16>,
    %c0_255 = arith.constant 0 : index
    %c96_256 = arith.constant 96 : index
    %443 = vector.load %arg13[%c0_255, %c96_256] : memref<2x128xbf16, #tpu.memory_space<vmem>>, vector<2x32xbf16>
    tpu.vector_store %arg13[%c0_255, %c96_256], %105 {strides = array<i32>} : memref<2x128xbf16, #tpu.memory_space<vmem>>, vector<2x32xbf16>,
    %c0_257 = arith.constant 0 : index
    %c0_258 = arith.constant 0 : index
    %444 = vector.load %arg13[%c0_257, %c0_258] : memref<2x128xbf16, #tpu.memory_space<vmem>>, vector<2x128xbf16>
    %cst_259 = arith.constant dense<0.000000e+00> : vector<2x64xf32>
    %445 = tpu.matmul %444, %394, %cst_259 {dimension_numbers = #tpu.dot_dimension_numbers<[1], [0], [0], [1], [0, 0, 1, 1], [], []>} : vector<2x128xbf16>, vector<128x64xbf16>, vector<2x64xf32> -> vector<2x64xf32>
    %446 = vector.broadcast %395 : vector<1x64xf32> to vector<2x64xf32>
    %447 = arith.addf %445, %446 : vector<2x64xf32>
    %cst_260 = arith.constant 0.000000e+00 : f32
    %448 = vector.broadcast %cst_260 : f32 to vector<2x64xf32>
    %449 = arith.maximumf %447, %448 : vector<2x64xf32>
    %450 = arith.truncf %449 : vector<2x64xf32> to vector<2x64xbf16>
    %c0_261 = arith.constant 0 : index
    %c0_262 = arith.constant 0 : index
    %451 = vector.load %arg13[%c0_261, %c0_262] : memref<2x128xbf16, #tpu.memory_space<vmem>>, vector<2x32xbf16>
    tpu.vector_store %arg13[%c0_261, %c0_262], %49 {strides = array<i32>} : memref<2x128xbf16, #tpu.memory_space<vmem>>, vector<2x32xbf16>,
    %c0_263 = arith.constant 0 : index
    %c32_264 = arith.constant 32 : index
    %452 = vector.load %arg13[%c0_263, %c32_264] : memref<2x128xbf16, #tpu.memory_space<vmem>>, vector<2x32xbf16>
    tpu.vector_store %arg13[%c0_263, %c32_264], %57 {strides = array<i32>} : memref<2x128xbf16, #tpu.memory_space<vmem>>, vector<2x32xbf16>,
    %c0_265 = arith.constant 0 : index
    %c64_266 = arith.constant 64 : index
    %453 = vector.load %arg13[%c0_265, %c64_266] : memref<2x128xbf16, #tpu.memory_space<vmem>>, vector<2x32xbf16>
    tpu.vector_store %arg13[%c0_265, %c64_266], %105 {strides = array<i32>} : memref<2x128xbf16, #tpu.memory_space<vmem>>, vector<2x32xbf16>,
    %c0_267 = arith.constant 0 : index
    %c96_268 = arith.constant 96 : index
    %454 = vector.load %arg13[%c0_267, %c96_268] : memref<2x128xbf16, #tpu.memory_space<vmem>>, vector<2x32xbf16>
    tpu.vector_store %arg13[%c0_267, %c96_268], %113 {strides = array<i32>} : memref<2x128xbf16, #tpu.memory_space<vmem>>, vector<2x32xbf16>,
    %c0_269 = arith.constant 0 : index
    %c0_270 = arith.constant 0 : index
    %455 = vector.load %arg13[%c0_269, %c0_270] : memref<2x128xbf16, #tpu.memory_space<vmem>>, vector<2x128xbf16>
    %cst_271 = arith.constant dense<0.000000e+00> : vector<2x64xf32>
    %456 = tpu.matmul %455, %394, %cst_271 {dimension_numbers = #tpu.dot_dimension_numbers<[1], [0], [0], [1], [0, 0, 1, 1], [], []>} : vector<2x128xbf16>, vector<128x64xbf16>, vector<2x64xf32> -> vector<2x64xf32>
    %457 = vector.broadcast %395 : vector<1x64xf32> to vector<2x64xf32>
    %458 = arith.addf %456, %457 : vector<2x64xf32>
    %cst_272 = arith.constant 0.000000e+00 : f32
    %459 = vector.broadcast %cst_272 : f32 to vector<2x64xf32>
    %460 = arith.maximumf %458, %459 : vector<2x64xf32>
    %461 = arith.truncf %460 : vector<2x64xf32> to vector<2x64xbf16>
    %c0_273 = arith.constant 0 : index
    %c0_274 = arith.constant 0 : index
    %462 = vector.load %arg13[%c0_273, %c0_274] : memref<2x128xbf16, #tpu.memory_space<vmem>>, vector<2x32xbf16>
    tpu.vector_store %arg13[%c0_273, %c0_274], %65 {strides = array<i32>} : memref<2x128xbf16, #tpu.memory_space<vmem>>, vector<2x32xbf16>,
    %c0_275 = arith.constant 0 : index
    %c32_276 = arith.constant 32 : index
    %463 = vector.load %arg13[%c0_275, %c32_276] : memref<2x128xbf16, #tpu.memory_space<vmem>>, vector<2x32xbf16>
    tpu.vector_store %arg13[%c0_275, %c32_276], %73 {strides = array<i32>} : memref<2x128xbf16, #tpu.memory_space<vmem>>, vector<2x32xbf16>,
    %c0_277 = arith.constant 0 : index
    %c64_278 = arith.constant 64 : index
    %464 = vector.load %arg13[%c0_277, %c64_278] : memref<2x128xbf16, #tpu.memory_space<vmem>>, vector<2x32xbf16>
    tpu.vector_store %arg13[%c0_277, %c64_278], %121 {strides = array<i32>} : memref<2x128xbf16, #tpu.memory_space<vmem>>, vector<2x32xbf16>,
    %c0_279 = arith.constant 0 : index
    %c96_280 = arith.constant 96 : index
    %465 = vector.load %arg13[%c0_279, %c96_280] : memref<2x128xbf16, #tpu.memory_space<vmem>>, vector<2x32xbf16>
    tpu.vector_store %arg13[%c0_279, %c96_280], %129 {strides = array<i32>} : memref<2x128xbf16, #tpu.memory_space<vmem>>, vector<2x32xbf16>,
    %c0_281 = arith.constant 0 : index
    %c0_282 = arith.constant 0 : index
    %466 = vector.load %arg13[%c0_281, %c0_282] : memref<2x128xbf16, #tpu.memory_space<vmem>>, vector<2x128xbf16>
    %cst_283 = arith.constant dense<0.000000e+00> : vector<2x64xf32>
    %467 = tpu.matmul %466, %394, %cst_283 {dimension_numbers = #tpu.dot_dimension_numbers<[1], [0], [0], [1], [0, 0, 1, 1], [], []>} : vector<2x128xbf16>, vector<128x64xbf16>, vector<2x64xf32> -> vector<2x64xf32>
    %468 = vector.broadcast %395 : vector<1x64xf32> to vector<2x64xf32>
    %469 = arith.addf %467, %468 : vector<2x64xf32>
    %cst_284 = arith.constant 0.000000e+00 : f32
    %470 = vector.broadcast %cst_284 : f32 to vector<2x64xf32>
    %471 = arith.maximumf %469, %470 : vector<2x64xf32>
    %472 = arith.truncf %471 : vector<2x64xf32> to vector<2x64xbf16>
    %c0_285 = arith.constant 0 : index
    %c0_286 = arith.constant 0 : index
    %473 = vector.load %arg13[%c0_285, %c0_286] : memref<2x128xbf16, #tpu.memory_space<vmem>>, vector<2x32xbf16>
    tpu.vector_store %arg13[%c0_285, %c0_286], %73 {strides = array<i32>} : memref<2x128xbf16, #tpu.memory_space<vmem>>, vector<2x32xbf16>,
    %c0_287 = arith.constant 0 : index
    %c32_288 = arith.constant 32 : index
    %474 = vector.load %arg13[%c0_287, %c32_288] : memref<2x128xbf16, #tpu.memory_space<vmem>>, vector<2x32xbf16>
    tpu.vector_store %arg13[%c0_287, %c32_288], %81 {strides = array<i32>} : memref<2x128xbf16, #tpu.memory_space<vmem>>, vector<2x32xbf16>,
    %c0_289 = arith.constant 0 : index
    %c64_290 = arith.constant 64 : index
    %475 = vector.load %arg13[%c0_289, %c64_290] : memref<2x128xbf16, #tpu.memory_space<vmem>>, vector<2x32xbf16>
    tpu.vector_store %arg13[%c0_289, %c64_290], %129 {strides = array<i32>} : memref<2x128xbf16, #tpu.memory_space<vmem>>, vector<2x32xbf16>,
    %c0_291 = arith.constant 0 : index
    %c96_292 = arith.constant 96 : index
    %476 = vector.load %arg13[%c0_291, %c96_292] : memref<2x128xbf16, #tpu.memory_space<vmem>>, vector<2x32xbf16>
    tpu.vector_store %arg13[%c0_291, %c96_292], %137 {strides = array<i32>} : memref<2x128xbf16, #tpu.memory_space<vmem>>, vector<2x32xbf16>,
    %c0_293 = arith.constant 0 : index
    %c0_294 = arith.constant 0 : index
    %477 = vector.load %arg13[%c0_293, %c0_294] : memref<2x128xbf16, #tpu.memory_space<vmem>>, vector<2x128xbf16>
    %cst_295 = arith.constant dense<0.000000e+00> : vector<2x64xf32>
    %478 = tpu.matmul %477, %394, %cst_295 {dimension_numbers = #tpu.dot_dimension_numbers<[1], [0], [0], [1], [0, 0, 1, 1], [], []>} : vector<2x128xbf16>, vector<128x64xbf16>, vector<2x64xf32> -> vector<2x64xf32>
    %479 = vector.broadcast %395 : vector<1x64xf32> to vector<2x64xf32>
    %480 = arith.addf %478, %479 : vector<2x64xf32>
    %cst_296 = arith.constant 0.000000e+00 : f32
    %481 = vector.broadcast %cst_296 : f32 to vector<2x64xf32>
    %482 = arith.maximumf %480, %481 : vector<2x64xf32>
    %483 = arith.truncf %482 : vector<2x64xf32> to vector<2x64xbf16>
    %c0_297 = arith.constant 0 : index
    %c0_298 = arith.constant 0 : index
    %484 = vector.load %arg13[%c0_297, %c0_298] : memref<2x128xbf16, #tpu.memory_space<vmem>>, vector<2x32xbf16>
    tpu.vector_store %arg13[%c0_297, %c0_298], %81 {strides = array<i32>} : memref<2x128xbf16, #tpu.memory_space<vmem>>, vector<2x32xbf16>,
    %c0_299 = arith.constant 0 : index
    %c32_300 = arith.constant 32 : index
    %485 = vector.load %arg13[%c0_299, %c32_300] : memref<2x128xbf16, #tpu.memory_space<vmem>>, vector<2x32xbf16>
    tpu.vector_store %arg13[%c0_299, %c32_300], %89 {strides = array<i32>} : memref<2x128xbf16, #tpu.memory_space<vmem>>, vector<2x32xbf16>,
    %c0_301 = arith.constant 0 : index
    %c64_302 = arith.constant 64 : index
    %486 = vector.load %arg13[%c0_301, %c64_302] : memref<2x128xbf16, #tpu.memory_space<vmem>>, vector<2x32xbf16>
    tpu.vector_store %arg13[%c0_301, %c64_302], %137 {strides = array<i32>} : memref<2x128xbf16, #tpu.memory_space<vmem>>, vector<2x32xbf16>,
    %c0_303 = arith.constant 0 : index
    %c96_304 = arith.constant 96 : index
    %487 = vector.load %arg13[%c0_303, %c96_304] : memref<2x128xbf16, #tpu.memory_space<vmem>>, vector<2x32xbf16>
    tpu.vector_store %arg13[%c0_303, %c96_304], %145 {strides = array<i32>} : memref<2x128xbf16, #tpu.memory_space<vmem>>, vector<2x32xbf16>,
    %c0_305 = arith.constant 0 : index
    %c0_306 = arith.constant 0 : index
    %488 = vector.load %arg13[%c0_305, %c0_306] : memref<2x128xbf16, #tpu.memory_space<vmem>>, vector<2x128xbf16>
    %cst_307 = arith.constant dense<0.000000e+00> : vector<2x64xf32>
    %489 = tpu.matmul %488, %394, %cst_307 {dimension_numbers = #tpu.dot_dimension_numbers<[1], [0], [0], [1], [0, 0, 1, 1], [], []>} : vector<2x128xbf16>, vector<128x64xbf16>, vector<2x64xf32> -> vector<2x64xf32>
    %490 = vector.broadcast %395 : vector<1x64xf32> to vector<2x64xf32>
    %491 = arith.addf %489, %490 : vector<2x64xf32>
    %cst_308 = arith.constant 0.000000e+00 : f32
    %492 = vector.broadcast %cst_308 : f32 to vector<2x64xf32>
    %493 = arith.maximumf %491, %492 : vector<2x64xf32>
    %494 = arith.truncf %493 : vector<2x64xf32> to vector<2x64xbf16>
    %c0_309 = arith.constant 0 : index
    %c0_310 = arith.constant 0 : index
    %495 = vector.load %arg13[%c0_309, %c0_310] : memref<2x128xbf16, #tpu.memory_space<vmem>>, vector<2x32xbf16>
    tpu.vector_store %arg13[%c0_309, %c0_310], %89 {strides = array<i32>} : memref<2x128xbf16, #tpu.memory_space<vmem>>, vector<2x32xbf16>,
    %c0_311 = arith.constant 0 : index
    %c32_312 = arith.constant 32 : index
    %496 = vector.load %arg13[%c0_311, %c32_312] : memref<2x128xbf16, #tpu.memory_space<vmem>>, vector<2x32xbf16>
    tpu.vector_store %arg13[%c0_311, %c32_312], %97 {strides = array<i32>} : memref<2x128xbf16, #tpu.memory_space<vmem>>, vector<2x32xbf16>,
    %c0_313 = arith.constant 0 : index
    %c64_314 = arith.constant 64 : index
    %497 = vector.load %arg13[%c0_313, %c64_314] : memref<2x128xbf16, #tpu.memory_space<vmem>>, vector<2x32xbf16>
    tpu.vector_store %arg13[%c0_313, %c64_314], %145 {strides = array<i32>} : memref<2x128xbf16, #tpu.memory_space<vmem>>, vector<2x32xbf16>,
    %c0_315 = arith.constant 0 : index
    %c96_316 = arith.constant 96 : index
    %498 = vector.load %arg13[%c0_315, %c96_316] : memref<2x128xbf16, #tpu.memory_space<vmem>>, vector<2x32xbf16>
    tpu.vector_store %arg13[%c0_315, %c96_316], %153 {strides = array<i32>} : memref<2x128xbf16, #tpu.memory_space<vmem>>, vector<2x32xbf16>,
    %c0_317 = arith.constant 0 : index
    %c0_318 = arith.constant 0 : index
    %499 = vector.load %arg13[%c0_317, %c0_318] : memref<2x128xbf16, #tpu.memory_space<vmem>>, vector<2x128xbf16>
    %cst_319 = arith.constant dense<0.000000e+00> : vector<2x64xf32>
    %500 = tpu.matmul %499, %394, %cst_319 {dimension_numbers = #tpu.dot_dimension_numbers<[1], [0], [0], [1], [0, 0, 1, 1], [], []>} : vector<2x128xbf16>, vector<128x64xbf16>, vector<2x64xf32> -> vector<2x64xf32>
    %501 = vector.broadcast %395 : vector<1x64xf32> to vector<2x64xf32>
    %502 = arith.addf %500, %501 : vector<2x64xf32>
    %cst_320 = arith.constant 0.000000e+00 : f32
    %503 = vector.broadcast %cst_320 : f32 to vector<2x64xf32>
    %504 = arith.maximumf %502, %503 : vector<2x64xf32>
    %505 = arith.truncf %504 : vector<2x64xf32> to vector<2x64xbf16>
    %c0_321 = arith.constant 0 : index
    %c0_322 = arith.constant 0 : index
    %506 = vector.load %arg13[%c0_321, %c0_322] : memref<2x128xbf16, #tpu.memory_space<vmem>>, vector<2x32xbf16>
    tpu.vector_store %arg13[%c0_321, %c0_322], %97 {strides = array<i32>} : memref<2x128xbf16, #tpu.memory_space<vmem>>, vector<2x32xbf16>,
    %c0_323 = arith.constant 0 : index
    %c32_324 = arith.constant 32 : index
    %507 = vector.load %arg13[%c0_323, %c32_324] : memref<2x128xbf16, #tpu.memory_space<vmem>>, vector<2x32xbf16>
    tpu.vector_store %arg13[%c0_323, %c32_324], %105 {strides = array<i32>} : memref<2x128xbf16, #tpu.memory_space<vmem>>, vector<2x32xbf16>,
    %c0_325 = arith.constant 0 : index
    %c64_326 = arith.constant 64 : index
    %508 = vector.load %arg13[%c0_325, %c64_326] : memref<2x128xbf16, #tpu.memory_space<vmem>>, vector<2x32xbf16>
    tpu.vector_store %arg13[%c0_325, %c64_326], %153 {strides = array<i32>} : memref<2x128xbf16, #tpu.memory_space<vmem>>, vector<2x32xbf16>,
    %c0_327 = arith.constant 0 : index
    %c96_328 = arith.constant 96 : index
    %509 = vector.load %arg13[%c0_327, %c96_328] : memref<2x128xbf16, #tpu.memory_space<vmem>>, vector<2x32xbf16>
    tpu.vector_store %arg13[%c0_327, %c96_328], %161 {strides = array<i32>} : memref<2x128xbf16, #tpu.memory_space<vmem>>, vector<2x32xbf16>,
    %c0_329 = arith.constant 0 : index
    %c0_330 = arith.constant 0 : index
    %510 = vector.load %arg13[%c0_329, %c0_330] : memref<2x128xbf16, #tpu.memory_space<vmem>>, vector<2x128xbf16>
    %cst_331 = arith.constant dense<0.000000e+00> : vector<2x64xf32>
    %511 = tpu.matmul %510, %394, %cst_331 {dimension_numbers = #tpu.dot_dimension_numbers<[1], [0], [0], [1], [0, 0, 1, 1], [], []>} : vector<2x128xbf16>, vector<128x64xbf16>, vector<2x64xf32> -> vector<2x64xf32>
    %512 = vector.broadcast %395 : vector<1x64xf32> to vector<2x64xf32>
    %513 = arith.addf %511, %512 : vector<2x64xf32>
    %cst_332 = arith.constant 0.000000e+00 : f32
    %514 = vector.broadcast %cst_332 : f32 to vector<2x64xf32>
    %515 = arith.maximumf %513, %514 : vector<2x64xf32>
    %516 = arith.truncf %515 : vector<2x64xf32> to vector<2x64xbf16>
    %c0_333 = arith.constant 0 : index
    %c0_334 = arith.constant 0 : index
    %517 = vector.load %arg13[%c0_333, %c0_334] : memref<2x128xbf16, #tpu.memory_space<vmem>>, vector<2x32xbf16>
    tpu.vector_store %arg13[%c0_333, %c0_334], %105 {strides = array<i32>} : memref<2x128xbf16, #tpu.memory_space<vmem>>, vector<2x32xbf16>,
    %c0_335 = arith.constant 0 : index
    %c32_336 = arith.constant 32 : index
    %518 = vector.load %arg13[%c0_335, %c32_336] : memref<2x128xbf16, #tpu.memory_space<vmem>>, vector<2x32xbf16>
    tpu.vector_store %arg13[%c0_335, %c32_336], %113 {strides = array<i32>} : memref<2x128xbf16, #tpu.memory_space<vmem>>, vector<2x32xbf16>,
    %c0_337 = arith.constant 0 : index
    %c64_338 = arith.constant 64 : index
    %519 = vector.load %arg13[%c0_337, %c64_338] : memref<2x128xbf16, #tpu.memory_space<vmem>>, vector<2x32xbf16>
    tpu.vector_store %arg13[%c0_337, %c64_338], %161 {strides = array<i32>} : memref<2x128xbf16, #tpu.memory_space<vmem>>, vector<2x32xbf16>,
    %c0_339 = arith.constant 0 : index
    %c96_340 = arith.constant 96 : index
    %520 = vector.load %arg13[%c0_339, %c96_340] : memref<2x128xbf16, #tpu.memory_space<vmem>>, vector<2x32xbf16>
    tpu.vector_store %arg13[%c0_339, %c96_340], %169 {strides = array<i32>} : memref<2x128xbf16, #tpu.memory_space<vmem>>, vector<2x32xbf16>,
    %c0_341 = arith.constant 0 : index
    %c0_342 = arith.constant 0 : index
    %521 = vector.load %arg13[%c0_341, %c0_342] : memref<2x128xbf16, #tpu.memory_space<vmem>>, vector<2x128xbf16>
    %cst_343 = arith.constant dense<0.000000e+00> : vector<2x64xf32>
    %522 = tpu.matmul %521, %394, %cst_343 {dimension_numbers = #tpu.dot_dimension_numbers<[1], [0], [0], [1], [0, 0, 1, 1], [], []>} : vector<2x128xbf16>, vector<128x64xbf16>, vector<2x64xf32> -> vector<2x64xf32>
    %523 = vector.broadcast %395 : vector<1x64xf32> to vector<2x64xf32>
    %524 = arith.addf %522, %523 : vector<2x64xf32>
    %cst_344 = arith.constant 0.000000e+00 : f32
    %525 = vector.broadcast %cst_344 : f32 to vector<2x64xf32>
    %526 = arith.maximumf %524, %525 : vector<2x64xf32>
    %527 = arith.truncf %526 : vector<2x64xf32> to vector<2x64xbf16>
    %c0_345 = arith.constant 0 : index
    %c0_346 = arith.constant 0 : index
    %528 = vector.load %arg13[%c0_345, %c0_346] : memref<2x128xbf16, #tpu.memory_space<vmem>>, vector<2x32xbf16>
    tpu.vector_store %arg13[%c0_345, %c0_346], %121 {strides = array<i32>} : memref<2x128xbf16, #tpu.memory_space<vmem>>, vector<2x32xbf16>,
    %c0_347 = arith.constant 0 : index
    %c32_348 = arith.constant 32 : index
    %529 = vector.load %arg13[%c0_347, %c32_348] : memref<2x128xbf16, #tpu.memory_space<vmem>>, vector<2x32xbf16>
    tpu.vector_store %arg13[%c0_347, %c32_348], %129 {strides = array<i32>} : memref<2x128xbf16, #tpu.memory_space<vmem>>, vector<2x32xbf16>,
    %c0_349 = arith.constant 0 : index
    %c64_350 = arith.constant 64 : index
    %530 = vector.load %arg13[%c0_349, %c64_350] : memref<2x128xbf16, #tpu.memory_space<vmem>>, vector<2x32xbf16>
    tpu.vector_store %arg13[%c0_349, %c64_350], %177 {strides = array<i32>} : memref<2x128xbf16, #tpu.memory_space<vmem>>, vector<2x32xbf16>,
    %c0_351 = arith.constant 0 : index
    %c96_352 = arith.constant 96 : index
    %531 = vector.load %arg13[%c0_351, %c96_352] : memref<2x128xbf16, #tpu.memory_space<vmem>>, vector<2x32xbf16>
    tpu.vector_store %arg13[%c0_351, %c96_352], %185 {strides = array<i32>} : memref<2x128xbf16, #tpu.memory_space<vmem>>, vector<2x32xbf16>,
    %c0_353 = arith.constant 0 : index
    %c0_354 = arith.constant 0 : index
    %532 = vector.load %arg13[%c0_353, %c0_354] : memref<2x128xbf16, #tpu.memory_space<vmem>>, vector<2x128xbf16>
    %cst_355 = arith.constant dense<0.000000e+00> : vector<2x64xf32>
    %533 = tpu.matmul %532, %394, %cst_355 {dimension_numbers = #tpu.dot_dimension_numbers<[1], [0], [0], [1], [0, 0, 1, 1], [], []>} : vector<2x128xbf16>, vector<128x64xbf16>, vector<2x64xf32> -> vector<2x64xf32>
    %534 = vector.broadcast %395 : vector<1x64xf32> to vector<2x64xf32>
    %535 = arith.addf %533, %534 : vector<2x64xf32>
    %cst_356 = arith.constant 0.000000e+00 : f32
    %536 = vector.broadcast %cst_356 : f32 to vector<2x64xf32>
    %537 = arith.maximumf %535, %536 : vector<2x64xf32>
    %538 = arith.truncf %537 : vector<2x64xf32> to vector<2x64xbf16>
    %c0_357 = arith.constant 0 : index
    %c0_358 = arith.constant 0 : index
    %539 = vector.load %arg13[%c0_357, %c0_358] : memref<2x128xbf16, #tpu.memory_space<vmem>>, vector<2x32xbf16>
    tpu.vector_store %arg13[%c0_357, %c0_358], %129 {strides = array<i32>} : memref<2x128xbf16, #tpu.memory_space<vmem>>, vector<2x32xbf16>,
    %c0_359 = arith.constant 0 : index
    %c32_360 = arith.constant 32 : index
    %540 = vector.load %arg13[%c0_359, %c32_360] : memref<2x128xbf16, #tpu.memory_space<vmem>>, vector<2x32xbf16>
    tpu.vector_store %arg13[%c0_359, %c32_360], %137 {strides = array<i32>} : memref<2x128xbf16, #tpu.memory_space<vmem>>, vector<2x32xbf16>,
    %c0_361 = arith.constant 0 : index
    %c64_362 = arith.constant 64 : index
    %541 = vector.load %arg13[%c0_361, %c64_362] : memref<2x128xbf16, #tpu.memory_space<vmem>>, vector<2x32xbf16>
    tpu.vector_store %arg13[%c0_361, %c64_362], %185 {strides = array<i32>} : memref<2x128xbf16, #tpu.memory_space<vmem>>, vector<2x32xbf16>,
    %c0_363 = arith.constant 0 : index
    %c96_364 = arith.constant 96 : index
    %542 = vector.load %arg13[%c0_363, %c96_364] : memref<2x128xbf16, #tpu.memory_space<vmem>>, vector<2x32xbf16>
    tpu.vector_store %arg13[%c0_363, %c96_364], %193 {strides = array<i32>} : memref<2x128xbf16, #tpu.memory_space<vmem>>, vector<2x32xbf16>,
    %c0_365 = arith.constant 0 : index
    %c0_366 = arith.constant 0 : index
    %543 = vector.load %arg13[%c0_365, %c0_366] : memref<2x128xbf16, #tpu.memory_space<vmem>>, vector<2x128xbf16>
    %cst_367 = arith.constant dense<0.000000e+00> : vector<2x64xf32>
    %544 = tpu.matmul %543, %394, %cst_367 {dimension_numbers = #tpu.dot_dimension_numbers<[1], [0], [0], [1], [0, 0, 1, 1], [], []>} : vector<2x128xbf16>, vector<128x64xbf16>, vector<2x64xf32> -> vector<2x64xf32>
    %545 = vector.broadcast %395 : vector<1x64xf32> to vector<2x64xf32>
    %546 = arith.addf %544, %545 : vector<2x64xf32>
    %cst_368 = arith.constant 0.000000e+00 : f32
    %547 = vector.broadcast %cst_368 : f32 to vector<2x64xf32>
    %548 = arith.maximumf %546, %547 : vector<2x64xf32>
    %549 = arith.truncf %548 : vector<2x64xf32> to vector<2x64xbf16>
    %c0_369 = arith.constant 0 : index
    %c0_370 = arith.constant 0 : index
    %550 = vector.load %arg13[%c0_369, %c0_370] : memref<2x128xbf16, #tpu.memory_space<vmem>>, vector<2x32xbf16>
    tpu.vector_store %arg13[%c0_369, %c0_370], %137 {strides = array<i32>} : memref<2x128xbf16, #tpu.memory_space<vmem>>, vector<2x32xbf16>,
    %c0_371 = arith.constant 0 : index
    %c32_372 = arith.constant 32 : index
    %551 = vector.load %arg13[%c0_371, %c32_372] : memref<2x128xbf16, #tpu.memory_space<vmem>>, vector<2x32xbf16>
    tpu.vector_store %arg13[%c0_371, %c32_372], %145 {strides = array<i32>} : memref<2x128xbf16, #tpu.memory_space<vmem>>, vector<2x32xbf16>,
    %c0_373 = arith.constant 0 : index
    %c64_374 = arith.constant 64 : index
    %552 = vector.load %arg13[%c0_373, %c64_374] : memref<2x128xbf16, #tpu.memory_space<vmem>>, vector<2x32xbf16>
    tpu.vector_store %arg13[%c0_373, %c64_374], %193 {strides = array<i32>} : memref<2x128xbf16, #tpu.memory_space<vmem>>, vector<2x32xbf16>,
    %c0_375 = arith.constant 0 : index
    %c96_376 = arith.constant 96 : index
    %553 = vector.load %arg13[%c0_375, %c96_376] : memref<2x128xbf16, #tpu.memory_space<vmem>>, vector<2x32xbf16>
    tpu.vector_store %arg13[%c0_375, %c96_376], %201 {strides = array<i32>} : memref<2x128xbf16, #tpu.memory_space<vmem>>, vector<2x32xbf16>,
    %c0_377 = arith.constant 0 : index
    %c0_378 = arith.constant 0 : index
    %554 = vector.load %arg13[%c0_377, %c0_378] : memref<2x128xbf16, #tpu.memory_space<vmem>>, vector<2x128xbf16>
    %cst_379 = arith.constant dense<0.000000e+00> : vector<2x64xf32>
    %555 = tpu.matmul %554, %394, %cst_379 {dimension_numbers = #tpu.dot_dimension_numbers<[1], [0], [0], [1], [0, 0, 1, 1], [], []>} : vector<2x128xbf16>, vector<128x64xbf16>, vector<2x64xf32> -> vector<2x64xf32>
    %556 = vector.broadcast %395 : vector<1x64xf32> to vector<2x64xf32>
    %557 = arith.addf %555, %556 : vector<2x64xf32>
    %cst_380 = arith.constant 0.000000e+00 : f32
    %558 = vector.broadcast %cst_380 : f32 to vector<2x64xf32>
    %559 = arith.maximumf %557, %558 : vector<2x64xf32>
    %560 = arith.truncf %559 : vector<2x64xf32> to vector<2x64xbf16>
    %c0_381 = arith.constant 0 : index
    %c0_382 = arith.constant 0 : index
    %561 = vector.load %arg13[%c0_381, %c0_382] : memref<2x128xbf16, #tpu.memory_space<vmem>>, vector<2x32xbf16>
    tpu.vector_store %arg13[%c0_381, %c0_382], %145 {strides = array<i32>} : memref<2x128xbf16, #tpu.memory_space<vmem>>, vector<2x32xbf16>,
    %c0_383 = arith.constant 0 : index
    %c32_384 = arith.constant 32 : index
    %562 = vector.load %arg13[%c0_383, %c32_384] : memref<2x128xbf16, #tpu.memory_space<vmem>>, vector<2x32xbf16>
    tpu.vector_store %arg13[%c0_383, %c32_384], %153 {strides = array<i32>} : memref<2x128xbf16, #tpu.memory_space<vmem>>, vector<2x32xbf16>,
    %c0_385 = arith.constant 0 : index
    %c64_386 = arith.constant 64 : index
    %563 = vector.load %arg13[%c0_385, %c64_386] : memref<2x128xbf16, #tpu.memory_space<vmem>>, vector<2x32xbf16>
    tpu.vector_store %arg13[%c0_385, %c64_386], %201 {strides = array<i32>} : memref<2x128xbf16, #tpu.memory_space<vmem>>, vector<2x32xbf16>,
    %c0_387 = arith.constant 0 : index
    %c96_388 = arith.constant 96 : index
    %564 = vector.load %arg13[%c0_387, %c96_388] : memref<2x128xbf16, #tpu.memory_space<vmem>>, vector<2x32xbf16>
    tpu.vector_store %arg13[%c0_387, %c96_388], %209 {strides = array<i32>} : memref<2x128xbf16, #tpu.memory_space<vmem>>, vector<2x32xbf16>,
    %c0_389 = arith.constant 0 : index
    %c0_390 = arith.constant 0 : index
    %565 = vector.load %arg13[%c0_389, %c0_390] : memref<2x128xbf16, #tpu.memory_space<vmem>>, vector<2x128xbf16>
    %cst_391 = arith.constant dense<0.000000e+00> : vector<2x64xf32>
    %566 = tpu.matmul %565, %394, %cst_391 {dimension_numbers = #tpu.dot_dimension_numbers<[1], [0], [0], [1], [0, 0, 1, 1], [], []>} : vector<2x128xbf16>, vector<128x64xbf16>, vector<2x64xf32> -> vector<2x64xf32>
    %567 = vector.broadcast %395 : vector<1x64xf32> to vector<2x64xf32>
    %568 = arith.addf %566, %567 : vector<2x64xf32>
    %cst_392 = arith.constant 0.000000e+00 : f32
    %569 = vector.broadcast %cst_392 : f32 to vector<2x64xf32>
    %570 = arith.maximumf %568, %569 : vector<2x64xf32>
    %571 = arith.truncf %570 : vector<2x64xf32> to vector<2x64xbf16>
    %c0_393 = arith.constant 0 : index
    %c0_394 = arith.constant 0 : index
    %572 = vector.load %arg13[%c0_393, %c0_394] : memref<2x128xbf16, #tpu.memory_space<vmem>>, vector<2x32xbf16>
    tpu.vector_store %arg13[%c0_393, %c0_394], %153 {strides = array<i32>} : memref<2x128xbf16, #tpu.memory_space<vmem>>, vector<2x32xbf16>,
    %c0_395 = arith.constant 0 : index
    %c32_396 = arith.constant 32 : index
    %573 = vector.load %arg13[%c0_395, %c32_396] : memref<2x128xbf16, #tpu.memory_space<vmem>>, vector<2x32xbf16>
    tpu.vector_store %arg13[%c0_395, %c32_396], %161 {strides = array<i32>} : memref<2x128xbf16, #tpu.memory_space<vmem>>, vector<2x32xbf16>,
    %c0_397 = arith.constant 0 : index
    %c64_398 = arith.constant 64 : index
    %574 = vector.load %arg13[%c0_397, %c64_398] : memref<2x128xbf16, #tpu.memory_space<vmem>>, vector<2x32xbf16>
    tpu.vector_store %arg13[%c0_397, %c64_398], %209 {strides = array<i32>} : memref<2x128xbf16, #tpu.memory_space<vmem>>, vector<2x32xbf16>,
    %c0_399 = arith.constant 0 : index
    %c96_400 = arith.constant 96 : index
    %575 = vector.load %arg13[%c0_399, %c96_400] : memref<2x128xbf16, #tpu.memory_space<vmem>>, vector<2x32xbf16>
    tpu.vector_store %arg13[%c0_399, %c96_400], %217 {strides = array<i32>} : memref<2x128xbf16, #tpu.memory_space<vmem>>, vector<2x32xbf16>,
    %c0_401 = arith.constant 0 : index
    %c0_402 = arith.constant 0 : index
    %576 = vector.load %arg13[%c0_401, %c0_402] : memref<2x128xbf16, #tpu.memory_space<vmem>>, vector<2x128xbf16>
    %cst_403 = arith.constant dense<0.000000e+00> : vector<2x64xf32>
    %577 = tpu.matmul %576, %394, %cst_403 {dimension_numbers = #tpu.dot_dimension_numbers<[1], [0], [0], [1], [0, 0, 1, 1], [], []>} : vector<2x128xbf16>, vector<128x64xbf16>, vector<2x64xf32> -> vector<2x64xf32>
    %578 = vector.broadcast %395 : vector<1x64xf32> to vector<2x64xf32>
    %579 = arith.addf %577, %578 : vector<2x64xf32>
    %cst_404 = arith.constant 0.000000e+00 : f32
    %580 = vector.broadcast %cst_404 : f32 to vector<2x64xf32>
    %581 = arith.maximumf %579, %580 : vector<2x64xf32>
    %582 = arith.truncf %581 : vector<2x64xf32> to vector<2x64xbf16>
    %c0_405 = arith.constant 0 : index
    %c0_406 = arith.constant 0 : index
    %583 = vector.load %arg13[%c0_405, %c0_406] : memref<2x128xbf16, #tpu.memory_space<vmem>>, vector<2x32xbf16>
    tpu.vector_store %arg13[%c0_405, %c0_406], %161 {strides = array<i32>} : memref<2x128xbf16, #tpu.memory_space<vmem>>, vector<2x32xbf16>,
    %c0_407 = arith.constant 0 : index
    %c32_408 = arith.constant 32 : index
    %584 = vector.load %arg13[%c0_407, %c32_408] : memref<2x128xbf16, #tpu.memory_space<vmem>>, vector<2x32xbf16>
    tpu.vector_store %arg13[%c0_407, %c32_408], %169 {strides = array<i32>} : memref<2x128xbf16, #tpu.memory_space<vmem>>, vector<2x32xbf16>,
    %c0_409 = arith.constant 0 : index
    %c64_410 = arith.constant 64 : index
    %585 = vector.load %arg13[%c0_409, %c64_410] : memref<2x128xbf16, #tpu.memory_space<vmem>>, vector<2x32xbf16>
    tpu.vector_store %arg13[%c0_409, %c64_410], %217 {strides = array<i32>} : memref<2x128xbf16, #tpu.memory_space<vmem>>, vector<2x32xbf16>,
    %c0_411 = arith.constant 0 : index
    %c96_412 = arith.constant 96 : index
    %586 = vector.load %arg13[%c0_411, %c96_412] : memref<2x128xbf16, #tpu.memory_space<vmem>>, vector<2x32xbf16>
    tpu.vector_store %arg13[%c0_411, %c96_412], %225 {strides = array<i32>} : memref<2x128xbf16, #tpu.memory_space<vmem>>, vector<2x32xbf16>,
    %c0_413 = arith.constant 0 : index
    %c0_414 = arith.constant 0 : index
    %587 = vector.load %arg13[%c0_413, %c0_414] : memref<2x128xbf16, #tpu.memory_space<vmem>>, vector<2x128xbf16>
    %cst_415 = arith.constant dense<0.000000e+00> : vector<2x64xf32>
    %588 = tpu.matmul %587, %394, %cst_415 {dimension_numbers = #tpu.dot_dimension_numbers<[1], [0], [0], [1], [0, 0, 1, 1], [], []>} : vector<2x128xbf16>, vector<128x64xbf16>, vector<2x64xf32> -> vector<2x64xf32>
    %589 = vector.broadcast %395 : vector<1x64xf32> to vector<2x64xf32>
    %590 = arith.addf %588, %589 : vector<2x64xf32>
    %cst_416 = arith.constant 0.000000e+00 : f32
    %591 = vector.broadcast %cst_416 : f32 to vector<2x64xf32>
    %592 = arith.maximumf %590, %591 : vector<2x64xf32>
    %593 = arith.truncf %592 : vector<2x64xf32> to vector<2x64xbf16>
    %c0_417 = arith.constant 0 : index
    %c0_418 = arith.constant 0 : index
    %594 = vector.load %arg13[%c0_417, %c0_418] : memref<2x128xbf16, #tpu.memory_space<vmem>>, vector<2x32xbf16>
    tpu.vector_store %arg13[%c0_417, %c0_418], %177 {strides = array<i32>} : memref<2x128xbf16, #tpu.memory_space<vmem>>, vector<2x32xbf16>,
    %c0_419 = arith.constant 0 : index
    %c32_420 = arith.constant 32 : index
    %595 = vector.load %arg13[%c0_419, %c32_420] : memref<2x128xbf16, #tpu.memory_space<vmem>>, vector<2x32xbf16>
    tpu.vector_store %arg13[%c0_419, %c32_420], %185 {strides = array<i32>} : memref<2x128xbf16, #tpu.memory_space<vmem>>, vector<2x32xbf16>,
    %c0_421 = arith.constant 0 : index
    %c64_422 = arith.constant 64 : index
    %596 = vector.load %arg13[%c0_421, %c64_422] : memref<2x128xbf16, #tpu.memory_space<vmem>>, vector<2x32xbf16>
    tpu.vector_store %arg13[%c0_421, %c64_422], %233 {strides = array<i32>} : memref<2x128xbf16, #tpu.memory_space<vmem>>, vector<2x32xbf16>,
    %c0_423 = arith.constant 0 : index
    %c96_424 = arith.constant 96 : index
    %597 = vector.load %arg13[%c0_423, %c96_424] : memref<2x128xbf16, #tpu.memory_space<vmem>>, vector<2x32xbf16>
    tpu.vector_store %arg13[%c0_423, %c96_424], %241 {strides = array<i32>} : memref<2x128xbf16, #tpu.memory_space<vmem>>, vector<2x32xbf16>,
    %c0_425 = arith.constant 0 : index
    %c0_426 = arith.constant 0 : index
    %598 = vector.load %arg13[%c0_425, %c0_426] : memref<2x128xbf16, #tpu.memory_space<vmem>>, vector<2x128xbf16>
    %cst_427 = arith.constant dense<0.000000e+00> : vector<2x64xf32>
    %599 = tpu.matmul %598, %394, %cst_427 {dimension_numbers = #tpu.dot_dimension_numbers<[1], [0], [0], [1], [0, 0, 1, 1], [], []>} : vector<2x128xbf16>, vector<128x64xbf16>, vector<2x64xf32> -> vector<2x64xf32>
    %600 = vector.broadcast %395 : vector<1x64xf32> to vector<2x64xf32>
    %601 = arith.addf %599, %600 : vector<2x64xf32>
    %cst_428 = arith.constant 0.000000e+00 : f32
    %602 = vector.broadcast %cst_428 : f32 to vector<2x64xf32>
    %603 = arith.maximumf %601, %602 : vector<2x64xf32>
    %604 = arith.truncf %603 : vector<2x64xf32> to vector<2x64xbf16>
    %c0_429 = arith.constant 0 : index
    %c0_430 = arith.constant 0 : index
    %605 = vector.load %arg13[%c0_429, %c0_430] : memref<2x128xbf16, #tpu.memory_space<vmem>>, vector<2x32xbf16>
    tpu.vector_store %arg13[%c0_429, %c0_430], %185 {strides = array<i32>} : memref<2x128xbf16, #tpu.memory_space<vmem>>, vector<2x32xbf16>,
    %c0_431 = arith.constant 0 : index
    %c32_432 = arith.constant 32 : index
    %606 = vector.load %arg13[%c0_431, %c32_432] : memref<2x128xbf16, #tpu.memory_space<vmem>>, vector<2x32xbf16>
    tpu.vector_store %arg13[%c0_431, %c32_432], %193 {strides = array<i32>} : memref<2x128xbf16, #tpu.memory_space<vmem>>, vector<2x32xbf16>,
    %c0_433 = arith.constant 0 : index
    %c64_434 = arith.constant 64 : index
    %607 = vector.load %arg13[%c0_433, %c64_434] : memref<2x128xbf16, #tpu.memory_space<vmem>>, vector<2x32xbf16>
    tpu.vector_store %arg13[%c0_433, %c64_434], %241 {strides = array<i32>} : memref<2x128xbf16, #tpu.memory_space<vmem>>, vector<2x32xbf16>,
    %c0_435 = arith.constant 0 : index
    %c96_436 = arith.constant 96 : index
    %608 = vector.load %arg13[%c0_435, %c96_436] : memref<2x128xbf16, #tpu.memory_space<vmem>>, vector<2x32xbf16>
    tpu.vector_store %arg13[%c0_435, %c96_436], %249 {strides = array<i32>} : memref<2x128xbf16, #tpu.memory_space<vmem>>, vector<2x32xbf16>,
    %c0_437 = arith.constant 0 : index
    %c0_438 = arith.constant 0 : index
    %609 = vector.load %arg13[%c0_437, %c0_438] : memref<2x128xbf16, #tpu.memory_space<vmem>>, vector<2x128xbf16>
    %cst_439 = arith.constant dense<0.000000e+00> : vector<2x64xf32>
    %610 = tpu.matmul %609, %394, %cst_439 {dimension_numbers = #tpu.dot_dimension_numbers<[1], [0], [0], [1], [0, 0, 1, 1], [], []>} : vector<2x128xbf16>, vector<128x64xbf16>, vector<2x64xf32> -> vector<2x64xf32>
    %611 = vector.broadcast %395 : vector<1x64xf32> to vector<2x64xf32>
    %612 = arith.addf %610, %611 : vector<2x64xf32>
    %cst_440 = arith.constant 0.000000e+00 : f32
    %613 = vector.broadcast %cst_440 : f32 to vector<2x64xf32>
    %614 = arith.maximumf %612, %613 : vector<2x64xf32>
    %615 = arith.truncf %614 : vector<2x64xf32> to vector<2x64xbf16>
    %c0_441 = arith.constant 0 : index
    %c0_442 = arith.constant 0 : index
    %616 = vector.load %arg13[%c0_441, %c0_442] : memref<2x128xbf16, #tpu.memory_space<vmem>>, vector<2x32xbf16>
    tpu.vector_store %arg13[%c0_441, %c0_442], %193 {strides = array<i32>} : memref<2x128xbf16, #tpu.memory_space<vmem>>, vector<2x32xbf16>,
    %c0_443 = arith.constant 0 : index
    %c32_444 = arith.constant 32 : index
    %617 = vector.load %arg13[%c0_443, %c32_444] : memref<2x128xbf16, #tpu.memory_space<vmem>>, vector<2x32xbf16>
    tpu.vector_store %arg13[%c0_443, %c32_444], %201 {strides = array<i32>} : memref<2x128xbf16, #tpu.memory_space<vmem>>, vector<2x32xbf16>,
    %c0_445 = arith.constant 0 : index
    %c64_446 = arith.constant 64 : index
    %618 = vector.load %arg13[%c0_445, %c64_446] : memref<2x128xbf16, #tpu.memory_space<vmem>>, vector<2x32xbf16>
    tpu.vector_store %arg13[%c0_445, %c64_446], %249 {strides = array<i32>} : memref<2x128xbf16, #tpu.memory_space<vmem>>, vector<2x32xbf16>,
    %c0_447 = arith.constant 0 : index
    %c96_448 = arith.constant 96 : index
    %619 = vector.load %arg13[%c0_447, %c96_448] : memref<2x128xbf16, #tpu.memory_space<vmem>>, vector<2x32xbf16>
    tpu.vector_store %arg13[%c0_447, %c96_448], %257 {strides = array<i32>} : memref<2x128xbf16, #tpu.memory_space<vmem>>, vector<2x32xbf16>,
    %c0_449 = arith.constant 0 : index
    %c0_450 = arith.constant 0 : index
    %620 = vector.load %arg13[%c0_449, %c0_450] : memref<2x128xbf16, #tpu.memory_space<vmem>>, vector<2x128xbf16>
    %cst_451 = arith.constant dense<0.000000e+00> : vector<2x64xf32>
    %621 = tpu.matmul %620, %394, %cst_451 {dimension_numbers = #tpu.dot_dimension_numbers<[1], [0], [0], [1], [0, 0, 1, 1], [], []>} : vector<2x128xbf16>, vector<128x64xbf16>, vector<2x64xf32> -> vector<2x64xf32>
    %622 = vector.broadcast %395 : vector<1x64xf32> to vector<2x64xf32>
    %623 = arith.addf %621, %622 : vector<2x64xf32>
    %cst_452 = arith.constant 0.000000e+00 : f32
    %624 = vector.broadcast %cst_452 : f32 to vector<2x64xf32>
    %625 = arith.maximumf %623, %624 : vector<2x64xf32>
    %626 = arith.truncf %625 : vector<2x64xf32> to vector<2x64xbf16>
    %c0_453 = arith.constant 0 : index
    %c0_454 = arith.constant 0 : index
    %627 = vector.load %arg13[%c0_453, %c0_454] : memref<2x128xbf16, #tpu.memory_space<vmem>>, vector<2x32xbf16>
    tpu.vector_store %arg13[%c0_453, %c0_454], %201 {strides = array<i32>} : memref<2x128xbf16, #tpu.memory_space<vmem>>, vector<2x32xbf16>,
    %c0_455 = arith.constant 0 : index
    %c32_456 = arith.constant 32 : index
    %628 = vector.load %arg13[%c0_455, %c32_456] : memref<2x128xbf16, #tpu.memory_space<vmem>>, vector<2x32xbf16>
    tpu.vector_store %arg13[%c0_455, %c32_456], %209 {strides = array<i32>} : memref<2x128xbf16, #tpu.memory_space<vmem>>, vector<2x32xbf16>,
    %c0_457 = arith.constant 0 : index
    %c64_458 = arith.constant 64 : index
    %629 = vector.load %arg13[%c0_457, %c64_458] : memref<2x128xbf16, #tpu.memory_space<vmem>>, vector<2x32xbf16>
    tpu.vector_store %arg13[%c0_457, %c64_458], %257 {strides = array<i32>} : memref<2x128xbf16, #tpu.memory_space<vmem>>, vector<2x32xbf16>,
    %c0_459 = arith.constant 0 : index
    %c96_460 = arith.constant 96 : index
    %630 = vector.load %arg13[%c0_459, %c96_460] : memref<2x128xbf16, #tpu.memory_space<vmem>>, vector<2x32xbf16>
    tpu.vector_store %arg13[%c0_459, %c96_460], %265 {strides = array<i32>} : memref<2x128xbf16, #tpu.memory_space<vmem>>, vector<2x32xbf16>,
    %c0_461 = arith.constant 0 : index
    %c0_462 = arith.constant 0 : index
    %631 = vector.load %arg13[%c0_461, %c0_462] : memref<2x128xbf16, #tpu.memory_space<vmem>>, vector<2x128xbf16>
    %cst_463 = arith.constant dense<0.000000e+00> : vector<2x64xf32>
    %632 = tpu.matmul %631, %394, %cst_463 {dimension_numbers = #tpu.dot_dimension_numbers<[1], [0], [0], [1], [0, 0, 1, 1], [], []>} : vector<2x128xbf16>, vector<128x64xbf16>, vector<2x64xf32> -> vector<2x64xf32>
    %633 = vector.broadcast %395 : vector<1x64xf32> to vector<2x64xf32>
    %634 = arith.addf %632, %633 : vector<2x64xf32>
    %cst_464 = arith.constant 0.000000e+00 : f32
    %635 = vector.broadcast %cst_464 : f32 to vector<2x64xf32>
    %636 = arith.maximumf %634, %635 : vector<2x64xf32>
    %637 = arith.truncf %636 : vector<2x64xf32> to vector<2x64xbf16>
    %c0_465 = arith.constant 0 : index
    %c0_466 = arith.constant 0 : index
    %638 = vector.load %arg13[%c0_465, %c0_466] : memref<2x128xbf16, #tpu.memory_space<vmem>>, vector<2x32xbf16>
    tpu.vector_store %arg13[%c0_465, %c0_466], %209 {strides = array<i32>} : memref<2x128xbf16, #tpu.memory_space<vmem>>, vector<2x32xbf16>,
    %c0_467 = arith.constant 0 : index
    %c32_468 = arith.constant 32 : index
    %639 = vector.load %arg13[%c0_467, %c32_468] : memref<2x128xbf16, #tpu.memory_space<vmem>>, vector<2x32xbf16>
    tpu.vector_store %arg13[%c0_467, %c32_468], %217 {strides = array<i32>} : memref<2x128xbf16, #tpu.memory_space<vmem>>, vector<2x32xbf16>,
    %c0_469 = arith.constant 0 : index
    %c64_470 = arith.constant 64 : index
    %640 = vector.load %arg13[%c0_469, %c64_470] : memref<2x128xbf16, #tpu.memory_space<vmem>>, vector<2x32xbf16>
    tpu.vector_store %arg13[%c0_469, %c64_470], %265 {strides = array<i32>} : memref<2x128xbf16, #tpu.memory_space<vmem>>, vector<2x32xbf16>,
    %c0_471 = arith.constant 0 : index
    %c96_472 = arith.constant 96 : index
    %641 = vector.load %arg13[%c0_471, %c96_472] : memref<2x128xbf16, #tpu.memory_space<vmem>>, vector<2x32xbf16>
    tpu.vector_store %arg13[%c0_471, %c96_472], %273 {strides = array<i32>} : memref<2x128xbf16, #tpu.memory_space<vmem>>, vector<2x32xbf16>,
    %c0_473 = arith.constant 0 : index
    %c0_474 = arith.constant 0 : index
    %642 = vector.load %arg13[%c0_473, %c0_474] : memref<2x128xbf16, #tpu.memory_space<vmem>>, vector<2x128xbf16>
    %cst_475 = arith.constant dense<0.000000e+00> : vector<2x64xf32>
    %643 = tpu.matmul %642, %394, %cst_475 {dimension_numbers = #tpu.dot_dimension_numbers<[1], [0], [0], [1], [0, 0, 1, 1], [], []>} : vector<2x128xbf16>, vector<128x64xbf16>, vector<2x64xf32> -> vector<2x64xf32>
    %644 = vector.broadcast %395 : vector<1x64xf32> to vector<2x64xf32>
    %645 = arith.addf %643, %644 : vector<2x64xf32>
    %cst_476 = arith.constant 0.000000e+00 : f32
    %646 = vector.broadcast %cst_476 : f32 to vector<2x64xf32>
    %647 = arith.maximumf %645, %646 : vector<2x64xf32>
    %648 = arith.truncf %647 : vector<2x64xf32> to vector<2x64xbf16>
    %c0_477 = arith.constant 0 : index
    %c0_478 = arith.constant 0 : index
    %649 = vector.load %arg13[%c0_477, %c0_478] : memref<2x128xbf16, #tpu.memory_space<vmem>>, vector<2x32xbf16>
    tpu.vector_store %arg13[%c0_477, %c0_478], %217 {strides = array<i32>} : memref<2x128xbf16, #tpu.memory_space<vmem>>, vector<2x32xbf16>,
    %c0_479 = arith.constant 0 : index
    %c32_480 = arith.constant 32 : index
    %650 = vector.load %arg13[%c0_479, %c32_480] : memref<2x128xbf16, #tpu.memory_space<vmem>>, vector<2x32xbf16>
    tpu.vector_store %arg13[%c0_479, %c32_480], %225 {strides = array<i32>} : memref<2x128xbf16, #tpu.memory_space<vmem>>, vector<2x32xbf16>,
    %c0_481 = arith.constant 0 : index
    %c64_482 = arith.constant 64 : index
    %651 = vector.load %arg13[%c0_481, %c64_482] : memref<2x128xbf16, #tpu.memory_space<vmem>>, vector<2x32xbf16>
    tpu.vector_store %arg13[%c0_481, %c64_482], %273 {strides = array<i32>} : memref<2x128xbf16, #tpu.memory_space<vmem>>, vector<2x32xbf16>,
    %c0_483 = arith.constant 0 : index
    %c96_484 = arith.constant 96 : index
    %652 = vector.load %arg13[%c0_483, %c96_484] : memref<2x128xbf16, #tpu.memory_space<vmem>>, vector<2x32xbf16>
    tpu.vector_store %arg13[%c0_483, %c96_484], %281 {strides = array<i32>} : memref<2x128xbf16, #tpu.memory_space<vmem>>, vector<2x32xbf16>,
    %c0_485 = arith.constant 0 : index
    %c0_486 = arith.constant 0 : index
    %653 = vector.load %arg13[%c0_485, %c0_486] : memref<2x128xbf16, #tpu.memory_space<vmem>>, vector<2x128xbf16>
    %cst_487 = arith.constant dense<0.000000e+00> : vector<2x64xf32>
    %654 = tpu.matmul %653, %394, %cst_487 {dimension_numbers = #tpu.dot_dimension_numbers<[1], [0], [0], [1], [0, 0, 1, 1], [], []>} : vector<2x128xbf16>, vector<128x64xbf16>, vector<2x64xf32> -> vector<2x64xf32>
    %655 = vector.broadcast %395 : vector<1x64xf32> to vector<2x64xf32>
    %656 = arith.addf %654, %655 : vector<2x64xf32>
    %cst_488 = arith.constant 0.000000e+00 : f32
    %657 = vector.broadcast %cst_488 : f32 to vector<2x64xf32>
    %658 = arith.maximumf %656, %657 : vector<2x64xf32>
    %659 = arith.truncf %658 : vector<2x64xf32> to vector<2x64xbf16>
    %c0_489 = arith.constant 0 : index
    %c0_490 = arith.constant 0 : index
    %660 = vector.load %arg13[%c0_489, %c0_490] : memref<2x128xbf16, #tpu.memory_space<vmem>>, vector<2x32xbf16>
    tpu.vector_store %arg13[%c0_489, %c0_490], %233 {strides = array<i32>} : memref<2x128xbf16, #tpu.memory_space<vmem>>, vector<2x32xbf16>,
    %c0_491 = arith.constant 0 : index
    %c32_492 = arith.constant 32 : index
    %661 = vector.load %arg13[%c0_491, %c32_492] : memref<2x128xbf16, #tpu.memory_space<vmem>>, vector<2x32xbf16>
    tpu.vector_store %arg13[%c0_491, %c32_492], %241 {strides = array<i32>} : memref<2x128xbf16, #tpu.memory_space<vmem>>, vector<2x32xbf16>,
    %c0_493 = arith.constant 0 : index
    %c64_494 = arith.constant 64 : index
    %662 = vector.load %arg13[%c0_493, %c64_494] : memref<2x128xbf16, #tpu.memory_space<vmem>>, vector<2x32xbf16>
    tpu.vector_store %arg13[%c0_493, %c64_494], %289 {strides = array<i32>} : memref<2x128xbf16, #tpu.memory_space<vmem>>, vector<2x32xbf16>,
    %c0_495 = arith.constant 0 : index
    %c96_496 = arith.constant 96 : index
    %663 = vector.load %arg13[%c0_495, %c96_496] : memref<2x128xbf16, #tpu.memory_space<vmem>>, vector<2x32xbf16>
    tpu.vector_store %arg13[%c0_495, %c96_496], %297 {strides = array<i32>} : memref<2x128xbf16, #tpu.memory_space<vmem>>, vector<2x32xbf16>,
    %c0_497 = arith.constant 0 : index
    %c0_498 = arith.constant 0 : index
    %664 = vector.load %arg13[%c0_497, %c0_498] : memref<2x128xbf16, #tpu.memory_space<vmem>>, vector<2x128xbf16>
    %cst_499 = arith.constant dense<0.000000e+00> : vector<2x64xf32>
    %665 = tpu.matmul %664, %394, %cst_499 {dimension_numbers = #tpu.dot_dimension_numbers<[1], [0], [0], [1], [0, 0, 1, 1], [], []>} : vector<2x128xbf16>, vector<128x64xbf16>, vector<2x64xf32> -> vector<2x64xf32>
    %666 = vector.broadcast %395 : vector<1x64xf32> to vector<2x64xf32>
    %667 = arith.addf %665, %666 : vector<2x64xf32>
    %cst_500 = arith.constant 0.000000e+00 : f32
    %668 = vector.broadcast %cst_500 : f32 to vector<2x64xf32>
    %669 = arith.maximumf %667, %668 : vector<2x64xf32>
    %670 = arith.truncf %669 : vector<2x64xf32> to vector<2x64xbf16>
    %c0_501 = arith.constant 0 : index
    %c0_502 = arith.constant 0 : index
    %671 = vector.load %arg13[%c0_501, %c0_502] : memref<2x128xbf16, #tpu.memory_space<vmem>>, vector<2x32xbf16>
    tpu.vector_store %arg13[%c0_501, %c0_502], %241 {strides = array<i32>} : memref<2x128xbf16, #tpu.memory_space<vmem>>, vector<2x32xbf16>,
    %c0_503 = arith.constant 0 : index
    %c32_504 = arith.constant 32 : index
    %672 = vector.load %arg13[%c0_503, %c32_504] : memref<2x128xbf16, #tpu.memory_space<vmem>>, vector<2x32xbf16>
    tpu.vector_store %arg13[%c0_503, %c32_504], %249 {strides = array<i32>} : memref<2x128xbf16, #tpu.memory_space<vmem>>, vector<2x32xbf16>,
    %c0_505 = arith.constant 0 : index
    %c64_506 = arith.constant 64 : index
    %673 = vector.load %arg13[%c0_505, %c64_506] : memref<2x128xbf16, #tpu.memory_space<vmem>>, vector<2x32xbf16>
    tpu.vector_store %arg13[%c0_505, %c64_506], %297 {strides = array<i32>} : memref<2x128xbf16, #tpu.memory_space<vmem>>, vector<2x32xbf16>,
    %c0_507 = arith.constant 0 : index
    %c96_508 = arith.constant 96 : index
    %674 = vector.load %arg13[%c0_507, %c96_508] : memref<2x128xbf16, #tpu.memory_space<vmem>>, vector<2x32xbf16>
    tpu.vector_store %arg13[%c0_507, %c96_508], %305 {strides = array<i32>} : memref<2x128xbf16, #tpu.memory_space<vmem>>, vector<2x32xbf16>,
    %c0_509 = arith.constant 0 : index
    %c0_510 = arith.constant 0 : index
    %675 = vector.load %arg13[%c0_509, %c0_510] : memref<2x128xbf16, #tpu.memory_space<vmem>>, vector<2x128xbf16>
    %cst_511 = arith.constant dense<0.000000e+00> : vector<2x64xf32>
    %676 = tpu.matmul %675, %394, %cst_511 {dimension_numbers = #tpu.dot_dimension_numbers<[1], [0], [0], [1], [0, 0, 1, 1], [], []>} : vector<2x128xbf16>, vector<128x64xbf16>, vector<2x64xf32> -> vector<2x64xf32>
    %677 = vector.broadcast %395 : vector<1x64xf32> to vector<2x64xf32>
    %678 = arith.addf %676, %677 : vector<2x64xf32>
    %cst_512 = arith.constant 0.000000e+00 : f32
    %679 = vector.broadcast %cst_512 : f32 to vector<2x64xf32>
    %680 = arith.maximumf %678, %679 : vector<2x64xf32>
    %681 = arith.truncf %680 : vector<2x64xf32> to vector<2x64xbf16>
    %c0_513 = arith.constant 0 : index
    %c0_514 = arith.constant 0 : index
    %682 = vector.load %arg13[%c0_513, %c0_514] : memref<2x128xbf16, #tpu.memory_space<vmem>>, vector<2x32xbf16>
    tpu.vector_store %arg13[%c0_513, %c0_514], %249 {strides = array<i32>} : memref<2x128xbf16, #tpu.memory_space<vmem>>, vector<2x32xbf16>,
    %c0_515 = arith.constant 0 : index
    %c32_516 = arith.constant 32 : index
    %683 = vector.load %arg13[%c0_515, %c32_516] : memref<2x128xbf16, #tpu.memory_space<vmem>>, vector<2x32xbf16>
    tpu.vector_store %arg13[%c0_515, %c32_516], %257 {strides = array<i32>} : memref<2x128xbf16, #tpu.memory_space<vmem>>, vector<2x32xbf16>,
    %c0_517 = arith.constant 0 : index
    %c64_518 = arith.constant 64 : index
    %684 = vector.load %arg13[%c0_517, %c64_518] : memref<2x128xbf16, #tpu.memory_space<vmem>>, vector<2x32xbf16>
    tpu.vector_store %arg13[%c0_517, %c64_518], %305 {strides = array<i32>} : memref<2x128xbf16, #tpu.memory_space<vmem>>, vector<2x32xbf16>,
    %c0_519 = arith.constant 0 : index
    %c96_520 = arith.constant 96 : index
    %685 = vector.load %arg13[%c0_519, %c96_520] : memref<2x128xbf16, #tpu.memory_space<vmem>>, vector<2x32xbf16>
    tpu.vector_store %arg13[%c0_519, %c96_520], %313 {strides = array<i32>} : memref<2x128xbf16, #tpu.memory_space<vmem>>, vector<2x32xbf16>,
    %c0_521 = arith.constant 0 : index
    %c0_522 = arith.constant 0 : index
    %686 = vector.load %arg13[%c0_521, %c0_522] : memref<2x128xbf16, #tpu.memory_space<vmem>>, vector<2x128xbf16>
    %cst_523 = arith.constant dense<0.000000e+00> : vector<2x64xf32>
    %687 = tpu.matmul %686, %394, %cst_523 {dimension_numbers = #tpu.dot_dimension_numbers<[1], [0], [0], [1], [0, 0, 1, 1], [], []>} : vector<2x128xbf16>, vector<128x64xbf16>, vector<2x64xf32> -> vector<2x64xf32>
    %688 = vector.broadcast %395 : vector<1x64xf32> to vector<2x64xf32>
    %689 = arith.addf %687, %688 : vector<2x64xf32>
    %cst_524 = arith.constant 0.000000e+00 : f32
    %690 = vector.broadcast %cst_524 : f32 to vector<2x64xf32>
    %691 = arith.maximumf %689, %690 : vector<2x64xf32>
    %692 = arith.truncf %691 : vector<2x64xf32> to vector<2x64xbf16>
    %c0_525 = arith.constant 0 : index
    %c0_526 = arith.constant 0 : index
    %693 = vector.load %arg13[%c0_525, %c0_526] : memref<2x128xbf16, #tpu.memory_space<vmem>>, vector<2x32xbf16>
    tpu.vector_store %arg13[%c0_525, %c0_526], %257 {strides = array<i32>} : memref<2x128xbf16, #tpu.memory_space<vmem>>, vector<2x32xbf16>,
    %c0_527 = arith.constant 0 : index
    %c32_528 = arith.constant 32 : index
    %694 = vector.load %arg13[%c0_527, %c32_528] : memref<2x128xbf16, #tpu.memory_space<vmem>>, vector<2x32xbf16>
    tpu.vector_store %arg13[%c0_527, %c32_528], %265 {strides = array<i32>} : memref<2x128xbf16, #tpu.memory_space<vmem>>, vector<2x32xbf16>,
    %c0_529 = arith.constant 0 : index
    %c64_530 = arith.constant 64 : index
    %695 = vector.load %arg13[%c0_529, %c64_530] : memref<2x128xbf16, #tpu.memory_space<vmem>>, vector<2x32xbf16>
    tpu.vector_store %arg13[%c0_529, %c64_530], %313 {strides = array<i32>} : memref<2x128xbf16, #tpu.memory_space<vmem>>, vector<2x32xbf16>,
    %c0_531 = arith.constant 0 : index
    %c96_532 = arith.constant 96 : index
    %696 = vector.load %arg13[%c0_531, %c96_532] : memref<2x128xbf16, #tpu.memory_space<vmem>>, vector<2x32xbf16>
    tpu.vector_store %arg13[%c0_531, %c96_532], %321 {strides = array<i32>} : memref<2x128xbf16, #tpu.memory_space<vmem>>, vector<2x32xbf16>,
    %c0_533 = arith.constant 0 : index
    %c0_534 = arith.constant 0 : index
    %697 = vector.load %arg13[%c0_533, %c0_534] : memref<2x128xbf16, #tpu.memory_space<vmem>>, vector<2x128xbf16>
    %cst_535 = arith.constant dense<0.000000e+00> : vector<2x64xf32>
    %698 = tpu.matmul %697, %394, %cst_535 {dimension_numbers = #tpu.dot_dimension_numbers<[1], [0], [0], [1], [0, 0, 1, 1], [], []>} : vector<2x128xbf16>, vector<128x64xbf16>, vector<2x64xf32> -> vector<2x64xf32>
    %699 = vector.broadcast %395 : vector<1x64xf32> to vector<2x64xf32>
    %700 = arith.addf %698, %699 : vector<2x64xf32>
    %cst_536 = arith.constant 0.000000e+00 : f32
    %701 = vector.broadcast %cst_536 : f32 to vector<2x64xf32>
    %702 = arith.maximumf %700, %701 : vector<2x64xf32>
    %703 = arith.truncf %702 : vector<2x64xf32> to vector<2x64xbf16>
    %c0_537 = arith.constant 0 : index
    %c0_538 = arith.constant 0 : index
    %704 = vector.load %arg13[%c0_537, %c0_538] : memref<2x128xbf16, #tpu.memory_space<vmem>>, vector<2x32xbf16>
    tpu.vector_store %arg13[%c0_537, %c0_538], %265 {strides = array<i32>} : memref<2x128xbf16, #tpu.memory_space<vmem>>, vector<2x32xbf16>,
    %c0_539 = arith.constant 0 : index
    %c32_540 = arith.constant 32 : index
    %705 = vector.load %arg13[%c0_539, %c32_540] : memref<2x128xbf16, #tpu.memory_space<vmem>>, vector<2x32xbf16>
    tpu.vector_store %arg13[%c0_539, %c32_540], %273 {strides = array<i32>} : memref<2x128xbf16, #tpu.memory_space<vmem>>, vector<2x32xbf16>,
    %c0_541 = arith.constant 0 : index
    %c64_542 = arith.constant 64 : index
    %706 = vector.load %arg13[%c0_541, %c64_542] : memref<2x128xbf16, #tpu.memory_space<vmem>>, vector<2x32xbf16>
    tpu.vector_store %arg13[%c0_541, %c64_542], %321 {strides = array<i32>} : memref<2x128xbf16, #tpu.memory_space<vmem>>, vector<2x32xbf16>,
    %c0_543 = arith.constant 0 : index
    %c96_544 = arith.constant 96 : index
    %707 = vector.load %arg13[%c0_543, %c96_544] : memref<2x128xbf16, #tpu.memory_space<vmem>>, vector<2x32xbf16>
    tpu.vector_store %arg13[%c0_543, %c96_544], %329 {strides = array<i32>} : memref<2x128xbf16, #tpu.memory_space<vmem>>, vector<2x32xbf16>,
    %c0_545 = arith.constant 0 : index
    %c0_546 = arith.constant 0 : index
    %708 = vector.load %arg13[%c0_545, %c0_546] : memref<2x128xbf16, #tpu.memory_space<vmem>>, vector<2x128xbf16>
    %cst_547 = arith.constant dense<0.000000e+00> : vector<2x64xf32>
    %709 = tpu.matmul %708, %394, %cst_547 {dimension_numbers = #tpu.dot_dimension_numbers<[1], [0], [0], [1], [0, 0, 1, 1], [], []>} : vector<2x128xbf16>, vector<128x64xbf16>, vector<2x64xf32> -> vector<2x64xf32>
    %710 = vector.broadcast %395 : vector<1x64xf32> to vector<2x64xf32>
    %711 = arith.addf %709, %710 : vector<2x64xf32>
    %cst_548 = arith.constant 0.000000e+00 : f32
    %712 = vector.broadcast %cst_548 : f32 to vector<2x64xf32>
    %713 = arith.maximumf %711, %712 : vector<2x64xf32>
    %714 = arith.truncf %713 : vector<2x64xf32> to vector<2x64xbf16>
    %c0_549 = arith.constant 0 : index
    %c0_550 = arith.constant 0 : index
    %715 = vector.load %arg13[%c0_549, %c0_550] : memref<2x128xbf16, #tpu.memory_space<vmem>>, vector<2x32xbf16>
    tpu.vector_store %arg13[%c0_549, %c0_550], %273 {strides = array<i32>} : memref<2x128xbf16, #tpu.memory_space<vmem>>, vector<2x32xbf16>,
    %c0_551 = arith.constant 0 : index
    %c32_552 = arith.constant 32 : index
    %716 = vector.load %arg13[%c0_551, %c32_552] : memref<2x128xbf16, #tpu.memory_space<vmem>>, vector<2x32xbf16>
    tpu.vector_store %arg13[%c0_551, %c32_552], %281 {strides = array<i32>} : memref<2x128xbf16, #tpu.memory_space<vmem>>, vector<2x32xbf16>,
    %c0_553 = arith.constant 0 : index
    %c64_554 = arith.constant 64 : index
    %717 = vector.load %arg13[%c0_553, %c64_554] : memref<2x128xbf16, #tpu.memory_space<vmem>>, vector<2x32xbf16>
    tpu.vector_store %arg13[%c0_553, %c64_554], %329 {strides = array<i32>} : memref<2x128xbf16, #tpu.memory_space<vmem>>, vector<2x32xbf16>,
    %c0_555 = arith.constant 0 : index
    %c96_556 = arith.constant 96 : index
    %718 = vector.load %arg13[%c0_555, %c96_556] : memref<2x128xbf16, #tpu.memory_space<vmem>>, vector<2x32xbf16>
    tpu.vector_store %arg13[%c0_555, %c96_556], %337 {strides = array<i32>} : memref<2x128xbf16, #tpu.memory_space<vmem>>, vector<2x32xbf16>,
    %c0_557 = arith.constant 0 : index
    %c0_558 = arith.constant 0 : index
    %719 = vector.load %arg13[%c0_557, %c0_558] : memref<2x128xbf16, #tpu.memory_space<vmem>>, vector<2x128xbf16>
    %cst_559 = arith.constant dense<0.000000e+00> : vector<2x64xf32>
    %720 = tpu.matmul %719, %394, %cst_559 {dimension_numbers = #tpu.dot_dimension_numbers<[1], [0], [0], [1], [0, 0, 1, 1], [], []>} : vector<2x128xbf16>, vector<128x64xbf16>, vector<2x64xf32> -> vector<2x64xf32>
    %721 = vector.broadcast %395 : vector<1x64xf32> to vector<2x64xf32>
    %722 = arith.addf %720, %721 : vector<2x64xf32>
    %cst_560 = arith.constant 0.000000e+00 : f32
    %723 = vector.broadcast %cst_560 : f32 to vector<2x64xf32>
    %724 = arith.maximumf %722, %723 : vector<2x64xf32>
    %725 = arith.truncf %724 : vector<2x64xf32> to vector<2x64xbf16>
    %c0_561 = arith.constant 0 : index
    %c0_562 = arith.constant 0 : index
    %726 = vector.load %arg13[%c0_561, %c0_562] : memref<2x128xbf16, #tpu.memory_space<vmem>>, vector<2x32xbf16>
    tpu.vector_store %arg13[%c0_561, %c0_562], %289 {strides = array<i32>} : memref<2x128xbf16, #tpu.memory_space<vmem>>, vector<2x32xbf16>,
    %c0_563 = arith.constant 0 : index
    %c32_564 = arith.constant 32 : index
    %727 = vector.load %arg13[%c0_563, %c32_564] : memref<2x128xbf16, #tpu.memory_space<vmem>>, vector<2x32xbf16>
    tpu.vector_store %arg13[%c0_563, %c32_564], %297 {strides = array<i32>} : memref<2x128xbf16, #tpu.memory_space<vmem>>, vector<2x32xbf16>,
    %c0_565 = arith.constant 0 : index
    %c64_566 = arith.constant 64 : index
    %728 = vector.load %arg13[%c0_565, %c64_566] : memref<2x128xbf16, #tpu.memory_space<vmem>>, vector<2x32xbf16>
    tpu.vector_store %arg13[%c0_565, %c64_566], %345 {strides = array<i32>} : memref<2x128xbf16, #tpu.memory_space<vmem>>, vector<2x32xbf16>,
    %c0_567 = arith.constant 0 : index
    %c96_568 = arith.constant 96 : index
    %729 = vector.load %arg13[%c0_567, %c96_568] : memref<2x128xbf16, #tpu.memory_space<vmem>>, vector<2x32xbf16>
    tpu.vector_store %arg13[%c0_567, %c96_568], %353 {strides = array<i32>} : memref<2x128xbf16, #tpu.memory_space<vmem>>, vector<2x32xbf16>,
    %c0_569 = arith.constant 0 : index
    %c0_570 = arith.constant 0 : index
    %730 = vector.load %arg13[%c0_569, %c0_570] : memref<2x128xbf16, #tpu.memory_space<vmem>>, vector<2x128xbf16>
    %cst_571 = arith.constant dense<0.000000e+00> : vector<2x64xf32>
    %731 = tpu.matmul %730, %394, %cst_571 {dimension_numbers = #tpu.dot_dimension_numbers<[1], [0], [0], [1], [0, 0, 1, 1], [], []>} : vector<2x128xbf16>, vector<128x64xbf16>, vector<2x64xf32> -> vector<2x64xf32>
    %732 = vector.broadcast %395 : vector<1x64xf32> to vector<2x64xf32>
    %733 = arith.addf %731, %732 : vector<2x64xf32>
    %cst_572 = arith.constant 0.000000e+00 : f32
    %734 = vector.broadcast %cst_572 : f32 to vector<2x64xf32>
    %735 = arith.maximumf %733, %734 : vector<2x64xf32>
    %736 = arith.truncf %735 : vector<2x64xf32> to vector<2x64xbf16>
    %c0_573 = arith.constant 0 : index
    %c0_574 = arith.constant 0 : index
    %737 = vector.load %arg13[%c0_573, %c0_574] : memref<2x128xbf16, #tpu.memory_space<vmem>>, vector<2x32xbf16>
    tpu.vector_store %arg13[%c0_573, %c0_574], %297 {strides = array<i32>} : memref<2x128xbf16, #tpu.memory_space<vmem>>, vector<2x32xbf16>,
    %c0_575 = arith.constant 0 : index
    %c32_576 = arith.constant 32 : index
    %738 = vector.load %arg13[%c0_575, %c32_576] : memref<2x128xbf16, #tpu.memory_space<vmem>>, vector<2x32xbf16>
    tpu.vector_store %arg13[%c0_575, %c32_576], %305 {strides = array<i32>} : memref<2x128xbf16, #tpu.memory_space<vmem>>, vector<2x32xbf16>,
    %c0_577 = arith.constant 0 : index
    %c64_578 = arith.constant 64 : index
    %739 = vector.load %arg13[%c0_577, %c64_578] : memref<2x128xbf16, #tpu.memory_space<vmem>>, vector<2x32xbf16>
    tpu.vector_store %arg13[%c0_577, %c64_578], %353 {strides = array<i32>} : memref<2x128xbf16, #tpu.memory_space<vmem>>, vector<2x32xbf16>,
    %c0_579 = arith.constant 0 : index
    %c96_580 = arith.constant 96 : index
    %740 = vector.load %arg13[%c0_579, %c96_580] : memref<2x128xbf16, #tpu.memory_space<vmem>>, vector<2x32xbf16>
    tpu.vector_store %arg13[%c0_579, %c96_580], %361 {strides = array<i32>} : memref<2x128xbf16, #tpu.memory_space<vmem>>, vector<2x32xbf16>,
    %c0_581 = arith.constant 0 : index
    %c0_582 = arith.constant 0 : index
    %741 = vector.load %arg13[%c0_581, %c0_582] : memref<2x128xbf16, #tpu.memory_space<vmem>>, vector<2x128xbf16>
    %cst_583 = arith.constant dense<0.000000e+00> : vector<2x64xf32>
    %742 = tpu.matmul %741, %394, %cst_583 {dimension_numbers = #tpu.dot_dimension_numbers<[1], [0], [0], [1], [0, 0, 1, 1], [], []>} : vector<2x128xbf16>, vector<128x64xbf16>, vector<2x64xf32> -> vector<2x64xf32>
    %743 = vector.broadcast %395 : vector<1x64xf32> to vector<2x64xf32>
    %744 = arith.addf %742, %743 : vector<2x64xf32>
    %cst_584 = arith.constant 0.000000e+00 : f32
    %745 = vector.broadcast %cst_584 : f32 to vector<2x64xf32>
    %746 = arith.maximumf %744, %745 : vector<2x64xf32>
    %747 = arith.truncf %746 : vector<2x64xf32> to vector<2x64xbf16>
    %c0_585 = arith.constant 0 : index
    %c0_586 = arith.constant 0 : index
    %748 = vector.load %arg13[%c0_585, %c0_586] : memref<2x128xbf16, #tpu.memory_space<vmem>>, vector<2x32xbf16>
    tpu.vector_store %arg13[%c0_585, %c0_586], %305 {strides = array<i32>} : memref<2x128xbf16, #tpu.memory_space<vmem>>, vector<2x32xbf16>,
    %c0_587 = arith.constant 0 : index
    %c32_588 = arith.constant 32 : index
    %749 = vector.load %arg13[%c0_587, %c32_588] : memref<2x128xbf16, #tpu.memory_space<vmem>>, vector<2x32xbf16>
    tpu.vector_store %arg13[%c0_587, %c32_588], %313 {strides = array<i32>} : memref<2x128xbf16, #tpu.memory_space<vmem>>, vector<2x32xbf16>,
    %c0_589 = arith.constant 0 : index
    %c64_590 = arith.constant 64 : index
    %750 = vector.load %arg13[%c0_589, %c64_590] : memref<2x128xbf16, #tpu.memory_space<vmem>>, vector<2x32xbf16>
    tpu.vector_store %arg13[%c0_589, %c64_590], %361 {strides = array<i32>} : memref<2x128xbf16, #tpu.memory_space<vmem>>, vector<2x32xbf16>,
    %c0_591 = arith.constant 0 : index
    %c96_592 = arith.constant 96 : index
    %751 = vector.load %arg13[%c0_591, %c96_592] : memref<2x128xbf16, #tpu.memory_space<vmem>>, vector<2x32xbf16>
    tpu.vector_store %arg13[%c0_591, %c96_592], %369 {strides = array<i32>} : memref<2x128xbf16, #tpu.memory_space<vmem>>, vector<2x32xbf16>,
    %c0_593 = arith.constant 0 : index
    %c0_594 = arith.constant 0 : index
    %752 = vector.load %arg13[%c0_593, %c0_594] : memref<2x128xbf16, #tpu.memory_space<vmem>>, vector<2x128xbf16>
    %cst_595 = arith.constant dense<0.000000e+00> : vector<2x64xf32>
    %753 = tpu.matmul %752, %394, %cst_595 {dimension_numbers = #tpu.dot_dimension_numbers<[1], [0], [0], [1], [0, 0, 1, 1], [], []>} : vector<2x128xbf16>, vector<128x64xbf16>, vector<2x64xf32> -> vector<2x64xf32>
    %754 = vector.broadcast %395 : vector<1x64xf32> to vector<2x64xf32>
    %755 = arith.addf %753, %754 : vector<2x64xf32>
    %cst_596 = arith.constant 0.000000e+00 : f32
    %756 = vector.broadcast %cst_596 : f32 to vector<2x64xf32>
    %757 = arith.maximumf %755, %756 : vector<2x64xf32>
    %758 = arith.truncf %757 : vector<2x64xf32> to vector<2x64xbf16>
    %c0_597 = arith.constant 0 : index
    %c0_598 = arith.constant 0 : index
    %759 = vector.load %arg13[%c0_597, %c0_598] : memref<2x128xbf16, #tpu.memory_space<vmem>>, vector<2x32xbf16>
    tpu.vector_store %arg13[%c0_597, %c0_598], %313 {strides = array<i32>} : memref<2x128xbf16, #tpu.memory_space<vmem>>, vector<2x32xbf16>,
    %c0_599 = arith.constant 0 : index
    %c32_600 = arith.constant 32 : index
    %760 = vector.load %arg13[%c0_599, %c32_600] : memref<2x128xbf16, #tpu.memory_space<vmem>>, vector<2x32xbf16>
    tpu.vector_store %arg13[%c0_599, %c32_600], %321 {strides = array<i32>} : memref<2x128xbf16, #tpu.memory_space<vmem>>, vector<2x32xbf16>,
    %c0_601 = arith.constant 0 : index
    %c64_602 = arith.constant 64 : index
    %761 = vector.load %arg13[%c0_601, %c64_602] : memref<2x128xbf16, #tpu.memory_space<vmem>>, vector<2x32xbf16>
    tpu.vector_store %arg13[%c0_601, %c64_602], %369 {strides = array<i32>} : memref<2x128xbf16, #tpu.memory_space<vmem>>, vector<2x32xbf16>,
    %c0_603 = arith.constant 0 : index
    %c96_604 = arith.constant 96 : index
    %762 = vector.load %arg13[%c0_603, %c96_604] : memref<2x128xbf16, #tpu.memory_space<vmem>>, vector<2x32xbf16>
    tpu.vector_store %arg13[%c0_603, %c96_604], %377 {strides = array<i32>} : memref<2x128xbf16, #tpu.memory_space<vmem>>, vector<2x32xbf16>,
    %c0_605 = arith.constant 0 : index
    %c0_606 = arith.constant 0 : index
    %763 = vector.load %arg13[%c0_605, %c0_606] : memref<2x128xbf16, #tpu.memory_space<vmem>>, vector<2x128xbf16>
    %cst_607 = arith.constant dense<0.000000e+00> : vector<2x64xf32>
    %764 = tpu.matmul %763, %394, %cst_607 {dimension_numbers = #tpu.dot_dimension_numbers<[1], [0], [0], [1], [0, 0, 1, 1], [], []>} : vector<2x128xbf16>, vector<128x64xbf16>, vector<2x64xf32> -> vector<2x64xf32>
    %765 = vector.broadcast %395 : vector<1x64xf32> to vector<2x64xf32>
    %766 = arith.addf %764, %765 : vector<2x64xf32>
    %cst_608 = arith.constant 0.000000e+00 : f32
    %767 = vector.broadcast %cst_608 : f32 to vector<2x64xf32>
    %768 = arith.maximumf %766, %767 : vector<2x64xf32>
    %769 = arith.truncf %768 : vector<2x64xf32> to vector<2x64xbf16>
    %c0_609 = arith.constant 0 : index
    %c0_610 = arith.constant 0 : index
    %770 = vector.load %arg13[%c0_609, %c0_610] : memref<2x128xbf16, #tpu.memory_space<vmem>>, vector<2x32xbf16>
    tpu.vector_store %arg13[%c0_609, %c0_610], %321 {strides = array<i32>} : memref<2x128xbf16, #tpu.memory_space<vmem>>, vector<2x32xbf16>,
    %c0_611 = arith.constant 0 : index
    %c32_612 = arith.constant 32 : index
    %771 = vector.load %arg13[%c0_611, %c32_612] : memref<2x128xbf16, #tpu.memory_space<vmem>>, vector<2x32xbf16>
    tpu.vector_store %arg13[%c0_611, %c32_612], %329 {strides = array<i32>} : memref<2x128xbf16, #tpu.memory_space<vmem>>, vector<2x32xbf16>,
    %c0_613 = arith.constant 0 : index
    %c64_614 = arith.constant 64 : index
    %772 = vector.load %arg13[%c0_613, %c64_614] : memref<2x128xbf16, #tpu.memory_space<vmem>>, vector<2x32xbf16>
    tpu.vector_store %arg13[%c0_613, %c64_614], %377 {strides = array<i32>} : memref<2x128xbf16, #tpu.memory_space<vmem>>, vector<2x32xbf16>,
    %c0_615 = arith.constant 0 : index
    %c96_616 = arith.constant 96 : index
    %773 = vector.load %arg13[%c0_615, %c96_616] : memref<2x128xbf16, #tpu.memory_space<vmem>>, vector<2x32xbf16>
    tpu.vector_store %arg13[%c0_615, %c96_616], %385 {strides = array<i32>} : memref<2x128xbf16, #tpu.memory_space<vmem>>, vector<2x32xbf16>,
    %c0_617 = arith.constant 0 : index
    %c0_618 = arith.constant 0 : index
    %774 = vector.load %arg13[%c0_617, %c0_618] : memref<2x128xbf16, #tpu.memory_space<vmem>>, vector<2x128xbf16>
    %cst_619 = arith.constant dense<0.000000e+00> : vector<2x64xf32>
    %775 = tpu.matmul %774, %394, %cst_619 {dimension_numbers = #tpu.dot_dimension_numbers<[1], [0], [0], [1], [0, 0, 1, 1], [], []>} : vector<2x128xbf16>, vector<128x64xbf16>, vector<2x64xf32> -> vector<2x64xf32>
    %776 = vector.broadcast %395 : vector<1x64xf32> to vector<2x64xf32>
    %777 = arith.addf %775, %776 : vector<2x64xf32>
    %cst_620 = arith.constant 0.000000e+00 : f32
    %778 = vector.broadcast %cst_620 : f32 to vector<2x64xf32>
    %779 = arith.maximumf %777, %778 : vector<2x64xf32>
    %780 = arith.truncf %779 : vector<2x64xf32> to vector<2x64xbf16>
    %c0_621 = arith.constant 0 : index
    %c0_622 = arith.constant 0 : index
    %781 = vector.load %arg13[%c0_621, %c0_622] : memref<2x128xbf16, #tpu.memory_space<vmem>>, vector<2x32xbf16>
    tpu.vector_store %arg13[%c0_621, %c0_622], %329 {strides = array<i32>} : memref<2x128xbf16, #tpu.memory_space<vmem>>, vector<2x32xbf16>,
    %c0_623 = arith.constant 0 : index
    %c32_624 = arith.constant 32 : index
    %782 = vector.load %arg13[%c0_623, %c32_624] : memref<2x128xbf16, #tpu.memory_space<vmem>>, vector<2x32xbf16>
    tpu.vector_store %arg13[%c0_623, %c32_624], %337 {strides = array<i32>} : memref<2x128xbf16, #tpu.memory_space<vmem>>, vector<2x32xbf16>,
    %c0_625 = arith.constant 0 : index
    %c64_626 = arith.constant 64 : index
    %783 = vector.load %arg13[%c0_625, %c64_626] : memref<2x128xbf16, #tpu.memory_space<vmem>>, vector<2x32xbf16>
    tpu.vector_store %arg13[%c0_625, %c64_626], %385 {strides = array<i32>} : memref<2x128xbf16, #tpu.memory_space<vmem>>, vector<2x32xbf16>,
    %c0_627 = arith.constant 0 : index
    %c96_628 = arith.constant 96 : index
    %784 = vector.load %arg13[%c0_627, %c96_628] : memref<2x128xbf16, #tpu.memory_space<vmem>>, vector<2x32xbf16>
    tpu.vector_store %arg13[%c0_627, %c96_628], %393 {strides = array<i32>} : memref<2x128xbf16, #tpu.memory_space<vmem>>, vector<2x32xbf16>,
    %c0_629 = arith.constant 0 : index
    %c0_630 = arith.constant 0 : index
    %785 = vector.load %arg13[%c0_629, %c0_630] : memref<2x128xbf16, #tpu.memory_space<vmem>>, vector<2x128xbf16>
    %cst_631 = arith.constant dense<0.000000e+00> : vector<2x64xf32>
    %786 = tpu.matmul %785, %394, %cst_631 {dimension_numbers = #tpu.dot_dimension_numbers<[1], [0], [0], [1], [0, 0, 1, 1], [], []>} : vector<2x128xbf16>, vector<128x64xbf16>, vector<2x64xf32> -> vector<2x64xf32>
    %787 = vector.broadcast %395 : vector<1x64xf32> to vector<2x64xf32>
    %788 = arith.addf %786, %787 : vector<2x64xf32>
    %cst_632 = arith.constant 0.000000e+00 : f32
    %789 = vector.broadcast %cst_632 : f32 to vector<2x64xf32>
    %790 = arith.maximumf %788, %789 : vector<2x64xf32>
    %791 = arith.truncf %790 : vector<2x64xf32> to vector<2x64xbf16>
    %c0_633 = arith.constant 0 : index
    %c0_634 = arith.constant 0 : index
    %792 = vector.load %arg6[%c0_633, %c0_634] : memref<256x64xbf16, #tpu.memory_space<vmem>>, vector<256x64xbf16>
    %c0_635 = arith.constant 0 : index
    %c0_636 = arith.constant 0 : index
    %793 = vector.load %arg7[%c0_635, %c0_636] : memref<1x64xf32, #tpu.memory_space<vmem>>, vector<1x64xf32>
    %c0_637 = arith.constant 0 : index
    %c0_638 = arith.constant 0 : index
    %794 = vector.load %arg14[%c0_637, %c0_638] : memref<2x256xbf16, #tpu.memory_space<vmem>>, vector<2x64xbf16>
    tpu.vector_store %arg14[%c0_637, %c0_638], %406 {strides = array<i32>} : memref<2x256xbf16, #tpu.memory_space<vmem>>, vector<2x64xbf16>,
    %c0_639 = arith.constant 0 : index
    %c64_640 = arith.constant 64 : index
    %795 = vector.load %arg14[%c0_639, %c64_640] : memref<2x256xbf16, #tpu.memory_space<vmem>>, vector<2x64xbf16>
    tpu.vector_store %arg14[%c0_639, %c64_640], %417 {strides = array<i32>} : memref<2x256xbf16, #tpu.memory_space<vmem>>, vector<2x64xbf16>,
    %c0_641 = arith.constant 0 : index
    %c128 = arith.constant 128 : index
    %796 = vector.load %arg14[%c0_641, %c128] : memref<2x256xbf16, #tpu.memory_space<vmem>>, vector<2x64xbf16>
    tpu.vector_store %arg14[%c0_641, %c128], %472 {strides = array<i32>} : memref<2x256xbf16, #tpu.memory_space<vmem>>, vector<2x64xbf16>,
    %c0_642 = arith.constant 0 : index
    %c192 = arith.constant 192 : index
    %797 = vector.load %arg14[%c0_642, %c192] : memref<2x256xbf16, #tpu.memory_space<vmem>>, vector<2x64xbf16>
    tpu.vector_store %arg14[%c0_642, %c192], %483 {strides = array<i32>} : memref<2x256xbf16, #tpu.memory_space<vmem>>, vector<2x64xbf16>,
    %c0_643 = arith.constant 0 : index
    %c0_644 = arith.constant 0 : index
    %798 = vector.load %arg14[%c0_643, %c0_644] : memref<2x256xbf16, #tpu.memory_space<vmem>>, vector<2x256xbf16>
    %cst_645 = arith.constant dense<0.000000e+00> : vector<2x64xf32>
    %799 = tpu.matmul %798, %792, %cst_645 {dimension_numbers = #tpu.dot_dimension_numbers<[1], [0], [0], [1], [0, 0, 1, 1], [], []>} : vector<2x256xbf16>, vector<256x64xbf16>, vector<2x64xf32> -> vector<2x64xf32>
    %800 = vector.broadcast %793 : vector<1x64xf32> to vector<2x64xf32>
    %801 = arith.addf %799, %800 : vector<2x64xf32>
    %cst_646 = arith.constant 0.000000e+00 : f32
    %802 = vector.broadcast %cst_646 : f32 to vector<2x64xf32>
    %803 = arith.maximumf %801, %802 : vector<2x64xf32>
    %804 = arith.truncf %803 : vector<2x64xf32> to vector<2x64xbf16>
    %c0_647 = arith.constant 0 : index
    %c0_648 = arith.constant 0 : index
    %805 = vector.load %arg14[%c0_647, %c0_648] : memref<2x256xbf16, #tpu.memory_space<vmem>>, vector<2x64xbf16>
    tpu.vector_store %arg14[%c0_647, %c0_648], %417 {strides = array<i32>} : memref<2x256xbf16, #tpu.memory_space<vmem>>, vector<2x64xbf16>,
    %c0_649 = arith.constant 0 : index
    %c64_650 = arith.constant 64 : index
    %806 = vector.load %arg14[%c0_649, %c64_650] : memref<2x256xbf16, #tpu.memory_space<vmem>>, vector<2x64xbf16>
    tpu.vector_store %arg14[%c0_649, %c64_650], %428 {strides = array<i32>} : memref<2x256xbf16, #tpu.memory_space<vmem>>, vector<2x64xbf16>,
    %c0_651 = arith.constant 0 : index
    %c128_652 = arith.constant 128 : index
    %807 = vector.load %arg14[%c0_651, %c128_652] : memref<2x256xbf16, #tpu.memory_space<vmem>>, vector<2x64xbf16>
    tpu.vector_store %arg14[%c0_651, %c128_652], %483 {strides = array<i32>} : memref<2x256xbf16, #tpu.memory_space<vmem>>, vector<2x64xbf16>,
    %c0_653 = arith.constant 0 : index
    %c192_654 = arith.constant 192 : index
    %808 = vector.load %arg14[%c0_653, %c192_654] : memref<2x256xbf16, #tpu.memory_space<vmem>>, vector<2x64xbf16>
    tpu.vector_store %arg14[%c0_653, %c192_654], %494 {strides = array<i32>} : memref<2x256xbf16, #tpu.memory_space<vmem>>, vector<2x64xbf16>,
    %c0_655 = arith.constant 0 : index
    %c0_656 = arith.constant 0 : index
    %809 = vector.load %arg14[%c0_655, %c0_656] : memref<2x256xbf16, #tpu.memory_space<vmem>>, vector<2x256xbf16>
    %cst_657 = arith.constant dense<0.000000e+00> : vector<2x64xf32>
    %810 = tpu.matmul %809, %792, %cst_657 {dimension_numbers = #tpu.dot_dimension_numbers<[1], [0], [0], [1], [0, 0, 1, 1], [], []>} : vector<2x256xbf16>, vector<256x64xbf16>, vector<2x64xf32> -> vector<2x64xf32>
    %811 = vector.broadcast %793 : vector<1x64xf32> to vector<2x64xf32>
    %812 = arith.addf %810, %811 : vector<2x64xf32>
    %cst_658 = arith.constant 0.000000e+00 : f32
    %813 = vector.broadcast %cst_658 : f32 to vector<2x64xf32>
    %814 = arith.maximumf %812, %813 : vector<2x64xf32>
    %815 = arith.truncf %814 : vector<2x64xf32> to vector<2x64xbf16>
    %c0_659 = arith.constant 0 : index
    %c0_660 = arith.constant 0 : index
    %816 = vector.load %arg14[%c0_659, %c0_660] : memref<2x256xbf16, #tpu.memory_space<vmem>>, vector<2x64xbf16>
    tpu.vector_store %arg14[%c0_659, %c0_660], %428 {strides = array<i32>} : memref<2x256xbf16, #tpu.memory_space<vmem>>, vector<2x64xbf16>,
    %c0_661 = arith.constant 0 : index
    %c64_662 = arith.constant 64 : index
    %817 = vector.load %arg14[%c0_661, %c64_662] : memref<2x256xbf16, #tpu.memory_space<vmem>>, vector<2x64xbf16>
    tpu.vector_store %arg14[%c0_661, %c64_662], %439 {strides = array<i32>} : memref<2x256xbf16, #tpu.memory_space<vmem>>, vector<2x64xbf16>,
    %c0_663 = arith.constant 0 : index
    %c128_664 = arith.constant 128 : index
    %818 = vector.load %arg14[%c0_663, %c128_664] : memref<2x256xbf16, #tpu.memory_space<vmem>>, vector<2x64xbf16>
    tpu.vector_store %arg14[%c0_663, %c128_664], %494 {strides = array<i32>} : memref<2x256xbf16, #tpu.memory_space<vmem>>, vector<2x64xbf16>,
    %c0_665 = arith.constant 0 : index
    %c192_666 = arith.constant 192 : index
    %819 = vector.load %arg14[%c0_665, %c192_666] : memref<2x256xbf16, #tpu.memory_space<vmem>>, vector<2x64xbf16>
    tpu.vector_store %arg14[%c0_665, %c192_666], %505 {strides = array<i32>} : memref<2x256xbf16, #tpu.memory_space<vmem>>, vector<2x64xbf16>,
    %c0_667 = arith.constant 0 : index
    %c0_668 = arith.constant 0 : index
    %820 = vector.load %arg14[%c0_667, %c0_668] : memref<2x256xbf16, #tpu.memory_space<vmem>>, vector<2x256xbf16>
    %cst_669 = arith.constant dense<0.000000e+00> : vector<2x64xf32>
    %821 = tpu.matmul %820, %792, %cst_669 {dimension_numbers = #tpu.dot_dimension_numbers<[1], [0], [0], [1], [0, 0, 1, 1], [], []>} : vector<2x256xbf16>, vector<256x64xbf16>, vector<2x64xf32> -> vector<2x64xf32>
    %822 = vector.broadcast %793 : vector<1x64xf32> to vector<2x64xf32>
    %823 = arith.addf %821, %822 : vector<2x64xf32>
    %cst_670 = arith.constant 0.000000e+00 : f32
    %824 = vector.broadcast %cst_670 : f32 to vector<2x64xf32>
    %825 = arith.maximumf %823, %824 : vector<2x64xf32>
    %826 = arith.truncf %825 : vector<2x64xf32> to vector<2x64xbf16>
    %c0_671 = arith.constant 0 : index
    %c0_672 = arith.constant 0 : index
    %827 = vector.load %arg14[%c0_671, %c0_672] : memref<2x256xbf16, #tpu.memory_space<vmem>>, vector<2x64xbf16>
    tpu.vector_store %arg14[%c0_671, %c0_672], %439 {strides = array<i32>} : memref<2x256xbf16, #tpu.memory_space<vmem>>, vector<2x64xbf16>,
    %c0_673 = arith.constant 0 : index
    %c64_674 = arith.constant 64 : index
    %828 = vector.load %arg14[%c0_673, %c64_674] : memref<2x256xbf16, #tpu.memory_space<vmem>>, vector<2x64xbf16>
    tpu.vector_store %arg14[%c0_673, %c64_674], %450 {strides = array<i32>} : memref<2x256xbf16, #tpu.memory_space<vmem>>, vector<2x64xbf16>,
    %c0_675 = arith.constant 0 : index
    %c128_676 = arith.constant 128 : index
    %829 = vector.load %arg14[%c0_675, %c128_676] : memref<2x256xbf16, #tpu.memory_space<vmem>>, vector<2x64xbf16>
    tpu.vector_store %arg14[%c0_675, %c128_676], %505 {strides = array<i32>} : memref<2x256xbf16, #tpu.memory_space<vmem>>, vector<2x64xbf16>,
    %c0_677 = arith.constant 0 : index
    %c192_678 = arith.constant 192 : index
    %830 = vector.load %arg14[%c0_677, %c192_678] : memref<2x256xbf16, #tpu.memory_space<vmem>>, vector<2x64xbf16>
    tpu.vector_store %arg14[%c0_677, %c192_678], %516 {strides = array<i32>} : memref<2x256xbf16, #tpu.memory_space<vmem>>, vector<2x64xbf16>,
    %c0_679 = arith.constant 0 : index
    %c0_680 = arith.constant 0 : index
    %831 = vector.load %arg14[%c0_679, %c0_680] : memref<2x256xbf16, #tpu.memory_space<vmem>>, vector<2x256xbf16>
    %cst_681 = arith.constant dense<0.000000e+00> : vector<2x64xf32>
    %832 = tpu.matmul %831, %792, %cst_681 {dimension_numbers = #tpu.dot_dimension_numbers<[1], [0], [0], [1], [0, 0, 1, 1], [], []>} : vector<2x256xbf16>, vector<256x64xbf16>, vector<2x64xf32> -> vector<2x64xf32>
    %833 = vector.broadcast %793 : vector<1x64xf32> to vector<2x64xf32>
    %834 = arith.addf %832, %833 : vector<2x64xf32>
    %cst_682 = arith.constant 0.000000e+00 : f32
    %835 = vector.broadcast %cst_682 : f32 to vector<2x64xf32>
    %836 = arith.maximumf %834, %835 : vector<2x64xf32>
    %837 = arith.truncf %836 : vector<2x64xf32> to vector<2x64xbf16>
    %c0_683 = arith.constant 0 : index
    %c0_684 = arith.constant 0 : index
    %838 = vector.load %arg14[%c0_683, %c0_684] : memref<2x256xbf16, #tpu.memory_space<vmem>>, vector<2x64xbf16>
    tpu.vector_store %arg14[%c0_683, %c0_684], %450 {strides = array<i32>} : memref<2x256xbf16, #tpu.memory_space<vmem>>, vector<2x64xbf16>,
    %c0_685 = arith.constant 0 : index
    %c64_686 = arith.constant 64 : index
    %839 = vector.load %arg14[%c0_685, %c64_686] : memref<2x256xbf16, #tpu.memory_space<vmem>>, vector<2x64xbf16>
    tpu.vector_store %arg14[%c0_685, %c64_686], %461 {strides = array<i32>} : memref<2x256xbf16, #tpu.memory_space<vmem>>, vector<2x64xbf16>,
    %c0_687 = arith.constant 0 : index
    %c128_688 = arith.constant 128 : index
    %840 = vector.load %arg14[%c0_687, %c128_688] : memref<2x256xbf16, #tpu.memory_space<vmem>>, vector<2x64xbf16>
    tpu.vector_store %arg14[%c0_687, %c128_688], %516 {strides = array<i32>} : memref<2x256xbf16, #tpu.memory_space<vmem>>, vector<2x64xbf16>,
    %c0_689 = arith.constant 0 : index
    %c192_690 = arith.constant 192 : index
    %841 = vector.load %arg14[%c0_689, %c192_690] : memref<2x256xbf16, #tpu.memory_space<vmem>>, vector<2x64xbf16>
    tpu.vector_store %arg14[%c0_689, %c192_690], %527 {strides = array<i32>} : memref<2x256xbf16, #tpu.memory_space<vmem>>, vector<2x64xbf16>,
    %c0_691 = arith.constant 0 : index
    %c0_692 = arith.constant 0 : index
    %842 = vector.load %arg14[%c0_691, %c0_692] : memref<2x256xbf16, #tpu.memory_space<vmem>>, vector<2x256xbf16>
    %cst_693 = arith.constant dense<0.000000e+00> : vector<2x64xf32>
    %843 = tpu.matmul %842, %792, %cst_693 {dimension_numbers = #tpu.dot_dimension_numbers<[1], [0], [0], [1], [0, 0, 1, 1], [], []>} : vector<2x256xbf16>, vector<256x64xbf16>, vector<2x64xf32> -> vector<2x64xf32>
    %844 = vector.broadcast %793 : vector<1x64xf32> to vector<2x64xf32>
    %845 = arith.addf %843, %844 : vector<2x64xf32>
    %cst_694 = arith.constant 0.000000e+00 : f32
    %846 = vector.broadcast %cst_694 : f32 to vector<2x64xf32>
    %847 = arith.maximumf %845, %846 : vector<2x64xf32>
    %848 = arith.truncf %847 : vector<2x64xf32> to vector<2x64xbf16>
    %c0_695 = arith.constant 0 : index
    %c0_696 = arith.constant 0 : index
    %849 = vector.load %arg14[%c0_695, %c0_696] : memref<2x256xbf16, #tpu.memory_space<vmem>>, vector<2x64xbf16>
    tpu.vector_store %arg14[%c0_695, %c0_696], %472 {strides = array<i32>} : memref<2x256xbf16, #tpu.memory_space<vmem>>, vector<2x64xbf16>,
    %c0_697 = arith.constant 0 : index
    %c64_698 = arith.constant 64 : index
    %850 = vector.load %arg14[%c0_697, %c64_698] : memref<2x256xbf16, #tpu.memory_space<vmem>>, vector<2x64xbf16>
    tpu.vector_store %arg14[%c0_697, %c64_698], %483 {strides = array<i32>} : memref<2x256xbf16, #tpu.memory_space<vmem>>, vector<2x64xbf16>,
    %c0_699 = arith.constant 0 : index
    %c128_700 = arith.constant 128 : index
    %851 = vector.load %arg14[%c0_699, %c128_700] : memref<2x256xbf16, #tpu.memory_space<vmem>>, vector<2x64xbf16>
    tpu.vector_store %arg14[%c0_699, %c128_700], %538 {strides = array<i32>} : memref<2x256xbf16, #tpu.memory_space<vmem>>, vector<2x64xbf16>,
    %c0_701 = arith.constant 0 : index
    %c192_702 = arith.constant 192 : index
    %852 = vector.load %arg14[%c0_701, %c192_702] : memref<2x256xbf16, #tpu.memory_space<vmem>>, vector<2x64xbf16>
    tpu.vector_store %arg14[%c0_701, %c192_702], %549 {strides = array<i32>} : memref<2x256xbf16, #tpu.memory_space<vmem>>, vector<2x64xbf16>,
    %c0_703 = arith.constant 0 : index
    %c0_704 = arith.constant 0 : index
    %853 = vector.load %arg14[%c0_703, %c0_704] : memref<2x256xbf16, #tpu.memory_space<vmem>>, vector<2x256xbf16>
    %cst_705 = arith.constant dense<0.000000e+00> : vector<2x64xf32>
    %854 = tpu.matmul %853, %792, %cst_705 {dimension_numbers = #tpu.dot_dimension_numbers<[1], [0], [0], [1], [0, 0, 1, 1], [], []>} : vector<2x256xbf16>, vector<256x64xbf16>, vector<2x64xf32> -> vector<2x64xf32>
    %855 = vector.broadcast %793 : vector<1x64xf32> to vector<2x64xf32>
    %856 = arith.addf %854, %855 : vector<2x64xf32>
    %cst_706 = arith.constant 0.000000e+00 : f32
    %857 = vector.broadcast %cst_706 : f32 to vector<2x64xf32>
    %858 = arith.maximumf %856, %857 : vector<2x64xf32>
    %859 = arith.truncf %858 : vector<2x64xf32> to vector<2x64xbf16>
    %c0_707 = arith.constant 0 : index
    %c0_708 = arith.constant 0 : index
    %860 = vector.load %arg14[%c0_707, %c0_708] : memref<2x256xbf16, #tpu.memory_space<vmem>>, vector<2x64xbf16>
    tpu.vector_store %arg14[%c0_707, %c0_708], %483 {strides = array<i32>} : memref<2x256xbf16, #tpu.memory_space<vmem>>, vector<2x64xbf16>,
    %c0_709 = arith.constant 0 : index
    %c64_710 = arith.constant 64 : index
    %861 = vector.load %arg14[%c0_709, %c64_710] : memref<2x256xbf16, #tpu.memory_space<vmem>>, vector<2x64xbf16>
    tpu.vector_store %arg14[%c0_709, %c64_710], %494 {strides = array<i32>} : memref<2x256xbf16, #tpu.memory_space<vmem>>, vector<2x64xbf16>,
    %c0_711 = arith.constant 0 : index
    %c128_712 = arith.constant 128 : index
    %862 = vector.load %arg14[%c0_711, %c128_712] : memref<2x256xbf16, #tpu.memory_space<vmem>>, vector<2x64xbf16>
    tpu.vector_store %arg14[%c0_711, %c128_712], %549 {strides = array<i32>} : memref<2x256xbf16, #tpu.memory_space<vmem>>, vector<2x64xbf16>,
    %c0_713 = arith.constant 0 : index
    %c192_714 = arith.constant 192 : index
    %863 = vector.load %arg14[%c0_713, %c192_714] : memref<2x256xbf16, #tpu.memory_space<vmem>>, vector<2x64xbf16>
    tpu.vector_store %arg14[%c0_713, %c192_714], %560 {strides = array<i32>} : memref<2x256xbf16, #tpu.memory_space<vmem>>, vector<2x64xbf16>,
    %c0_715 = arith.constant 0 : index
    %c0_716 = arith.constant 0 : index
    %864 = vector.load %arg14[%c0_715, %c0_716] : memref<2x256xbf16, #tpu.memory_space<vmem>>, vector<2x256xbf16>
    %cst_717 = arith.constant dense<0.000000e+00> : vector<2x64xf32>
    %865 = tpu.matmul %864, %792, %cst_717 {dimension_numbers = #tpu.dot_dimension_numbers<[1], [0], [0], [1], [0, 0, 1, 1], [], []>} : vector<2x256xbf16>, vector<256x64xbf16>, vector<2x64xf32> -> vector<2x64xf32>
    %866 = vector.broadcast %793 : vector<1x64xf32> to vector<2x64xf32>
    %867 = arith.addf %865, %866 : vector<2x64xf32>
    %cst_718 = arith.constant 0.000000e+00 : f32
    %868 = vector.broadcast %cst_718 : f32 to vector<2x64xf32>
    %869 = arith.maximumf %867, %868 : vector<2x64xf32>
    %870 = arith.truncf %869 : vector<2x64xf32> to vector<2x64xbf16>
    %c0_719 = arith.constant 0 : index
    %c0_720 = arith.constant 0 : index
    %871 = vector.load %arg14[%c0_719, %c0_720] : memref<2x256xbf16, #tpu.memory_space<vmem>>, vector<2x64xbf16>
    tpu.vector_store %arg14[%c0_719, %c0_720], %494 {strides = array<i32>} : memref<2x256xbf16, #tpu.memory_space<vmem>>, vector<2x64xbf16>,
    %c0_721 = arith.constant 0 : index
    %c64_722 = arith.constant 64 : index
    %872 = vector.load %arg14[%c0_721, %c64_722] : memref<2x256xbf16, #tpu.memory_space<vmem>>, vector<2x64xbf16>
    tpu.vector_store %arg14[%c0_721, %c64_722], %505 {strides = array<i32>} : memref<2x256xbf16, #tpu.memory_space<vmem>>, vector<2x64xbf16>,
    %c0_723 = arith.constant 0 : index
    %c128_724 = arith.constant 128 : index
    %873 = vector.load %arg14[%c0_723, %c128_724] : memref<2x256xbf16, #tpu.memory_space<vmem>>, vector<2x64xbf16>
    tpu.vector_store %arg14[%c0_723, %c128_724], %560 {strides = array<i32>} : memref<2x256xbf16, #tpu.memory_space<vmem>>, vector<2x64xbf16>,
    %c0_725 = arith.constant 0 : index
    %c192_726 = arith.constant 192 : index
    %874 = vector.load %arg14[%c0_725, %c192_726] : memref<2x256xbf16, #tpu.memory_space<vmem>>, vector<2x64xbf16>
    tpu.vector_store %arg14[%c0_725, %c192_726], %571 {strides = array<i32>} : memref<2x256xbf16, #tpu.memory_space<vmem>>, vector<2x64xbf16>,
    %c0_727 = arith.constant 0 : index
    %c0_728 = arith.constant 0 : index
    %875 = vector.load %arg14[%c0_727, %c0_728] : memref<2x256xbf16, #tpu.memory_space<vmem>>, vector<2x256xbf16>
    %cst_729 = arith.constant dense<0.000000e+00> : vector<2x64xf32>
    %876 = tpu.matmul %875, %792, %cst_729 {dimension_numbers = #tpu.dot_dimension_numbers<[1], [0], [0], [1], [0, 0, 1, 1], [], []>} : vector<2x256xbf16>, vector<256x64xbf16>, vector<2x64xf32> -> vector<2x64xf32>
    %877 = vector.broadcast %793 : vector<1x64xf32> to vector<2x64xf32>
    %878 = arith.addf %876, %877 : vector<2x64xf32>
    %cst_730 = arith.constant 0.000000e+00 : f32
    %879 = vector.broadcast %cst_730 : f32 to vector<2x64xf32>
    %880 = arith.maximumf %878, %879 : vector<2x64xf32>
    %881 = arith.truncf %880 : vector<2x64xf32> to vector<2x64xbf16>
    %c0_731 = arith.constant 0 : index
    %c0_732 = arith.constant 0 : index
    %882 = vector.load %arg14[%c0_731, %c0_732] : memref<2x256xbf16, #tpu.memory_space<vmem>>, vector<2x64xbf16>
    tpu.vector_store %arg14[%c0_731, %c0_732], %505 {strides = array<i32>} : memref<2x256xbf16, #tpu.memory_space<vmem>>, vector<2x64xbf16>,
    %c0_733 = arith.constant 0 : index
    %c64_734 = arith.constant 64 : index
    %883 = vector.load %arg14[%c0_733, %c64_734] : memref<2x256xbf16, #tpu.memory_space<vmem>>, vector<2x64xbf16>
    tpu.vector_store %arg14[%c0_733, %c64_734], %516 {strides = array<i32>} : memref<2x256xbf16, #tpu.memory_space<vmem>>, vector<2x64xbf16>,
    %c0_735 = arith.constant 0 : index
    %c128_736 = arith.constant 128 : index
    %884 = vector.load %arg14[%c0_735, %c128_736] : memref<2x256xbf16, #tpu.memory_space<vmem>>, vector<2x64xbf16>
    tpu.vector_store %arg14[%c0_735, %c128_736], %571 {strides = array<i32>} : memref<2x256xbf16, #tpu.memory_space<vmem>>, vector<2x64xbf16>,
    %c0_737 = arith.constant 0 : index
    %c192_738 = arith.constant 192 : index
    %885 = vector.load %arg14[%c0_737, %c192_738] : memref<2x256xbf16, #tpu.memory_space<vmem>>, vector<2x64xbf16>
    tpu.vector_store %arg14[%c0_737, %c192_738], %582 {strides = array<i32>} : memref<2x256xbf16, #tpu.memory_space<vmem>>, vector<2x64xbf16>,
    %c0_739 = arith.constant 0 : index
    %c0_740 = arith.constant 0 : index
    %886 = vector.load %arg14[%c0_739, %c0_740] : memref<2x256xbf16, #tpu.memory_space<vmem>>, vector<2x256xbf16>
    %cst_741 = arith.constant dense<0.000000e+00> : vector<2x64xf32>
    %887 = tpu.matmul %886, %792, %cst_741 {dimension_numbers = #tpu.dot_dimension_numbers<[1], [0], [0], [1], [0, 0, 1, 1], [], []>} : vector<2x256xbf16>, vector<256x64xbf16>, vector<2x64xf32> -> vector<2x64xf32>
    %888 = vector.broadcast %793 : vector<1x64xf32> to vector<2x64xf32>
    %889 = arith.addf %887, %888 : vector<2x64xf32>
    %cst_742 = arith.constant 0.000000e+00 : f32
    %890 = vector.broadcast %cst_742 : f32 to vector<2x64xf32>
    %891 = arith.maximumf %889, %890 : vector<2x64xf32>
    %892 = arith.truncf %891 : vector<2x64xf32> to vector<2x64xbf16>
    %c0_743 = arith.constant 0 : index
    %c0_744 = arith.constant 0 : index
    %893 = vector.load %arg14[%c0_743, %c0_744] : memref<2x256xbf16, #tpu.memory_space<vmem>>, vector<2x64xbf16>
    tpu.vector_store %arg14[%c0_743, %c0_744], %516 {strides = array<i32>} : memref<2x256xbf16, #tpu.memory_space<vmem>>, vector<2x64xbf16>,
    %c0_745 = arith.constant 0 : index
    %c64_746 = arith.constant 64 : index
    %894 = vector.load %arg14[%c0_745, %c64_746] : memref<2x256xbf16, #tpu.memory_space<vmem>>, vector<2x64xbf16>
    tpu.vector_store %arg14[%c0_745, %c64_746], %527 {strides = array<i32>} : memref<2x256xbf16, #tpu.memory_space<vmem>>, vector<2x64xbf16>,
    %c0_747 = arith.constant 0 : index
    %c128_748 = arith.constant 128 : index
    %895 = vector.load %arg14[%c0_747, %c128_748] : memref<2x256xbf16, #tpu.memory_space<vmem>>, vector<2x64xbf16>
    tpu.vector_store %arg14[%c0_747, %c128_748], %582 {strides = array<i32>} : memref<2x256xbf16, #tpu.memory_space<vmem>>, vector<2x64xbf16>,
    %c0_749 = arith.constant 0 : index
    %c192_750 = arith.constant 192 : index
    %896 = vector.load %arg14[%c0_749, %c192_750] : memref<2x256xbf16, #tpu.memory_space<vmem>>, vector<2x64xbf16>
    tpu.vector_store %arg14[%c0_749, %c192_750], %593 {strides = array<i32>} : memref<2x256xbf16, #tpu.memory_space<vmem>>, vector<2x64xbf16>,
    %c0_751 = arith.constant 0 : index
    %c0_752 = arith.constant 0 : index
    %897 = vector.load %arg14[%c0_751, %c0_752] : memref<2x256xbf16, #tpu.memory_space<vmem>>, vector<2x256xbf16>
    %cst_753 = arith.constant dense<0.000000e+00> : vector<2x64xf32>
    %898 = tpu.matmul %897, %792, %cst_753 {dimension_numbers = #tpu.dot_dimension_numbers<[1], [0], [0], [1], [0, 0, 1, 1], [], []>} : vector<2x256xbf16>, vector<256x64xbf16>, vector<2x64xf32> -> vector<2x64xf32>
    %899 = vector.broadcast %793 : vector<1x64xf32> to vector<2x64xf32>
    %900 = arith.addf %898, %899 : vector<2x64xf32>
    %cst_754 = arith.constant 0.000000e+00 : f32
    %901 = vector.broadcast %cst_754 : f32 to vector<2x64xf32>
    %902 = arith.maximumf %900, %901 : vector<2x64xf32>
    %903 = arith.truncf %902 : vector<2x64xf32> to vector<2x64xbf16>
    %c0_755 = arith.constant 0 : index
    %c0_756 = arith.constant 0 : index
    %904 = vector.load %arg14[%c0_755, %c0_756] : memref<2x256xbf16, #tpu.memory_space<vmem>>, vector<2x64xbf16>
    tpu.vector_store %arg14[%c0_755, %c0_756], %538 {strides = array<i32>} : memref<2x256xbf16, #tpu.memory_space<vmem>>, vector<2x64xbf16>,
    %c0_757 = arith.constant 0 : index
    %c64_758 = arith.constant 64 : index
    %905 = vector.load %arg14[%c0_757, %c64_758] : memref<2x256xbf16, #tpu.memory_space<vmem>>, vector<2x64xbf16>
    tpu.vector_store %arg14[%c0_757, %c64_758], %549 {strides = array<i32>} : memref<2x256xbf16, #tpu.memory_space<vmem>>, vector<2x64xbf16>,
    %c0_759 = arith.constant 0 : index
    %c128_760 = arith.constant 128 : index
    %906 = vector.load %arg14[%c0_759, %c128_760] : memref<2x256xbf16, #tpu.memory_space<vmem>>, vector<2x64xbf16>
    tpu.vector_store %arg14[%c0_759, %c128_760], %604 {strides = array<i32>} : memref<2x256xbf16, #tpu.memory_space<vmem>>, vector<2x64xbf16>,
    %c0_761 = arith.constant 0 : index
    %c192_762 = arith.constant 192 : index
    %907 = vector.load %arg14[%c0_761, %c192_762] : memref<2x256xbf16, #tpu.memory_space<vmem>>, vector<2x64xbf16>
    tpu.vector_store %arg14[%c0_761, %c192_762], %615 {strides = array<i32>} : memref<2x256xbf16, #tpu.memory_space<vmem>>, vector<2x64xbf16>,
    %c0_763 = arith.constant 0 : index
    %c0_764 = arith.constant 0 : index
    %908 = vector.load %arg14[%c0_763, %c0_764] : memref<2x256xbf16, #tpu.memory_space<vmem>>, vector<2x256xbf16>
    %cst_765 = arith.constant dense<0.000000e+00> : vector<2x64xf32>
    %909 = tpu.matmul %908, %792, %cst_765 {dimension_numbers = #tpu.dot_dimension_numbers<[1], [0], [0], [1], [0, 0, 1, 1], [], []>} : vector<2x256xbf16>, vector<256x64xbf16>, vector<2x64xf32> -> vector<2x64xf32>
    %910 = vector.broadcast %793 : vector<1x64xf32> to vector<2x64xf32>
    %911 = arith.addf %909, %910 : vector<2x64xf32>
    %cst_766 = arith.constant 0.000000e+00 : f32
    %912 = vector.broadcast %cst_766 : f32 to vector<2x64xf32>
    %913 = arith.maximumf %911, %912 : vector<2x64xf32>
    %914 = arith.truncf %913 : vector<2x64xf32> to vector<2x64xbf16>
    %c0_767 = arith.constant 0 : index
    %c0_768 = arith.constant 0 : index
    %915 = vector.load %arg14[%c0_767, %c0_768] : memref<2x256xbf16, #tpu.memory_space<vmem>>, vector<2x64xbf16>
    tpu.vector_store %arg14[%c0_767, %c0_768], %549 {strides = array<i32>} : memref<2x256xbf16, #tpu.memory_space<vmem>>, vector<2x64xbf16>,
    %c0_769 = arith.constant 0 : index
    %c64_770 = arith.constant 64 : index
    %916 = vector.load %arg14[%c0_769, %c64_770] : memref<2x256xbf16, #tpu.memory_space<vmem>>, vector<2x64xbf16>
    tpu.vector_store %arg14[%c0_769, %c64_770], %560 {strides = array<i32>} : memref<2x256xbf16, #tpu.memory_space<vmem>>, vector<2x64xbf16>,
    %c0_771 = arith.constant 0 : index
    %c128_772 = arith.constant 128 : index
    %917 = vector.load %arg14[%c0_771, %c128_772] : memref<2x256xbf16, #tpu.memory_space<vmem>>, vector<2x64xbf16>
    tpu.vector_store %arg14[%c0_771, %c128_772], %615 {strides = array<i32>} : memref<2x256xbf16, #tpu.memory_space<vmem>>, vector<2x64xbf16>,
    %c0_773 = arith.constant 0 : index
    %c192_774 = arith.constant 192 : index
    %918 = vector.load %arg14[%c0_773, %c192_774] : memref<2x256xbf16, #tpu.memory_space<vmem>>, vector<2x64xbf16>
    tpu.vector_store %arg14[%c0_773, %c192_774], %626 {strides = array<i32>} : memref<2x256xbf16, #tpu.memory_space<vmem>>, vector<2x64xbf16>,
    %c0_775 = arith.constant 0 : index
    %c0_776 = arith.constant 0 : index
    %919 = vector.load %arg14[%c0_775, %c0_776] : memref<2x256xbf16, #tpu.memory_space<vmem>>, vector<2x256xbf16>
    %cst_777 = arith.constant dense<0.000000e+00> : vector<2x64xf32>
    %920 = tpu.matmul %919, %792, %cst_777 {dimension_numbers = #tpu.dot_dimension_numbers<[1], [0], [0], [1], [0, 0, 1, 1], [], []>} : vector<2x256xbf16>, vector<256x64xbf16>, vector<2x64xf32> -> vector<2x64xf32>
    %921 = vector.broadcast %793 : vector<1x64xf32> to vector<2x64xf32>
    %922 = arith.addf %920, %921 : vector<2x64xf32>
    %cst_778 = arith.constant 0.000000e+00 : f32
    %923 = vector.broadcast %cst_778 : f32 to vector<2x64xf32>
    %924 = arith.maximumf %922, %923 : vector<2x64xf32>
    %925 = arith.truncf %924 : vector<2x64xf32> to vector<2x64xbf16>
    %c0_779 = arith.constant 0 : index
    %c0_780 = arith.constant 0 : index
    %926 = vector.load %arg14[%c0_779, %c0_780] : memref<2x256xbf16, #tpu.memory_space<vmem>>, vector<2x64xbf16>
    tpu.vector_store %arg14[%c0_779, %c0_780], %560 {strides = array<i32>} : memref<2x256xbf16, #tpu.memory_space<vmem>>, vector<2x64xbf16>,
    %c0_781 = arith.constant 0 : index
    %c64_782 = arith.constant 64 : index
    %927 = vector.load %arg14[%c0_781, %c64_782] : memref<2x256xbf16, #tpu.memory_space<vmem>>, vector<2x64xbf16>
    tpu.vector_store %arg14[%c0_781, %c64_782], %571 {strides = array<i32>} : memref<2x256xbf16, #tpu.memory_space<vmem>>, vector<2x64xbf16>,
    %c0_783 = arith.constant 0 : index
    %c128_784 = arith.constant 128 : index
    %928 = vector.load %arg14[%c0_783, %c128_784] : memref<2x256xbf16, #tpu.memory_space<vmem>>, vector<2x64xbf16>
    tpu.vector_store %arg14[%c0_783, %c128_784], %626 {strides = array<i32>} : memref<2x256xbf16, #tpu.memory_space<vmem>>, vector<2x64xbf16>,
    %c0_785 = arith.constant 0 : index
    %c192_786 = arith.constant 192 : index
    %929 = vector.load %arg14[%c0_785, %c192_786] : memref<2x256xbf16, #tpu.memory_space<vmem>>, vector<2x64xbf16>
    tpu.vector_store %arg14[%c0_785, %c192_786], %637 {strides = array<i32>} : memref<2x256xbf16, #tpu.memory_space<vmem>>, vector<2x64xbf16>,
    %c0_787 = arith.constant 0 : index
    %c0_788 = arith.constant 0 : index
    %930 = vector.load %arg14[%c0_787, %c0_788] : memref<2x256xbf16, #tpu.memory_space<vmem>>, vector<2x256xbf16>
    %cst_789 = arith.constant dense<0.000000e+00> : vector<2x64xf32>
    %931 = tpu.matmul %930, %792, %cst_789 {dimension_numbers = #tpu.dot_dimension_numbers<[1], [0], [0], [1], [0, 0, 1, 1], [], []>} : vector<2x256xbf16>, vector<256x64xbf16>, vector<2x64xf32> -> vector<2x64xf32>
    %932 = vector.broadcast %793 : vector<1x64xf32> to vector<2x64xf32>
    %933 = arith.addf %931, %932 : vector<2x64xf32>
    %cst_790 = arith.constant 0.000000e+00 : f32
    %934 = vector.broadcast %cst_790 : f32 to vector<2x64xf32>
    %935 = arith.maximumf %933, %934 : vector<2x64xf32>
    %936 = arith.truncf %935 : vector<2x64xf32> to vector<2x64xbf16>
    %c0_791 = arith.constant 0 : index
    %c0_792 = arith.constant 0 : index
    %937 = vector.load %arg14[%c0_791, %c0_792] : memref<2x256xbf16, #tpu.memory_space<vmem>>, vector<2x64xbf16>
    tpu.vector_store %arg14[%c0_791, %c0_792], %571 {strides = array<i32>} : memref<2x256xbf16, #tpu.memory_space<vmem>>, vector<2x64xbf16>,
    %c0_793 = arith.constant 0 : index
    %c64_794 = arith.constant 64 : index
    %938 = vector.load %arg14[%c0_793, %c64_794] : memref<2x256xbf16, #tpu.memory_space<vmem>>, vector<2x64xbf16>
    tpu.vector_store %arg14[%c0_793, %c64_794], %582 {strides = array<i32>} : memref<2x256xbf16, #tpu.memory_space<vmem>>, vector<2x64xbf16>,
    %c0_795 = arith.constant 0 : index
    %c128_796 = arith.constant 128 : index
    %939 = vector.load %arg14[%c0_795, %c128_796] : memref<2x256xbf16, #tpu.memory_space<vmem>>, vector<2x64xbf16>
    tpu.vector_store %arg14[%c0_795, %c128_796], %637 {strides = array<i32>} : memref<2x256xbf16, #tpu.memory_space<vmem>>, vector<2x64xbf16>,
    %c0_797 = arith.constant 0 : index
    %c192_798 = arith.constant 192 : index
    %940 = vector.load %arg14[%c0_797, %c192_798] : memref<2x256xbf16, #tpu.memory_space<vmem>>, vector<2x64xbf16>
    tpu.vector_store %arg14[%c0_797, %c192_798], %648 {strides = array<i32>} : memref<2x256xbf16, #tpu.memory_space<vmem>>, vector<2x64xbf16>,
    %c0_799 = arith.constant 0 : index
    %c0_800 = arith.constant 0 : index
    %941 = vector.load %arg14[%c0_799, %c0_800] : memref<2x256xbf16, #tpu.memory_space<vmem>>, vector<2x256xbf16>
    %cst_801 = arith.constant dense<0.000000e+00> : vector<2x64xf32>
    %942 = tpu.matmul %941, %792, %cst_801 {dimension_numbers = #tpu.dot_dimension_numbers<[1], [0], [0], [1], [0, 0, 1, 1], [], []>} : vector<2x256xbf16>, vector<256x64xbf16>, vector<2x64xf32> -> vector<2x64xf32>
    %943 = vector.broadcast %793 : vector<1x64xf32> to vector<2x64xf32>
    %944 = arith.addf %942, %943 : vector<2x64xf32>
    %cst_802 = arith.constant 0.000000e+00 : f32
    %945 = vector.broadcast %cst_802 : f32 to vector<2x64xf32>
    %946 = arith.maximumf %944, %945 : vector<2x64xf32>
    %947 = arith.truncf %946 : vector<2x64xf32> to vector<2x64xbf16>
    %c0_803 = arith.constant 0 : index
    %c0_804 = arith.constant 0 : index
    %948 = vector.load %arg14[%c0_803, %c0_804] : memref<2x256xbf16, #tpu.memory_space<vmem>>, vector<2x64xbf16>
    tpu.vector_store %arg14[%c0_803, %c0_804], %582 {strides = array<i32>} : memref<2x256xbf16, #tpu.memory_space<vmem>>, vector<2x64xbf16>,
    %c0_805 = arith.constant 0 : index
    %c64_806 = arith.constant 64 : index
    %949 = vector.load %arg14[%c0_805, %c64_806] : memref<2x256xbf16, #tpu.memory_space<vmem>>, vector<2x64xbf16>
    tpu.vector_store %arg14[%c0_805, %c64_806], %593 {strides = array<i32>} : memref<2x256xbf16, #tpu.memory_space<vmem>>, vector<2x64xbf16>,
    %c0_807 = arith.constant 0 : index
    %c128_808 = arith.constant 128 : index
    %950 = vector.load %arg14[%c0_807, %c128_808] : memref<2x256xbf16, #tpu.memory_space<vmem>>, vector<2x64xbf16>
    tpu.vector_store %arg14[%c0_807, %c128_808], %648 {strides = array<i32>} : memref<2x256xbf16, #tpu.memory_space<vmem>>, vector<2x64xbf16>,
    %c0_809 = arith.constant 0 : index
    %c192_810 = arith.constant 192 : index
    %951 = vector.load %arg14[%c0_809, %c192_810] : memref<2x256xbf16, #tpu.memory_space<vmem>>, vector<2x64xbf16>
    tpu.vector_store %arg14[%c0_809, %c192_810], %659 {strides = array<i32>} : memref<2x256xbf16, #tpu.memory_space<vmem>>, vector<2x64xbf16>,
    %c0_811 = arith.constant 0 : index
    %c0_812 = arith.constant 0 : index
    %952 = vector.load %arg14[%c0_811, %c0_812] : memref<2x256xbf16, #tpu.memory_space<vmem>>, vector<2x256xbf16>
    %cst_813 = arith.constant dense<0.000000e+00> : vector<2x64xf32>
    %953 = tpu.matmul %952, %792, %cst_813 {dimension_numbers = #tpu.dot_dimension_numbers<[1], [0], [0], [1], [0, 0, 1, 1], [], []>} : vector<2x256xbf16>, vector<256x64xbf16>, vector<2x64xf32> -> vector<2x64xf32>
    %954 = vector.broadcast %793 : vector<1x64xf32> to vector<2x64xf32>
    %955 = arith.addf %953, %954 : vector<2x64xf32>
    %cst_814 = arith.constant 0.000000e+00 : f32
    %956 = vector.broadcast %cst_814 : f32 to vector<2x64xf32>
    %957 = arith.maximumf %955, %956 : vector<2x64xf32>
    %958 = arith.truncf %957 : vector<2x64xf32> to vector<2x64xbf16>
    %c0_815 = arith.constant 0 : index
    %c0_816 = arith.constant 0 : index
    %959 = vector.load %arg14[%c0_815, %c0_816] : memref<2x256xbf16, #tpu.memory_space<vmem>>, vector<2x64xbf16>
    tpu.vector_store %arg14[%c0_815, %c0_816], %604 {strides = array<i32>} : memref<2x256xbf16, #tpu.memory_space<vmem>>, vector<2x64xbf16>,
    %c0_817 = arith.constant 0 : index
    %c64_818 = arith.constant 64 : index
    %960 = vector.load %arg14[%c0_817, %c64_818] : memref<2x256xbf16, #tpu.memory_space<vmem>>, vector<2x64xbf16>
    tpu.vector_store %arg14[%c0_817, %c64_818], %615 {strides = array<i32>} : memref<2x256xbf16, #tpu.memory_space<vmem>>, vector<2x64xbf16>,
    %c0_819 = arith.constant 0 : index
    %c128_820 = arith.constant 128 : index
    %961 = vector.load %arg14[%c0_819, %c128_820] : memref<2x256xbf16, #tpu.memory_space<vmem>>, vector<2x64xbf16>
    tpu.vector_store %arg14[%c0_819, %c128_820], %670 {strides = array<i32>} : memref<2x256xbf16, #tpu.memory_space<vmem>>, vector<2x64xbf16>,
    %c0_821 = arith.constant 0 : index
    %c192_822 = arith.constant 192 : index
    %962 = vector.load %arg14[%c0_821, %c192_822] : memref<2x256xbf16, #tpu.memory_space<vmem>>, vector<2x64xbf16>
    tpu.vector_store %arg14[%c0_821, %c192_822], %681 {strides = array<i32>} : memref<2x256xbf16, #tpu.memory_space<vmem>>, vector<2x64xbf16>,
    %c0_823 = arith.constant 0 : index
    %c0_824 = arith.constant 0 : index
    %963 = vector.load %arg14[%c0_823, %c0_824] : memref<2x256xbf16, #tpu.memory_space<vmem>>, vector<2x256xbf16>
    %cst_825 = arith.constant dense<0.000000e+00> : vector<2x64xf32>
    %964 = tpu.matmul %963, %792, %cst_825 {dimension_numbers = #tpu.dot_dimension_numbers<[1], [0], [0], [1], [0, 0, 1, 1], [], []>} : vector<2x256xbf16>, vector<256x64xbf16>, vector<2x64xf32> -> vector<2x64xf32>
    %965 = vector.broadcast %793 : vector<1x64xf32> to vector<2x64xf32>
    %966 = arith.addf %964, %965 : vector<2x64xf32>
    %cst_826 = arith.constant 0.000000e+00 : f32
    %967 = vector.broadcast %cst_826 : f32 to vector<2x64xf32>
    %968 = arith.maximumf %966, %967 : vector<2x64xf32>
    %969 = arith.truncf %968 : vector<2x64xf32> to vector<2x64xbf16>
    %c0_827 = arith.constant 0 : index
    %c0_828 = arith.constant 0 : index
    %970 = vector.load %arg14[%c0_827, %c0_828] : memref<2x256xbf16, #tpu.memory_space<vmem>>, vector<2x64xbf16>
    tpu.vector_store %arg14[%c0_827, %c0_828], %615 {strides = array<i32>} : memref<2x256xbf16, #tpu.memory_space<vmem>>, vector<2x64xbf16>,
    %c0_829 = arith.constant 0 : index
    %c64_830 = arith.constant 64 : index
    %971 = vector.load %arg14[%c0_829, %c64_830] : memref<2x256xbf16, #tpu.memory_space<vmem>>, vector<2x64xbf16>
    tpu.vector_store %arg14[%c0_829, %c64_830], %626 {strides = array<i32>} : memref<2x256xbf16, #tpu.memory_space<vmem>>, vector<2x64xbf16>,
    %c0_831 = arith.constant 0 : index
    %c128_832 = arith.constant 128 : index
    %972 = vector.load %arg14[%c0_831, %c128_832] : memref<2x256xbf16, #tpu.memory_space<vmem>>, vector<2x64xbf16>
    tpu.vector_store %arg14[%c0_831, %c128_832], %681 {strides = array<i32>} : memref<2x256xbf16, #tpu.memory_space<vmem>>, vector<2x64xbf16>,
    %c0_833 = arith.constant 0 : index
    %c192_834 = arith.constant 192 : index
    %973 = vector.load %arg14[%c0_833, %c192_834] : memref<2x256xbf16, #tpu.memory_space<vmem>>, vector<2x64xbf16>
    tpu.vector_store %arg14[%c0_833, %c192_834], %692 {strides = array<i32>} : memref<2x256xbf16, #tpu.memory_space<vmem>>, vector<2x64xbf16>,
    %c0_835 = arith.constant 0 : index
    %c0_836 = arith.constant 0 : index
    %974 = vector.load %arg14[%c0_835, %c0_836] : memref<2x256xbf16, #tpu.memory_space<vmem>>, vector<2x256xbf16>
    %cst_837 = arith.constant dense<0.000000e+00> : vector<2x64xf32>
    %975 = tpu.matmul %974, %792, %cst_837 {dimension_numbers = #tpu.dot_dimension_numbers<[1], [0], [0], [1], [0, 0, 1, 1], [], []>} : vector<2x256xbf16>, vector<256x64xbf16>, vector<2x64xf32> -> vector<2x64xf32>
    %976 = vector.broadcast %793 : vector<1x64xf32> to vector<2x64xf32>
    %977 = arith.addf %975, %976 : vector<2x64xf32>
    %cst_838 = arith.constant 0.000000e+00 : f32
    %978 = vector.broadcast %cst_838 : f32 to vector<2x64xf32>
    %979 = arith.maximumf %977, %978 : vector<2x64xf32>
    %980 = arith.truncf %979 : vector<2x64xf32> to vector<2x64xbf16>
    %c0_839 = arith.constant 0 : index
    %c0_840 = arith.constant 0 : index
    %981 = vector.load %arg14[%c0_839, %c0_840] : memref<2x256xbf16, #tpu.memory_space<vmem>>, vector<2x64xbf16>
    tpu.vector_store %arg14[%c0_839, %c0_840], %626 {strides = array<i32>} : memref<2x256xbf16, #tpu.memory_space<vmem>>, vector<2x64xbf16>,
    %c0_841 = arith.constant 0 : index
    %c64_842 = arith.constant 64 : index
    %982 = vector.load %arg14[%c0_841, %c64_842] : memref<2x256xbf16, #tpu.memory_space<vmem>>, vector<2x64xbf16>
    tpu.vector_store %arg14[%c0_841, %c64_842], %637 {strides = array<i32>} : memref<2x256xbf16, #tpu.memory_space<vmem>>, vector<2x64xbf16>,
    %c0_843 = arith.constant 0 : index
    %c128_844 = arith.constant 128 : index
    %983 = vector.load %arg14[%c0_843, %c128_844] : memref<2x256xbf16, #tpu.memory_space<vmem>>, vector<2x64xbf16>
    tpu.vector_store %arg14[%c0_843, %c128_844], %692 {strides = array<i32>} : memref<2x256xbf16, #tpu.memory_space<vmem>>, vector<2x64xbf16>,
    %c0_845 = arith.constant 0 : index
    %c192_846 = arith.constant 192 : index
    %984 = vector.load %arg14[%c0_845, %c192_846] : memref<2x256xbf16, #tpu.memory_space<vmem>>, vector<2x64xbf16>
    tpu.vector_store %arg14[%c0_845, %c192_846], %703 {strides = array<i32>} : memref<2x256xbf16, #tpu.memory_space<vmem>>, vector<2x64xbf16>,
    %c0_847 = arith.constant 0 : index
    %c0_848 = arith.constant 0 : index
    %985 = vector.load %arg14[%c0_847, %c0_848] : memref<2x256xbf16, #tpu.memory_space<vmem>>, vector<2x256xbf16>
    %cst_849 = arith.constant dense<0.000000e+00> : vector<2x64xf32>
    %986 = tpu.matmul %985, %792, %cst_849 {dimension_numbers = #tpu.dot_dimension_numbers<[1], [0], [0], [1], [0, 0, 1, 1], [], []>} : vector<2x256xbf16>, vector<256x64xbf16>, vector<2x64xf32> -> vector<2x64xf32>
    %987 = vector.broadcast %793 : vector<1x64xf32> to vector<2x64xf32>
    %988 = arith.addf %986, %987 : vector<2x64xf32>
    %cst_850 = arith.constant 0.000000e+00 : f32
    %989 = vector.broadcast %cst_850 : f32 to vector<2x64xf32>
    %990 = arith.maximumf %988, %989 : vector<2x64xf32>
    %991 = arith.truncf %990 : vector<2x64xf32> to vector<2x64xbf16>
    %c0_851 = arith.constant 0 : index
    %c0_852 = arith.constant 0 : index
    %992 = vector.load %arg14[%c0_851, %c0_852] : memref<2x256xbf16, #tpu.memory_space<vmem>>, vector<2x64xbf16>
    tpu.vector_store %arg14[%c0_851, %c0_852], %637 {strides = array<i32>} : memref<2x256xbf16, #tpu.memory_space<vmem>>, vector<2x64xbf16>,
    %c0_853 = arith.constant 0 : index
    %c64_854 = arith.constant 64 : index
    %993 = vector.load %arg14[%c0_853, %c64_854] : memref<2x256xbf16, #tpu.memory_space<vmem>>, vector<2x64xbf16>
    tpu.vector_store %arg14[%c0_853, %c64_854], %648 {strides = array<i32>} : memref<2x256xbf16, #tpu.memory_space<vmem>>, vector<2x64xbf16>,
    %c0_855 = arith.constant 0 : index
    %c128_856 = arith.constant 128 : index
    %994 = vector.load %arg14[%c0_855, %c128_856] : memref<2x256xbf16, #tpu.memory_space<vmem>>, vector<2x64xbf16>
    tpu.vector_store %arg14[%c0_855, %c128_856], %703 {strides = array<i32>} : memref<2x256xbf16, #tpu.memory_space<vmem>>, vector<2x64xbf16>,
    %c0_857 = arith.constant 0 : index
    %c192_858 = arith.constant 192 : index
    %995 = vector.load %arg14[%c0_857, %c192_858] : memref<2x256xbf16, #tpu.memory_space<vmem>>, vector<2x64xbf16>
    tpu.vector_store %arg14[%c0_857, %c192_858], %714 {strides = array<i32>} : memref<2x256xbf16, #tpu.memory_space<vmem>>, vector<2x64xbf16>,
    %c0_859 = arith.constant 0 : index
    %c0_860 = arith.constant 0 : index
    %996 = vector.load %arg14[%c0_859, %c0_860] : memref<2x256xbf16, #tpu.memory_space<vmem>>, vector<2x256xbf16>
    %cst_861 = arith.constant dense<0.000000e+00> : vector<2x64xf32>
    %997 = tpu.matmul %996, %792, %cst_861 {dimension_numbers = #tpu.dot_dimension_numbers<[1], [0], [0], [1], [0, 0, 1, 1], [], []>} : vector<2x256xbf16>, vector<256x64xbf16>, vector<2x64xf32> -> vector<2x64xf32>
    %998 = vector.broadcast %793 : vector<1x64xf32> to vector<2x64xf32>
    %999 = arith.addf %997, %998 : vector<2x64xf32>
    %cst_862 = arith.constant 0.000000e+00 : f32
    %1000 = vector.broadcast %cst_862 : f32 to vector<2x64xf32>
    %1001 = arith.maximumf %999, %1000 : vector<2x64xf32>
    %1002 = arith.truncf %1001 : vector<2x64xf32> to vector<2x64xbf16>
    %c0_863 = arith.constant 0 : index
    %c0_864 = arith.constant 0 : index
    %1003 = vector.load %arg14[%c0_863, %c0_864] : memref<2x256xbf16, #tpu.memory_space<vmem>>, vector<2x64xbf16>
    tpu.vector_store %arg14[%c0_863, %c0_864], %648 {strides = array<i32>} : memref<2x256xbf16, #tpu.memory_space<vmem>>, vector<2x64xbf16>,
    %c0_865 = arith.constant 0 : index
    %c64_866 = arith.constant 64 : index
    %1004 = vector.load %arg14[%c0_865, %c64_866] : memref<2x256xbf16, #tpu.memory_space<vmem>>, vector<2x64xbf16>
    tpu.vector_store %arg14[%c0_865, %c64_866], %659 {strides = array<i32>} : memref<2x256xbf16, #tpu.memory_space<vmem>>, vector<2x64xbf16>,
    %c0_867 = arith.constant 0 : index
    %c128_868 = arith.constant 128 : index
    %1005 = vector.load %arg14[%c0_867, %c128_868] : memref<2x256xbf16, #tpu.memory_space<vmem>>, vector<2x64xbf16>
    tpu.vector_store %arg14[%c0_867, %c128_868], %714 {strides = array<i32>} : memref<2x256xbf16, #tpu.memory_space<vmem>>, vector<2x64xbf16>,
    %c0_869 = arith.constant 0 : index
    %c192_870 = arith.constant 192 : index
    %1006 = vector.load %arg14[%c0_869, %c192_870] : memref<2x256xbf16, #tpu.memory_space<vmem>>, vector<2x64xbf16>
    tpu.vector_store %arg14[%c0_869, %c192_870], %725 {strides = array<i32>} : memref<2x256xbf16, #tpu.memory_space<vmem>>, vector<2x64xbf16>,
    %c0_871 = arith.constant 0 : index
    %c0_872 = arith.constant 0 : index
    %1007 = vector.load %arg14[%c0_871, %c0_872] : memref<2x256xbf16, #tpu.memory_space<vmem>>, vector<2x256xbf16>
    %cst_873 = arith.constant dense<0.000000e+00> : vector<2x64xf32>
    %1008 = tpu.matmul %1007, %792, %cst_873 {dimension_numbers = #tpu.dot_dimension_numbers<[1], [0], [0], [1], [0, 0, 1, 1], [], []>} : vector<2x256xbf16>, vector<256x64xbf16>, vector<2x64xf32> -> vector<2x64xf32>
    %1009 = vector.broadcast %793 : vector<1x64xf32> to vector<2x64xf32>
    %1010 = arith.addf %1008, %1009 : vector<2x64xf32>
    %cst_874 = arith.constant 0.000000e+00 : f32
    %1011 = vector.broadcast %cst_874 : f32 to vector<2x64xf32>
    %1012 = arith.maximumf %1010, %1011 : vector<2x64xf32>
    %1013 = arith.truncf %1012 : vector<2x64xf32> to vector<2x64xbf16>
    %c0_875 = arith.constant 0 : index
    %c0_876 = arith.constant 0 : index
    %1014 = vector.load %arg14[%c0_875, %c0_876] : memref<2x256xbf16, #tpu.memory_space<vmem>>, vector<2x64xbf16>
    tpu.vector_store %arg14[%c0_875, %c0_876], %670 {strides = array<i32>} : memref<2x256xbf16, #tpu.memory_space<vmem>>, vector<2x64xbf16>,
    %c0_877 = arith.constant 0 : index
    %c64_878 = arith.constant 64 : index
    %1015 = vector.load %arg14[%c0_877, %c64_878] : memref<2x256xbf16, #tpu.memory_space<vmem>>, vector<2x64xbf16>
    tpu.vector_store %arg14[%c0_877, %c64_878], %681 {strides = array<i32>} : memref<2x256xbf16, #tpu.memory_space<vmem>>, vector<2x64xbf16>,
    %c0_879 = arith.constant 0 : index
    %c128_880 = arith.constant 128 : index
    %1016 = vector.load %arg14[%c0_879, %c128_880] : memref<2x256xbf16, #tpu.memory_space<vmem>>, vector<2x64xbf16>
    tpu.vector_store %arg14[%c0_879, %c128_880], %736 {strides = array<i32>} : memref<2x256xbf16, #tpu.memory_space<vmem>>, vector<2x64xbf16>,
    %c0_881 = arith.constant 0 : index
    %c192_882 = arith.constant 192 : index
    %1017 = vector.load %arg14[%c0_881, %c192_882] : memref<2x256xbf16, #tpu.memory_space<vmem>>, vector<2x64xbf16>
    tpu.vector_store %arg14[%c0_881, %c192_882], %747 {strides = array<i32>} : memref<2x256xbf16, #tpu.memory_space<vmem>>, vector<2x64xbf16>,
    %c0_883 = arith.constant 0 : index
    %c0_884 = arith.constant 0 : index
    %1018 = vector.load %arg14[%c0_883, %c0_884] : memref<2x256xbf16, #tpu.memory_space<vmem>>, vector<2x256xbf16>
    %cst_885 = arith.constant dense<0.000000e+00> : vector<2x64xf32>
    %1019 = tpu.matmul %1018, %792, %cst_885 {dimension_numbers = #tpu.dot_dimension_numbers<[1], [0], [0], [1], [0, 0, 1, 1], [], []>} : vector<2x256xbf16>, vector<256x64xbf16>, vector<2x64xf32> -> vector<2x64xf32>
    %1020 = vector.broadcast %793 : vector<1x64xf32> to vector<2x64xf32>
    %1021 = arith.addf %1019, %1020 : vector<2x64xf32>
    %cst_886 = arith.constant 0.000000e+00 : f32
    %1022 = vector.broadcast %cst_886 : f32 to vector<2x64xf32>
    %1023 = arith.maximumf %1021, %1022 : vector<2x64xf32>
    %1024 = arith.truncf %1023 : vector<2x64xf32> to vector<2x64xbf16>
    %c0_887 = arith.constant 0 : index
    %c0_888 = arith.constant 0 : index
    %1025 = vector.load %arg14[%c0_887, %c0_888] : memref<2x256xbf16, #tpu.memory_space<vmem>>, vector<2x64xbf16>
    tpu.vector_store %arg14[%c0_887, %c0_888], %681 {strides = array<i32>} : memref<2x256xbf16, #tpu.memory_space<vmem>>, vector<2x64xbf16>,
    %c0_889 = arith.constant 0 : index
    %c64_890 = arith.constant 64 : index
    %1026 = vector.load %arg14[%c0_889, %c64_890] : memref<2x256xbf16, #tpu.memory_space<vmem>>, vector<2x64xbf16>
    tpu.vector_store %arg14[%c0_889, %c64_890], %692 {strides = array<i32>} : memref<2x256xbf16, #tpu.memory_space<vmem>>, vector<2x64xbf16>,
    %c0_891 = arith.constant 0 : index
    %c128_892 = arith.constant 128 : index
    %1027 = vector.load %arg14[%c0_891, %c128_892] : memref<2x256xbf16, #tpu.memory_space<vmem>>, vector<2x64xbf16>
    tpu.vector_store %arg14[%c0_891, %c128_892], %747 {strides = array<i32>} : memref<2x256xbf16, #tpu.memory_space<vmem>>, vector<2x64xbf16>,
    %c0_893 = arith.constant 0 : index
    %c192_894 = arith.constant 192 : index
    %1028 = vector.load %arg14[%c0_893, %c192_894] : memref<2x256xbf16, #tpu.memory_space<vmem>>, vector<2x64xbf16>
    tpu.vector_store %arg14[%c0_893, %c192_894], %758 {strides = array<i32>} : memref<2x256xbf16, #tpu.memory_space<vmem>>, vector<2x64xbf16>,
    %c0_895 = arith.constant 0 : index
    %c0_896 = arith.constant 0 : index
    %1029 = vector.load %arg14[%c0_895, %c0_896] : memref<2x256xbf16, #tpu.memory_space<vmem>>, vector<2x256xbf16>
    %cst_897 = arith.constant dense<0.000000e+00> : vector<2x64xf32>
    %1030 = tpu.matmul %1029, %792, %cst_897 {dimension_numbers = #tpu.dot_dimension_numbers<[1], [0], [0], [1], [0, 0, 1, 1], [], []>} : vector<2x256xbf16>, vector<256x64xbf16>, vector<2x64xf32> -> vector<2x64xf32>
    %1031 = vector.broadcast %793 : vector<1x64xf32> to vector<2x64xf32>
    %1032 = arith.addf %1030, %1031 : vector<2x64xf32>
    %cst_898 = arith.constant 0.000000e+00 : f32
    %1033 = vector.broadcast %cst_898 : f32 to vector<2x64xf32>
    %1034 = arith.maximumf %1032, %1033 : vector<2x64xf32>
    %1035 = arith.truncf %1034 : vector<2x64xf32> to vector<2x64xbf16>
    %c0_899 = arith.constant 0 : index
    %c0_900 = arith.constant 0 : index
    %1036 = vector.load %arg14[%c0_899, %c0_900] : memref<2x256xbf16, #tpu.memory_space<vmem>>, vector<2x64xbf16>
    tpu.vector_store %arg14[%c0_899, %c0_900], %692 {strides = array<i32>} : memref<2x256xbf16, #tpu.memory_space<vmem>>, vector<2x64xbf16>,
    %c0_901 = arith.constant 0 : index
    %c64_902 = arith.constant 64 : index
    %1037 = vector.load %arg14[%c0_901, %c64_902] : memref<2x256xbf16, #tpu.memory_space<vmem>>, vector<2x64xbf16>
    tpu.vector_store %arg14[%c0_901, %c64_902], %703 {strides = array<i32>} : memref<2x256xbf16, #tpu.memory_space<vmem>>, vector<2x64xbf16>,
    %c0_903 = arith.constant 0 : index
    %c128_904 = arith.constant 128 : index
    %1038 = vector.load %arg14[%c0_903, %c128_904] : memref<2x256xbf16, #tpu.memory_space<vmem>>, vector<2x64xbf16>
    tpu.vector_store %arg14[%c0_903, %c128_904], %758 {strides = array<i32>} : memref<2x256xbf16, #tpu.memory_space<vmem>>, vector<2x64xbf16>,
    %c0_905 = arith.constant 0 : index
    %c192_906 = arith.constant 192 : index
    %1039 = vector.load %arg14[%c0_905, %c192_906] : memref<2x256xbf16, #tpu.memory_space<vmem>>, vector<2x64xbf16>
    tpu.vector_store %arg14[%c0_905, %c192_906], %769 {strides = array<i32>} : memref<2x256xbf16, #tpu.memory_space<vmem>>, vector<2x64xbf16>,
    %c0_907 = arith.constant 0 : index
    %c0_908 = arith.constant 0 : index
    %1040 = vector.load %arg14[%c0_907, %c0_908] : memref<2x256xbf16, #tpu.memory_space<vmem>>, vector<2x256xbf16>
    %cst_909 = arith.constant dense<0.000000e+00> : vector<2x64xf32>
    %1041 = tpu.matmul %1040, %792, %cst_909 {dimension_numbers = #tpu.dot_dimension_numbers<[1], [0], [0], [1], [0, 0, 1, 1], [], []>} : vector<2x256xbf16>, vector<256x64xbf16>, vector<2x64xf32> -> vector<2x64xf32>
    %1042 = vector.broadcast %793 : vector<1x64xf32> to vector<2x64xf32>
    %1043 = arith.addf %1041, %1042 : vector<2x64xf32>
    %cst_910 = arith.constant 0.000000e+00 : f32
    %1044 = vector.broadcast %cst_910 : f32 to vector<2x64xf32>
    %1045 = arith.maximumf %1043, %1044 : vector<2x64xf32>
    %1046 = arith.truncf %1045 : vector<2x64xf32> to vector<2x64xbf16>
    %c0_911 = arith.constant 0 : index
    %c0_912 = arith.constant 0 : index
    %1047 = vector.load %arg14[%c0_911, %c0_912] : memref<2x256xbf16, #tpu.memory_space<vmem>>, vector<2x64xbf16>
    tpu.vector_store %arg14[%c0_911, %c0_912], %703 {strides = array<i32>} : memref<2x256xbf16, #tpu.memory_space<vmem>>, vector<2x64xbf16>,
    %c0_913 = arith.constant 0 : index
    %c64_914 = arith.constant 64 : index
    %1048 = vector.load %arg14[%c0_913, %c64_914] : memref<2x256xbf16, #tpu.memory_space<vmem>>, vector<2x64xbf16>
    tpu.vector_store %arg14[%c0_913, %c64_914], %714 {strides = array<i32>} : memref<2x256xbf16, #tpu.memory_space<vmem>>, vector<2x64xbf16>,
    %c0_915 = arith.constant 0 : index
    %c128_916 = arith.constant 128 : index
    %1049 = vector.load %arg14[%c0_915, %c128_916] : memref<2x256xbf16, #tpu.memory_space<vmem>>, vector<2x64xbf16>
    tpu.vector_store %arg14[%c0_915, %c128_916], %769 {strides = array<i32>} : memref<2x256xbf16, #tpu.memory_space<vmem>>, vector<2x64xbf16>,
    %c0_917 = arith.constant 0 : index
    %c192_918 = arith.constant 192 : index
    %1050 = vector.load %arg14[%c0_917, %c192_918] : memref<2x256xbf16, #tpu.memory_space<vmem>>, vector<2x64xbf16>
    tpu.vector_store %arg14[%c0_917, %c192_918], %780 {strides = array<i32>} : memref<2x256xbf16, #tpu.memory_space<vmem>>, vector<2x64xbf16>,
    %c0_919 = arith.constant 0 : index
    %c0_920 = arith.constant 0 : index
    %1051 = vector.load %arg14[%c0_919, %c0_920] : memref<2x256xbf16, #tpu.memory_space<vmem>>, vector<2x256xbf16>
    %cst_921 = arith.constant dense<0.000000e+00> : vector<2x64xf32>
    %1052 = tpu.matmul %1051, %792, %cst_921 {dimension_numbers = #tpu.dot_dimension_numbers<[1], [0], [0], [1], [0, 0, 1, 1], [], []>} : vector<2x256xbf16>, vector<256x64xbf16>, vector<2x64xf32> -> vector<2x64xf32>
    %1053 = vector.broadcast %793 : vector<1x64xf32> to vector<2x64xf32>
    %1054 = arith.addf %1052, %1053 : vector<2x64xf32>
    %cst_922 = arith.constant 0.000000e+00 : f32
    %1055 = vector.broadcast %cst_922 : f32 to vector<2x64xf32>
    %1056 = arith.maximumf %1054, %1055 : vector<2x64xf32>
    %1057 = arith.truncf %1056 : vector<2x64xf32> to vector<2x64xbf16>
    %c0_923 = arith.constant 0 : index
    %c0_924 = arith.constant 0 : index
    %1058 = vector.load %arg14[%c0_923, %c0_924] : memref<2x256xbf16, #tpu.memory_space<vmem>>, vector<2x64xbf16>
    tpu.vector_store %arg14[%c0_923, %c0_924], %714 {strides = array<i32>} : memref<2x256xbf16, #tpu.memory_space<vmem>>, vector<2x64xbf16>,
    %c0_925 = arith.constant 0 : index
    %c64_926 = arith.constant 64 : index
    %1059 = vector.load %arg14[%c0_925, %c64_926] : memref<2x256xbf16, #tpu.memory_space<vmem>>, vector<2x64xbf16>
    tpu.vector_store %arg14[%c0_925, %c64_926], %725 {strides = array<i32>} : memref<2x256xbf16, #tpu.memory_space<vmem>>, vector<2x64xbf16>,
    %c0_927 = arith.constant 0 : index
    %c128_928 = arith.constant 128 : index
    %1060 = vector.load %arg14[%c0_927, %c128_928] : memref<2x256xbf16, #tpu.memory_space<vmem>>, vector<2x64xbf16>
    tpu.vector_store %arg14[%c0_927, %c128_928], %780 {strides = array<i32>} : memref<2x256xbf16, #tpu.memory_space<vmem>>, vector<2x64xbf16>,
    %c0_929 = arith.constant 0 : index
    %c192_930 = arith.constant 192 : index
    %1061 = vector.load %arg14[%c0_929, %c192_930] : memref<2x256xbf16, #tpu.memory_space<vmem>>, vector<2x64xbf16>
    tpu.vector_store %arg14[%c0_929, %c192_930], %791 {strides = array<i32>} : memref<2x256xbf16, #tpu.memory_space<vmem>>, vector<2x64xbf16>,
    %c0_931 = arith.constant 0 : index
    %c0_932 = arith.constant 0 : index
    %1062 = vector.load %arg14[%c0_931, %c0_932] : memref<2x256xbf16, #tpu.memory_space<vmem>>, vector<2x256xbf16>
    %cst_933 = arith.constant dense<0.000000e+00> : vector<2x64xf32>
    %1063 = tpu.matmul %1062, %792, %cst_933 {dimension_numbers = #tpu.dot_dimension_numbers<[1], [0], [0], [1], [0, 0, 1, 1], [], []>} : vector<2x256xbf16>, vector<256x64xbf16>, vector<2x64xf32> -> vector<2x64xf32>
    %1064 = vector.broadcast %793 : vector<1x64xf32> to vector<2x64xf32>
    %1065 = arith.addf %1063, %1064 : vector<2x64xf32>
    %cst_934 = arith.constant 0.000000e+00 : f32
    %1066 = vector.broadcast %cst_934 : f32 to vector<2x64xf32>
    %1067 = arith.maximumf %1065, %1066 : vector<2x64xf32>
    %1068 = arith.truncf %1067 : vector<2x64xf32> to vector<2x64xbf16>
    %c0_935 = arith.constant 0 : index
    %c0_936 = arith.constant 0 : index
    %1069 = vector.load %arg15[%c0_935, %c0_936] : memref<2x1600xbf16, #tpu.memory_space<vmem>>, vector<2x64xbf16>
    tpu.vector_store %arg15[%c0_935, %c0_936], %804 {strides = array<i32>} : memref<2x1600xbf16, #tpu.memory_space<vmem>>, vector<2x64xbf16>,
    %c0_937 = arith.constant 0 : index
    %c64_938 = arith.constant 64 : index
    %1070 = vector.load %arg15[%c0_937, %c64_938] : memref<2x1600xbf16, #tpu.memory_space<vmem>>, vector<2x64xbf16>
    tpu.vector_store %arg15[%c0_937, %c64_938], %815 {strides = array<i32>} : memref<2x1600xbf16, #tpu.memory_space<vmem>>, vector<2x64xbf16>,
    %c0_939 = arith.constant 0 : index
    %c128_940 = arith.constant 128 : index
    %1071 = vector.load %arg15[%c0_939, %c128_940] : memref<2x1600xbf16, #tpu.memory_space<vmem>>, vector<2x64xbf16>
    tpu.vector_store %arg15[%c0_939, %c128_940], %826 {strides = array<i32>} : memref<2x1600xbf16, #tpu.memory_space<vmem>>, vector<2x64xbf16>,
    %c0_941 = arith.constant 0 : index
    %c192_942 = arith.constant 192 : index
    %1072 = vector.load %arg15[%c0_941, %c192_942] : memref<2x1600xbf16, #tpu.memory_space<vmem>>, vector<2x64xbf16>
    tpu.vector_store %arg15[%c0_941, %c192_942], %837 {strides = array<i32>} : memref<2x1600xbf16, #tpu.memory_space<vmem>>, vector<2x64xbf16>,
    %c0_943 = arith.constant 0 : index
    %c256 = arith.constant 256 : index
    %1073 = vector.load %arg15[%c0_943, %c256] : memref<2x1600xbf16, #tpu.memory_space<vmem>>, vector<2x64xbf16>
    tpu.vector_store %arg15[%c0_943, %c256], %848 {strides = array<i32>} : memref<2x1600xbf16, #tpu.memory_space<vmem>>, vector<2x64xbf16>,
    %c0_944 = arith.constant 0 : index
    %c320 = arith.constant 320 : index
    %1074 = vector.load %arg15[%c0_944, %c320] : memref<2x1600xbf16, #tpu.memory_space<vmem>>, vector<2x64xbf16>
    tpu.vector_store %arg15[%c0_944, %c320], %859 {strides = array<i32>} : memref<2x1600xbf16, #tpu.memory_space<vmem>>, vector<2x64xbf16>,
    %c0_945 = arith.constant 0 : index
    %c384 = arith.constant 384 : index
    %1075 = vector.load %arg15[%c0_945, %c384] : memref<2x1600xbf16, #tpu.memory_space<vmem>>, vector<2x64xbf16>
    tpu.vector_store %arg15[%c0_945, %c384], %870 {strides = array<i32>} : memref<2x1600xbf16, #tpu.memory_space<vmem>>, vector<2x64xbf16>,
    %c0_946 = arith.constant 0 : index
    %c448 = arith.constant 448 : index
    %1076 = vector.load %arg15[%c0_946, %c448] : memref<2x1600xbf16, #tpu.memory_space<vmem>>, vector<2x64xbf16>
    tpu.vector_store %arg15[%c0_946, %c448], %881 {strides = array<i32>} : memref<2x1600xbf16, #tpu.memory_space<vmem>>, vector<2x64xbf16>,
    %c0_947 = arith.constant 0 : index
    %c512 = arith.constant 512 : index
    %1077 = vector.load %arg15[%c0_947, %c512] : memref<2x1600xbf16, #tpu.memory_space<vmem>>, vector<2x64xbf16>
    tpu.vector_store %arg15[%c0_947, %c512], %892 {strides = array<i32>} : memref<2x1600xbf16, #tpu.memory_space<vmem>>, vector<2x64xbf16>,
    %c0_948 = arith.constant 0 : index
    %c576 = arith.constant 576 : index
    %1078 = vector.load %arg15[%c0_948, %c576] : memref<2x1600xbf16, #tpu.memory_space<vmem>>, vector<2x64xbf16>
    tpu.vector_store %arg15[%c0_948, %c576], %903 {strides = array<i32>} : memref<2x1600xbf16, #tpu.memory_space<vmem>>, vector<2x64xbf16>,
    %c0_949 = arith.constant 0 : index
    %c640 = arith.constant 640 : index
    %1079 = vector.load %arg15[%c0_949, %c640] : memref<2x1600xbf16, #tpu.memory_space<vmem>>, vector<2x64xbf16>
    tpu.vector_store %arg15[%c0_949, %c640], %914 {strides = array<i32>} : memref<2x1600xbf16, #tpu.memory_space<vmem>>, vector<2x64xbf16>,
    %c0_950 = arith.constant 0 : index
    %c704 = arith.constant 704 : index
    %1080 = vector.load %arg15[%c0_950, %c704] : memref<2x1600xbf16, #tpu.memory_space<vmem>>, vector<2x64xbf16>
    tpu.vector_store %arg15[%c0_950, %c704], %925 {strides = array<i32>} : memref<2x1600xbf16, #tpu.memory_space<vmem>>, vector<2x64xbf16>,
    %c0_951 = arith.constant 0 : index
    %c768 = arith.constant 768 : index
    %1081 = vector.load %arg15[%c0_951, %c768] : memref<2x1600xbf16, #tpu.memory_space<vmem>>, vector<2x64xbf16>
    tpu.vector_store %arg15[%c0_951, %c768], %936 {strides = array<i32>} : memref<2x1600xbf16, #tpu.memory_space<vmem>>, vector<2x64xbf16>,
    %c0_952 = arith.constant 0 : index
    %c832 = arith.constant 832 : index
    %1082 = vector.load %arg15[%c0_952, %c832] : memref<2x1600xbf16, #tpu.memory_space<vmem>>, vector<2x64xbf16>
    tpu.vector_store %arg15[%c0_952, %c832], %947 {strides = array<i32>} : memref<2x1600xbf16, #tpu.memory_space<vmem>>, vector<2x64xbf16>,
    %c0_953 = arith.constant 0 : index
    %c896 = arith.constant 896 : index
    %1083 = vector.load %arg15[%c0_953, %c896] : memref<2x1600xbf16, #tpu.memory_space<vmem>>, vector<2x64xbf16>
    tpu.vector_store %arg15[%c0_953, %c896], %958 {strides = array<i32>} : memref<2x1600xbf16, #tpu.memory_space<vmem>>, vector<2x64xbf16>,
    %c0_954 = arith.constant 0 : index
    %c960 = arith.constant 960 : index
    %1084 = vector.load %arg15[%c0_954, %c960] : memref<2x1600xbf16, #tpu.memory_space<vmem>>, vector<2x64xbf16>
    tpu.vector_store %arg15[%c0_954, %c960], %969 {strides = array<i32>} : memref<2x1600xbf16, #tpu.memory_space<vmem>>, vector<2x64xbf16>,
    %c0_955 = arith.constant 0 : index
    %c1024 = arith.constant 1024 : index
    %1085 = vector.load %arg15[%c0_955, %c1024] : memref<2x1600xbf16, #tpu.memory_space<vmem>>, vector<2x64xbf16>
    tpu.vector_store %arg15[%c0_955, %c1024], %980 {strides = array<i32>} : memref<2x1600xbf16, #tpu.memory_space<vmem>>, vector<2x64xbf16>,
    %c0_956 = arith.constant 0 : index
    %c1088 = arith.constant 1088 : index
    %1086 = vector.load %arg15[%c0_956, %c1088] : memref<2x1600xbf16, #tpu.memory_space<vmem>>, vector<2x64xbf16>
    tpu.vector_store %arg15[%c0_956, %c1088], %991 {strides = array<i32>} : memref<2x1600xbf16, #tpu.memory_space<vmem>>, vector<2x64xbf16>,
    %c0_957 = arith.constant 0 : index
    %c1152 = arith.constant 1152 : index
    %1087 = vector.load %arg15[%c0_957, %c1152] : memref<2x1600xbf16, #tpu.memory_space<vmem>>, vector<2x64xbf16>
    tpu.vector_store %arg15[%c0_957, %c1152], %1002 {strides = array<i32>} : memref<2x1600xbf16, #tpu.memory_space<vmem>>, vector<2x64xbf16>,
    %c0_958 = arith.constant 0 : index
    %c1216 = arith.constant 1216 : index
    %1088 = vector.load %arg15[%c0_958, %c1216] : memref<2x1600xbf16, #tpu.memory_space<vmem>>, vector<2x64xbf16>
    tpu.vector_store %arg15[%c0_958, %c1216], %1013 {strides = array<i32>} : memref<2x1600xbf16, #tpu.memory_space<vmem>>, vector<2x64xbf16>,
    %c0_959 = arith.constant 0 : index
    %c1280 = arith.constant 1280 : index
    %1089 = vector.load %arg15[%c0_959, %c1280] : memref<2x1600xbf16, #tpu.memory_space<vmem>>, vector<2x64xbf16>
    tpu.vector_store %arg15[%c0_959, %c1280], %1024 {strides = array<i32>} : memref<2x1600xbf16, #tpu.memory_space<vmem>>, vector<2x64xbf16>,
    %c0_960 = arith.constant 0 : index
    %c1344 = arith.constant 1344 : index
    %1090 = vector.load %arg15[%c0_960, %c1344] : memref<2x1600xbf16, #tpu.memory_space<vmem>>, vector<2x64xbf16>
    tpu.vector_store %arg15[%c0_960, %c1344], %1035 {strides = array<i32>} : memref<2x1600xbf16, #tpu.memory_space<vmem>>, vector<2x64xbf16>,
    %c0_961 = arith.constant 0 : index
    %c1408 = arith.constant 1408 : index
    %1091 = vector.load %arg15[%c0_961, %c1408] : memref<2x1600xbf16, #tpu.memory_space<vmem>>, vector<2x64xbf16>
    tpu.vector_store %arg15[%c0_961, %c1408], %1046 {strides = array<i32>} : memref<2x1600xbf16, #tpu.memory_space<vmem>>, vector<2x64xbf16>,
    %c0_962 = arith.constant 0 : index
    %c1472 = arith.constant 1472 : index
    %1092 = vector.load %arg15[%c0_962, %c1472] : memref<2x1600xbf16, #tpu.memory_space<vmem>>, vector<2x64xbf16>
    tpu.vector_store %arg15[%c0_962, %c1472], %1057 {strides = array<i32>} : memref<2x1600xbf16, #tpu.memory_space<vmem>>, vector<2x64xbf16>,
    %c0_963 = arith.constant 0 : index
    %c1536 = arith.constant 1536 : index
    %1093 = vector.load %arg15[%c0_963, %c1536] : memref<2x1600xbf16, #tpu.memory_space<vmem>>, vector<2x64xbf16>
    tpu.vector_store %arg15[%c0_963, %c1536], %1068 {strides = array<i32>} : memref<2x1600xbf16, #tpu.memory_space<vmem>>, vector<2x64xbf16>,
    %c0_964 = arith.constant 0 : index
    %c0_965 = arith.constant 0 : index
    %1094 = vector.load %arg15[%c0_964, %c0_965] : memref<2x1600xbf16, #tpu.memory_space<vmem>>, vector<2x1600xbf16>
    %c0_966 = arith.constant 0 : index
    %c0_967 = arith.constant 0 : index
    %1095 = vector.load %arg8[%c0_966, %c0_967] : memref<1600x512xbf16, #tpu.memory_space<vmem>>, vector<1600x512xbf16>
    %cst_968 = arith.constant dense<0.000000e+00> : vector<2x512xf32>
    %1096 = tpu.matmul %1094, %1095, %cst_968 {dimension_numbers = #tpu.dot_dimension_numbers<[1], [0], [0], [1], [0, 0, 1, 1], [], []>} : vector<2x1600xbf16>, vector<1600x512xbf16>, vector<2x512xf32> -> vector<2x512xf32>
    %c0_969 = arith.constant 0 : index
    %c0_970 = arith.constant 0 : index
    %1097 = vector.load %arg9[%c0_969, %c0_970] : memref<1x512xf32, #tpu.memory_space<vmem>>, vector<1x512xf32>
    %1098 = vector.broadcast %1097 : vector<1x512xf32> to vector<2x512xf32>
    %1099 = arith.addf %1096, %1098 : vector<2x512xf32>
    %cst_971 = arith.constant 0.000000e+00 : f32
    %1100 = vector.broadcast %cst_971 : f32 to vector<2x512xf32>
    %1101 = arith.maximumf %1099, %1100 : vector<2x512xf32>
    %1102 = arith.truncf %1101 : vector<2x512xf32> to vector<2x512xbf16>
    %c0_972 = arith.constant 0 : index
    %c0_973 = arith.constant 0 : index
    %1103 = vector.load %arg10[%c0_972, %c0_973] : memref<512x128xbf16, #tpu.memory_space<vmem>>, vector<512x128xbf16>
    %cst_974 = arith.constant dense<0.000000e+00> : vector<2x128xf32>
    %1104 = tpu.matmul %1102, %1103, %cst_974 {dimension_numbers = #tpu.dot_dimension_numbers<[1], [0], [0], [1], [0, 0, 1, 1], [], []>} : vector<2x512xbf16>, vector<512x128xbf16>, vector<2x128xf32> -> vector<2x128xf32>
    %c0_975 = arith.constant 0 : index
    %c0_976 = arith.constant 0 : index
    %1105 = vector.load %arg11[%c0_975, %c0_976] : memref<1x128xf32, #tpu.memory_space<vmem>>, vector<1x128xf32>
    %1106 = vector.broadcast %1105 : vector<1x128xf32> to vector<2x128xf32>
    %1107 = arith.addf %1104, %1106 : vector<2x128xf32>
    %1108 = tpu.iota {dimensions = array<i32: 1>} : vector<2x128xi32>
    %c6_i32 = arith.constant 6 : i32
    %1109 = vector.broadcast %c6_i32 : i32 to vector<2x128xi32>
    %1110 = arith.cmpi slt, %1108, %1109 : vector<2x128xi32>
    %cst_977 = arith.constant -1.000000e+30 : f32
    %1111 = vector.broadcast %cst_977 : f32 to vector<2x128xf32>
    %1112 = arith.select %1110, %1107, %1111 : vector<2x128xi1>, vector<2x128xf32>
    %cst_978 = arith.constant dense<0xFF800000> : vector<2xf32>
    %1113 = vector.multi_reduction <maximumf>, %1112, %cst_978 [1] : vector<2x128xf32> to vector<2xf32>
    %1114 = vector.shape_cast %1113 : vector<2xf32> to vector<2x1xf32>
    %1115 = vector.broadcast %1114 : vector<2x1xf32> to vector<2x128xf32>
    %1116 = arith.subf %1112, %1115 : vector<2x128xf32>
    %1117 = math.exp %1116 : vector<2x128xf32>
    %cst_979 = arith.constant dense<0.000000e+00> : vector<2xf32>
    %1118 = vector.multi_reduction <add>, %1117, %cst_979 [1] : vector<2x128xf32> to vector<2xf32>
    %1119 = vector.shape_cast %1118 : vector<2xf32> to vector<2x1xf32>
    %1120 = vector.broadcast %1119 : vector<2x1xf32> to vector<2x128xf32>
    %1121 = arith.divf %1117, %1120 : vector<2x128xf32>
    %c6_i32_980 = arith.constant 6 : i32
    %1122 = vector.broadcast %c6_i32_980 : i32 to vector<2x128xi32>
    %1123 = arith.cmpi eq, %1108, %1122 : vector<2x128xi32>
    %cst_981 = arith.constant 0.000000e+00 : f32
    %1124 = vector.broadcast %cst_981 : f32 to vector<2x128xf32>
    %1125 = arith.select %1123, %1107, %1124 : vector<2x128xi1>, vector<2x128xf32>
    %1126 = arith.select %1110, %1121, %1125 : vector<2x128xi1>, vector<2x128xf32>
    %c0_982 = arith.constant 0 : index
    %c0_983 = arith.constant 0 : index
    %1127 = vector.load %arg12[%c0_982, %c0_983] : memref<2x128xf32, #tpu.memory_space<vmem>>, vector<2x128xf32>
    tpu.vector_store %arg12[%c0_982, %c0_983], %1126 {strides = array<i32>} : memref<2x128xf32, #tpu.memory_space<vmem>>, vector<2x128xf32>,
    return
  }
  func.func @transform_0(%arg0: i32) -> (i32, i32, i32) {
    %c0_i32 = arith.constant 0 : i32
    %c0_i32_0 = arith.constant 0 : i32
    %c0_i32_1 = arith.constant 0 : i32
    return %c0_i32, %arg0, %c0_i32_0 : i32, i32, i32
  }
  func.func @transform_1(%arg0: i32) -> (i32, i32) {
    %c0_i32 = arith.constant 0 : i32
    %c0_i32_0 = arith.constant 0 : i32
    %c0_i32_1 = arith.constant 0 : i32
    return %c0_i32, %c0_i32_0 : i32, i32
  }
  func.func @transform_2(%arg0: i32) -> (i32, i32) {
    %c0_i32 = arith.constant 0 : i32
    %c0_i32_0 = arith.constant 0 : i32
    %c0_i32_1 = arith.constant 0 : i32
    return %c0_i32, %c0_i32_0 : i32, i32
  }
  func.func @transform_3(%arg0: i32) -> (i32, i32) {
    %c0_i32 = arith.constant 0 : i32
    %c0_i32_0 = arith.constant 0 : i32
    %c0_i32_1 = arith.constant 0 : i32
    return %c0_i32, %c0_i32_0 : i32, i32
  }
  func.func @transform_4(%arg0: i32) -> (i32, i32) {
    %c0_i32 = arith.constant 0 : i32
    %c0_i32_0 = arith.constant 0 : i32
    %c0_i32_1 = arith.constant 0 : i32
    return %c0_i32, %c0_i32_0 : i32, i32
  }
  func.func @transform_5(%arg0: i32) -> (i32, i32) {
    %c0_i32 = arith.constant 0 : i32
    %c0_i32_0 = arith.constant 0 : i32
    %c0_i32_1 = arith.constant 0 : i32
    return %c0_i32, %c0_i32_0 : i32, i32
  }
  func.func @transform_6(%arg0: i32) -> (i32, i32) {
    %c0_i32 = arith.constant 0 : i32
    %c0_i32_0 = arith.constant 0 : i32
    %c0_i32_1 = arith.constant 0 : i32
    return %c0_i32, %c0_i32_0 : i32, i32
  }
  func.func @transform_7(%arg0: i32) -> (i32, i32) {
    %c0_i32 = arith.constant 0 : i32
    %c0_i32_0 = arith.constant 0 : i32
    %c0_i32_1 = arith.constant 0 : i32
    return %c0_i32, %c0_i32_0 : i32, i32
  }
  func.func @transform_8(%arg0: i32) -> (i32, i32) {
    %c0_i32 = arith.constant 0 : i32
    %c0_i32_0 = arith.constant 0 : i32
    %c0_i32_1 = arith.constant 0 : i32
    return %c0_i32, %c0_i32_0 : i32, i32
  }
  func.func @transform_9(%arg0: i32) -> (i32, i32) {
    %c0_i32 = arith.constant 0 : i32
    %c0_i32_0 = arith.constant 0 : i32
    %c0_i32_1 = arith.constant 0 : i32
    return %c0_i32, %c0_i32_0 : i32, i32
  }
  func.func @transform_10(%arg0: i32) -> (i32, i32) {
    %c0_i32 = arith.constant 0 : i32
    %c0_i32_0 = arith.constant 0 : i32
    %c0_i32_1 = arith.constant 0 : i32
    return %c0_i32, %c0_i32_0 : i32, i32
  }
  func.func @transform_11(%arg0: i32) -> (i32, i32) {
    %c0_i32 = arith.constant 0 : i32
    %c0_i32_0 = arith.constant 0 : i32
    return %arg0, %c0_i32 : i32, i32
  }
}

</mosaic_0001>

<llo_original>
// kernel: vmpo_qec_forward.1
$region0: #{vmpo_qec_forward.1}
  #allocation0 [shape = 'u32[]', space=smem, size = 0x4, offset = 0x4, fixed_abs, tag = 'smem constant byte address 0x4 - core index']
  #allocation1 [shape = 'u32[72,128]{1,0:T(1,128)}', space=vmem, size = 0x9000, scoped, tag = 'internal scratch']
  #allocation2 [shape = 'bf16[2,128]{1,0:T(2,128)(2,1)}', space=vmem, size = 0x200, scoped, tag = 'scratch operand']
  #allocation3 [shape = 'bf16[2,256]{1,0:T(2,128)(2,1)}', space=vmem, size = 0x400, scoped, tag = 'scratch operand']
  #allocation4 [shape = 'bf16[2,1600]{1,0:T(2,128)(2,1)}', space=vmem, size = 0x1a00, scoped, tag = 'scratch operand']
  %s0 = inlined_call_operand.vmem [shape: bf16[49,2,36], index: 0, kind: input, shape index: {}]
  %s1 = inlined_call_operand.vmem [shape: bf16[36,32], index: 1, kind: input, shape index: {}]
  %s2 = inlined_call_operand.hbm [shape: f32[1,32], index: 2, kind: input, shape index: {}]
  %s3 = inlined_call_operand.vmem [shape: bf16[128,64], index: 3, kind: input, shape index: {}]
  %s4 = inlined_call_operand.hbm [shape: f32[1,64], index: 4, kind: input, shape index: {}]
  %s5 = inlined_call_operand.vmem [shape: bf16[256,64], index: 5, kind: input, shape index: {}]
  %s6 = inlined_call_operand.hbm [shape: f32[1,64], index: 6, kind: input, shape index: {}]
  %s7 = inlined_call_operand.hbm [shape: bf16[1600,512], index: 7, kind: input, shape index: {}]
  %s8 = inlined_call_operand.hbm [shape: f32[1,512], index: 8, kind: input, shape index: {}]
  %s9 = inlined_call_operand.hbm [shape: bf16[512,128], index: 9, kind: input, shape index: {}]
  %s10 = inlined_call_operand.hbm [shape: f32[1,128], index: 10, kind: input, shape index: {}]
  %s11 = inlined_call_operand.vmem [shape: f32[2,128], index: 11, kind: output, shape index: {}]
  %s12 = sld [smem:[#allocation0]]
  $region82: #{vmpo_qec_forward.1} parent=0
    _
  %s14 = ssub.s32 1, %s12
  %s15 = scalar_select 0, %s14, %s12
  $region1: #{vmpo_qec_forward.1} parent=0
    #allocation5 [shape = 'u8[512]{0}', space=vmem, size = 0x400, scoped, tag = 'input window, operand 2, single buffered']
    #allocation6 [shape = 's32[1]{0}', space=sflag, size = 0x4, scoped, tag = 'scoped memory for vmpo_qec_forward.1']
    #allocation7 [shape = 'u8[512]{0}', space=vmem, size = 0x400, scoped, tag = 'input window, operand 4, single buffered']
    #allocation8 [shape = 's32[1]{0}', space=sflag, size = 0x4, scoped, tag = 'scoped memory for vmpo_qec_forward.1']
    #allocation9 [shape = 'u8[512]{0}', space=vmem, size = 0x400, scoped, tag = 'input window, operand 6, single buffered']
    #allocation10 [shape = 'u8[1638400]{0}', space=vmem, size = 0x190000, scoped, tag = 'input window, operand 7, single buffered']
    #allocation11 [shape = 's32[1]{0}', space=sflag, size = 0x4, scoped, tag = 'scoped memory for vmpo_qec_forward.1']
    #allocation12 [shape = 'u8[2048]{0}', space=vmem, size = 0x800, scoped, tag = 'input window, operand 8, single buffered']
    #allocation13 [shape = 'u8[131072]{0}', space=vmem, size = 0x20000, scoped, tag = 'input window, operand 9, single buffered']
    #allocation14 [shape = 's32[1]{0}', space=sflag, size = 0x4, scoped, tag = 'scoped memory for vmpo_qec_forward.1']
    #allocation15 [shape = 'u8[512]{0}', space=vmem, size = 0x400, scoped, tag = 'input window, operand 10, single buffered']
    %16 = vsyncpa [#allocation6], 0
    %17 = vsyncpa [#allocation8], 0
    %18 = vsyncpa [#allocation11], 0
    %19 = vsyncpa [#allocation14], 0
    // Predicated region
    $region2: #{vmpo_qec_forward.1} parent=1 // pred_check
      _
    $region3: #{vmpo_qec_forward.1} parent=1 // pred_check_branch
      %21 = sbr.rel (0) target = $region5
    $region4: #{vmpo_qec_forward.1} parent=1 // pred_region
      _
    $region5: #{vmpo_qec_forward.1} parent=1 // pred_fallthru
      _
    // Predicated region
    $region6: #{vmpo_qec_forward.1} parent=1 // pred_check
      _
    $region7: #{vmpo_qec_forward.1} parent=1 // pred_check_branch
      %23 = sbr.rel (0) target = $region9
    $region8: #{vmpo_qec_forward.1} parent=1 // pred_region
      _
    $region9: #{vmpo_qec_forward.1} parent=1 // pred_fallthru
      _
    // Predicated region
    $region10: #{vmpo_qec_forward.1} parent=1 // pred_check
      _
    $region11: #{vmpo_qec_forward.1} parent=1 // pred_check_branch
      %25 = sbr.rel (0) target = $region13
    $region12: #{vmpo_qec_forward.1} parent=1 // pred_region
      %27 = vsyncadd [#allocation6], 0
      %s29 = sshll.u32 %s2, 4
      %s30 = int_to_ptr.hbm [resolvable:$true] %s29
      %s31 = sshll.u32 [#allocation5], 4
      %s32 = int_to_ptr.vmem [resolvable:$true] %s31
      %34 = dma.hbm_to_vmem [thread:$0]  %s30, 16, %s32, [#allocation6]
    $region13: #{vmpo_qec_forward.1} parent=1 // pred_fallthru
      _
    // Predicated region
    $region14: #{vmpo_qec_forward.1} parent=1 // pred_check
      _
    $region15: #{vmpo_qec_forward.1} parent=1 // pred_check_branch
      %36 = sbr.rel (0) target = $region17
    $region16: #{vmpo_qec_forward.1} parent=1 // pred_region
      _
    $region17: #{vmpo_qec_forward.1} parent=1 // pred_fallthru
      _
    // Predicated region
    $region18: #{vmpo_qec_forward.1} parent=1 // pred_check
      _
    $region19: #{vmpo_qec_forward.1} parent=1 // pred_check_branch
      %38 = sbr.rel (0) target = $region21
    $region20: #{vmpo_qec_forward.1} parent=1 // pred_region
      %40 = vsyncadd [#allocation8], 0
      %s42 = sshll.u32 %s4, 4
      %s43 = int_to_ptr.hbm [resolvable:$true] %s42
      %s44 = sshll.u32 [#allocation7], 4
      %s45 = int_to_ptr.vmem [resolvable:$true] %s44
      %47 = dma.hbm_to_vmem [thread:$0]  %s43, 16, %s45, [#allocation8]
    $region21: #{vmpo_qec_forward.1} parent=1 // pred_fallthru
      _
    // Predicated region
    $region22: #{vmpo_qec_forward.1} parent=1 // pred_check
      _
    $region23: #{vmpo_qec_forward.1} parent=1 // pred_check_branch
      %49 = sbr.rel (0) target = $region25
    $region24: #{vmpo_qec_forward.1} parent=1 // pred_region
      _
    $region25: #{vmpo_qec_forward.1} parent=1 // pred_fallthru
      _
    // Predicated region
    $region26: #{vmpo_qec_forward.1} parent=1 // pred_check
      _
    $region27: #{vmpo_qec_forward.1} parent=1 // pred_check_branch
      %51 = sbr.rel (0) target = $region29
    $region28: #{vmpo_qec_forward.1} parent=1 // pred_region
      %53 = vsyncadd [#allocation8], 0
      %s55 = sshll.u32 %s6, 4
      %s56 = int_to_ptr.hbm [resolvable:$true] %s55
      %s57 = sshll.u32 [#allocation9], 4
      %s58 = int_to_ptr.vmem [resolvable:$true] %s57
      %60 = dma.hbm_to_vmem [thread:$0]  %s56, 16, %s58, [#allocation8]
    $region29: #{vmpo_qec_forward.1} parent=1 // pred_fallthru
      _
    // Predicated region
    $region30: #{vmpo_qec_forward.1} parent=1 // pred_check
      _
    $region31: #{vmpo_qec_forward.1} parent=1 // pred_check_branch
      %62 = sbr.rel (0) target = $region33
    $region32: #{vmpo_qec_forward.1} parent=1 // pred_region
      %64 = vsyncadd [#allocation11], 0
      %s65 = sshll.u32 %s7, 4
      %s66 = int_to_ptr.hbm [resolvable:$true] %s65
      %s67 = sshll.u32 [#allocation10], 4
      %s68 = int_to_ptr.vmem [resolvable:$true] %s67
      %73 = dma.hbm_to_vmem [thread:$0]  %s66, 51200, %s68, [#allocation11], 256, 256, 16
    $region33: #{vmpo_qec_forward.1} parent=1 // pred_fallthru
      _
    // Predicated region
    $region34: #{vmpo_qec_forward.1} parent=1 // pred_check
      _
    $region35: #{vmpo_qec_forward.1} parent=1 // pred_check_branch
      %75 = sbr.rel (0) target = $region37
    $region36: #{vmpo_qec_forward.1} parent=1 // pred_region
      %77 = vsyncadd [#allocation11], 0
      %s79 = sshll.u32 %s8, 4
      %s80 = int_to_ptr.hbm [resolvable:$true] %s79
      %s81 = sshll.u32 [#allocation12], 4
      %s82 = int_to_ptr.vmem [resolvable:$true] %s81
      %84 = dma.hbm_to_vmem [thread:$0]  %s80, 64, %s82, [#allocation11]
    $region37: #{vmpo_qec_forward.1} parent=1 // pred_fallthru
      _
    // Predicated region
    $region38: #{vmpo_qec_forward.1} parent=1 // pred_check
      _
    $region39: #{vmpo_qec_forward.1} parent=1 // pred_check_branch
      %86 = sbr.rel (0) target = $region41
    $region40: #{vmpo_qec_forward.1} parent=1 // pred_region
      %88 = vsyncadd [#allocation14], 0
      %s89 = sshll.u32 %s9, 4
      %s90 = int_to_ptr.hbm [resolvable:$true] %s89
      %s91 = sshll.u32 [#allocation13], 4
      %s92 = int_to_ptr.vmem [resolvable:$true] %s91
      %97 = dma.hbm_to_vmem [thread:$0]  %s90, 4096, %s92, [#allocation14], 64, 64, 4
    $region41: #{vmpo_qec_forward.1} parent=1 // pred_fallthru
      _
    // Predicated region
    $region42: #{vmpo_qec_forward.1} parent=1 // pred_check
      _
    $region43: #{vmpo_qec_forward.1} parent=1 // pred_check_branch
      %99 = sbr.rel (0) target = $region45
    $region44: #{vmpo_qec_forward.1} parent=1 // pred_region
      %101 = vsyncadd [#allocation14], 0
      %s103 = sshll.u32 %s10, 4
      %s104 = int_to_ptr.hbm [resolvable:$true] %s103
      %s105 = sshll.u32 [#allocation15], 4
      %s106 = int_to_ptr.vmem [resolvable:$true] %s105
      %108 = dma.hbm_to_vmem [thread:$0]  %s104, 16, %s106, [#allocation14]
    $region45: #{vmpo_qec_forward.1} parent=1 // pred_fallthru
      _
    // Predicated region
    $region46: #{vmpo_qec_forward.1} parent=1 // pred_check
      _
    $region47: #{vmpo_qec_forward.1} parent=1 // pred_check_branch
      %110 = sbr.rel (0) target = $region49
    $region48: #{vmpo_qec_forward.1} parent=1 // pred_region
      %112 = dma.done [#allocation6], 16
    $region49: #{vmpo_qec_forward.1} parent=1 // pred_fallthru
      _
    // Predicated region
    $region50: #{vmpo_qec_forward.1} parent=1 // pred_check
      _
    $region51: #{vmpo_qec_forward.1} parent=1 // pred_check_branch
      %114 = sbr.rel (0) target = $region53
    $region52: #{vmpo_qec_forward.1} parent=1 // pred_region
      %116 = dma.done [#allocation8], 16
    $region53: #{vmpo_qec_forward.1} parent=1 // pred_fallthru
      _
    // Predicated region
    $region54: #{vmpo_qec_forward.1} parent=1 // pred_check
      _
    $region55: #{vmpo_qec_forward.1} parent=1 // pred_check_branch
      %118 = sbr.rel (0) target = $region57
    $region56: #{vmpo_qec_forward.1} parent=1 // pred_region
      %120 = dma.done [#allocation8], 16
    $region57: #{vmpo_qec_forward.1} parent=1 // pred_fallthru
      _
    // Predicated region
    $region58: #{vmpo_qec_forward.1} parent=1 // pred_check
      _
    $region59: #{vmpo_qec_forward.1} parent=1 // pred_check_branch
      %122 = sbr.rel (0) target = $region61
    $region60: #{vmpo_qec_forward.1} parent=1 // pred_region
      %124 = dma.done [#allocation11], 51200
    $region61: #{vmpo_qec_forward.1} parent=1 // pred_fallthru
      _
    // Predicated region
    $region62: #{vmpo_qec_forward.1} parent=1 // pred_check
      _
    $region63: #{vmpo_qec_forward.1} parent=1 // pred_check_branch
      %126 = sbr.rel (0) target = $region65
    $region64: #{vmpo_qec_forward.1} parent=1 // pred_region
      %128 = dma.done [#allocation11], 64
    $region65: #{vmpo_qec_forward.1} parent=1 // pred_fallthru
      _
    // Predicated region
    $region66: #{vmpo_qec_forward.1} parent=1 // pred_check
      _
    $region67: #{vmpo_qec_forward.1} parent=1 // pred_check_branch
      %130 = sbr.rel (0) target = $region69
    $region68: #{vmpo_qec_forward.1} parent=1 // pred_region
      %132 = dma.done [#allocation14], 4096
    $region69: #{vmpo_qec_forward.1} parent=1 // pred_fallthru
      _
    // Predicated region
    $region70: #{vmpo_qec_forward.1} parent=1 // pred_check
      _
    $region71: #{vmpo_qec_forward.1} parent=1 // pred_check_branch
      %134 = sbr.rel (0) target = $region73
    $region72: #{vmpo_qec_forward.1} parent=1 // pred_region
      %136 = dma.done [#allocation14], 16
    $region73: #{vmpo_qec_forward.1} parent=1 // pred_fallthru
      _
    %v138 = vld [vmem:[%s1] sm:$0xf]
    %v139 = vld [vmem:[%s1 + $0x4] sm:$0xf]
    %v140 = vld [vmem:[%s1 + $0x8] sm:$0xf]
    %v141 = vld [vmem:[%s1 + $0xc] sm:$0xf]
    %v142 = vld [vmem:[%s1 + $0x10] sm:$0x3]
    %v143 = vld [vmem:[#allocation5] sm:$0x1]
    %v144 = vld [vmem:[%s0] sm:$0x1]
    %v146 = vperm.slane %v143, 0
    %v153 = vunpack.c.l.b16 %v138
    %v154 = vunpack.c.l.b16 %v139
    %v155 = vunpack.c.l.b16 %v140
    %v156 = vunpack.c.l.b16 %v141
    %v157 = vunpack.c.l.b16 %v142
    %v158 = vpack.c.b16 %v154, %v153
    %v159 = vpack.c.b16 %v156, %v155
    %v160 = vpack.c.b16 %v157, %v157
    %vm163 = vcmask 293888
    %v165 = vsel %vm163, %v144, 0
    %vm167 = vcmask 1041408
    %v169 = vsel %vm167, %v160, 0
    %171 = vmatpush.bf16.msra.mxu0 0
    %172 = vmatpush.bf16.msra.mxu0 0
    %173 = vmatpush.bf16.msra.mxu0 0
    %174 = vmatpush.bf16.msra.mxu0 0
    %175 = vmatpush.bf16.msra.mxu0 0
    %176 = vmatpush.bf16.msra.mxu0 %v169
    %177 = vmatpush.bf16.msra.mxu0 %v159
    %178 = vmatpush.bf16.msra.mxu0 %v158
    %179 = vmatmul.bf16.gmra.mxu0 %v165
    %v180 = vpop.f32.mrf.mxu0
    %v181 = vadd.f32 %v146, %v180
    %v182 = vpop.f32.mrf.mxu0
    %183 = vdwg.mxu0
    %v184 = vmax.f32 %v181, 0.0
    %v185 = vpack.c.bf16 %v184, %v184
    %s186 = scalar_lea.vmem %s0, 1
    %v187 = vld [vmem:[%s186] sm:$0x1]
    %v189 = vsel %vm163, %v187, 0
    %191 = vmatpush.bf16.msra.mxu0 0
    %192 = vmatpush.bf16.msra.mxu0 0
    %193 = vmatpush.bf16.msra.mxu0 0
    %194 = vmatpush.bf16.msra.mxu0 0
    %195 = vmatpush.bf16.msra.mxu0 0
    %196 = vmatpush.bf16.msra.mxu0 %v169
    %197 = vmatpush.bf16.msra.mxu0 %v159
    %198 = vmatpush.bf16.msra.mxu0 %v158
    %199 = vmatmul.bf16.gmra.mxu0 %v189
    %v200 = vpop.f32.mrf.mxu0
    %v201 = vadd.f32 %v146, %v200
    %v202 = vpop.f32.mrf.mxu0
    %203 = vdwg.mxu0
    %v204 = vmax.f32 %v201, 0.0
    %v205 = vpack.c.bf16 %v204, %v204
    %s206 = scalar_lea.vmem %s0, 2
    %v207 = vld [vmem:[%s206] sm:$0x1]
    %v209 = vsel %vm163, %v207, 0
    %211 = vmatpush.bf16.msra.mxu0 0
    %212 = vmatpush.bf16.msra.mxu0 0
    %213 = vmatpush.bf16.msra.mxu0 0
    %214 = vmatpush.bf16.msra.mxu0 0
    %215 = vmatpush.bf16.msra.mxu0 0
    %216 = vmatpush.bf16.msra.mxu0 %v169
    %217 = vmatpush.bf16.msra.mxu0 %v159
    %218 = vmatpush.bf16.msra.mxu0 %v158
    %219 = vmatmul.bf16.gmra.mxu0 %v209
    %v220 = vpop.f32.mrf.mxu0
    %v221 = vadd.f32 %v146, %v220
    %v222 = vpop.f32.mrf.mxu0
    %223 = vdwg.mxu0
    %v224 = vmax.f32 %v221, 0.0
    %v225 = vpack.c.bf16 %v224, %v224
    %s226 = scalar_lea.vmem %s0, 3
    %v227 = vld [vmem:[%s226] sm:$0x1]
    %v229 = vsel %vm163, %v227, 0
    %231 = vmatpush.bf16.msra.mxu0 0
    %232 = vmatpush.bf16.msra.mxu0 0
    %233 = vmatpush.bf16.msra.mxu0 0
    %234 = vmatpush.bf16.msra.mxu0 0
    %235 = vmatpush.bf16.msra.mxu0 0
    %236 = vmatpush.bf16.msra.mxu0 %v169
    %237 = vmatpush.bf16.msra.mxu0 %v159
    %238 = vmatpush.bf16.msra.mxu0 %v158
    %239 = vmatmul.bf16.gmra.mxu0 %v229
    %v240 = vpop.f32.mrf.mxu0
    %v241 = vadd.f32 %v146, %v240
    %v242 = vpop.f32.mrf.mxu0
    %243 = vdwg.mxu0
    %v244 = vmax.f32 %v241, 0.0
    %v245 = vpack.c.bf16 %v244, %v244
    %s246 = scalar_lea.vmem %s0, 4
    %v247 = vld [vmem:[%s246] sm:$0x1]
    %v249 = vsel %vm163, %v247, 0
    %251 = vmatpush.bf16.msra.mxu0 0
    %252 = vmatpush.bf16.msra.mxu0 0
    %253 = vmatpush.bf16.msra.mxu0 0
    %254 = vmatpush.bf16.msra.mxu0 0
    %255 = vmatpush.bf16.msra.mxu0 0
    %256 = vmatpush.bf16.msra.mxu0 %v169
    %257 = vmatpush.bf16.msra.mxu0 %v159
    %258 = vmatpush.bf16.msra.mxu0 %v158
    %259 = vmatmul.bf16.gmra.mxu0 %v249
    %v260 = vpop.f32.mrf.mxu0
    %v261 = vadd.f32 %v146, %v260
    %v262 = vpop.f32.mrf.mxu0
    %263 = vdwg.mxu0
    %v264 = vmax.f32 %v261, 0.0
    %v265 = vpack.c.bf16 %v264, %v264
    %s266 = scalar_lea.vmem %s0, 5
    %v267 = vld [vmem:[%s266] sm:$0x1]
    %v269 = vsel %vm163, %v267, 0
    %271 = vmatpush.bf16.msra.mxu0 0
    %272 = vmatpush.bf16.msra.mxu0 0
    %273 = vmatpush.bf16.msra.mxu0 0
    %274 = vmatpush.bf16.msra.mxu0 0
    %275 = vmatpush.bf16.msra.mxu0 0
    %276 = vmatpush.bf16.msra.mxu0 %v169
    %277 = vmatpush.bf16.msra.mxu0 %v159
    %278 = vmatpush.bf16.msra.mxu0 %v158
    %279 = vmatmul.bf16.gmra.mxu0 %v269
    %v280 = vpop.f32.mrf.mxu0
    %v281 = vadd.f32 %v146, %v280
    %v282 = vpop.f32.mrf.mxu0
    %283 = vdwg.mxu0
    %v284 = vmax.f32 %v281, 0.0
    %v285 = vpack.c.bf16 %v284, %v284
    %s286 = scalar_lea.vmem %s0, 6
    %v287 = vld [vmem:[%s286] sm:$0x1]
    %v289 = vsel %vm163, %v287, 0
    %291 = vmatpush.bf16.msra.mxu0 0
    %292 = vmatpush.bf16.msra.mxu0 0
    %293 = vmatpush.bf16.msra.mxu0 0
    %294 = vmatpush.bf16.msra.mxu0 0
    %295 = vmatpush.bf16.msra.mxu0 0
    %296 = vmatpush.bf16.msra.mxu0 %v169
    %297 = vmatpush.bf16.msra.mxu0 %v159
    %298 = vmatpush.bf16.msra.mxu0 %v158
    %299 = vmatmul.bf16.gmra.mxu0 %v289
    %v300 = vpop.f32.mrf.mxu0
    %v301 = vadd.f32 %v146, %v300
    %v302 = vpop.f32.mrf.mxu0
    %303 = vdwg.mxu0
    %v304 = vmax.f32 %v301, 0.0
    %v305 = vpack.c.bf16 %v304, %v304
    %s306 = scalar_lea.vmem %s0, 7
    %v307 = vld [vmem:[%s306] sm:$0x1]
    %v309 = vsel %vm163, %v307, 0
    %311 = vmatpush.bf16.msra.mxu0 0
    %312 = vmatpush.bf16.msra.mxu0 0
    %313 = vmatpush.bf16.msra.mxu0 0
    %314 = vmatpush.bf16.msra.mxu0 0
    %315 = vmatpush.bf16.msra.mxu0 0
    %316 = vmatpush.bf16.msra.mxu0 %v169
    %317 = vmatpush.bf16.msra.mxu0 %v159
    %318 = vmatpush.bf16.msra.mxu0 %v158
    %319 = vmatmul.bf16.gmra.mxu0 %v309
    %v320 = vpop.f32.mrf.mxu0
    %v321 = vadd.f32 %v146, %v320
    %v322 = vpop.f32.mrf.mxu0
    %323 = vdwg.mxu0
    %v324 = vmax.f32 %v321, 0.0
    %v325 = vpack.c.bf16 %v324, %v324
    %s326 = scalar_lea.vmem %s0, 8
    %v327 = vld [vmem:[%s326] sm:$0x1]
    %v329 = vsel %vm163, %v327, 0
    %331 = vmatpush.bf16.msra.mxu0 0
    %332 = vmatpush.bf16.msra.mxu0 0
    %333 = vmatpush.bf16.msra.mxu0 0
    %334 = vmatpush.bf16.msra.mxu0 0
    %335 = vmatpush.bf16.msra.mxu0 0
    %336 = vmatpush.bf16.msra.mxu0 %v169
    %337 = vmatpush.bf16.msra.mxu0 %v159
    %338 = vmatpush.bf16.msra.mxu0 %v158
    %339 = vmatmul.bf16.gmra.mxu0 %v329
    %v340 = vpop.f32.mrf.mxu0
    %v341 = vadd.f32 %v146, %v340
    %v342 = vpop.f32.mrf.mxu0
    %343 = vdwg.mxu0
    %v344 = vmax.f32 %v341, 0.0
    %v345 = vpack.c.bf16 %v344, %v344
    %s346 = scalar_lea.vmem %s0, 9
    %v347 = vld [vmem:[%s346] sm:$0x1]
    %v349 = vsel %vm163, %v347, 0
    %351 = vmatpush.bf16.msra.mxu0 0
    %352 = vmatpush.bf16.msra.mxu0 0
    %353 = vmatpush.bf16.msra.mxu0 0
    %354 = vmatpush.bf16.msra.mxu0 0
    %355 = vmatpush.bf16.msra.mxu0 0
    %356 = vmatpush.bf16.msra.mxu0 %v169
    %357 = vmatpush.bf16.msra.mxu0 %v159
    %358 = vmatpush.bf16.msra.mxu0 %v158
    %359 = vmatmul.bf16.gmra.mxu0 %v349
    %v360 = vpop.f32.mrf.mxu0
    %v361 = vadd.f32 %v146, %v360
    %v362 = vpop.f32.mrf.mxu0
    %363 = vdwg.mxu0
    %v364 = vmax.f32 %v361, 0.0
    %v365 = vpack.c.bf16 %v364, %v364
    %s366 = scalar_lea.vmem %s0, 10
    %v367 = vld [vmem:[%s366] sm:$0x1]
    %v369 = vsel %vm163, %v367, 0
    %371 = vmatpush.bf16.msra.mxu0 0
    %372 = vmatpush.bf16.msra.mxu0 0
    %373 = vmatpush.bf16.msra.mxu0 0
    %374 = vmatpush.bf16.msra.mxu0 0
    %375 = vmatpush.bf16.msra.mxu0 0
    %376 = vmatpush.bf16.msra.mxu0 %v169
    %377 = vmatpush.bf16.msra.mxu0 %v159
    %378 = vmatpush.bf16.msra.mxu0 %v158
    %379 = vmatmul.bf16.gmra.mxu0 %v369
    %v380 = vpop.f32.mrf.mxu0
    %v381 = vadd.f32 %v146, %v380
    %v382 = vpop.f32.mrf.mxu0
    %383 = vdwg.mxu0
    %v384 = vmax.f32 %v381, 0.0
    %v385 = vpack.c.bf16 %v384, %v384
    %s386 = scalar_lea.vmem %s0, 11
    %v387 = vld [vmem:[%s386] sm:$0x1]
    %v389 = vsel %vm163, %v387, 0
    %391 = vmatpush.bf16.msra.mxu0 0
    %392 = vmatpush.bf16.msra.mxu0 0
    %393 = vmatpush.bf16.msra.mxu0 0
    %394 = vmatpush.bf16.msra.mxu0 0
    %395 = vmatpush.bf16.msra.mxu0 0
    %396 = vmatpush.bf16.msra.mxu0 %v169
    %397 = vmatpush.bf16.msra.mxu0 %v159
    %398 = vmatpush.bf16.msra.mxu0 %v158
    %399 = vmatmul.bf16.gmra.mxu0 %v389
    %v400 = vpop.f32.mrf.mxu0
    %v401 = vadd.f32 %v146, %v400
    %v402 = vpop.f32.mrf.mxu0
    %403 = vdwg.mxu0
    %v404 = vmax.f32 %v401, 0.0
    %v405 = vpack.c.bf16 %v404, %v404
    %s406 = scalar_lea.vmem %s0, 12
    %v407 = vld [vmem:[%s406] sm:$0x1]
    %v409 = vsel %vm163, %v407, 0
    %411 = vmatpush.bf16.msra.mxu0 0
    %412 = vmatpush.bf16.msra.mxu0 0
    %413 = vmatpush.bf16.msra.mxu0 0
    %414 = vmatpush.bf16.msra.mxu0 0
    %415 = vmatpush.bf16.msra.mxu0 0
    %416 = vmatpush.bf16.msra.mxu0 %v169
    %417 = vmatpush.bf16.msra.mxu0 %v159
    %418 = vmatpush.bf16.msra.mxu0 %v158
    %419 = vmatmul.bf16.gmra.mxu0 %v409
    %v420 = vpop.f32.mrf.mxu0
    %v421 = vadd.f32 %v146, %v420
    %v422 = vpop.f32.mrf.mxu0
    %423 = vdwg.mxu0
    %v424 = vmax.f32 %v421, 0.0
    %v425 = vpack.c.bf16 %v424, %v424
    %s426 = scalar_lea.vmem %s0, 13
    %v427 = vld [vmem:[%s426] sm:$0x1]
    %v429 = vsel %vm163, %v427, 0
    %431 = vmatpush.bf16.msra.mxu0 0
    %432 = vmatpush.bf16.msra.mxu0 0
    %433 = vmatpush.bf16.msra.mxu0 0
    %434 = vmatpush.bf16.msra.mxu0 0
    %435 = vmatpush.bf16.msra.mxu0 0
    %436 = vmatpush.bf16.msra.mxu0 %v169
    %437 = vmatpush.bf16.msra.mxu0 %v159
    %438 = vmatpush.bf16.msra.mxu0 %v158
    %439 = vmatmul.bf16.gmra.mxu0 %v429
    %v440 = vpop.f32.mrf.mxu0
    %v441 = vadd.f32 %v146, %v440
    %v442 = vpop.f32.mrf.mxu0
    %443 = vdwg.mxu0
    %v444 = vmax.f32 %v441, 0.0
    %v445 = vpack.c.bf16 %v444, %v444
    %s446 = scalar_lea.vmem %s0, 14
    %v447 = vld [vmem:[%s446] sm:$0x1]
    %v449 = vsel %vm163, %v447, 0
    %451 = vmatpush.bf16.msra.mxu0 0
    %452 = vmatpush.bf16.msra.mxu0 0
    %453 = vmatpush.bf16.msra.mxu0 0
    %454 = vmatpush.bf16.msra.mxu0 0
    %455 = vmatpush.bf16.msra.mxu0 0
    %456 = vmatpush.bf16.msra.mxu0 %v169
    %457 = vmatpush.bf16.msra.mxu0 %v159
    %458 = vmatpush.bf16.msra.mxu0 %v158
    %459 = vmatmul.bf16.gmra.mxu0 %v449
    %v460 = vpop.f32.mrf.mxu0
    %v461 = vadd.f32 %v146, %v460
    %v462 = vpop.f32.mrf.mxu0
    %463 = vdwg.mxu0
    %v464 = vmax.f32 %v461, 0.0
    %v465 = vpack.c.bf16 %v464, %v464
    %s466 = scalar_lea.vmem %s0, 15
    %v467 = vld [vmem:[%s466] sm:$0x1]
    %v469 = vsel %vm163, %v467, 0
    %471 = vmatpush.bf16.msra.mxu0 0
    %472 = vmatpush.bf16.msra.mxu0 0
    %473 = vmatpush.bf16.msra.mxu0 0
    %474 = vmatpush.bf16.msra.mxu0 0
    %475 = vmatpush.bf16.msra.mxu0 0
    %476 = vmatpush.bf16.msra.mxu0 %v169
    %477 = vmatpush.bf16.msra.mxu0 %v159
    %478 = vmatpush.bf16.msra.mxu0 %v158
    %479 = vmatmul.bf16.gmra.mxu0 %v469
    %v480 = vpop.f32.mrf.mxu0
    %v481 = vadd.f32 %v146, %v480
    %v482 = vpop.f32.mrf.mxu0
    %483 = vdwg.mxu0
    %v484 = vmax.f32 %v481, 0.0
    %v485 = vpack.c.bf16 %v484, %v484
    %s486 = scalar_lea.vmem %s0, 16
    %v487 = vld [vmem:[%s486] sm:$0x1]
    %v489 = vsel %vm163, %v487, 0
    %491 = vmatpush.bf16.msra.mxu0 0
    %492 = vmatpush.bf16.msra.mxu0 0
    %493 = vmatpush.bf16.msra.mxu0 0
    %494 = vmatpush.bf16.msra.mxu0 0
    %495 = vmatpush.bf16.msra.mxu0 0
    %496 = vmatpush.bf16.msra.mxu0 %v169
    %497 = vmatpush.bf16.msra.mxu0 %v159
    %498 = vmatpush.bf16.msra.mxu0 %v158
    %499 = vmatmul.bf16.gmra.mxu0 %v489
    %v500 = vpop.f32.mrf.mxu0
    %v501 = vadd.f32 %v146, %v500
    %v502 = vpop.f32.mrf.mxu0
    %503 = vdwg.mxu0
    %v504 = vmax.f32 %v501, 0.0
    %v505 = vpack.c.bf16 %v504, %v504
    %s506 = scalar_lea.vmem %s0, 17
    %v507 = vld [vmem:[%s506] sm:$0x1]
    %v509 = vsel %vm163, %v507, 0
    %511 = vmatpush.bf16.msra.mxu0 0
    %512 = vmatpush.bf16.msra.mxu0 0
    %513 = vmatpush.bf16.msra.mxu0 0
    %514 = vmatpush.bf16.msra.mxu0 0
    %515 = vmatpush.bf16.msra.mxu0 0
    %516 = vmatpush.bf16.msra.mxu0 %v169
    %517 = vmatpush.bf16.msra.mxu0 %v159
    %518 = vmatpush.bf16.msra.mxu0 %v158
    %519 = vmatmul.bf16.gmra.mxu0 %v509
    %v520 = vpop.f32.mrf.mxu0
    %v521 = vadd.f32 %v146, %v520
    %v522 = vpop.f32.mrf.mxu0
    %523 = vdwg.mxu0
    %v524 = vmax.f32 %v521, 0.0
    %v525 = vpack.c.bf16 %v524, %v524
    %s526 = scalar_lea.vmem %s0, 18
    %v527 = vld [vmem:[%s526] sm:$0x1]
    %v529 = vsel %vm163, %v527, 0
    %531 = vmatpush.bf16.msra.mxu0 0
    %532 = vmatpush.bf16.msra.mxu0 0
    %533 = vmatpush.bf16.msra.mxu0 0
    %534 = vmatpush.bf16.msra.mxu0 0
    %535 = vmatpush.bf16.msra.mxu0 0
    %536 = vmatpush.bf16.msra.mxu0 %v169
    %537 = vmatpush.bf16.msra.mxu0 %v159
    %538 = vmatpush.bf16.msra.mxu0 %v158
    %539 = vmatmul.bf16.gmra.mxu0 %v529
    %v540 = vpop.f32.mrf.mxu0
    %v541 = vadd.f32 %v146, %v540
    %v542 = vpop.f32.mrf.mxu0
    %543 = vdwg.mxu0
    %v544 = vmax.f32 %v541, 0.0
    %v545 = vpack.c.bf16 %v544, %v544
    %s546 = scalar_lea.vmem %s0, 19
    %v547 = vld [vmem:[%s546] sm:$0x1]
    %v549 = vsel %vm163, %v547, 0
    %551 = vmatpush.bf16.msra.mxu0 0
    %552 = vmatpush.bf16.msra.mxu0 0
    %553 = vmatpush.bf16.msra.mxu0 0
    %554 = vmatpush.bf16.msra.mxu0 0
    %555 = vmatpush.bf16.msra.mxu0 0
    %556 = vmatpush.bf16.msra.mxu0 %v169
    %557 = vmatpush.bf16.msra.mxu0 %v159
    %558 = vmatpush.bf16.msra.mxu0 %v158
    %559 = vmatmul.bf16.gmra.mxu0 %v549
    %v560 = vpop.f32.mrf.mxu0
    %v561 = vadd.f32 %v146, %v560
    %v562 = vpop.f32.mrf.mxu0
    %563 = vdwg.mxu0
    %v564 = vmax.f32 %v561, 0.0
    %v565 = vpack.c.bf16 %v564, %v564
    %s566 = scalar_lea.vmem %s0, 20
    %v567 = vld [vmem:[%s566] sm:$0x1]
    %v569 = vsel %vm163, %v567, 0
    %571 = vmatpush.bf16.msra.mxu0 0
    %572 = vmatpush.bf16.msra.mxu0 0
    %573 = vmatpush.bf16.msra.mxu0 0
    %574 = vmatpush.bf16.msra.mxu0 0
    %575 = vmatpush.bf16.msra.mxu0 0
    %576 = vmatpush.bf16.msra.mxu0 %v169
    %577 = vmatpush.bf16.msra.mxu0 %v159
    %578 = vmatpush.bf16.msra.mxu0 %v158
    %579 = vmatmul.bf16.gmra.mxu0 %v569
    %v580 = vpop.f32.mrf.mxu0
    %v581 = vadd.f32 %v146, %v580
    %v582 = vpop.f32.mrf.mxu0
    %583 = vdwg.mxu0
    %v584 = vmax.f32 %v581, 0.0
    %v585 = vpack.c.bf16 %v584, %v584
    %s586 = scalar_lea.vmem %s0, 21
    %v587 = vld [vmem:[%s586] sm:$0x1]
    %v589 = vsel %vm163, %v587, 0
    %591 = vmatpush.bf16.msra.mxu0 0
    %592 = vmatpush.bf16.msra.mxu0 0
    %593 = vmatpush.bf16.msra.mxu0 0
    %594 = vmatpush.bf16.msra.mxu0 0
    %595 = vmatpush.bf16.msra.mxu0 0
    %596 = vmatpush.bf16.msra.mxu0 %v169
    %597 = vmatpush.bf16.msra.mxu0 %v159
    %598 = vmatpush.bf16.msra.mxu0 %v158
    %599 = vmatmul.bf16.gmra.mxu0 %v589
    %v600 = vpop.f32.mrf.mxu0
    %v601 = vadd.f32 %v146, %v600
    %v602 = vpop.f32.mrf.mxu0
    %603 = vdwg.mxu0
    %v604 = vmax.f32 %v601, 0.0
    %v605 = vpack.c.bf16 %v604, %v604
    %s606 = scalar_lea.vmem %s0, 22
    %v607 = vld [vmem:[%s606] sm:$0x1]
    %v609 = vsel %vm163, %v607, 0
    %611 = vmatpush.bf16.msra.mxu0 0
    %612 = vmatpush.bf16.msra.mxu0 0
    %613 = vmatpush.bf16.msra.mxu0 0
    %614 = vmatpush.bf16.msra.mxu0 0
    %615 = vmatpush.bf16.msra.mxu0 0
    %616 = vmatpush.bf16.msra.mxu0 %v169
    %617 = vmatpush.bf16.msra.mxu0 %v159
    %618 = vmatpush.bf16.msra.mxu0 %v158
    %619 = vmatmul.bf16.gmra.mxu0 %v609
    %v620 = vpop.f32.mrf.mxu0
    %v621 = vadd.f32 %v146, %v620
    %v622 = vpop.f32.mrf.mxu0
    %623 = vdwg.mxu0
    %v624 = vmax.f32 %v621, 0.0
    %v625 = vpack.c.bf16 %v624, %v624
    %s626 = scalar_lea.vmem %s0, 23
    %v627 = vld [vmem:[%s626] sm:$0x1]
    %v629 = vsel %vm163, %v627, 0
    %631 = vmatpush.bf16.msra.mxu0 0
    %632 = vmatpush.bf16.msra.mxu0 0
    %633 = vmatpush.bf16.msra.mxu0 0
    %634 = vmatpush.bf16.msra.mxu0 0
    %635 = vmatpush.bf16.msra.mxu0 0
    %636 = vmatpush.bf16.msra.mxu0 %v169
    %637 = vmatpush.bf16.msra.mxu0 %v159
    %638 = vmatpush.bf16.msra.mxu0 %v158
    %639 = vmatmul.bf16.gmra.mxu0 %v629
    %v640 = vpop.f32.mrf.mxu0
    %v641 = vadd.f32 %v146, %v640
    %v642 = vpop.f32.mrf.mxu0
    %643 = vdwg.mxu0
    %v644 = vmax.f32 %v641, 0.0
    %v645 = vpack.c.bf16 %v644, %v644
    %s646 = scalar_lea.vmem %s0, 24
    %v647 = vld [vmem:[%s646] sm:$0x1]
    %v649 = vsel %vm163, %v647, 0
    %651 = vmatpush.bf16.msra.mxu0 0
    %652 = vmatpush.bf16.msra.mxu0 0
    %653 = vmatpush.bf16.msra.mxu0 0
    %654 = vmatpush.bf16.msra.mxu0 0
    %655 = vmatpush.bf16.msra.mxu0 0
    %656 = vmatpush.bf16.msra.mxu0 %v169
    %657 = vmatpush.bf16.msra.mxu0 %v159
    %658 = vmatpush.bf16.msra.mxu0 %v158
    %659 = vmatmul.bf16.gmra.mxu0 %v649
    %v660 = vpop.f32.mrf.mxu0
    %v661 = vadd.f32 %v146, %v660
    %v662 = vpop.f32.mrf.mxu0
    %663 = vdwg.mxu0
    %v664 = vmax.f32 %v661, 0.0
    %v665 = vpack.c.bf16 %v664, %v664
    %s666 = scalar_lea.vmem %s0, 25
    %v667 = vld [vmem:[%s666] sm:$0x1]
    %v669 = vsel %vm163, %v667, 0
    %671 = vmatpush.bf16.msra.mxu0 0
    %672 = vmatpush.bf16.msra.mxu0 0
    %673 = vmatpush.bf16.msra.mxu0 0
    %674 = vmatpush.bf16.msra.mxu0 0
    %675 = vmatpush.bf16.msra.mxu0 0
    %676 = vmatpush.bf16.msra.mxu0 %v169
    %677 = vmatpush.bf16.msra.mxu0 %v159
    %678 = vmatpush.bf16.msra.mxu0 %v158
    %679 = vmatmul.bf16.gmra.mxu0 %v669
    %v680 = vpop.f32.mrf.mxu0
    %v681 = vadd.f32 %v146, %v680
    %v682 = vpop.f32.mrf.mxu0
    %683 = vdwg.mxu0
    %v684 = vmax.f32 %v681, 0.0
    %v685 = vpack.c.bf16 %v684, %v684
    %s686 = scalar_lea.vmem %s0, 26
    %v687 = vld [vmem:[%s686] sm:$0x1]
    %v689 = vsel %vm163, %v687, 0
    %691 = vmatpush.bf16.msra.mxu0 0
    %692 = vmatpush.bf16.msra.mxu0 0
    %693 = vmatpush.bf16.msra.mxu0 0
    %694 = vmatpush.bf16.msra.mxu0 0
    %695 = vmatpush.bf16.msra.mxu0 0
    %696 = vmatpush.bf16.msra.mxu0 %v169
    %697 = vmatpush.bf16.msra.mxu0 %v159
    %698 = vmatpush.bf16.msra.mxu0 %v158
    %699 = vmatmul.bf16.gmra.mxu0 %v689
    %v700 = vpop.f32.mrf.mxu0
    %v701 = vadd.f32 %v146, %v700
    %v702 = vpop.f32.mrf.mxu0
    %703 = vdwg.mxu0
    %v704 = vmax.f32 %v701, 0.0
    %v705 = vpack.c.bf16 %v704, %v704
    %s706 = scalar_lea.vmem %s0, 27
    %v707 = vld [vmem:[%s706] sm:$0x1]
    %v709 = vsel %vm163, %v707, 0
    %711 = vmatpush.bf16.msra.mxu0 0
    %712 = vmatpush.bf16.msra.mxu0 0
    %713 = vmatpush.bf16.msra.mxu0 0
    %714 = vmatpush.bf16.msra.mxu0 0
    %715 = vmatpush.bf16.msra.mxu0 0
    %716 = vmatpush.bf16.msra.mxu0 %v169
    %717 = vmatpush.bf16.msra.mxu0 %v159
    %718 = vmatpush.bf16.msra.mxu0 %v158
    %719 = vmatmul.bf16.gmra.mxu0 %v709
    %v720 = vpop.f32.mrf.mxu0
    %v721 = vadd.f32 %v146, %v720
    %v722 = vpop.f32.mrf.mxu0
    %723 = vdwg.mxu0
    %v724 = vmax.f32 %v721, 0.0
    %v725 = vpack.c.bf16 %v724, %v724
    %s726 = scalar_lea.vmem %s0, 28
    %v727 = vld [vmem:[%s726] sm:$0x1]
    %v729 = vsel %vm163, %v727, 0
    %731 = vmatpush.bf16.msra.mxu0 0
    %732 = vmatpush.bf16.msra.mxu0 0
    %733 = vmatpush.bf16.msra.mxu0 0
    %734 = vmatpush.bf16.msra.mxu0 0
    %735 = vmatpush.bf16.msra.mxu0 0
    %736 = vmatpush.bf16.msra.mxu0 %v169
    %737 = vmatpush.bf16.msra.mxu0 %v159
    %738 = vmatpush.bf16.msra.mxu0 %v158
    %739 = vmatmul.bf16.gmra.mxu0 %v729
    %v740 = vpop.f32.mrf.mxu0
    %v741 = vadd.f32 %v146, %v740
    %v742 = vpop.f32.mrf.mxu0
    %743 = vdwg.mxu0
    %v744 = vmax.f32 %v741, 0.0
    %v745 = vpack.c.bf16 %v744, %v744
    %s746 = scalar_lea.vmem %s0, 29
    %v747 = vld [vmem:[%s746] sm:$0x1]
    %v749 = vsel %vm163, %v747, 0
    %751 = vmatpush.bf16.msra.mxu0 0
    %752 = vmatpush.bf16.msra.mxu0 0
    %753 = vmatpush.bf16.msra.mxu0 0
    %754 = vmatpush.bf16.msra.mxu0 0
    %755 = vmatpush.bf16.msra.mxu0 0
    %756 = vmatpush.bf16.msra.mxu0 %v169
    %757 = vmatpush.bf16.msra.mxu0 %v159
    %758 = vmatpush.bf16.msra.mxu0 %v158
    %759 = vmatmul.bf16.gmra.mxu0 %v749
    %v760 = vpop.f32.mrf.mxu0
    %v761 = vadd.f32 %v146, %v760
    %v762 = vpop.f32.mrf.mxu0
    %763 = vdwg.mxu0
    %v764 = vmax.f32 %v761, 0.0
    %v765 = vpack.c.bf16 %v764, %v764
    %s766 = scalar_lea.vmem %s0, 30
    %v767 = vld [vmem:[%s766] sm:$0x1]
    %v769 = vsel %vm163, %v767, 0
    %771 = vmatpush.bf16.msra.mxu0 0
    %772 = vmatpush.bf16.msra.mxu0 0
    %773 = vmatpush.bf16.msra.mxu0 0
    %774 = vmatpush.bf16.msra.mxu0 0
    %775 = vmatpush.bf16.msra.mxu0 0
    %776 = vmatpush.bf16.msra.mxu0 %v169
    %777 = vmatpush.bf16.msra.mxu0 %v159
    %778 = vmatpush.bf16.msra.mxu0 %v158
    %779 = vmatmul.bf16.gmra.mxu0 %v769
    %v780 = vpop.f32.mrf.mxu0
    %v781 = vadd.f32 %v146, %v780
    %v782 = vpop.f32.mrf.mxu0
    %783 = vdwg.mxu0
    %v784 = vmax.f32 %v781, 0.0
    %v785 = vpack.c.bf16 %v784, %v784
    %s786 = scalar_lea.vmem %s0, 31
    %v787 = vld [vmem:[%s786] sm:$0x1]
    %v789 = vsel %vm163, %v787, 0
    %791 = vmatpush.bf16.msra.mxu0 0
    %792 = vmatpush.bf16.msra.mxu0 0
    %793 = vmatpush.bf16.msra.mxu0 0
    %794 = vmatpush.bf16.msra.mxu0 0
    %795 = vmatpush.bf16.msra.mxu0 0
    %796 = vmatpush.bf16.msra.mxu0 %v169
    %797 = vmatpush.bf16.msra.mxu0 %v159
    %798 = vmatpush.bf16.msra.mxu0 %v158
    %799 = vmatmul.bf16.gmra.mxu0 %v789
    %v800 = vpop.f32.mrf.mxu0
    %v801 = vadd.f32 %v146, %v800
    %v802 = vpop.f32.mrf.mxu0
    %803 = vdwg.mxu0
    %v804 = vmax.f32 %v801, 0.0
    %v805 = vpack.c.bf16 %v804, %v804
    %s806 = scalar_lea.vmem %s0, 32
    %v807 = vld [vmem:[%s806] sm:$0x1]
    %v809 = vsel %vm163, %v807, 0
    %811 = vmatpush.bf16.msra.mxu0 0
    %812 = vmatpush.bf16.msra.mxu0 0
    %813 = vmatpush.bf16.msra.mxu0 0
    %814 = vmatpush.bf16.msra.mxu0 0
    %815 = vmatpush.bf16.msra.mxu0 0
    %816 = vmatpush.bf16.msra.mxu0 %v169
    %817 = vmatpush.bf16.msra.mxu0 %v159
    %818 = vmatpush.bf16.msra.mxu0 %v158
    %819 = vmatmul.bf16.gmra.mxu0 %v809
    %v820 = vpop.f32.mrf.mxu0
    %v821 = vadd.f32 %v146, %v820
    %v822 = vpop.f32.mrf.mxu0
    %823 = vdwg.mxu0
    %v824 = vmax.f32 %v821, 0.0
    %v825 = vpack.c.bf16 %v824, %v824
    %s826 = scalar_lea.vmem %s0, 33
    %v827 = vld [vmem:[%s826] sm:$0x1]
    %v829 = vsel %vm163, %v827, 0
    %831 = vmatpush.bf16.msra.mxu0 0
    %832 = vmatpush.bf16.msra.mxu0 0
    %833 = vmatpush.bf16.msra.mxu0 0
    %834 = vmatpush.bf16.msra.mxu0 0
    %835 = vmatpush.bf16.msra.mxu0 0
    %836 = vmatpush.bf16.msra.mxu0 %v169
    %837 = vmatpush.bf16.msra.mxu0 %v159
    %838 = vmatpush.bf16.msra.mxu0 %v158
    %839 = vmatmul.bf16.gmra.mxu0 %v829
    %v840 = vpop.f32.mrf.mxu0
    %v841 = vadd.f32 %v146, %v840
    %v842 = vpop.f32.mrf.mxu0
    %843 = vdwg.mxu0
    %v844 = vmax.f32 %v841, 0.0
    %v845 = vpack.c.bf16 %v844, %v844
    %s846 = scalar_lea.vmem %s0, 34
    %v847 = vld [vmem:[%s846] sm:$0x1]
    %v849 = vsel %vm163, %v847, 0
    %851 = vmatpush.bf16.msra.mxu0 0
    %852 = vmatpush.bf16.msra.mxu0 0
    %853 = vmatpush.bf16.msra.mxu0 0
    %854 = vmatpush.bf16.msra.mxu0 0
    %855 = vmatpush.bf16.msra.mxu0 0
    %856 = vmatpush.bf16.msra.mxu0 %v169
    %857 = vmatpush.bf16.msra.mxu0 %v159
    %858 = vmatpush.bf16.msra.mxu0 %v158
    %859 = vmatmul.bf16.gmra.mxu0 %v849
    %v860 = vpop.f32.mrf.mxu0
    %v861 = vadd.f32 %v146, %v860
    %v862 = vpop.f32.mrf.mxu0
    %863 = vdwg.mxu0
    %v864 = vmax.f32 %v861, 0.0
    %v865 = vpack.c.bf16 %v864, %v864
    %s866 = scalar_lea.vmem %s0, 35
    %v867 = vld [vmem:[%s866] sm:$0x1]
    %v869 = vsel %vm163, %v867, 0
    %871 = vmatpush.bf16.msra.mxu0 0
    %872 = vmatpush.bf16.msra.mxu0 0
    %873 = vmatpush.bf16.msra.mxu0 0
    %874 = vmatpush.bf16.msra.mxu0 0
    %875 = vmatpush.bf16.msra.mxu0 0
    %876 = vmatpush.bf16.msra.mxu0 %v169
    %877 = vmatpush.bf16.msra.mxu0 %v159
    %878 = vmatpush.bf16.msra.mxu0 %v158
    %879 = vmatmul.bf16.gmra.mxu0 %v869
    %v880 = vpop.f32.mrf.mxu0
    %v881 = vadd.f32 %v146, %v880
    %v882 = vpop.f32.mrf.mxu0
    %883 = vdwg.mxu0
    %v884 = vmax.f32 %v881, 0.0
    %v885 = vpack.c.bf16 %v884, %v884
    %s886 = scalar_lea.vmem %s0, 36
    %v887 = vld [vmem:[%s886] sm:$0x1]
    %v889 = vsel %vm163, %v887, 0
    %891 = vmatpush.bf16.msra.mxu0 0
    %892 = vmatpush.bf16.msra.mxu0 0
    %893 = vmatpush.bf16.msra.mxu0 0
    %894 = vmatpush.bf16.msra.mxu0 0
    %895 = vmatpush.bf16.msra.mxu0 0
    %896 = vmatpush.bf16.msra.mxu0 %v169
    %897 = vmatpush.bf16.msra.mxu0 %v159
    %898 = vmatpush.bf16.msra.mxu0 %v158
    %899 = vmatmul.bf16.gmra.mxu0 %v889
    %v900 = vpop.f32.mrf.mxu0
    %v901 = vadd.f32 %v146, %v900
    %v902 = vpop.f32.mrf.mxu0
    %903 = vdwg.mxu0
    %v904 = vmax.f32 %v901, 0.0
    %v905 = vpack.c.bf16 %v904, %v904
    %s906 = scalar_lea.vmem %s0, 37
    %v907 = vld [vmem:[%s906] sm:$0x1]
    %v909 = vsel %vm163, %v907, 0
    %911 = vmatpush.bf16.msra.mxu0 0
    %912 = vmatpush.bf16.msra.mxu0 0
    %913 = vmatpush.bf16.msra.mxu0 0
    %914 = vmatpush.bf16.msra.mxu0 0
    %915 = vmatpush.bf16.msra.mxu0 0
    %916 = vmatpush.bf16.msra.mxu0 %v169
    %917 = vmatpush.bf16.msra.mxu0 %v159
    %918 = vmatpush.bf16.msra.mxu0 %v158
    %919 = vmatmul.bf16.gmra.mxu0 %v909
    %v920 = vpop.f32.mrf.mxu0
    %v921 = vadd.f32 %v146, %v920
    %v922 = vpop.f32.mrf.mxu0
    %923 = vdwg.mxu0
    %v924 = vmax.f32 %v921, 0.0
    %v925 = vpack.c.bf16 %v924, %v924
    %s926 = scalar_lea.vmem %s0, 38
    %v927 = vld [vmem:[%s926] sm:$0x1]
    %v929 = vsel %vm163, %v927, 0
    %931 = vmatpush.bf16.msra.mxu0 0
    %932 = vmatpush.bf16.msra.mxu0 0
    %933 = vmatpush.bf16.msra.mxu0 0
    %934 = vmatpush.bf16.msra.mxu0 0
    %935 = vmatpush.bf16.msra.mxu0 0
    %936 = vmatpush.bf16.msra.mxu0 %v169
    %937 = vmatpush.bf16.msra.mxu0 %v159
    %938 = vmatpush.bf16.msra.mxu0 %v158
    %939 = vmatmul.bf16.gmra.mxu0 %v929
    %v940 = vpop.f32.mrf.mxu0
    %v941 = vadd.f32 %v146, %v940
    %v942 = vpop.f32.mrf.mxu0
    %943 = vdwg.mxu0
    %v944 = vmax.f32 %v941, 0.0
    %v945 = vpack.c.bf16 %v944, %v944
    %s946 = scalar_lea.vmem %s0, 39
    %v947 = vld [vmem:[%s946] sm:$0x1]
    %v949 = vsel %vm163, %v947, 0
    %951 = vmatpush.bf16.msra.mxu0 0
    %952 = vmatpush.bf16.msra.mxu0 0
    %953 = vmatpush.bf16.msra.mxu0 0
    %954 = vmatpush.bf16.msra.mxu0 0
    %955 = vmatpush.bf16.msra.mxu0 0
    %956 = vmatpush.bf16.msra.mxu0 %v169
    %957 = vmatpush.bf16.msra.mxu0 %v159
    %958 = vmatpush.bf16.msra.mxu0 %v158
    %959 = vmatmul.bf16.gmra.mxu0 %v949
    %v960 = vpop.f32.mrf.mxu0
    %v961 = vadd.f32 %v146, %v960
    %v962 = vpop.f32.mrf.mxu0
    %963 = vdwg.mxu0
    %v964 = vmax.f32 %v961, 0.0
    %v965 = vpack.c.bf16 %v964, %v964
    %s966 = scalar_lea.vmem %s0, 40
    %v967 = vld [vmem:[%s966] sm:$0x1]
    %v969 = vsel %vm163, %v967, 0
    %971 = vmatpush.bf16.msra.mxu0 0
    %972 = vmatpush.bf16.msra.mxu0 0
    %973 = vmatpush.bf16.msra.mxu0 0
    %974 = vmatpush.bf16.msra.mxu0 0
    %975 = vmatpush.bf16.msra.mxu0 0
    %976 = vmatpush.bf16.msra.mxu0 %v169
    %977 = vmatpush.bf16.msra.mxu0 %v159
    %978 = vmatpush.bf16.msra.mxu0 %v158
    %979 = vmatmul.bf16.gmra.mxu0 %v969
    %v980 = vpop.f32.mrf.mxu0
    %v981 = vadd.f32 %v146, %v980
    %v982 = vpop.f32.mrf.mxu0
    %983 = vdwg.mxu0
    %v984 = vmax.f32 %v981, 0.0
    %v985 = vpack.c.bf16 %v984, %v984
    %s986 = scalar_lea.vmem %s0, 41
    %v987 = vld [vmem:[%s986] sm:$0x1]
    %v989 = vsel %vm163, %v987, 0
    %991 = vmatpush.bf16.msra.mxu0 0
    %992 = vmatpush.bf16.msra.mxu0 0
    %993 = vmatpush.bf16.msra.mxu0 0
    %994 = vmatpush.bf16.msra.mxu0 0
    %995 = vmatpush.bf16.msra.mxu0 0
    %996 = vmatpush.bf16.msra.mxu0 %v169
    %997 = vmatpush.bf16.msra.mxu0 %v159
    %998 = vmatpush.bf16.msra.mxu0 %v158
    %999 = vmatmul.bf16.gmra.mxu0 %v989
    %v1000 = vpop.f32.mrf.mxu0
    %v1001 = vadd.f32 %v146, %v1000
    %v1002 = vpop.f32.mrf.mxu0
    %1003 = vdwg.mxu0
    %v1004 = vmax.f32 %v1001, 0.0
    %v1005 = vpack.c.bf16 %v1004, %v1004
    %s1006 = scalar_lea.vmem %s0, 42
    %v1007 = vld [vmem:[%s1006] sm:$0x1]
    %v1009 = vsel %vm163, %v1007, 0
    %1011 = vmatpush.bf16.msra.mxu0 0
    %1012 = vmatpush.bf16.msra.mxu0 0
    %1013 = vmatpush.bf16.msra.mxu0 0
    %1014 = vmatpush.bf16.msra.mxu0 0
    %1015 = vmatpush.bf16.msra.mxu0 0
    %1016 = vmatpush.bf16.msra.mxu0 %v169
    %1017 = vmatpush.bf16.msra.mxu0 %v159
    %1018 = vmatpush.bf16.msra.mxu0 %v158
    %1019 = vmatmul.bf16.gmra.mxu0 %v1009
    %v1020 = vpop.f32.mrf.mxu0
    %v1021 = vadd.f32 %v146, %v1020
    %v1022 = vpop.f32.mrf.mxu0
    %1023 = vdwg.mxu0
    %v1024 = vmax.f32 %v1021, 0.0
    %v1025 = vpack.c.bf16 %v1024, %v1024
    %s1026 = scalar_lea.vmem %s0, 43
    %v1027 = vld [vmem:[%s1026] sm:$0x1]
    %v1029 = vsel %vm163, %v1027, 0
    %1031 = vmatpush.bf16.msra.mxu0 0
    %1032 = vmatpush.bf16.msra.mxu0 0
    %1033 = vmatpush.bf16.msra.mxu0 0
    %1034 = vmatpush.bf16.msra.mxu0 0
    %1035 = vmatpush.bf16.msra.mxu0 0
    %1036 = vmatpush.bf16.msra.mxu0 %v169
    %1037 = vmatpush.bf16.msra.mxu0 %v159
    %1038 = vmatpush.bf16.msra.mxu0 %v158
    %1039 = vmatmul.bf16.gmra.mxu0 %v1029
    %v1040 = vpop.f32.mrf.mxu0
    %v1041 = vadd.f32 %v146, %v1040
    %v1042 = vpop.f32.mrf.mxu0
    %1043 = vdwg.mxu0
    %v1044 = vmax.f32 %v1041, 0.0
    %v1045 = vpack.c.bf16 %v1044, %v1044
    %s1046 = scalar_lea.vmem %s0, 44
    %v1047 = vld [vmem:[%s1046] sm:$0x1]
    %v1049 = vsel %vm163, %v1047, 0
    %1051 = vmatpush.bf16.msra.mxu0 0
    %1052 = vmatpush.bf16.msra.mxu0 0
    %1053 = vmatpush.bf16.msra.mxu0 0
    %1054 = vmatpush.bf16.msra.mxu0 0
    %1055 = vmatpush.bf16.msra.mxu0 0
    %1056 = vmatpush.bf16.msra.mxu0 %v169
    %1057 = vmatpush.bf16.msra.mxu0 %v159
    %1058 = vmatpush.bf16.msra.mxu0 %v158
    %1059 = vmatmul.bf16.gmra.mxu0 %v1049
    %v1060 = vpop.f32.mrf.mxu0
    %v1061 = vadd.f32 %v146, %v1060
    %v1062 = vpop.f32.mrf.mxu0
    %1063 = vdwg.mxu0
    %v1064 = vmax.f32 %v1061, 0.0
    %v1065 = vpack.c.bf16 %v1064, %v1064
    %s1066 = scalar_lea.vmem %s0, 45
    %v1067 = vld [vmem:[%s1066] sm:$0x1]
    %v1069 = vsel %vm163, %v1067, 0
    %1071 = vmatpush.bf16.msra.mxu0 0
    %1072 = vmatpush.bf16.msra.mxu0 0
    %1073 = vmatpush.bf16.msra.mxu0 0
    %1074 = vmatpush.bf16.msra.mxu0 0
    %1075 = vmatpush.bf16.msra.mxu0 0
    %1076 = vmatpush.bf16.msra.mxu0 %v169
    %1077 = vmatpush.bf16.msra.mxu0 %v159
    %1078 = vmatpush.bf16.msra.mxu0 %v158
    %1079 = vmatmul.bf16.gmra.mxu0 %v1069
    %v1080 = vpop.f32.mrf.mxu0
    %v1081 = vadd.f32 %v146, %v1080
    %v1082 = vpop.f32.mrf.mxu0
    %1083 = vdwg.mxu0
    %v1084 = vmax.f32 %v1081, 0.0
    %v1085 = vpack.c.bf16 %v1084, %v1084
    %s1086 = scalar_lea.vmem %s0, 46
    %v1087 = vld [vmem:[%s1086] sm:$0x1]
    %v1089 = vsel %vm163, %v1087, 0
    %1091 = vmatpush.bf16.msra.mxu0 0
    %1092 = vmatpush.bf16.msra.mxu0 0
    %1093 = vmatpush.bf16.msra.mxu0 0
    %1094 = vmatpush.bf16.msra.mxu0 0
    %1095 = vmatpush.bf16.msra.mxu0 0
    %1096 = vmatpush.bf16.msra.mxu0 %v169
    %1097 = vmatpush.bf16.msra.mxu0 %v159
    %1098 = vmatpush.bf16.msra.mxu0 %v158
    %1099 = vmatmul.bf16.gmra.mxu0 %v1089
    %v1100 = vpop.f32.mrf.mxu0
    %v1101 = vadd.f32 %v146, %v1100
    %v1102 = vpop.f32.mrf.mxu0
    %1103 = vdwg.mxu0
    %v1104 = vmax.f32 %v1101, 0.0
    %v1105 = vpack.c.bf16 %v1104, %v1104
    %s1106 = scalar_lea.vmem %s0, 47
    %v1107 = vld [vmem:[%s1106] sm:$0x1]
    %v1109 = vsel %vm163, %v1107, 0
    %1111 = vmatpush.bf16.msra.mxu0 0
    %1112 = vmatpush.bf16.msra.mxu0 0
    %1113 = vmatpush.bf16.msra.mxu0 0
    %1114 = vmatpush.bf16.msra.mxu0 0
    %1115 = vmatpush.bf16.msra.mxu0 0
    %1116 = vmatpush.bf16.msra.mxu0 %v169
    %1117 = vmatpush.bf16.msra.mxu0 %v159
    %1118 = vmatpush.bf16.msra.mxu0 %v158
    %1119 = vmatmul.bf16.gmra.mxu0 %v1109
    %v1120 = vpop.f32.mrf.mxu0
    %v1121 = vadd.f32 %v146, %v1120
    %v1122 = vpop.f32.mrf.mxu0
    %1123 = vdwg.mxu0
    %v1124 = vmax.f32 %v1121, 0.0
    %v1125 = vpack.c.bf16 %v1124, %v1124
    %s1126 = scalar_lea.vmem %s0, 48
    %v1127 = vld [vmem:[%s1126] sm:$0x1]
    %v1129 = vsel %vm163, %v1127, 0
    %1131 = vmatpush.bf16.msra.mxu0 0
    %1132 = vmatpush.bf16.msra.mxu0 0
    %1133 = vmatpush.bf16.msra.mxu0 0
    %1134 = vmatpush.bf16.msra.mxu0 0
    %1135 = vmatpush.bf16.msra.mxu0 0
    %1136 = vmatpush.bf16.msra.mxu0 %v169
    %1137 = vmatpush.bf16.msra.mxu0 %v159
    %1138 = vmatpush.bf16.msra.mxu0 %v158
    %1139 = vmatmul.bf16.gmra.mxu0 %v1129
    %v1140 = vpop.f32.mrf.mxu0
    %v1141 = vadd.f32 %v146, %v1140
    %v1142 = vpop.f32.mrf.mxu0
    %1143 = vdwg.mxu0
    %v1144 = vmax.f32 %v1141, 0.0
    %v1145 = vpack.c.bf16 %v1144, %v1144
    %v1146 = vld [vmem:[%s3] sm:$0xf]
    %v1147 = vld [vmem:[%s3 + $0x4] sm:$0xf]
    %v1148 = vld [vmem:[%s3 + $0x8] sm:$0xf]
    %v1149 = vld [vmem:[%s3 + $0xc] sm:$0xf]
    %v1150 = vld [vmem:[%s3 + $0x10] sm:$0xf]
    %v1151 = vld [vmem:[%s3 + $0x14] sm:$0xf]
    %v1152 = vld [vmem:[%s3 + $0x18] sm:$0xf]
    %v1153 = vld [vmem:[%s3 + $0x1c] sm:$0xf]
    %v1154 = vld [vmem:[%s3 + $0x20] sm:$0xf]
    %v1155 = vld [vmem:[%s3 + $0x24] sm:$0xf]
    %v1156 = vld [vmem:[%s3 + $0x28] sm:$0xf]
    %v1157 = vld [vmem:[%s3 + $0x2c] sm:$0xf]
    %v1158 = vld [vmem:[%s3 + $0x30] sm:$0xf]
    %v1159 = vld [vmem:[%s3 + $0x34] sm:$0xf]
    %v1160 = vld [vmem:[%s3 + $0x38] sm:$0xf]
    %v1161 = vld [vmem:[%s3 + $0x3c] sm:$0xf]
    %v1162 = vld [vmem:[#allocation7] sm:$0x1]
    %vm1163 = vcmask 253952
    %1164 = vst.msk [vmem:[#allocation2] sm:$0x1] %vm1163, %v185
    %v1166 = vrot.slane %v205, 3
    %vm1167 = vcmask 1040384
    %v1170 = vsel %vm1167, %v205, %v1166
    %1172 = vrot.lane.b32.xlu0 %v1170, 32
    %v1173 = vpop.permute.xlu0 %1172
    %vm1175 = vcmask 516352
    %1176 = vst.msk [vmem:[#allocation2] sm:$0x1] %vm1175, %v1173
    %v1178 = vrot.slane %v325, 3
    %v1181 = vsel %vm1167, %v325, %v1178
    %1183 = vrot.lane.b32.xlu0 %v1181, 64
    %v1184 = vpop.permute.xlu0 %1183
    %vm1186 = vcmask 778752
    %1187 = vst.msk [vmem:[#allocation2] sm:$0x1] %vm1186, %v1184
    %v1189 = vrot.slane %v345, 3
    %v1192 = vsel %vm1167, %v345, %v1189
    %1194 = vrot.lane.b32.xlu0 %v1192, 96
    %v1195 = vpop.permute.xlu0 %1194
    %vm1197 = vcmask 1041152
    %1198 = vst.msk [vmem:[#allocation2] sm:$0x1] %vm1197, %v1195
    %v1199 = vld [vmem:[#allocation2] sm:$0x1]
    %v1201 = vperm.slane %v1162, 0
    %v1219 = vunpack.c.l.b16 %v1146
    %v1220 = vunpack.c.l.b16 %v1147
    %v1221 = vunpack.c.l.b16 %v1148
    %v1222 = vunpack.c.l.b16 %v1149
    %v1223 = vunpack.c.l.b16 %v1150
    %v1224 = vunpack.c.l.b16 %v1151
    %v1225 = vunpack.c.l.b16 %v1152
    %v1226 = vunpack.c.l.b16 %v1153
    %v1227 = vunpack.c.l.b16 %v1154
    %v1228 = vunpack.c.l.b16 %v1155
    %v1229 = vunpack.c.l.b16 %v1156
    %v1230 = vunpack.c.l.b16 %v1157
    %v1231 = vunpack.c.l.b16 %v1158
    %v1232 = vunpack.c.l.b16 %v1159
    %v1233 = vunpack.c.l.b16 %v1160
    %v1234 = vunpack.c.l.b16 %v1161
    %v1235 = vpack.c.b16 %v1220, %v1219
    %v1236 = vpack.c.b16 %v1222, %v1221
    %v1237 = vpack.c.b16 %v1224, %v1223
    %v1238 = vpack.c.b16 %v1226, %v1225
    %v1239 = vpack.c.b16 %v1228, %v1227
    %v1240 = vpack.c.b16 %v1230, %v1229
    %v1241 = vpack.c.b16 %v1232, %v1231
    %v1242 = vpack.c.b16 %v1234, %v1233
    %1251 = vmatpush.bf16.msra.mxu0 %v1242
    %1252 = vmatpush.bf16.msra.mxu0 %v1241
    %1253 = vmatpush.bf16.msra.mxu0 %v1240
    %1254 = vmatpush.bf16.msra.mxu0 %v1239
    %1255 = vmatpush.bf16.msra.mxu0 %v1238
    %1256 = vmatpush.bf16.msra.mxu0 %v1237
    %1257 = vmatpush.bf16.msra.mxu0 %v1236
    %1258 = vmatpush.bf16.msra.mxu0 %v1235
    %1259 = vmatmul.bf16.gmra.mxu0 %v1199
    %v1260 = vpop.f32.mrf.mxu0
    %v1261 = vadd.f32 %v1201, %v1260
    %v1262 = vpop.f32.mrf.mxu0
    %1263 = vdwg.mxu0
    %v1264 = vmax.f32 %v1261, 0.0
    %v1265 = vpack.c.bf16 %v1264, %v1264
    %1266 = vst.msk [vmem:[#allocation2] sm:$0x1] %vm1163, %v205
    %v1268 = vrot.slane %v225, 3
    %v1271 = vsel %vm1167, %v225, %v1268
    %1273 = vrot.lane.b32.xlu0 %v1271, 32
    %v1274 = vpop.permute.xlu0 %1273
    %1276 = vst.msk [vmem:[#allocation2] sm:$0x1] %vm1175, %v1274
    %1277 = vrot.lane.b32.xlu0 %v1192, 64
    %v1278 = vpop.permute.xlu0 %1277
    %1280 = vst.msk [vmem:[#allocation2] sm:$0x1] %vm1186, %v1278
    %v1282 = vrot.slane %v365, 3
    %v1285 = vsel %vm1167, %v365, %v1282
    %1287 = vrot.lane.b32.xlu0 %v1285, 96
    %v1288 = vpop.permute.xlu0 %1287
    %1290 = vst.msk [vmem:[#allocation2] sm:$0x1] %vm1197, %v1288
    %v1291 = vld [vmem:[#allocation2] sm:$0x1]
    %1292 = vmatpush.bf16.msra.mxu0 %v1242
    %1293 = vmatpush.bf16.msra.mxu0 %v1241
    %1294 = vmatpush.bf16.msra.mxu0 %v1240
    %1295 = vmatpush.bf16.msra.mxu0 %v1239
    %1296 = vmatpush.bf16.msra.mxu0 %v1238
    %1297 = vmatpush.bf16.msra.mxu0 %v1237
    %1298 = vmatpush.bf16.msra.mxu0 %v1236
    %1299 = vmatpush.bf16.msra.mxu0 %v1235
    %1300 = vmatmul.bf16.gmra.mxu0 %v1291
    %v1301 = vpop.f32.mrf.mxu0
    %v1302 = vadd.f32 %v1201, %v1301
    %v1303 = vpop.f32.mrf.mxu0
    %1304 = vdwg.mxu0
    %v1305 = vmax.f32 %v1302, 0.0
    %v1306 = vpack.c.bf16 %v1305, %v1305
    %1307 = vst.msk [vmem:[#allocation2] sm:$0x1] %vm1163, %v225
    %v1309 = vrot.slane %v245, 3
    %v1312 = vsel %vm1167, %v245, %v1309
    %1314 = vrot.lane.b32.xlu0 %v1312, 32
    %v1315 = vpop.permute.xlu0 %1314
    %1317 = vst.msk [vmem:[#allocation2] sm:$0x1] %vm1175, %v1315
    %1318 = vrot.lane.b32.xlu0 %v1285, 64
    %v1319 = vpop.permute.xlu0 %1318
    %1321 = vst.msk [vmem:[#allocation2] sm:$0x1] %vm1186, %v1319
    %v1323 = vrot.slane %v385, 3
    %v1326 = vsel %vm1167, %v385, %v1323
    %1328 = vrot.lane.b32.xlu0 %v1326, 96
    %v1329 = vpop.permute.xlu0 %1328
    %1331 = vst.msk [vmem:[#allocation2] sm:$0x1] %vm1197, %v1329
    %v1332 = vld [vmem:[#allocation2] sm:$0x1]
    %1333 = vmatpush.bf16.msra.mxu0 %v1242
    %1334 = vmatpush.bf16.msra.mxu0 %v1241
    %1335 = vmatpush.bf16.msra.mxu0 %v1240
    %1336 = vmatpush.bf16.msra.mxu0 %v1239
    %1337 = vmatpush.bf16.msra.mxu0 %v1238
    %1338 = vmatpush.bf16.msra.mxu0 %v1237
    %1339 = vmatpush.bf16.msra.mxu0 %v1236
    %1340 = vmatpush.bf16.msra.mxu0 %v1235
    %1341 = vmatmul.bf16.gmra.mxu0 %v1332
    %v1342 = vpop.f32.mrf.mxu0
    %v1343 = vadd.f32 %v1201, %v1342
    %v1344 = vpop.f32.mrf.mxu0
    %1345 = vdwg.mxu0
    %v1346 = vmax.f32 %v1343, 0.0
    %v1347 = vpack.c.bf16 %v1346, %v1346
    %1348 = vst.msk [vmem:[#allocation2] sm:$0x1] %vm1163, %v245
    %v1350 = vrot.slane %v265, 3
    %v1353 = vsel %vm1167, %v265, %v1350
    %1355 = vrot.lane.b32.xlu0 %v1353, 32
    %v1356 = vpop.permute.xlu0 %1355
    %1358 = vst.msk [vmem:[#allocation2] sm:$0x1] %vm1175, %v1356
    %1359 = vrot.lane.b32.xlu0 %v1326, 64
    %v1360 = vpop.permute.xlu0 %1359
    %1362 = vst.msk [vmem:[#allocation2] sm:$0x1] %vm1186, %v1360
    %v1364 = vrot.slane %v405, 3
    %v1367 = vsel %vm1167, %v405, %v1364
    %1369 = vrot.lane.b32.xlu0 %v1367, 96
    %v1370 = vpop.permute.xlu0 %1369
    %1372 = vst.msk [vmem:[#allocation2] sm:$0x1] %vm1197, %v1370
    %v1373 = vld [vmem:[#allocation2] sm:$0x1]
    %1374 = vmatpush.bf16.msra.mxu0 %v1242
    %1375 = vmatpush.bf16.msra.mxu0 %v1241
    %1376 = vmatpush.bf16.msra.mxu0 %v1240
    %1377 = vmatpush.bf16.msra.mxu0 %v1239
    %1378 = vmatpush.bf16.msra.mxu0 %v1238
    %1379 = vmatpush.bf16.msra.mxu0 %v1237
    %1380 = vmatpush.bf16.msra.mxu0 %v1236
    %1381 = vmatpush.bf16.msra.mxu0 %v1235
    %1382 = vmatmul.bf16.gmra.mxu0 %v1373
    %v1383 = vpop.f32.mrf.mxu0
    %v1384 = vadd.f32 %v1201, %v1383
    %v1385 = vpop.f32.mrf.mxu0
    %1386 = vdwg.mxu0
    %v1387 = vmax.f32 %v1384, 0.0
    %v1388 = vpack.c.bf16 %v1387, %v1387
    %1389 = vst.msk [vmem:[#allocation2] sm:$0x1] %vm1163, %v265
    %v1391 = vrot.slane %v285, 3
    %v1394 = vsel %vm1167, %v285, %v1391
    %1396 = vrot.lane.b32.xlu0 %v1394, 32
    %v1397 = vpop.permute.xlu0 %1396
    %1399 = vst.msk [vmem:[#allocation2] sm:$0x1] %vm1175, %v1397
    %1400 = vrot.lane.b32.xlu0 %v1367, 64
    %v1401 = vpop.permute.xlu0 %1400
    %1403 = vst.msk [vmem:[#allocation2] sm:$0x1] %vm1186, %v1401
    %v1405 = vrot.slane %v425, 3
    %v1408 = vsel %vm1167, %v425, %v1405
    %1410 = vrot.lane.b32.xlu0 %v1408, 96
    %v1411 = vpop.permute.xlu0 %1410
    %1413 = vst.msk [vmem:[#allocation2] sm:$0x1] %vm1197, %v1411
    %v1414 = vld [vmem:[#allocation2] sm:$0x1]
    %1415 = vmatpush.bf16.msra.mxu0 %v1242
    %1416 = vmatpush.bf16.msra.mxu0 %v1241
    %1417 = vmatpush.bf16.msra.mxu0 %v1240
    %1418 = vmatpush.bf16.msra.mxu0 %v1239
    %1419 = vmatpush.bf16.msra.mxu0 %v1238
    %1420 = vmatpush.bf16.msra.mxu0 %v1237
    %1421 = vmatpush.bf16.msra.mxu0 %v1236
    %1422 = vmatpush.bf16.msra.mxu0 %v1235
    %1423 = vmatmul.bf16.gmra.mxu0 %v1414
    %v1424 = vpop.f32.mrf.mxu0
    %v1425 = vadd.f32 %v1201, %v1424
    %v1426 = vpop.f32.mrf.mxu0
    %1427 = vdwg.mxu0
    %v1428 = vmax.f32 %v1425, 0.0
    %v1429 = vpack.c.bf16 %v1428, %v1428
    %1430 = vst.msk [vmem:[#allocation2] sm:$0x1] %vm1163, %v285
    %v1432 = vrot.slane %v305, 3
    %v1435 = vsel %vm1167, %v305, %v1432
    %1437 = vrot.lane.b32.xlu0 %v1435, 32
    %v1438 = vpop.permute.xlu0 %1437
    %1440 = vst.msk [vmem:[#allocation2] sm:$0x1] %vm1175, %v1438
    %1441 = vrot.lane.b32.xlu0 %v1408, 64
    %v1442 = vpop.permute.xlu0 %1441
    %1444 = vst.msk [vmem:[#allocation2] sm:$0x1] %vm1186, %v1442
    %v1446 = vrot.slane %v445, 3
    %v1449 = vsel %vm1167, %v445, %v1446
    %1451 = vrot.lane.b32.xlu0 %v1449, 96
    %v1452 = vpop.permute.xlu0 %1451
    %1454 = vst.msk [vmem:[#allocation2] sm:$0x1] %vm1197, %v1452
    %v1455 = vld [vmem:[#allocation2] sm:$0x1]
    %1456 = vmatpush.bf16.msra.mxu0 %v1242
    %1457 = vmatpush.bf16.msra.mxu0 %v1241
    %1458 = vmatpush.bf16.msra.mxu0 %v1240
    %1459 = vmatpush.bf16.msra.mxu0 %v1239
    %1460 = vmatpush.bf16.msra.mxu0 %v1238
    %1461 = vmatpush.bf16.msra.mxu0 %v1237
    %1462 = vmatpush.bf16.msra.mxu0 %v1236
    %1463 = vmatpush.bf16.msra.mxu0 %v1235
    %1464 = vmatmul.bf16.gmra.mxu0 %v1455
    %v1465 = vpop.f32.mrf.mxu0
    %v1466 = vadd.f32 %v1201, %v1465
    %v1467 = vpop.f32.mrf.mxu0
    %1468 = vdwg.mxu0
    %v1469 = vmax.f32 %v1466, 0.0
    %v1470 = vpack.c.bf16 %v1469, %v1469
    %1471 = vst.msk [vmem:[#allocation2] sm:$0x1] %vm1163, %v325
    %1472 = vrot.lane.b32.xlu0 %v1192, 32
    %v1473 = vpop.permute.xlu0 %1472
    %1475 = vst.msk [vmem:[#allocation2] sm:$0x1] %vm1175, %v1473
    %v1477 = vrot.slane %v465, 3
    %v1480 = vsel %vm1167, %v465, %v1477
    %1482 = vrot.lane.b32.xlu0 %v1480, 64
    %v1483 = vpop.permute.xlu0 %1482
    %1485 = vst.msk [vmem:[#allocation2] sm:$0x1] %vm1186, %v1483
    %v1487 = vrot.slane %v485, 3
    %v1490 = vsel %vm1167, %v485, %v1487
    %1492 = vrot.lane.b32.xlu0 %v1490, 96
    %v1493 = vpop.permute.xlu0 %1492
    %1495 = vst.msk [vmem:[#allocation2] sm:$0x1] %vm1197, %v1493
    %v1496 = vld [vmem:[#allocation2] sm:$0x1]
    %1497 = vmatpush.bf16.msra.mxu0 %v1242
    %1498 = vmatpush.bf16.msra.mxu0 %v1241
    %1499 = vmatpush.bf16.msra.mxu0 %v1240
    %1500 = vmatpush.bf16.msra.mxu0 %v1239
    %1501 = vmatpush.bf16.msra.mxu0 %v1238
    %1502 = vmatpush.bf16.msra.mxu0 %v1237
    %1503 = vmatpush.bf16.msra.mxu0 %v1236
    %1504 = vmatpush.bf16.msra.mxu0 %v1235
    %1505 = vmatmul.bf16.gmra.mxu0 %v1496
    %v1506 = vpop.f32.mrf.mxu0
    %v1507 = vadd.f32 %v1201, %v1506
    %v1508 = vpop.f32.mrf.mxu0
    %1509 = vdwg.mxu0
    %v1510 = vmax.f32 %v1507, 0.0
    %v1511 = vpack.c.bf16 %v1510, %v1510
    %1512 = vst.msk [vmem:[#allocation2] sm:$0x1] %vm1163, %v345
    %1513 = vrot.lane.b32.xlu0 %v1285, 32
    %v1514 = vpop.permute.xlu0 %1513
    %1516 = vst.msk [vmem:[#allocation2] sm:$0x1] %vm1175, %v1514
    %1517 = vrot.lane.b32.xlu0 %v1490, 64
    %v1518 = vpop.permute.xlu0 %1517
    %1520 = vst.msk [vmem:[#allocation2] sm:$0x1] %vm1186, %v1518
    %v1522 = vrot.slane %v505, 3
    %v1525 = vsel %vm1167, %v505, %v1522
    %1527 = vrot.lane.b32.xlu0 %v1525, 96
    %v1528 = vpop.permute.xlu0 %1527
    %1530 = vst.msk [vmem:[#allocation2] sm:$0x1] %vm1197, %v1528
    %v1531 = vld [vmem:[#allocation2] sm:$0x1]
    %1532 = vmatpush.bf16.msra.mxu0 %v1242
    %1533 = vmatpush.bf16.msra.mxu0 %v1241
    %1534 = vmatpush.bf16.msra.mxu0 %v1240
    %1535 = vmatpush.bf16.msra.mxu0 %v1239
    %1536 = vmatpush.bf16.msra.mxu0 %v1238
    %1537 = vmatpush.bf16.msra.mxu0 %v1237
    %1538 = vmatpush.bf16.msra.mxu0 %v1236
    %1539 = vmatpush.bf16.msra.mxu0 %v1235
    %1540 = vmatmul.bf16.gmra.mxu0 %v1531
    %v1541 = vpop.f32.mrf.mxu0
    %v1542 = vadd.f32 %v1201, %v1541
    %v1543 = vpop.f32.mrf.mxu0
    %1544 = vdwg.mxu0
    %v1545 = vmax.f32 %v1542, 0.0
    %v1546 = vpack.c.bf16 %v1545, %v1545
    %1547 = vst.msk [vmem:[#allocation2] sm:$0x1] %vm1163, %v365
    %1548 = vrot.lane.b32.xlu0 %v1326, 32
    %v1549 = vpop.permute.xlu0 %1548
    %1551 = vst.msk [vmem:[#allocation2] sm:$0x1] %vm1175, %v1549
    %1552 = vrot.lane.b32.xlu0 %v1525, 64
    %v1553 = vpop.permute.xlu0 %1552
    %1555 = vst.msk [vmem:[#allocation2] sm:$0x1] %vm1186, %v1553
    %v1557 = vrot.slane %v525, 3
    %v1560 = vsel %vm1167, %v525, %v1557
    %1562 = vrot.lane.b32.xlu0 %v1560, 96
    %v1563 = vpop.permute.xlu0 %1562
    %1565 = vst.msk [vmem:[#allocation2] sm:$0x1] %vm1197, %v1563
    %v1566 = vld [vmem:[#allocation2] sm:$0x1]
    %1567 = vmatpush.bf16.msra.mxu0 %v1242
    %1568 = vmatpush.bf16.msra.mxu0 %v1241
    %1569 = vmatpush.bf16.msra.mxu0 %v1240
    %1570 = vmatpush.bf16.msra.mxu0 %v1239
    %1571 = vmatpush.bf16.msra.mxu0 %v1238
    %1572 = vmatpush.bf16.msra.mxu0 %v1237
    %1573 = vmatpush.bf16.msra.mxu0 %v1236
    %1574 = vmatpush.bf16.msra.mxu0 %v1235
    %1575 = vmatmul.bf16.gmra.mxu0 %v1566
    %v1576 = vpop.f32.mrf.mxu0
    %v1577 = vadd.f32 %v1201, %v1576
    %v1578 = vpop.f32.mrf.mxu0
    %1579 = vdwg.mxu0
    %v1580 = vmax.f32 %v1577, 0.0
    %v1581 = vpack.c.bf16 %v1580, %v1580
    %1582 = vst.msk [vmem:[#allocation2] sm:$0x1] %vm1163, %v385
    %1583 = vrot.lane.b32.xlu0 %v1367, 32
    %v1584 = vpop.permute.xlu0 %1583
    %1586 = vst.msk [vmem:[#allocation2] sm:$0x1] %vm1175, %v1584
    %1587 = vrot.lane.b32.xlu0 %v1560, 64
    %v1588 = vpop.permute.xlu0 %1587
    %1590 = vst.msk [vmem:[#allocation2] sm:$0x1] %vm1186, %v1588
    %v1592 = vrot.slane %v545, 3
    %v1595 = vsel %vm1167, %v545, %v1592
    %1597 = vrot.lane.b32.xlu0 %v1595, 96
    %v1598 = vpop.permute.xlu0 %1597
    %1600 = vst.msk [vmem:[#allocation2] sm:$0x1] %vm1197, %v1598
    %v1601 = vld [vmem:[#allocation2] sm:$0x1]
    %1602 = vmatpush.bf16.msra.mxu0 %v1242
    %1603 = vmatpush.bf16.msra.mxu0 %v1241
    %1604 = vmatpush.bf16.msra.mxu0 %v1240
    %1605 = vmatpush.bf16.msra.mxu0 %v1239
    %1606 = vmatpush.bf16.msra.mxu0 %v1238
    %1607 = vmatpush.bf16.msra.mxu0 %v1237
    %1608 = vmatpush.bf16.msra.mxu0 %v1236
    %1609 = vmatpush.bf16.msra.mxu0 %v1235
    %1610 = vmatmul.bf16.gmra.mxu0 %v1601
    %v1611 = vpop.f32.mrf.mxu0
    %v1612 = vadd.f32 %v1201, %v1611
    %v1613 = vpop.f32.mrf.mxu0
    %1614 = vdwg.mxu0
    %v1615 = vmax.f32 %v1612, 0.0
    %v1616 = vpack.c.bf16 %v1615, %v1615
    %1617 = vst.msk [vmem:[#allocation2] sm:$0x1] %vm1163, %v405
    %1618 = vrot.lane.b32.xlu0 %v1408, 32
    %v1619 = vpop.permute.xlu0 %1618
    %1621 = vst.msk [vmem:[#allocation2] sm:$0x1] %vm1175, %v1619
    %1622 = vrot.lane.b32.xlu0 %v1595, 64
    %v1623 = vpop.permute.xlu0 %1622
    %1625 = vst.msk [vmem:[#allocation2] sm:$0x1] %vm1186, %v1623
    %v1627 = vrot.slane %v565, 3
    %v1630 = vsel %vm1167, %v565, %v1627
    %1632 = vrot.lane.b32.xlu0 %v1630, 96
    %v1633 = vpop.permute.xlu0 %1632
    %1635 = vst.msk [vmem:[#allocation2] sm:$0x1] %vm1197, %v1633
    %v1636 = vld [vmem:[#allocation2] sm:$0x1]
    %1637 = vmatpush.bf16.msra.mxu0 %v1242
    %1638 = vmatpush.bf16.msra.mxu0 %v1241
    %1639 = vmatpush.bf16.msra.mxu0 %v1240
    %1640 = vmatpush.bf16.msra.mxu0 %v1239
    %1641 = vmatpush.bf16.msra.mxu0 %v1238
    %1642 = vmatpush.bf16.msra.mxu0 %v1237
    %1643 = vmatpush.bf16.msra.mxu0 %v1236
    %1644 = vmatpush.bf16.msra.mxu0 %v1235
    %1645 = vmatmul.bf16.gmra.mxu0 %v1636
    %v1646 = vpop.f32.mrf.mxu0
    %v1647 = vadd.f32 %v1201, %v1646
    %v1648 = vpop.f32.mrf.mxu0
    %1649 = vdwg.mxu0
    %v1650 = vmax.f32 %v1647, 0.0
    %v1651 = vpack.c.bf16 %v1650, %v1650
    %1652 = vst.msk [vmem:[#allocation2] sm:$0x1] %vm1163, %v425
    %1653 = vrot.lane.b32.xlu0 %v1449, 32
    %v1654 = vpop.permute.xlu0 %1653
    %1656 = vst.msk [vmem:[#allocation2] sm:$0x1] %vm1175, %v1654
    %1657 = vrot.lane.b32.xlu0 %v1630, 64
    %v1658 = vpop.permute.xlu0 %1657
    %1660 = vst.msk [vmem:[#allocation2] sm:$0x1] %vm1186, %v1658
    %v1662 = vrot.slane %v585, 3
    %v1665 = vsel %vm1167, %v585, %v1662
    %1667 = vrot.lane.b32.xlu0 %v1665, 96
    %v1668 = vpop.permute.xlu0 %1667
    %1670 = vst.msk [vmem:[#allocation2] sm:$0x1] %vm1197, %v1668
    %v1671 = vld [vmem:[#allocation2] sm:$0x1]
    %1672 = vmatpush.bf16.msra.mxu0 %v1242
    %1673 = vmatpush.bf16.msra.mxu0 %v1241
    %1674 = vmatpush.bf16.msra.mxu0 %v1240
    %1675 = vmatpush.bf16.msra.mxu0 %v1239
    %1676 = vmatpush.bf16.msra.mxu0 %v1238
    %1677 = vmatpush.bf16.msra.mxu0 %v1237
    %1678 = vmatpush.bf16.msra.mxu0 %v1236
    %1679 = vmatpush.bf16.msra.mxu0 %v1235
    %1680 = vmatmul.bf16.gmra.mxu0 %v1671
    %v1681 = vpop.f32.mrf.mxu0
    %v1682 = vadd.f32 %v1201, %v1681
    %v1683 = vpop.f32.mrf.mxu0
    %1684 = vdwg.mxu0
    %v1685 = vmax.f32 %v1682, 0.0
    %v1686 = vpack.c.bf16 %v1685, %v1685
    %1687 = vst.msk [vmem:[#allocation2] sm:$0x1] %vm1163, %v465
    %1688 = vrot.lane.b32.xlu0 %v1490, 32
    %v1689 = vpop.permute.xlu0 %1688
    %1691 = vst.msk [vmem:[#allocation2] sm:$0x1] %vm1175, %v1689
    %v1693 = vrot.slane %v605, 3
    %v1696 = vsel %vm1167, %v605, %v1693
    %1698 = vrot.lane.b32.xlu0 %v1696, 64
    %v1699 = vpop.permute.xlu0 %1698
    %1701 = vst.msk [vmem:[#allocation2] sm:$0x1] %vm1186, %v1699
    %v1703 = vrot.slane %v625, 3
    %v1706 = vsel %vm1167, %v625, %v1703
    %1708 = vrot.lane.b32.xlu0 %v1706, 96
    %v1709 = vpop.permute.xlu0 %1708
    %1711 = vst.msk [vmem:[#allocation2] sm:$0x1] %vm1197, %v1709
    %v1712 = vld [vmem:[#allocation2] sm:$0x1]
    %1713 = vmatpush.bf16.msra.mxu0 %v1242
    %1714 = vmatpush.bf16.msra.mxu0 %v1241
    %1715 = vmatpush.bf16.msra.mxu0 %v1240
    %1716 = vmatpush.bf16.msra.mxu0 %v1239
    %1717 = vmatpush.bf16.msra.mxu0 %v1238
    %1718 = vmatpush.bf16.msra.mxu0 %v1237
    %1719 = vmatpush.bf16.msra.mxu0 %v1236
    %1720 = vmatpush.bf16.msra.mxu0 %v1235
    %1721 = vmatmul.bf16.gmra.mxu0 %v1712
    %v1722 = vpop.f32.mrf.mxu0
    %v1723 = vadd.f32 %v1201, %v1722
    %v1724 = vpop.f32.mrf.mxu0
    %1725 = vdwg.mxu0
    %v1726 = vmax.f32 %v1723, 0.0
    %v1727 = vpack.c.bf16 %v1726, %v1726
    %1728 = vst.msk [vmem:[#allocation2] sm:$0x1] %vm1163, %v485
    %1729 = vrot.lane.b32.xlu0 %v1525, 32
    %v1730 = vpop.permute.xlu0 %1729
    %1732 = vst.msk [vmem:[#allocation2] sm:$0x1] %vm1175, %v1730
    %1733 = vrot.lane.b32.xlu0 %v1706, 64
    %v1734 = vpop.permute.xlu0 %1733
    %1736 = vst.msk [vmem:[#allocation2] sm:$0x1] %vm1186, %v1734
    %v1738 = vrot.slane %v645, 3
    %v1741 = vsel %vm1167, %v645, %v1738
    %1743 = vrot.lane.b32.xlu0 %v1741, 96
    %v1744 = vpop.permute.xlu0 %1743
    %1746 = vst.msk [vmem:[#allocation2] sm:$0x1] %vm1197, %v1744
    %v1747 = vld [vmem:[#allocation2] sm:$0x1]
    %1748 = vmatpush.bf16.msra.mxu0 %v1242
    %1749 = vmatpush.bf16.msra.mxu0 %v1241
    %1750 = vmatpush.bf16.msra.mxu0 %v1240
    %1751 = vmatpush.bf16.msra.mxu0 %v1239
    %1752 = vmatpush.bf16.msra.mxu0 %v1238
    %1753 = vmatpush.bf16.msra.mxu0 %v1237
    %1754 = vmatpush.bf16.msra.mxu0 %v1236
    %1755 = vmatpush.bf16.msra.mxu0 %v1235
    %1756 = vmatmul.bf16.gmra.mxu0 %v1747
    %v1757 = vpop.f32.mrf.mxu0
    %v1758 = vadd.f32 %v1201, %v1757
    %v1759 = vpop.f32.mrf.mxu0
    %1760 = vdwg.mxu0
    %v1761 = vmax.f32 %v1758, 0.0
    %v1762 = vpack.c.bf16 %v1761, %v1761
    %1763 = vst.msk [vmem:[#allocation2] sm:$0x1] %vm1163, %v505
    %1764 = vrot.lane.b32.xlu0 %v1560, 32
    %v1765 = vpop.permute.xlu0 %1764
    %1767 = vst.msk [vmem:[#allocation2] sm:$0x1] %vm1175, %v1765
    %1768 = vrot.lane.b32.xlu0 %v1741, 64
    %v1769 = vpop.permute.xlu0 %1768
    %1771 = vst.msk [vmem:[#allocation2] sm:$0x1] %vm1186, %v1769
    %v1773 = vrot.slane %v665, 3
    %v1776 = vsel %vm1167, %v665, %v1773
    %1778 = vrot.lane.b32.xlu0 %v1776, 96
    %v1779 = vpop.permute.xlu0 %1778
    %1781 = vst.msk [vmem:[#allocation2] sm:$0x1] %vm1197, %v1779
    %v1782 = vld [vmem:[#allocation2] sm:$0x1]
    %1783 = vmatpush.bf16.msra.mxu0 %v1242
    %1784 = vmatpush.bf16.msra.mxu0 %v1241
    %1785 = vmatpush.bf16.msra.mxu0 %v1240
    %1786 = vmatpush.bf16.msra.mxu0 %v1239
    %1787 = vmatpush.bf16.msra.mxu0 %v1238
    %1788 = vmatpush.bf16.msra.mxu0 %v1237
    %1789 = vmatpush.bf16.msra.mxu0 %v1236
    %1790 = vmatpush.bf16.msra.mxu0 %v1235
    %1791 = vmatmul.bf16.gmra.mxu0 %v1782
    %v1792 = vpop.f32.mrf.mxu0
    %v1793 = vadd.f32 %v1201, %v1792
    %v1794 = vpop.f32.mrf.mxu0
    %1795 = vdwg.mxu0
    %v1796 = vmax.f32 %v1793, 0.0
    %v1797 = vpack.c.bf16 %v1796, %v1796
    %1798 = vst.msk [vmem:[#allocation2] sm:$0x1] %vm1163, %v525
    %1799 = vrot.lane.b32.xlu0 %v1595, 32
    %v1800 = vpop.permute.xlu0 %1799
    %1802 = vst.msk [vmem:[#allocation2] sm:$0x1] %vm1175, %v1800
    %1803 = vrot.lane.b32.xlu0 %v1776, 64
    %v1804 = vpop.permute.xlu0 %1803
    %1806 = vst.msk [vmem:[#allocation2] sm:$0x1] %vm1186, %v1804
    %v1808 = vrot.slane %v685, 3
    %v1811 = vsel %vm1167, %v685, %v1808
    %1813 = vrot.lane.b32.xlu0 %v1811, 96
    %v1814 = vpop.permute.xlu0 %1813
    %1816 = vst.msk [vmem:[#allocation2] sm:$0x1] %vm1197, %v1814
    %v1817 = vld [vmem:[#allocation2] sm:$0x1]
    %1818 = vmatpush.bf16.msra.mxu0 %v1242
    %1819 = vmatpush.bf16.msra.mxu0 %v1241
    %1820 = vmatpush.bf16.msra.mxu0 %v1240
    %1821 = vmatpush.bf16.msra.mxu0 %v1239
    %1822 = vmatpush.bf16.msra.mxu0 %v1238
    %1823 = vmatpush.bf16.msra.mxu0 %v1237
    %1824 = vmatpush.bf16.msra.mxu0 %v1236
    %1825 = vmatpush.bf16.msra.mxu0 %v1235
    %1826 = vmatmul.bf16.gmra.mxu0 %v1817
    %v1827 = vpop.f32.mrf.mxu0
    %v1828 = vadd.f32 %v1201, %v1827
    %v1829 = vpop.f32.mrf.mxu0
    %1830 = vdwg.mxu0
    %v1831 = vmax.f32 %v1828, 0.0
    %v1832 = vpack.c.bf16 %v1831, %v1831
    %1833 = vst.msk [vmem:[#allocation2] sm:$0x1] %vm1163, %v545
    %1834 = vrot.lane.b32.xlu0 %v1630, 32
    %v1835 = vpop.permute.xlu0 %1834
    %1837 = vst.msk [vmem:[#allocation2] sm:$0x1] %vm1175, %v1835
    %1838 = vrot.lane.b32.xlu0 %v1811, 64
    %v1839 = vpop.permute.xlu0 %1838
    %1841 = vst.msk [vmem:[#allocation2] sm:$0x1] %vm1186, %v1839
    %v1843 = vrot.slane %v705, 3
    %v1846 = vsel %vm1167, %v705, %v1843
    %1848 = vrot.lane.b32.xlu0 %v1846, 96
    %v1849 = vpop.permute.xlu0 %1848
    %1851 = vst.msk [vmem:[#allocation2] sm:$0x1] %vm1197, %v1849
    %v1852 = vld [vmem:[#allocation2] sm:$0x1]
    %1853 = vmatpush.bf16.msra.mxu0 %v1242
    %1854 = vmatpush.bf16.msra.mxu0 %v1241
    %1855 = vmatpush.bf16.msra.mxu0 %v1240
    %1856 = vmatpush.bf16.msra.mxu0 %v1239
    %1857 = vmatpush.bf16.msra.mxu0 %v1238
    %1858 = vmatpush.bf16.msra.mxu0 %v1237
    %1859 = vmatpush.bf16.msra.mxu0 %v1236
    %1860 = vmatpush.bf16.msra.mxu0 %v1235
    %1861 = vmatmul.bf16.gmra.mxu0 %v1852
    %v1862 = vpop.f32.mrf.mxu0
    %v1863 = vadd.f32 %v1201, %v1862
    %v1864 = vpop.f32.mrf.mxu0
    %1865 = vdwg.mxu0
    %v1866 = vmax.f32 %v1863, 0.0
    %v1867 = vpack.c.bf16 %v1866, %v1866
    %1868 = vst.msk [vmem:[#allocation2] sm:$0x1] %vm1163, %v565
    %1869 = vrot.lane.b32.xlu0 %v1665, 32
    %v1870 = vpop.permute.xlu0 %1869
    %1872 = vst.msk [vmem:[#allocation2] sm:$0x1] %vm1175, %v1870
    %1873 = vrot.lane.b32.xlu0 %v1846, 64
    %v1874 = vpop.permute.xlu0 %1873
    %1876 = vst.msk [vmem:[#allocation2] sm:$0x1] %vm1186, %v1874
    %v1878 = vrot.slane %v725, 3
    %v1881 = vsel %vm1167, %v725, %v1878
    %1883 = vrot.lane.b32.xlu0 %v1881, 96
    %v1884 = vpop.permute.xlu0 %1883
    %1886 = vst.msk [vmem:[#allocation2] sm:$0x1] %vm1197, %v1884
    %v1887 = vld [vmem:[#allocation2] sm:$0x1]
    %1888 = vmatpush.bf16.msra.mxu0 %v1242
    %1889 = vmatpush.bf16.msra.mxu0 %v1241
    %1890 = vmatpush.bf16.msra.mxu0 %v1240
    %1891 = vmatpush.bf16.msra.mxu0 %v1239
    %1892 = vmatpush.bf16.msra.mxu0 %v1238
    %1893 = vmatpush.bf16.msra.mxu0 %v1237
    %1894 = vmatpush.bf16.msra.mxu0 %v1236
    %1895 = vmatpush.bf16.msra.mxu0 %v1235
    %1896 = vmatmul.bf16.gmra.mxu0 %v1887
    %v1897 = vpop.f32.mrf.mxu0
    %v1898 = vadd.f32 %v1201, %v1897
    %v1899 = vpop.f32.mrf.mxu0
    %1900 = vdwg.mxu0
    %v1901 = vmax.f32 %v1898, 0.0
    %v1902 = vpack.c.bf16 %v1901, %v1901
    %1903 = vst.msk [vmem:[#allocation2] sm:$0x1] %vm1163, %v605
    %1904 = vrot.lane.b32.xlu0 %v1706, 32
    %v1905 = vpop.permute.xlu0 %1904
    %1907 = vst.msk [vmem:[#allocation2] sm:$0x1] %vm1175, %v1905
    %v1909 = vrot.slane %v745, 3
    %v1912 = vsel %vm1167, %v745, %v1909
    %1914 = vrot.lane.b32.xlu0 %v1912, 64
    %v1915 = vpop.permute.xlu0 %1914
    %1917 = vst.msk [vmem:[#allocation2] sm:$0x1] %vm1186, %v1915
    %v1919 = vrot.slane %v765, 3
    %v1922 = vsel %vm1167, %v765, %v1919
    %1924 = vrot.lane.b32.xlu0 %v1922, 96
    %v1925 = vpop.permute.xlu0 %1924
    %1927 = vst.msk [vmem:[#allocation2] sm:$0x1] %vm1197, %v1925
    %v1928 = vld [vmem:[#allocation2] sm:$0x1]
    %1929 = vmatpush.bf16.msra.mxu0 %v1242
    %1930 = vmatpush.bf16.msra.mxu0 %v1241
    %1931 = vmatpush.bf16.msra.mxu0 %v1240
    %1932 = vmatpush.bf16.msra.mxu0 %v1239
    %1933 = vmatpush.bf16.msra.mxu0 %v1238
    %1934 = vmatpush.bf16.msra.mxu0 %v1237
    %1935 = vmatpush.bf16.msra.mxu0 %v1236
    %1936 = vmatpush.bf16.msra.mxu0 %v1235
    %1937 = vmatmul.bf16.gmra.mxu0 %v1928
    %v1938 = vpop.f32.mrf.mxu0
    %v1939 = vadd.f32 %v1201, %v1938
    %v1940 = vpop.f32.mrf.mxu0
    %1941 = vdwg.mxu0
    %v1942 = vmax.f32 %v1939, 0.0
    %v1943 = vpack.c.bf16 %v1942, %v1942
    %1944 = vst.msk [vmem:[#allocation2] sm:$0x1] %vm1163, %v625
    %1945 = vrot.lane.b32.xlu0 %v1741, 32
    %v1946 = vpop.permute.xlu0 %1945
    %1948 = vst.msk [vmem:[#allocation2] sm:$0x1] %vm1175, %v1946
    %1949 = vrot.lane.b32.xlu0 %v1922, 64
    %v1950 = vpop.permute.xlu0 %1949
    %1952 = vst.msk [vmem:[#allocation2] sm:$0x1] %vm1186, %v1950
    %v1954 = vrot.slane %v785, 3
    %v1957 = vsel %vm1167, %v785, %v1954
    %1959 = vrot.lane.b32.xlu0 %v1957, 96
    %v1960 = vpop.permute.xlu0 %1959
    %1962 = vst.msk [vmem:[#allocation2] sm:$0x1] %vm1197, %v1960
    %v1963 = vld [vmem:[#allocation2] sm:$0x1]
    %1964 = vmatpush.bf16.msra.mxu0 %v1242
    %1965 = vmatpush.bf16.msra.mxu0 %v1241
    %1966 = vmatpush.bf16.msra.mxu0 %v1240
    %1967 = vmatpush.bf16.msra.mxu0 %v1239
    %1968 = vmatpush.bf16.msra.mxu0 %v1238
    %1969 = vmatpush.bf16.msra.mxu0 %v1237
    %1970 = vmatpush.bf16.msra.mxu0 %v1236
    %1971 = vmatpush.bf16.msra.mxu0 %v1235
    %1972 = vmatmul.bf16.gmra.mxu0 %v1963
    %v1973 = vpop.f32.mrf.mxu0
    %v1974 = vadd.f32 %v1201, %v1973
    %v1975 = vpop.f32.mrf.mxu0
    %1976 = vdwg.mxu0
    %v1977 = vmax.f32 %v1974, 0.0
    %v1978 = vpack.c.bf16 %v1977, %v1977
    %1979 = vst.msk [vmem:[#allocation2] sm:$0x1] %vm1163, %v645
    %1980 = vrot.lane.b32.xlu0 %v1776, 32
    %v1981 = vpop.permute.xlu0 %1980
    %1983 = vst.msk [vmem:[#allocation2] sm:$0x1] %vm1175, %v1981
    %1984 = vrot.lane.b32.xlu0 %v1957, 64
    %v1985 = vpop.permute.xlu0 %1984
    %1987 = vst.msk [vmem:[#allocation2] sm:$0x1] %vm1186, %v1985
    %v1989 = vrot.slane %v805, 3
    %v1992 = vsel %vm1167, %v805, %v1989
    %1994 = vrot.lane.b32.xlu0 %v1992, 96
    %v1995 = vpop.permute.xlu0 %1994
    %1997 = vst.msk [vmem:[#allocation2] sm:$0x1] %vm1197, %v1995
    %v1998 = vld [vmem:[#allocation2] sm:$0x1]
    %1999 = vmatpush.bf16.msra.mxu0 %v1242
    %2000 = vmatpush.bf16.msra.mxu0 %v1241
    %2001 = vmatpush.bf16.msra.mxu0 %v1240
    %2002 = vmatpush.bf16.msra.mxu0 %v1239
    %2003 = vmatpush.bf16.msra.mxu0 %v1238
    %2004 = vmatpush.bf16.msra.mxu0 %v1237
    %2005 = vmatpush.bf16.msra.mxu0 %v1236
    %2006 = vmatpush.bf16.msra.mxu0 %v1235
    %2007 = vmatmul.bf16.gmra.mxu0 %v1998
    %v2008 = vpop.f32.mrf.mxu0
    %v2009 = vadd.f32 %v1201, %v2008
    %v2010 = vpop.f32.mrf.mxu0
    %2011 = vdwg.mxu0
    %v2012 = vmax.f32 %v2009, 0.0
    %v2013 = vpack.c.bf16 %v2012, %v2012
    %2014 = vst.msk [vmem:[#allocation2] sm:$0x1] %vm1163, %v665
    %2015 = vrot.lane.b32.xlu0 %v1811, 32
    %v2016 = vpop.permute.xlu0 %2015
    %2018 = vst.msk [vmem:[#allocation2] sm:$0x1] %vm1175, %v2016
    %2019 = vrot.lane.b32.xlu0 %v1992, 64
    %v2020 = vpop.permute.xlu0 %2019
    %2022 = vst.msk [vmem:[#allocation2] sm:$0x1] %vm1186, %v2020
    %v2024 = vrot.slane %v825, 3
    %v2027 = vsel %vm1167, %v825, %v2024
    %2029 = vrot.lane.b32.xlu0 %v2027, 96
    %v2030 = vpop.permute.xlu0 %2029
    %2032 = vst.msk [vmem:[#allocation2] sm:$0x1] %vm1197, %v2030
    %v2033 = vld [vmem:[#allocation2] sm:$0x1]
    %2034 = vmatpush.bf16.msra.mxu0 %v1242
    %2035 = vmatpush.bf16.msra.mxu0 %v1241
    %2036 = vmatpush.bf16.msra.mxu0 %v1240
    %2037 = vmatpush.bf16.msra.mxu0 %v1239
    %2038 = vmatpush.bf16.msra.mxu0 %v1238
    %2039 = vmatpush.bf16.msra.mxu0 %v1237
    %2040 = vmatpush.bf16.msra.mxu0 %v1236
    %2041 = vmatpush.bf16.msra.mxu0 %v1235
    %2042 = vmatmul.bf16.gmra.mxu0 %v2033
    %v2043 = vpop.f32.mrf.mxu0
    %v2044 = vadd.f32 %v1201, %v2043
    %v2045 = vpop.f32.mrf.mxu0
    %2046 = vdwg.mxu0
    %v2047 = vmax.f32 %v2044, 0.0
    %v2048 = vpack.c.bf16 %v2047, %v2047
    %2049 = vst.msk [vmem:[#allocation2] sm:$0x1] %vm1163, %v685
    %2050 = vrot.lane.b32.xlu0 %v1846, 32
    %v2051 = vpop.permute.xlu0 %2050
    %2053 = vst.msk [vmem:[#allocation2] sm:$0x1] %vm1175, %v2051
    %2054 = vrot.lane.b32.xlu0 %v2027, 64
    %v2055 = vpop.permute.xlu0 %2054
    %2057 = vst.msk [vmem:[#allocation2] sm:$0x1] %vm1186, %v2055
    %v2059 = vrot.slane %v845, 3
    %v2062 = vsel %vm1167, %v845, %v2059
    %2064 = vrot.lane.b32.xlu0 %v2062, 96
    %v2065 = vpop.permute.xlu0 %2064
    %2067 = vst.msk [vmem:[#allocation2] sm:$0x1] %vm1197, %v2065
    %v2068 = vld [vmem:[#allocation2] sm:$0x1]
    %2069 = vmatpush.bf16.msra.mxu0 %v1242
    %2070 = vmatpush.bf16.msra.mxu0 %v1241
    %2071 = vmatpush.bf16.msra.mxu0 %v1240
    %2072 = vmatpush.bf16.msra.mxu0 %v1239
    %2073 = vmatpush.bf16.msra.mxu0 %v1238
    %2074 = vmatpush.bf16.msra.mxu0 %v1237
    %2075 = vmatpush.bf16.msra.mxu0 %v1236
    %2076 = vmatpush.bf16.msra.mxu0 %v1235
    %2077 = vmatmul.bf16.gmra.mxu0 %v2068
    %v2078 = vpop.f32.mrf.mxu0
    %v2079 = vadd.f32 %v1201, %v2078
    %v2080 = vpop.f32.mrf.mxu0
    %2081 = vdwg.mxu0
    %v2082 = vmax.f32 %v2079, 0.0
    %v2083 = vpack.c.bf16 %v2082, %v2082
    %2084 = vst.msk [vmem:[#allocation2] sm:$0x1] %vm1163, %v705
    %2085 = vrot.lane.b32.xlu0 %v1881, 32
    %v2086 = vpop.permute.xlu0 %2085
    %2088 = vst.msk [vmem:[#allocation2] sm:$0x1] %vm1175, %v2086
    %2089 = vrot.lane.b32.xlu0 %v2062, 64
    %v2090 = vpop.permute.xlu0 %2089
    %2092 = vst.msk [vmem:[#allocation2] sm:$0x1] %vm1186, %v2090
    %v2094 = vrot.slane %v865, 3
    %v2097 = vsel %vm1167, %v865, %v2094
    %2099 = vrot.lane.b32.xlu0 %v2097, 96
    %v2100 = vpop.permute.xlu0 %2099
    %2102 = vst.msk [vmem:[#allocation2] sm:$0x1] %vm1197, %v2100
    %v2103 = vld [vmem:[#allocation2] sm:$0x1]
    %2104 = vmatpush.bf16.msra.mxu0 %v1242
    %2105 = vmatpush.bf16.msra.mxu0 %v1241
    %2106 = vmatpush.bf16.msra.mxu0 %v1240
    %2107 = vmatpush.bf16.msra.mxu0 %v1239
    %2108 = vmatpush.bf16.msra.mxu0 %v1238
    %2109 = vmatpush.bf16.msra.mxu0 %v1237
    %2110 = vmatpush.bf16.msra.mxu0 %v1236
    %2111 = vmatpush.bf16.msra.mxu0 %v1235
    %2112 = vmatmul.bf16.gmra.mxu0 %v2103
    %v2113 = vpop.f32.mrf.mxu0
    %v2114 = vadd.f32 %v1201, %v2113
    %v2115 = vpop.f32.mrf.mxu0
    %2116 = vdwg.mxu0
    %v2117 = vmax.f32 %v2114, 0.0
    %v2118 = vpack.c.bf16 %v2117, %v2117
    %2119 = vst.msk [vmem:[#allocation2] sm:$0x1] %vm1163, %v745
    %2120 = vrot.lane.b32.xlu0 %v1922, 32
    %v2121 = vpop.permute.xlu0 %2120
    %2123 = vst.msk [vmem:[#allocation2] sm:$0x1] %vm1175, %v2121
    %v2125 = vrot.slane %v885, 3
    %v2128 = vsel %vm1167, %v885, %v2125
    %2130 = vrot.lane.b32.xlu0 %v2128, 64
    %v2131 = vpop.permute.xlu0 %2130
    %2133 = vst.msk [vmem:[#allocation2] sm:$0x1] %vm1186, %v2131
    %v2135 = vrot.slane %v905, 3
    %v2138 = vsel %vm1167, %v905, %v2135
    %2140 = vrot.lane.b32.xlu0 %v2138, 96
    %v2141 = vpop.permute.xlu0 %2140
    %2143 = vst.msk [vmem:[#allocation2] sm:$0x1] %vm1197, %v2141
    %v2144 = vld [vmem:[#allocation2] sm:$0x1]
    %2145 = vmatpush.bf16.msra.mxu0 %v1242
    %2146 = vmatpush.bf16.msra.mxu0 %v1241
    %2147 = vmatpush.bf16.msra.mxu0 %v1240
    %2148 = vmatpush.bf16.msra.mxu0 %v1239
    %2149 = vmatpush.bf16.msra.mxu0 %v1238
    %2150 = vmatpush.bf16.msra.mxu0 %v1237
    %2151 = vmatpush.bf16.msra.mxu0 %v1236
    %2152 = vmatpush.bf16.msra.mxu0 %v1235
    %2153 = vmatmul.bf16.gmra.mxu0 %v2144
    %v2154 = vpop.f32.mrf.mxu0
    %v2155 = vadd.f32 %v1201, %v2154
    %v2156 = vpop.f32.mrf.mxu0
    %2157 = vdwg.mxu0
    %v2158 = vmax.f32 %v2155, 0.0
    %v2159 = vpack.c.bf16 %v2158, %v2158
    %2160 = vst.msk [vmem:[#allocation2] sm:$0x1] %vm1163, %v765
    %2161 = vrot.lane.b32.xlu0 %v1957, 32
    %v2162 = vpop.permute.xlu0 %2161
    %2164 = vst.msk [vmem:[#allocation2] sm:$0x1] %vm1175, %v2162
    %2165 = vrot.lane.b32.xlu0 %v2138, 64
    %v2166 = vpop.permute.xlu0 %2165
    %2168 = vst.msk [vmem:[#allocation2] sm:$0x1] %vm1186, %v2166
    %v2170 = vrot.slane %v925, 3
    %v2173 = vsel %vm1167, %v925, %v2170
    %2175 = vrot.lane.b32.xlu0 %v2173, 96
    %v2176 = vpop.permute.xlu0 %2175
    %2178 = vst.msk [vmem:[#allocation2] sm:$0x1] %vm1197, %v2176
    %v2179 = vld [vmem:[#allocation2] sm:$0x1]
    %2180 = vmatpush.bf16.msra.mxu0 %v1242
    %2181 = vmatpush.bf16.msra.mxu0 %v1241
    %2182 = vmatpush.bf16.msra.mxu0 %v1240
    %2183 = vmatpush.bf16.msra.mxu0 %v1239
    %2184 = vmatpush.bf16.msra.mxu0 %v1238
    %2185 = vmatpush.bf16.msra.mxu0 %v1237
    %2186 = vmatpush.bf16.msra.mxu0 %v1236
    %2187 = vmatpush.bf16.msra.mxu0 %v1235
    %2188 = vmatmul.bf16.gmra.mxu0 %v2179
    %v2189 = vpop.f32.mrf.mxu0
    %v2190 = vadd.f32 %v1201, %v2189
    %v2191 = vpop.f32.mrf.mxu0
    %2192 = vdwg.mxu0
    %v2193 = vmax.f32 %v2190, 0.0
    %v2194 = vpack.c.bf16 %v2193, %v2193
    %2195 = vst.msk [vmem:[#allocation2] sm:$0x1] %vm1163, %v785
    %2196 = vrot.lane.b32.xlu0 %v1992, 32
    %v2197 = vpop.permute.xlu0 %2196
    %2199 = vst.msk [vmem:[#allocation2] sm:$0x1] %vm1175, %v2197
    %2200 = vrot.lane.b32.xlu0 %v2173, 64
    %v2201 = vpop.permute.xlu0 %2200
    %2203 = vst.msk [vmem:[#allocation2] sm:$0x1] %vm1186, %v2201
    %v2205 = vrot.slane %v945, 3
    %v2208 = vsel %vm1167, %v945, %v2205
    %2210 = vrot.lane.b32.xlu0 %v2208, 96
    %v2211 = vpop.permute.xlu0 %2210
    %2213 = vst.msk [vmem:[#allocation2] sm:$0x1] %vm1197, %v2211
    %v2214 = vld [vmem:[#allocation2] sm:$0x1]
    %2215 = vmatpush.bf16.msra.mxu0 %v1242
    %2216 = vmatpush.bf16.msra.mxu0 %v1241
    %2217 = vmatpush.bf16.msra.mxu0 %v1240
    %2218 = vmatpush.bf16.msra.mxu0 %v1239
    %2219 = vmatpush.bf16.msra.mxu0 %v1238
    %2220 = vmatpush.bf16.msra.mxu0 %v1237
    %2221 = vmatpush.bf16.msra.mxu0 %v1236
    %2222 = vmatpush.bf16.msra.mxu0 %v1235
    %2223 = vmatmul.bf16.gmra.mxu0 %v2214
    %v2224 = vpop.f32.mrf.mxu0
    %v2225 = vadd.f32 %v1201, %v2224
    %v2226 = vpop.f32.mrf.mxu0
    %2227 = vdwg.mxu0
    %v2228 = vmax.f32 %v2225, 0.0
    %v2229 = vpack.c.bf16 %v2228, %v2228
    %2230 = vst.msk [vmem:[#allocation2] sm:$0x1] %vm1163, %v805
    %2231 = vrot.lane.b32.xlu0 %v2027, 32
    %v2232 = vpop.permute.xlu0 %2231
    %2234 = vst.msk [vmem:[#allocation2] sm:$0x1] %vm1175, %v2232
    %2235 = vrot.lane.b32.xlu0 %v2208, 64
    %v2236 = vpop.permute.xlu0 %2235
    %2238 = vst.msk [vmem:[#allocation2] sm:$0x1] %vm1186, %v2236
    %v2240 = vrot.slane %v965, 3
    %v2243 = vsel %vm1167, %v965, %v2240
    %2245 = vrot.lane.b32.xlu0 %v2243, 96
    %v2246 = vpop.permute.xlu0 %2245
    %2248 = vst.msk [vmem:[#allocation2] sm:$0x1] %vm1197, %v2246
    %v2249 = vld [vmem:[#allocation2] sm:$0x1]
    %2250 = vmatpush.bf16.msra.mxu0 %v1242
    %2251 = vmatpush.bf16.msra.mxu0 %v1241
    %2252 = vmatpush.bf16.msra.mxu0 %v1240
    %2253 = vmatpush.bf16.msra.mxu0 %v1239
    %2254 = vmatpush.bf16.msra.mxu0 %v1238
    %2255 = vmatpush.bf16.msra.mxu0 %v1237
    %2256 = vmatpush.bf16.msra.mxu0 %v1236
    %2257 = vmatpush.bf16.msra.mxu0 %v1235
    %2258 = vmatmul.bf16.gmra.mxu0 %v2249
    %v2259 = vpop.f32.mrf.mxu0
    %v2260 = vadd.f32 %v1201, %v2259
    %v2261 = vpop.f32.mrf.mxu0
    %2262 = vdwg.mxu0
    %v2263 = vmax.f32 %v2260, 0.0
    %v2264 = vpack.c.bf16 %v2263, %v2263
    %2265 = vst.msk [vmem:[#allocation2] sm:$0x1] %vm1163, %v825
    %2266 = vrot.lane.b32.xlu0 %v2062, 32
    %v2267 = vpop.permute.xlu0 %2266
    %2269 = vst.msk [vmem:[#allocation2] sm:$0x1] %vm1175, %v2267
    %2270 = vrot.lane.b32.xlu0 %v2243, 64
    %v2271 = vpop.permute.xlu0 %2270
    %2273 = vst.msk [vmem:[#allocation2] sm:$0x1] %vm1186, %v2271
    %v2275 = vrot.slane %v985, 3
    %v2278 = vsel %vm1167, %v985, %v2275
    %2280 = vrot.lane.b32.xlu0 %v2278, 96
    %v2281 = vpop.permute.xlu0 %2280
    %2283 = vst.msk [vmem:[#allocation2] sm:$0x1] %vm1197, %v2281
    %v2284 = vld [vmem:[#allocation2] sm:$0x1]
    %2285 = vmatpush.bf16.msra.mxu0 %v1242
    %2286 = vmatpush.bf16.msra.mxu0 %v1241
    %2287 = vmatpush.bf16.msra.mxu0 %v1240
    %2288 = vmatpush.bf16.msra.mxu0 %v1239
    %2289 = vmatpush.bf16.msra.mxu0 %v1238
    %2290 = vmatpush.bf16.msra.mxu0 %v1237
    %2291 = vmatpush.bf16.msra.mxu0 %v1236
    %2292 = vmatpush.bf16.msra.mxu0 %v1235
    %2293 = vmatmul.bf16.gmra.mxu0 %v2284
    %v2294 = vpop.f32.mrf.mxu0
    %v2295 = vadd.f32 %v1201, %v2294
    %v2296 = vpop.f32.mrf.mxu0
    %2297 = vdwg.mxu0
    %v2298 = vmax.f32 %v2295, 0.0
    %v2299 = vpack.c.bf16 %v2298, %v2298
    %2300 = vst.msk [vmem:[#allocation2] sm:$0x1] %vm1163, %v845
    %2301 = vrot.lane.b32.xlu0 %v2097, 32
    %v2302 = vpop.permute.xlu0 %2301
    %2304 = vst.msk [vmem:[#allocation2] sm:$0x1] %vm1175, %v2302
    %2305 = vrot.lane.b32.xlu0 %v2278, 64
    %v2306 = vpop.permute.xlu0 %2305
    %2308 = vst.msk [vmem:[#allocation2] sm:$0x1] %vm1186, %v2306
    %v2310 = vrot.slane %v1005, 3
    %v2313 = vsel %vm1167, %v1005, %v2310
    %2315 = vrot.lane.b32.xlu0 %v2313, 96
    %v2316 = vpop.permute.xlu0 %2315
    %2318 = vst.msk [vmem:[#allocation2] sm:$0x1] %vm1197, %v2316
    %v2319 = vld [vmem:[#allocation2] sm:$0x1]
    %2320 = vmatpush.bf16.msra.mxu0 %v1242
    %2321 = vmatpush.bf16.msra.mxu0 %v1241
    %2322 = vmatpush.bf16.msra.mxu0 %v1240
    %2323 = vmatpush.bf16.msra.mxu0 %v1239
    %2324 = vmatpush.bf16.msra.mxu0 %v1238
    %2325 = vmatpush.bf16.msra.mxu0 %v1237
    %2326 = vmatpush.bf16.msra.mxu0 %v1236
    %2327 = vmatpush.bf16.msra.mxu0 %v1235
    %2328 = vmatmul.bf16.gmra.mxu0 %v2319
    %v2329 = vpop.f32.mrf.mxu0
    %v2330 = vadd.f32 %v1201, %v2329
    %v2331 = vpop.f32.mrf.mxu0
    %2332 = vdwg.mxu0
    %v2333 = vmax.f32 %v2330, 0.0
    %v2334 = vpack.c.bf16 %v2333, %v2333
    %2335 = vst.msk [vmem:[#allocation2] sm:$0x1] %vm1163, %v885
    %2336 = vrot.lane.b32.xlu0 %v2138, 32
    %v2337 = vpop.permute.xlu0 %2336
    %2339 = vst.msk [vmem:[#allocation2] sm:$0x1] %vm1175, %v2337
    %v2341 = vrot.slane %v1025, 3
    %v2344 = vsel %vm1167, %v1025, %v2341
    %2346 = vrot.lane.b32.xlu0 %v2344, 64
    %v2347 = vpop.permute.xlu0 %2346
    %2349 = vst.msk [vmem:[#allocation2] sm:$0x1] %vm1186, %v2347
    %v2351 = vrot.slane %v1045, 3
    %v2354 = vsel %vm1167, %v1045, %v2351
    %2356 = vrot.lane.b32.xlu0 %v2354, 96
    %v2357 = vpop.permute.xlu0 %2356
    %2359 = vst.msk [vmem:[#allocation2] sm:$0x1] %vm1197, %v2357
    %v2360 = vld [vmem:[#allocation2] sm:$0x1]
    %2361 = vmatpush.bf16.msra.mxu0 %v1242
    %2362 = vmatpush.bf16.msra.mxu0 %v1241
    %2363 = vmatpush.bf16.msra.mxu0 %v1240
    %2364 = vmatpush.bf16.msra.mxu0 %v1239
    %2365 = vmatpush.bf16.msra.mxu0 %v1238
    %2366 = vmatpush.bf16.msra.mxu0 %v1237
    %2367 = vmatpush.bf16.msra.mxu0 %v1236
    %2368 = vmatpush.bf16.msra.mxu0 %v1235
    %2369 = vmatmul.bf16.gmra.mxu0 %v2360
    %v2370 = vpop.f32.mrf.mxu0
    %v2371 = vadd.f32 %v1201, %v2370
    %v2372 = vpop.f32.mrf.mxu0
    %2373 = vdwg.mxu0
    %v2374 = vmax.f32 %v2371, 0.0
    %v2375 = vpack.c.bf16 %v2374, %v2374
    %2376 = vst.msk [vmem:[#allocation2] sm:$0x1] %vm1163, %v905
    %2377 = vrot.lane.b32.xlu0 %v2173, 32
    %v2378 = vpop.permute.xlu0 %2377
    %2380 = vst.msk [vmem:[#allocation2] sm:$0x1] %vm1175, %v2378
    %2381 = vrot.lane.b32.xlu0 %v2354, 64
    %v2382 = vpop.permute.xlu0 %2381
    %2384 = vst.msk [vmem:[#allocation2] sm:$0x1] %vm1186, %v2382
    %v2386 = vrot.slane %v1065, 3
    %v2389 = vsel %vm1167, %v1065, %v2386
    %2391 = vrot.lane.b32.xlu0 %v2389, 96
    %v2392 = vpop.permute.xlu0 %2391
    %2394 = vst.msk [vmem:[#allocation2] sm:$0x1] %vm1197, %v2392
    %v2395 = vld [vmem:[#allocation2] sm:$0x1]
    %2396 = vmatpush.bf16.msra.mxu0 %v1242
    %2397 = vmatpush.bf16.msra.mxu0 %v1241
    %2398 = vmatpush.bf16.msra.mxu0 %v1240
    %2399 = vmatpush.bf16.msra.mxu0 %v1239
    %2400 = vmatpush.bf16.msra.mxu0 %v1238
    %2401 = vmatpush.bf16.msra.mxu0 %v1237
    %2402 = vmatpush.bf16.msra.mxu0 %v1236
    %2403 = vmatpush.bf16.msra.mxu0 %v1235
    %2404 = vmatmul.bf16.gmra.mxu0 %v2395
    %v2405 = vpop.f32.mrf.mxu0
    %v2406 = vadd.f32 %v1201, %v2405
    %v2407 = vpop.f32.mrf.mxu0
    %2408 = vdwg.mxu0
    %v2409 = vmax.f32 %v2406, 0.0
    %v2410 = vpack.c.bf16 %v2409, %v2409
    %2411 = vst.msk [vmem:[#allocation2] sm:$0x1] %vm1163, %v925
    %2412 = vrot.lane.b32.xlu0 %v2208, 32
    %v2413 = vpop.permute.xlu0 %2412
    %2415 = vst.msk [vmem:[#allocation2] sm:$0x1] %vm1175, %v2413
    %2416 = vrot.lane.b32.xlu0 %v2389, 64
    %v2417 = vpop.permute.xlu0 %2416
    %2419 = vst.msk [vmem:[#allocation2] sm:$0x1] %vm1186, %v2417
    %v2421 = vrot.slane %v1085, 3
    %v2424 = vsel %vm1167, %v1085, %v2421
    %2426 = vrot.lane.b32.xlu0 %v2424, 96
    %v2427 = vpop.permute.xlu0 %2426
    %2429 = vst.msk [vmem:[#allocation2] sm:$0x1] %vm1197, %v2427
    %v2430 = vld [vmem:[#allocation2] sm:$0x1]
    %2431 = vmatpush.bf16.msra.mxu0 %v1242
    %2432 = vmatpush.bf16.msra.mxu0 %v1241
    %2433 = vmatpush.bf16.msra.mxu0 %v1240
    %2434 = vmatpush.bf16.msra.mxu0 %v1239
    %2435 = vmatpush.bf16.msra.mxu0 %v1238
    %2436 = vmatpush.bf16.msra.mxu0 %v1237
    %2437 = vmatpush.bf16.msra.mxu0 %v1236
    %2438 = vmatpush.bf16.msra.mxu0 %v1235
    %2439 = vmatmul.bf16.gmra.mxu0 %v2430
    %v2440 = vpop.f32.mrf.mxu0
    %v2441 = vadd.f32 %v1201, %v2440
    %v2442 = vpop.f32.mrf.mxu0
    %2443 = vdwg.mxu0
    %v2444 = vmax.f32 %v2441, 0.0
    %v2445 = vpack.c.bf16 %v2444, %v2444
    %2446 = vst.msk [vmem:[#allocation2] sm:$0x1] %vm1163, %v945
    %2447 = vrot.lane.b32.xlu0 %v2243, 32
    %v2448 = vpop.permute.xlu0 %2447
    %2450 = vst.msk [vmem:[#allocation2] sm:$0x1] %vm1175, %v2448
    %2451 = vrot.lane.b32.xlu0 %v2424, 64
    %v2452 = vpop.permute.xlu0 %2451
    %2454 = vst.msk [vmem:[#allocation2] sm:$0x1] %vm1186, %v2452
    %v2456 = vrot.slane %v1105, 3
    %v2459 = vsel %vm1167, %v1105, %v2456
    %2461 = vrot.lane.b32.xlu0 %v2459, 96
    %v2462 = vpop.permute.xlu0 %2461
    %2464 = vst.msk [vmem:[#allocation2] sm:$0x1] %vm1197, %v2462
    %v2465 = vld [vmem:[#allocation2] sm:$0x1]
    %2466 = vmatpush.bf16.msra.mxu0 %v1242
    %2467 = vmatpush.bf16.msra.mxu0 %v1241
    %2468 = vmatpush.bf16.msra.mxu0 %v1240
    %2469 = vmatpush.bf16.msra.mxu0 %v1239
    %2470 = vmatpush.bf16.msra.mxu0 %v1238
    %2471 = vmatpush.bf16.msra.mxu0 %v1237
    %2472 = vmatpush.bf16.msra.mxu0 %v1236
    %2473 = vmatpush.bf16.msra.mxu0 %v1235
    %2474 = vmatmul.bf16.gmra.mxu0 %v2465
    %v2475 = vpop.f32.mrf.mxu0
    %v2476 = vadd.f32 %v1201, %v2475
    %v2477 = vpop.f32.mrf.mxu0
    %2478 = vdwg.mxu0
    %v2479 = vmax.f32 %v2476, 0.0
    %v2480 = vpack.c.bf16 %v2479, %v2479
    %2481 = vst.msk [vmem:[#allocation2] sm:$0x1] %vm1163, %v965
    %2482 = vrot.lane.b32.xlu0 %v2278, 32
    %v2483 = vpop.permute.xlu0 %2482
    %2485 = vst.msk [vmem:[#allocation2] sm:$0x1] %vm1175, %v2483
    %2486 = vrot.lane.b32.xlu0 %v2459, 64
    %v2487 = vpop.permute.xlu0 %2486
    %2489 = vst.msk [vmem:[#allocation2] sm:$0x1] %vm1186, %v2487
    %v2491 = vrot.slane %v1125, 3
    %v2494 = vsel %vm1167, %v1125, %v2491
    %2496 = vrot.lane.b32.xlu0 %v2494, 96
    %v2497 = vpop.permute.xlu0 %2496
    %2499 = vst.msk [vmem:[#allocation2] sm:$0x1] %vm1197, %v2497
    %v2500 = vld [vmem:[#allocation2] sm:$0x1]
    %2501 = vmatpush.bf16.msra.mxu0 %v1242
    %2502 = vmatpush.bf16.msra.mxu0 %v1241
    %2503 = vmatpush.bf16.msra.mxu0 %v1240
    %2504 = vmatpush.bf16.msra.mxu0 %v1239
    %2505 = vmatpush.bf16.msra.mxu0 %v1238
    %2506 = vmatpush.bf16.msra.mxu0 %v1237
    %2507 = vmatpush.bf16.msra.mxu0 %v1236
    %2508 = vmatpush.bf16.msra.mxu0 %v1235
    %2509 = vmatmul.bf16.gmra.mxu0 %v2500
    %v2510 = vpop.f32.mrf.mxu0
    %v2511 = vadd.f32 %v1201, %v2510
    %v2512 = vpop.f32.mrf.mxu0
    %2513 = vdwg.mxu0
    %v2514 = vmax.f32 %v2511, 0.0
    %v2515 = vpack.c.bf16 %v2514, %v2514
    %2516 = vst.msk [vmem:[#allocation2] sm:$0x1] %vm1163, %v985
    %2517 = vrot.lane.b32.xlu0 %v2313, 32
    %v2518 = vpop.permute.xlu0 %2517
    %2520 = vst.msk [vmem:[#allocation2] sm:$0x1] %vm1175, %v2518
    %2521 = vrot.lane.b32.xlu0 %v2494, 64
    %v2522 = vpop.permute.xlu0 %2521
    %2524 = vst.msk [vmem:[#allocation2] sm:$0x1] %vm1186, %v2522
    %v2526 = vrot.slane %v1145, 3
    %v2529 = vsel %vm1167, %v1145, %v2526
    %2531 = vrot.lane.b32.xlu0 %v2529, 96
    %v2532 = vpop.permute.xlu0 %2531
    %2534 = vst.msk [vmem:[#allocation2] sm:$0x1] %vm1197, %v2532
    %v2535 = vld [vmem:[#allocation2] sm:$0x1]
    %2536 = vmatpush.bf16.msra.mxu0 %v1242
    %2537 = vmatpush.bf16.msra.mxu0 %v1241
    %2538 = vmatpush.bf16.msra.mxu0 %v1240
    %2539 = vmatpush.bf16.msra.mxu0 %v1239
    %2540 = vmatpush.bf16.msra.mxu0 %v1238
    %2541 = vmatpush.bf16.msra.mxu0 %v1237
    %2542 = vmatpush.bf16.msra.mxu0 %v1236
    %2543 = vmatpush.bf16.msra.mxu0 %v1235
    %2544 = vmatmul.bf16.gmra.mxu0 %v2535
    %v2545 = vpop.f32.mrf.mxu0
    %v2546 = vadd.f32 %v1201, %v2545
    %v2547 = vpop.f32.mrf.mxu0
    %2548 = vdwg.mxu0
    %v2549 = vmax.f32 %v2546, 0.0
    %v2550 = vpack.c.bf16 %v2549, %v2549
    %v2551 = vld [vmem:[%s5] sm:$0xf]
    %v2552 = vld [vmem:[%s5 + $0x4] sm:$0xf]
    %v2553 = vld [vmem:[%s5 + $0x8] sm:$0xf]
    %v2554 = vld [vmem:[%s5 + $0xc] sm:$0xf]
    %v2555 = vld [vmem:[%s5 + $0x10] sm:$0xf]
    %v2556 = vld [vmem:[%s5 + $0x14] sm:$0xf]
    %v2557 = vld [vmem:[%s5 + $0x18] sm:$0xf]
    %v2558 = vld [vmem:[%s5 + $0x1c] sm:$0xf]
    %v2559 = vld [vmem:[%s5 + $0x20] sm:$0xf]
    %v2560 = vld [vmem:[%s5 + $0x24] sm:$0xf]
    %v2561 = vld [vmem:[%s5 + $0x28] sm:$0xf]
    %v2562 = vld [vmem:[%s5 + $0x2c] sm:$0xf]
    %v2563 = vld [vmem:[%s5 + $0x30] sm:$0xf]
    %v2564 = vld [vmem:[%s5 + $0x34] sm:$0xf]
    %v2565 = vld [vmem:[%s5 + $0x38] sm:$0xf]
    %v2566 = vld [vmem:[%s5 + $0x3c] sm:$0xf]
    %v2567 = vld [vmem:[%s5 + $0x40] sm:$0xf]
    %v2568 = vld [vmem:[%s5 + $0x44] sm:$0xf]
    %v2569 = vld [vmem:[%s5 + $0x48] sm:$0xf]
    %v2570 = vld [vmem:[%s5 + $0x4c] sm:$0xf]
    %v2571 = vld [vmem:[%s5 + $0x50] sm:$0xf]
    %v2572 = vld [vmem:[%s5 + $0x54] sm:$0xf]
    %v2573 = vld [vmem:[%s5 + $0x58] sm:$0xf]
    %v2574 = vld [vmem:[%s5 + $0x5c] sm:$0xf]
    %v2575 = vld [vmem:[%s5 + $0x60] sm:$0xf]
    %v2576 = vld [vmem:[%s5 + $0x64] sm:$0xf]
    %v2577 = vld [vmem:[%s5 + $0x68] sm:$0xf]
    %v2578 = vld [vmem:[%s5 + $0x6c] sm:$0xf]
    %v2579 = vld [vmem:[%s5 + $0x70] sm:$0xf]
    %v2580 = vld [vmem:[%s5 + $0x74] sm:$0xf]
    %v2581 = vld [vmem:[%s5 + $0x78] sm:$0xf]
    %v2582 = vld [vmem:[%s5 + $0x7c] sm:$0xf]
    %v2583 = vld [vmem:[#allocation9] sm:$0x1]
    %vm2584 = vcmask 516096
    %2585 = vst.msk [vmem:[#allocation3] sm:$0x1] %vm2584, %v1265
    %v2587 = vrot.slane %v1306, 3
    %v2590 = vsel %vm1167, %v1306, %v2587
    %2592 = vrot.lane.b32.xlu0 %v2590, 64
    %v2593 = vpop.permute.xlu0 %2592
    %vm2595 = vcmask 1040896
    %2596 = vst.msk [vmem:[#allocation3] sm:$0x1] %vm2595, %v2593
    %2597 = vst.msk [vmem:[#allocation3 + $0x1] sm:$0x1] %vm2584, %v1511
    %v2599 = vrot.slane %v1546, 3
    %v2602 = vsel %vm1167, %v1546, %v2599
    %2604 = vrot.lane.b32.xlu0 %v2602, 64
    %v2605 = vpop.permute.xlu0 %2604
    %2607 = vst.msk [vmem:[#allocation3 + $0x1] sm:$0x1] %vm2595, %v2605
    %v2608 = vld [vmem:[#allocation3] sm:$0x3]
    %v2610 = vperm.slane %v2583, 0
    %2613 = vst [vmem:[#allocation1] ss:$9 sm:$0xff] %v2608
    %v2614 = vld [vmem:[#allocation1] sm:$0xff]
    %v2615 = vld [vmem:[#allocation1 + $0x9] sm:$0xff]
    %v2650 = vunpack.c.l.b16 %v2551
    %v2651 = vunpack.c.l.b16 %v2552
    %v2652 = vunpack.c.l.b16 %v2553
    %v2653 = vunpack.c.l.b16 %v2554
    %v2654 = vunpack.c.l.b16 %v2555
    %v2655 = vunpack.c.l.b16 %v2556
    %v2656 = vunpack.c.l.b16 %v2557
    %v2657 = vunpack.c.l.b16 %v2558
    %v2658 = vunpack.c.l.b16 %v2559
    %v2659 = vunpack.c.l.b16 %v2560
    %v2660 = vunpack.c.l.b16 %v2561
    %v2661 = vunpack.c.l.b16 %v2562
    %v2662 = vunpack.c.l.b16 %v2563
    %v2663 = vunpack.c.l.b16 %v2564
    %v2664 = vunpack.c.l.b16 %v2565
    %v2665 = vunpack.c.l.b16 %v2566
    %v2666 = vunpack.c.l.b16 %v2567
    %v2667 = vunpack.c.l.b16 %v2568
    %v2668 = vunpack.c.l.b16 %v2569
    %v2669 = vunpack.c.l.b16 %v2570
    %v2670 = vunpack.c.l.b16 %v2571
    %v2671 = vunpack.c.l.b16 %v2572
    %v2672 = vunpack.c.l.b16 %v2573
    %v2673 = vunpack.c.l.b16 %v2574
    %v2674 = vunpack.c.l.b16 %v2575
    %v2675 = vunpack.c.l.b16 %v2576
    %v2676 = vunpack.c.l.b16 %v2577
    %v2677 = vunpack.c.l.b16 %v2578
    %v2678 = vunpack.c.l.b16 %v2579
    %v2679 = vunpack.c.l.b16 %v2580
    %v2680 = vunpack.c.l.b16 %v2581
    %v2681 = vunpack.c.l.b16 %v2582
    %v2682 = vpack.c.b16 %v2651, %v2650
    %v2683 = vpack.c.b16 %v2653, %v2652
    %v2684 = vpack.c.b16 %v2655, %v2654
    %v2685 = vpack.c.b16 %v2657, %v2656
    %v2686 = vpack.c.b16 %v2659, %v2658
    %v2687 = vpack.c.b16 %v2661, %v2660
    %v2688 = vpack.c.b16 %v2663, %v2662
    %v2689 = vpack.c.b16 %v2665, %v2664
    %v2690 = vpack.c.b16 %v2667, %v2666
    %v2691 = vpack.c.b16 %v2669, %v2668
    %v2692 = vpack.c.b16 %v2671, %v2670
    %v2693 = vpack.c.b16 %v2673, %v2672
    %v2694 = vpack.c.b16 %v2675, %v2674
    %v2695 = vpack.c.b16 %v2677, %v2676
    %v2696 = vpack.c.b16 %v2679, %v2678
    %v2697 = vpack.c.b16 %v2681, %v2680
    %2714 = vmatpush.bf16.msra.mxu0 %v2689
    %2715 = vmatpush.bf16.msra.mxu0 %v2688
    %2716 = vmatpush.bf16.msra.mxu0 %v2687
    %2717 = vmatpush.bf16.msra.mxu0 %v2686
    %2718 = vmatpush.bf16.msra.mxu0 %v2685
    %2719 = vmatpush.bf16.msra.mxu0 %v2684
    %2720 = vmatpush.bf16.msra.mxu0 %v2683
    %2721 = vmatpush.bf16.msra.mxu0 %v2682
    %2722 = vmatmul.bf16.gmra.mxu0 %v2614
    %v2723 = vpop.f32.mrf.mxu0
    %v2724 = vadd.f32 %v2610, %v2723
    %v2725 = vpop.f32.mrf.mxu0
    %2726 = vdwg.mxu0
    %2727 = vmatpush.bf16.msra.mxu0 %v2697
    %2728 = vmatpush.bf16.msra.mxu0 %v2696
    %2729 = vmatpush.bf16.msra.mxu0 %v2695
    %2730 = vmatpush.bf16.msra.mxu0 %v2694
    %2731 = vmatpush.bf16.msra.mxu0 %v2693
    %2732 = vmatpush.bf16.msra.mxu0 %v2692
    %2733 = vmatpush.bf16.msra.mxu0 %v2691
    %2734 = vmatpush.bf16.msra.mxu0 %v2690
    %2735 = vmatmul.bf16.gmra.mxu0 %v2615
    %v2736 = vpop.f32.mrf.mxu0
    %v2737 = vadd.f32 %v2724, %v2736
    %v2738 = vpop.f32.mrf.mxu0
    %2739 = vdwg.mxu0
    %v2740 = vmax.f32 %v2737, 0.0
    %v2741 = vpack.c.bf16 %v2740, %v2740
    %2742 = vst.msk [vmem:[#allocation3] sm:$0x1] %vm2584, %v1306
    %v2744 = vrot.slane %v1347, 3
    %v2747 = vsel %vm1167, %v1347, %v2744
    %2749 = vrot.lane.b32.xlu0 %v2747, 64
    %v2750 = vpop.permute.xlu0 %2749
    %2752 = vst.msk [vmem:[#allocation3] sm:$0x1] %vm2595, %v2750
    %2753 = vst.msk [vmem:[#allocation3 + $0x1] sm:$0x1] %vm2584, %v1546
    %v2755 = vrot.slane %v1581, 3
    %v2758 = vsel %vm1167, %v1581, %v2755
    %2760 = vrot.lane.b32.xlu0 %v2758, 64
    %v2761 = vpop.permute.xlu0 %2760
    %2763 = vst.msk [vmem:[#allocation3 + $0x1] sm:$0x1] %vm2595, %v2761
    %v2764 = vld [vmem:[#allocation3] sm:$0x3]
    %2766 = vst [vmem:[#allocation1] ss:$9 sm:$0xff] %v2764
    %v2767 = vld [vmem:[#allocation1] sm:$0xff]
    %v2768 = vld [vmem:[#allocation1 + $0x9] sm:$0xff]
    %2771 = vmatpush.bf16.msra.mxu0 %v2689
    %2772 = vmatpush.bf16.msra.mxu0 %v2688
    %2773 = vmatpush.bf16.msra.mxu0 %v2687
    %2774 = vmatpush.bf16.msra.mxu0 %v2686
    %2775 = vmatpush.bf16.msra.mxu0 %v2685
    %2776 = vmatpush.bf16.msra.mxu0 %v2684
    %2777 = vmatpush.bf16.msra.mxu0 %v2683
    %2778 = vmatpush.bf16.msra.mxu0 %v2682
    %2779 = vmatmul.bf16.gmra.mxu0 %v2767
    %v2780 = vpop.f32.mrf.mxu0
    %v2781 = vadd.f32 %v2610, %v2780
    %v2782 = vpop.f32.mrf.mxu0
    %2783 = vdwg.mxu0
    %2784 = vmatpush.bf16.msra.mxu0 %v2697
    %2785 = vmatpush.bf16.msra.mxu0 %v2696
    %2786 = vmatpush.bf16.msra.mxu0 %v2695
    %2787 = vmatpush.bf16.msra.mxu0 %v2694
    %2788 = vmatpush.bf16.msra.mxu0 %v2693
    %2789 = vmatpush.bf16.msra.mxu0 %v2692
    %2790 = vmatpush.bf16.msra.mxu0 %v2691
    %2791 = vmatpush.bf16.msra.mxu0 %v2690
    %2792 = vmatmul.bf16.gmra.mxu0 %v2768
    %v2793 = vpop.f32.mrf.mxu0
    %v2794 = vadd.f32 %v2781, %v2793
    %v2795 = vpop.f32.mrf.mxu0
    %2796 = vdwg.mxu0
    %v2797 = vmax.f32 %v2794, 0.0
    %v2798 = vpack.c.bf16 %v2797, %v2797
    %2799 = vst.msk [vmem:[#allocation3] sm:$0x1] %vm2584, %v1347
    %v2801 = vrot.slane %v1388, 3
    %v2804 = vsel %vm1167, %v1388, %v2801
    %2806 = vrot.lane.b32.xlu0 %v2804, 64
    %v2807 = vpop.permute.xlu0 %2806
    %2809 = vst.msk [vmem:[#allocation3] sm:$0x1] %vm2595, %v2807
    %2810 = vst.msk [vmem:[#allocation3 + $0x1] sm:$0x1] %vm2584, %v1581
    %v2812 = vrot.slane %v1616, 3
    %v2815 = vsel %vm1167, %v1616, %v2812
    %2817 = vrot.lane.b32.xlu0 %v2815, 64
    %v2818 = vpop.permute.xlu0 %2817
    %2820 = vst.msk [vmem:[#allocation3 + $0x1] sm:$0x1] %vm2595, %v2818
    %v2821 = vld [vmem:[#allocation3] sm:$0x3]
    %2823 = vst [vmem:[#allocation1] ss:$9 sm:$0xff] %v2821
    %v2824 = vld [vmem:[#allocation1] sm:$0xff]
    %v2825 = vld [vmem:[#allocation1 + $0x9] sm:$0xff]
    %2828 = vmatpush.bf16.msra.mxu0 %v2689
    %2829 = vmatpush.bf16.msra.mxu0 %v2688
    %2830 = vmatpush.bf16.msra.mxu0 %v2687
    %2831 = vmatpush.bf16.msra.mxu0 %v2686
    %2832 = vmatpush.bf16.msra.mxu0 %v2685
    %2833 = vmatpush.bf16.msra.mxu0 %v2684
    %2834 = vmatpush.bf16.msra.mxu0 %v2683
    %2835 = vmatpush.bf16.msra.mxu0 %v2682
    %2836 = vmatmul.bf16.gmra.mxu0 %v2824
    %v2837 = vpop.f32.mrf.mxu0
    %v2838 = vadd.f32 %v2610, %v2837
    %v2839 = vpop.f32.mrf.mxu0
    %2840 = vdwg.mxu0
    %2841 = vmatpush.bf16.msra.mxu0 %v2697
    %2842 = vmatpush.bf16.msra.mxu0 %v2696
    %2843 = vmatpush.bf16.msra.mxu0 %v2695
    %2844 = vmatpush.bf16.msra.mxu0 %v2694
    %2845 = vmatpush.bf16.msra.mxu0 %v2693
    %2846 = vmatpush.bf16.msra.mxu0 %v2692
    %2847 = vmatpush.bf16.msra.mxu0 %v2691
    %2848 = vmatpush.bf16.msra.mxu0 %v2690
    %2849 = vmatmul.bf16.gmra.mxu0 %v2825
    %v2850 = vpop.f32.mrf.mxu0
    %v2851 = vadd.f32 %v2838, %v2850
    %v2852 = vpop.f32.mrf.mxu0
    %2853 = vdwg.mxu0
    %v2854 = vmax.f32 %v2851, 0.0
    %v2855 = vpack.c.bf16 %v2854, %v2854
    %2856 = vst.msk [vmem:[#allocation3] sm:$0x1] %vm2584, %v1388
    %v2858 = vrot.slane %v1429, 3
    %v2861 = vsel %vm1167, %v1429, %v2858
    %2863 = vrot.lane.b32.xlu0 %v2861, 64
    %v2864 = vpop.permute.xlu0 %2863
    %2866 = vst.msk [vmem:[#allocation3] sm:$0x1] %vm2595, %v2864
    %2867 = vst.msk [vmem:[#allocation3 + $0x1] sm:$0x1] %vm2584, %v1616
    %v2869 = vrot.slane %v1651, 3
    %v2872 = vsel %vm1167, %v1651, %v2869
    %2874 = vrot.lane.b32.xlu0 %v2872, 64
    %v2875 = vpop.permute.xlu0 %2874
    %2877 = vst.msk [vmem:[#allocation3 + $0x1] sm:$0x1] %vm2595, %v2875
    %v2878 = vld [vmem:[#allocation3] sm:$0x3]
    %2880 = vst [vmem:[#allocation1] ss:$9 sm:$0xff] %v2878
    %v2881 = vld [vmem:[#allocation1] sm:$0xff]
    %v2882 = vld [vmem:[#allocation1 + $0x9] sm:$0xff]
    %2885 = vmatpush.bf16.msra.mxu0 %v2689
    %2886 = vmatpush.bf16.msra.mxu0 %v2688
    %2887 = vmatpush.bf16.msra.mxu0 %v2687
    %2888 = vmatpush.bf16.msra.mxu0 %v2686
    %2889 = vmatpush.bf16.msra.mxu0 %v2685
    %2890 = vmatpush.bf16.msra.mxu0 %v2684
    %2891 = vmatpush.bf16.msra.mxu0 %v2683
    %2892 = vmatpush.bf16.msra.mxu0 %v2682
    %2893 = vmatmul.bf16.gmra.mxu0 %v2881
    %v2894 = vpop.f32.mrf.mxu0
    %v2895 = vadd.f32 %v2610, %v2894
    %v2896 = vpop.f32.mrf.mxu0
    %2897 = vdwg.mxu0
    %2898 = vmatpush.bf16.msra.mxu0 %v2697
    %2899 = vmatpush.bf16.msra.mxu0 %v2696
    %2900 = vmatpush.bf16.msra.mxu0 %v2695
    %2901 = vmatpush.bf16.msra.mxu0 %v2694
    %2902 = vmatpush.bf16.msra.mxu0 %v2693
    %2903 = vmatpush.bf16.msra.mxu0 %v2692
    %2904 = vmatpush.bf16.msra.mxu0 %v2691
    %2905 = vmatpush.bf16.msra.mxu0 %v2690
    %2906 = vmatmul.bf16.gmra.mxu0 %v2882
    %v2907 = vpop.f32.mrf.mxu0
    %v2908 = vadd.f32 %v2895, %v2907
    %v2909 = vpop.f32.mrf.mxu0
    %2910 = vdwg.mxu0
    %v2911 = vmax.f32 %v2908, 0.0
    %v2912 = vpack.c.bf16 %v2911, %v2911
    %2913 = vst.msk [vmem:[#allocation3] sm:$0x1] %vm2584, %v1429
    %v2915 = vrot.slane %v1470, 3
    %v2918 = vsel %vm1167, %v1470, %v2915
    %2920 = vrot.lane.b32.xlu0 %v2918, 64
    %v2921 = vpop.permute.xlu0 %2920
    %2923 = vst.msk [vmem:[#allocation3] sm:$0x1] %vm2595, %v2921
    %2924 = vst.msk [vmem:[#allocation3 + $0x1] sm:$0x1] %vm2584, %v1651
    %v2926 = vrot.slane %v1686, 3
    %v2929 = vsel %vm1167, %v1686, %v2926
    %2931 = vrot.lane.b32.xlu0 %v2929, 64
    %v2932 = vpop.permute.xlu0 %2931
    %2934 = vst.msk [vmem:[#allocation3 + $0x1] sm:$0x1] %vm2595, %v2932
    %v2935 = vld [vmem:[#allocation3] sm:$0x3]
    %2937 = vst [vmem:[#allocation1] ss:$9 sm:$0xff] %v2935
    %v2938 = vld [vmem:[#allocation1] sm:$0xff]
    %v2939 = vld [vmem:[#allocation1 + $0x9] sm:$0xff]
    %2942 = vmatpush.bf16.msra.mxu0 %v2689
    %2943 = vmatpush.bf16.msra.mxu0 %v2688
    %2944 = vmatpush.bf16.msra.mxu0 %v2687
    %2945 = vmatpush.bf16.msra.mxu0 %v2686
    %2946 = vmatpush.bf16.msra.mxu0 %v2685
    %2947 = vmatpush.bf16.msra.mxu0 %v2684
    %2948 = vmatpush.bf16.msra.mxu0 %v2683
    %2949 = vmatpush.bf16.msra.mxu0 %v2682
    %2950 = vmatmul.bf16.gmra.mxu0 %v2938
    %v2951 = vpop.f32.mrf.mxu0
    %v2952 = vadd.f32 %v2610, %v2951
    %v2953 = vpop.f32.mrf.mxu0
    %2954 = vdwg.mxu0
    %2955 = vmatpush.bf16.msra.mxu0 %v2697
    %2956 = vmatpush.bf16.msra.mxu0 %v2696
    %2957 = vmatpush.bf16.msra.mxu0 %v2695
    %2958 = vmatpush.bf16.msra.mxu0 %v2694
    %2959 = vmatpush.bf16.msra.mxu0 %v2693
    %2960 = vmatpush.bf16.msra.mxu0 %v2692
    %2961 = vmatpush.bf16.msra.mxu0 %v2691
    %2962 = vmatpush.bf16.msra.mxu0 %v2690
    %2963 = vmatmul.bf16.gmra.mxu0 %v2939
    %v2964 = vpop.f32.mrf.mxu0
    %v2965 = vadd.f32 %v2952, %v2964
    %v2966 = vpop.f32.mrf.mxu0
    %2967 = vdwg.mxu0
    %v2968 = vmax.f32 %v2965, 0.0
    %v2969 = vpack.c.bf16 %v2968, %v2968
    %2970 = vst.msk [vmem:[#allocation3] sm:$0x1] %vm2584, %v1511
    %2971 = vst.msk [vmem:[#allocation3] sm:$0x1] %vm2595, %v2605
    %2972 = vst.msk [vmem:[#allocation3 + $0x1] sm:$0x1] %vm2584, %v1727
    %v2974 = vrot.slane %v1762, 3
    %v2977 = vsel %vm1167, %v1762, %v2974
    %2979 = vrot.lane.b32.xlu0 %v2977, 64
    %v2980 = vpop.permute.xlu0 %2979
    %2982 = vst.msk [vmem:[#allocation3 + $0x1] sm:$0x1] %vm2595, %v2980
    %v2983 = vld [vmem:[#allocation3] sm:$0x3]
    %2985 = vst [vmem:[#allocation1] ss:$9 sm:$0xff] %v2983
    %v2986 = vld [vmem:[#allocation1] sm:$0xff]
    %v2987 = vld [vmem:[#allocation1 + $0x9] sm:$0xff]
    %2990 = vmatpush.bf16.msra.mxu0 %v2689
    %2991 = vmatpush.bf16.msra.mxu0 %v2688
    %2992 = vmatpush.bf16.msra.mxu0 %v2687
    %2993 = vmatpush.bf16.msra.mxu0 %v2686
    %2994 = vmatpush.bf16.msra.mxu0 %v2685
    %2995 = vmatpush.bf16.msra.mxu0 %v2684
    %2996 = vmatpush.bf16.msra.mxu0 %v2683
    %2997 = vmatpush.bf16.msra.mxu0 %v2682
    %2998 = vmatmul.bf16.gmra.mxu0 %v2986
    %v2999 = vpop.f32.mrf.mxu0
    %v3000 = vadd.f32 %v2610, %v2999
    %v3001 = vpop.f32.mrf.mxu0
    %3002 = vdwg.mxu0
    %3003 = vmatpush.bf16.msra.mxu0 %v2697
    %3004 = vmatpush.bf16.msra.mxu0 %v2696
    %3005 = vmatpush.bf16.msra.mxu0 %v2695
    %3006 = vmatpush.bf16.msra.mxu0 %v2694
    %3007 = vmatpush.bf16.msra.mxu0 %v2693
    %3008 = vmatpush.bf16.msra.mxu0 %v2692
    %3009 = vmatpush.bf16.msra.mxu0 %v2691
    %3010 = vmatpush.bf16.msra.mxu0 %v2690
    %3011 = vmatmul.bf16.gmra.mxu0 %v2987
    %v3012 = vpop.f32.mrf.mxu0
    %v3013 = vadd.f32 %v3000, %v3012
    %v3014 = vpop.f32.mrf.mxu0
    %3015 = vdwg.mxu0
    %v3016 = vmax.f32 %v3013, 0.0
    %v3017 = vpack.c.bf16 %v3016, %v3016
    %3018 = vst.msk [vmem:[#allocation3] sm:$0x1] %vm2584, %v1546
    %3019 = vst.msk [vmem:[#allocation3] sm:$0x1] %vm2595, %v2761
    %3020 = vst.msk [vmem:[#allocation3 + $0x1] sm:$0x1] %vm2584, %v1762
    %v3022 = vrot.slane %v1797, 3
    %v3025 = vsel %vm1167, %v1797, %v3022
    %3027 = vrot.lane.b32.xlu0 %v3025, 64
    %v3028 = vpop.permute.xlu0 %3027
    %3030 = vst.msk [vmem:[#allocation3 + $0x1] sm:$0x1] %vm2595, %v3028
    %v3031 = vld [vmem:[#allocation3] sm:$0x3]
    %3033 = vst [vmem:[#allocation1] ss:$9 sm:$0xff] %v3031
    %v3034 = vld [vmem:[#allocation1] sm:$0xff]
    %v3035 = vld [vmem:[#allocation1 + $0x9] sm:$0xff]
    %3038 = vmatpush.bf16.msra.mxu0 %v2689
    %3039 = vmatpush.bf16.msra.mxu0 %v2688
    %3040 = vmatpush.bf16.msra.mxu0 %v2687
    %3041 = vmatpush.bf16.msra.mxu0 %v2686
    %3042 = vmatpush.bf16.msra.mxu0 %v2685
    %3043 = vmatpush.bf16.msra.mxu0 %v2684
    %3044 = vmatpush.bf16.msra.mxu0 %v2683
    %3045 = vmatpush.bf16.msra.mxu0 %v2682
    %3046 = vmatmul.bf16.gmra.mxu0 %v3034
    %v3047 = vpop.f32.mrf.mxu0
    %v3048 = vadd.f32 %v2610, %v3047
    %v3049 = vpop.f32.mrf.mxu0
    %3050 = vdwg.mxu0
    %3051 = vmatpush.bf16.msra.mxu0 %v2697
    %3052 = vmatpush.bf16.msra.mxu0 %v2696
    %3053 = vmatpush.bf16.msra.mxu0 %v2695
    %3054 = vmatpush.bf16.msra.mxu0 %v2694
    %3055 = vmatpush.bf16.msra.mxu0 %v2693
    %3056 = vmatpush.bf16.msra.mxu0 %v2692
    %3057 = vmatpush.bf16.msra.mxu0 %v2691
    %3058 = vmatpush.bf16.msra.mxu0 %v2690
    %3059 = vmatmul.bf16.gmra.mxu0 %v3035
    %v3060 = vpop.f32.mrf.mxu0
    %v3061 = vadd.f32 %v3048, %v3060
    %v3062 = vpop.f32.mrf.mxu0
    %3063 = vdwg.mxu0
    %v3064 = vmax.f32 %v3061, 0.0
    %v3065 = vpack.c.bf16 %v3064, %v3064
    %3066 = vst.msk [vmem:[#allocation3] sm:$0x1] %vm2584, %v1581
    %3067 = vst.msk [vmem:[#allocation3] sm:$0x1] %vm2595, %v2818
    %3068 = vst.msk [vmem:[#allocation3 + $0x1] sm:$0x1] %vm2584, %v1797
    %v3070 = vrot.slane %v1832, 3
    %v3073 = vsel %vm1167, %v1832, %v3070
    %3075 = vrot.lane.b32.xlu0 %v3073, 64
    %v3076 = vpop.permute.xlu0 %3075
    %3078 = vst.msk [vmem:[#allocation3 + $0x1] sm:$0x1] %vm2595, %v3076
    %v3079 = vld [vmem:[#allocation3] sm:$0x3]
    %3081 = vst [vmem:[#allocation1] ss:$9 sm:$0xff] %v3079
    %v3082 = vld [vmem:[#allocation1] sm:$0xff]
    %v3083 = vld [vmem:[#allocation1 + $0x9] sm:$0xff]
    %3086 = vmatpush.bf16.msra.mxu0 %v2689
    %3087 = vmatpush.bf16.msra.mxu0 %v2688
    %3088 = vmatpush.bf16.msra.mxu0 %v2687
    %3089 = vmatpush.bf16.msra.mxu0 %v2686
    %3090 = vmatpush.bf16.msra.mxu0 %v2685
    %3091 = vmatpush.bf16.msra.mxu0 %v2684
    %3092 = vmatpush.bf16.msra.mxu0 %v2683
    %3093 = vmatpush.bf16.msra.mxu0 %v2682
    %3094 = vmatmul.bf16.gmra.mxu0 %v3082
    %v3095 = vpop.f32.mrf.mxu0
    %v3096 = vadd.f32 %v2610, %v3095
    %v3097 = vpop.f32.mrf.mxu0
    %3098 = vdwg.mxu0
    %3099 = vmatpush.bf16.msra.mxu0 %v2697
    %3100 = vmatpush.bf16.msra.mxu0 %v2696
    %3101 = vmatpush.bf16.msra.mxu0 %v2695
    %3102 = vmatpush.bf16.msra.mxu0 %v2694
    %3103 = vmatpush.bf16.msra.mxu0 %v2693
    %3104 = vmatpush.bf16.msra.mxu0 %v2692
    %3105 = vmatpush.bf16.msra.mxu0 %v2691
    %3106 = vmatpush.bf16.msra.mxu0 %v2690
    %3107 = vmatmul.bf16.gmra.mxu0 %v3083
    %v3108 = vpop.f32.mrf.mxu0
    %v3109 = vadd.f32 %v3096, %v3108
    %v3110 = vpop.f32.mrf.mxu0
    %3111 = vdwg.mxu0
    %v3112 = vmax.f32 %v3109, 0.0
    %v3113 = vpack.c.bf16 %v3112, %v3112
    %3114 = vst.msk [vmem:[#allocation3] sm:$0x1] %vm2584, %v1616
    %3115 = vst.msk [vmem:[#allocation3] sm:$0x1] %vm2595, %v2875
    %3116 = vst.msk [vmem:[#allocation3 + $0x1] sm:$0x1] %vm2584, %v1832
    %v3118 = vrot.slane %v1867, 3
    %v3121 = vsel %vm1167, %v1867, %v3118
    %3123 = vrot.lane.b32.xlu0 %v3121, 64
    %v3124 = vpop.permute.xlu0 %3123
    %3126 = vst.msk [vmem:[#allocation3 + $0x1] sm:$0x1] %vm2595, %v3124
    %v3127 = vld [vmem:[#allocation3] sm:$0x3]
    %3129 = vst [vmem:[#allocation1] ss:$9 sm:$0xff] %v3127
    %v3130 = vld [vmem:[#allocation1] sm:$0xff]
    %v3131 = vld [vmem:[#allocation1 + $0x9] sm:$0xff]
    %3134 = vmatpush.bf16.msra.mxu0 %v2689
    %3135 = vmatpush.bf16.msra.mxu0 %v2688
    %3136 = vmatpush.bf16.msra.mxu0 %v2687
    %3137 = vmatpush.bf16.msra.mxu0 %v2686
    %3138 = vmatpush.bf16.msra.mxu0 %v2685
    %3139 = vmatpush.bf16.msra.mxu0 %v2684
    %3140 = vmatpush.bf16.msra.mxu0 %v2683
    %3141 = vmatpush.bf16.msra.mxu0 %v2682
    %3142 = vmatmul.bf16.gmra.mxu0 %v3130
    %v3143 = vpop.f32.mrf.mxu0
    %v3144 = vadd.f32 %v2610, %v3143
    %v3145 = vpop.f32.mrf.mxu0
    %3146 = vdwg.mxu0
    %3147 = vmatpush.bf16.msra.mxu0 %v2697
    %3148 = vmatpush.bf16.msra.mxu0 %v2696
    %3149 = vmatpush.bf16.msra.mxu0 %v2695
    %3150 = vmatpush.bf16.msra.mxu0 %v2694
    %3151 = vmatpush.bf16.msra.mxu0 %v2693
    %3152 = vmatpush.bf16.msra.mxu0 %v2692
    %3153 = vmatpush.bf16.msra.mxu0 %v2691
    %3154 = vmatpush.bf16.msra.mxu0 %v2690
    %3155 = vmatmul.bf16.gmra.mxu0 %v3131
    %v3156 = vpop.f32.mrf.mxu0
    %v3157 = vadd.f32 %v3144, %v3156
    %v3158 = vpop.f32.mrf.mxu0
    %3159 = vdwg.mxu0
    %v3160 = vmax.f32 %v3157, 0.0
    %v3161 = vpack.c.bf16 %v3160, %v3160
    %3162 = vst.msk [vmem:[#allocation3] sm:$0x1] %vm2584, %v1651
    %3163 = vst.msk [vmem:[#allocation3] sm:$0x1] %vm2595, %v2932
    %3164 = vst.msk [vmem:[#allocation3 + $0x1] sm:$0x1] %vm2584, %v1867
    %v3166 = vrot.slane %v1902, 3
    %v3169 = vsel %vm1167, %v1902, %v3166
    %3171 = vrot.lane.b32.xlu0 %v3169, 64
    %v3172 = vpop.permute.xlu0 %3171
    %3174 = vst.msk [vmem:[#allocation3 + $0x1] sm:$0x1] %vm2595, %v3172
    %v3175 = vld [vmem:[#allocation3] sm:$0x3]
    %3177 = vst [vmem:[#allocation1] ss:$9 sm:$0xff] %v3175
    %v3178 = vld [vmem:[#allocation1] sm:$0xff]
    %v3179 = vld [vmem:[#allocation1 + $0x9] sm:$0xff]
    %3182 = vmatpush.bf16.msra.mxu0 %v2689
    %3183 = vmatpush.bf16.msra.mxu0 %v2688
    %3184 = vmatpush.bf16.msra.mxu0 %v2687
    %3185 = vmatpush.bf16.msra.mxu0 %v2686
    %3186 = vmatpush.bf16.msra.mxu0 %v2685
    %3187 = vmatpush.bf16.msra.mxu0 %v2684
    %3188 = vmatpush.bf16.msra.mxu0 %v2683
    %3189 = vmatpush.bf16.msra.mxu0 %v2682
    %3190 = vmatmul.bf16.gmra.mxu0 %v3178
    %v3191 = vpop.f32.mrf.mxu0
    %v3192 = vadd.f32 %v2610, %v3191
    %v3193 = vpop.f32.mrf.mxu0
    %3194 = vdwg.mxu0
    %3195 = vmatpush.bf16.msra.mxu0 %v2697
    %3196 = vmatpush.bf16.msra.mxu0 %v2696
    %3197 = vmatpush.bf16.msra.mxu0 %v2695
    %3198 = vmatpush.bf16.msra.mxu0 %v2694
    %3199 = vmatpush.bf16.msra.mxu0 %v2693
    %3200 = vmatpush.bf16.msra.mxu0 %v2692
    %3201 = vmatpush.bf16.msra.mxu0 %v2691
    %3202 = vmatpush.bf16.msra.mxu0 %v2690
    %3203 = vmatmul.bf16.gmra.mxu0 %v3179
    %v3204 = vpop.f32.mrf.mxu0
    %v3205 = vadd.f32 %v3192, %v3204
    %v3206 = vpop.f32.mrf.mxu0
    %3207 = vdwg.mxu0
    %v3208 = vmax.f32 %v3205, 0.0
    %v3209 = vpack.c.bf16 %v3208, %v3208
    %3210 = vst.msk [vmem:[#allocation3] sm:$0x1] %vm2584, %v1727
    %3211 = vst.msk [vmem:[#allocation3] sm:$0x1] %vm2595, %v2980
    %3212 = vst.msk [vmem:[#allocation3 + $0x1] sm:$0x1] %vm2584, %v1943
    %v3214 = vrot.slane %v1978, 3
    %v3217 = vsel %vm1167, %v1978, %v3214
    %3219 = vrot.lane.b32.xlu0 %v3217, 64
    %v3220 = vpop.permute.xlu0 %3219
    %3222 = vst.msk [vmem:[#allocation3 + $0x1] sm:$0x1] %vm2595, %v3220
    %v3223 = vld [vmem:[#allocation3] sm:$0x3]
    %3225 = vst [vmem:[#allocation1] ss:$9 sm:$0xff] %v3223
    %v3226 = vld [vmem:[#allocation1] sm:$0xff]
    %v3227 = vld [vmem:[#allocation1 + $0x9] sm:$0xff]
    %3230 = vmatpush.bf16.msra.mxu0 %v2689
    %3231 = vmatpush.bf16.msra.mxu0 %v2688
    %3232 = vmatpush.bf16.msra.mxu0 %v2687
    %3233 = vmatpush.bf16.msra.mxu0 %v2686
    %3234 = vmatpush.bf16.msra.mxu0 %v2685
    %3235 = vmatpush.bf16.msra.mxu0 %v2684
    %3236 = vmatpush.bf16.msra.mxu0 %v2683
    %3237 = vmatpush.bf16.msra.mxu0 %v2682
    %3238 = vmatmul.bf16.gmra.mxu0 %v3226
    %v3239 = vpop.f32.mrf.mxu0
    %v3240 = vadd.f32 %v2610, %v3239
    %v3241 = vpop.f32.mrf.mxu0
    %3242 = vdwg.mxu0
    %3243 = vmatpush.bf16.msra.mxu0 %v2697
    %3244 = vmatpush.bf16.msra.mxu0 %v2696
    %3245 = vmatpush.bf16.msra.mxu0 %v2695
    %3246 = vmatpush.bf16.msra.mxu0 %v2694
    %3247 = vmatpush.bf16.msra.mxu0 %v2693
    %3248 = vmatpush.bf16.msra.mxu0 %v2692
    %3249 = vmatpush.bf16.msra.mxu0 %v2691
    %3250 = vmatpush.bf16.msra.mxu0 %v2690
    %3251 = vmatmul.bf16.gmra.mxu0 %v3227
    %v3252 = vpop.f32.mrf.mxu0
    %v3253 = vadd.f32 %v3240, %v3252
    %v3254 = vpop.f32.mrf.mxu0
    %3255 = vdwg.mxu0
    %v3256 = vmax.f32 %v3253, 0.0
    %v3257 = vpack.c.bf16 %v3256, %v3256
    %3258 = vst.msk [vmem:[#allocation3] sm:$0x1] %vm2584, %v1762
    %3259 = vst.msk [vmem:[#allocation3] sm:$0x1] %vm2595, %v3028
    %3260 = vst.msk [vmem:[#allocation3 + $0x1] sm:$0x1] %vm2584, %v1978
    %v3262 = vrot.slane %v2013, 3
    %v3265 = vsel %vm1167, %v2013, %v3262
    %3267 = vrot.lane.b32.xlu0 %v3265, 64
    %v3268 = vpop.permute.xlu0 %3267
    %3270 = vst.msk [vmem:[#allocation3 + $0x1] sm:$0x1] %vm2595, %v3268
    %v3271 = vld [vmem:[#allocation3] sm:$0x3]
    %3273 = vst [vmem:[#allocation1] ss:$9 sm:$0xff] %v3271
    %v3274 = vld [vmem:[#allocation1] sm:$0xff]
    %v3275 = vld [vmem:[#allocation1 + $0x9] sm:$0xff]
    %3278 = vmatpush.bf16.msra.mxu0 %v2689
    %3279 = vmatpush.bf16.msra.mxu0 %v2688
    %3280 = vmatpush.bf16.msra.mxu0 %v2687
    %3281 = vmatpush.bf16.msra.mxu0 %v2686
    %3282 = vmatpush.bf16.msra.mxu0 %v2685
    %3283 = vmatpush.bf16.msra.mxu0 %v2684
    %3284 = vmatpush.bf16.msra.mxu0 %v2683
    %3285 = vmatpush.bf16.msra.mxu0 %v2682
    %3286 = vmatmul.bf16.gmra.mxu0 %v3274
    %v3287 = vpop.f32.mrf.mxu0
    %v3288 = vadd.f32 %v2610, %v3287
    %v3289 = vpop.f32.mrf.mxu0
    %3290 = vdwg.mxu0
    %3291 = vmatpush.bf16.msra.mxu0 %v2697
    %3292 = vmatpush.bf16.msra.mxu0 %v2696
    %3293 = vmatpush.bf16.msra.mxu0 %v2695
    %3294 = vmatpush.bf16.msra.mxu0 %v2694
    %3295 = vmatpush.bf16.msra.mxu0 %v2693
    %3296 = vmatpush.bf16.msra.mxu0 %v2692
    %3297 = vmatpush.bf16.msra.mxu0 %v2691
    %3298 = vmatpush.bf16.msra.mxu0 %v2690
    %3299 = vmatmul.bf16.gmra.mxu0 %v3275
    %v3300 = vpop.f32.mrf.mxu0
    %v3301 = vadd.f32 %v3288, %v3300
    %v3302 = vpop.f32.mrf.mxu0
    %3303 = vdwg.mxu0
    %v3304 = vmax.f32 %v3301, 0.0
    %v3305 = vpack.c.bf16 %v3304, %v3304
    %3306 = vst.msk [vmem:[#allocation3] sm:$0x1] %vm2584, %v1797
    %3307 = vst.msk [vmem:[#allocation3] sm:$0x1] %vm2595, %v3076
    %3308 = vst.msk [vmem:[#allocation3 + $0x1] sm:$0x1] %vm2584, %v2013
    %v3310 = vrot.slane %v2048, 3
    %v3313 = vsel %vm1167, %v2048, %v3310
    %3315 = vrot.lane.b32.xlu0 %v3313, 64
    %v3316 = vpop.permute.xlu0 %3315
    %3318 = vst.msk [vmem:[#allocation3 + $0x1] sm:$0x1] %vm2595, %v3316
    %v3319 = vld [vmem:[#allocation3] sm:$0x3]
    %3321 = vst [vmem:[#allocation1] ss:$9 sm:$0xff] %v3319
    %v3322 = vld [vmem:[#allocation1] sm:$0xff]
    %v3323 = vld [vmem:[#allocation1 + $0x9] sm:$0xff]
    %3326 = vmatpush.bf16.msra.mxu0 %v2689
    %3327 = vmatpush.bf16.msra.mxu0 %v2688
    %3328 = vmatpush.bf16.msra.mxu0 %v2687
    %3329 = vmatpush.bf16.msra.mxu0 %v2686
    %3330 = vmatpush.bf16.msra.mxu0 %v2685
    %3331 = vmatpush.bf16.msra.mxu0 %v2684
    %3332 = vmatpush.bf16.msra.mxu0 %v2683
    %3333 = vmatpush.bf16.msra.mxu0 %v2682
    %3334 = vmatmul.bf16.gmra.mxu0 %v3322
    %v3335 = vpop.f32.mrf.mxu0
    %v3336 = vadd.f32 %v2610, %v3335
    %v3337 = vpop.f32.mrf.mxu0
    %3338 = vdwg.mxu0
    %3339 = vmatpush.bf16.msra.mxu0 %v2697
    %3340 = vmatpush.bf16.msra.mxu0 %v2696
    %3341 = vmatpush.bf16.msra.mxu0 %v2695
    %3342 = vmatpush.bf16.msra.mxu0 %v2694
    %3343 = vmatpush.bf16.msra.mxu0 %v2693
    %3344 = vmatpush.bf16.msra.mxu0 %v2692
    %3345 = vmatpush.bf16.msra.mxu0 %v2691
    %3346 = vmatpush.bf16.msra.mxu0 %v2690
    %3347 = vmatmul.bf16.gmra.mxu0 %v3323
    %v3348 = vpop.f32.mrf.mxu0
    %v3349 = vadd.f32 %v3336, %v3348
    %v3350 = vpop.f32.mrf.mxu0
    %3351 = vdwg.mxu0
    %v3352 = vmax.f32 %v3349, 0.0
    %v3353 = vpack.c.bf16 %v3352, %v3352
    %3354 = vst.msk [vmem:[#allocation3] sm:$0x1] %vm2584, %v1832
    %3355 = vst.msk [vmem:[#allocation3] sm:$0x1] %vm2595, %v3124
    %3356 = vst.msk [vmem:[#allocation3 + $0x1] sm:$0x1] %vm2584, %v2048
    %v3358 = vrot.slane %v2083, 3
    %v3361 = vsel %vm1167, %v2083, %v3358
    %3363 = vrot.lane.b32.xlu0 %v3361, 64
    %v3364 = vpop.permute.xlu0 %3363
    %3366 = vst.msk [vmem:[#allocation3 + $0x1] sm:$0x1] %vm2595, %v3364
    %v3367 = vld [vmem:[#allocation3] sm:$0x3]
    %3369 = vst [vmem:[#allocation1] ss:$9 sm:$0xff] %v3367
    %v3370 = vld [vmem:[#allocation1] sm:$0xff]
    %v3371 = vld [vmem:[#allocation1 + $0x9] sm:$0xff]
    %3374 = vmatpush.bf16.msra.mxu0 %v2689
    %3375 = vmatpush.bf16.msra.mxu0 %v2688
    %3376 = vmatpush.bf16.msra.mxu0 %v2687
    %3377 = vmatpush.bf16.msra.mxu0 %v2686
    %3378 = vmatpush.bf16.msra.mxu0 %v2685
    %3379 = vmatpush.bf16.msra.mxu0 %v2684
    %3380 = vmatpush.bf16.msra.mxu0 %v2683
    %3381 = vmatpush.bf16.msra.mxu0 %v2682
    %3382 = vmatmul.bf16.gmra.mxu0 %v3370
    %v3383 = vpop.f32.mrf.mxu0
    %v3384 = vadd.f32 %v2610, %v3383
    %v3385 = vpop.f32.mrf.mxu0
    %3386 = vdwg.mxu0
    %3387 = vmatpush.bf16.msra.mxu0 %v2697
    %3388 = vmatpush.bf16.msra.mxu0 %v2696
    %3389 = vmatpush.bf16.msra.mxu0 %v2695
    %3390 = vmatpush.bf16.msra.mxu0 %v2694
    %3391 = vmatpush.bf16.msra.mxu0 %v2693
    %3392 = vmatpush.bf16.msra.mxu0 %v2692
    %3393 = vmatpush.bf16.msra.mxu0 %v2691
    %3394 = vmatpush.bf16.msra.mxu0 %v2690
    %3395 = vmatmul.bf16.gmra.mxu0 %v3371
    %v3396 = vpop.f32.mrf.mxu0
    %v3397 = vadd.f32 %v3384, %v3396
    %v3398 = vpop.f32.mrf.mxu0
    %3399 = vdwg.mxu0
    %v3400 = vmax.f32 %v3397, 0.0
    %v3401 = vpack.c.bf16 %v3400, %v3400
    %3402 = vst.msk [vmem:[#allocation3] sm:$0x1] %vm2584, %v1867
    %3403 = vst.msk [vmem:[#allocation3] sm:$0x1] %vm2595, %v3172
    %3404 = vst.msk [vmem:[#allocation3 + $0x1] sm:$0x1] %vm2584, %v2083
    %v3406 = vrot.slane %v2118, 3
    %v3409 = vsel %vm1167, %v2118, %v3406
    %3411 = vrot.lane.b32.xlu0 %v3409, 64
    %v3412 = vpop.permute.xlu0 %3411
    %3414 = vst.msk [vmem:[#allocation3 + $0x1] sm:$0x1] %vm2595, %v3412
    %v3415 = vld [vmem:[#allocation3] sm:$0x3]
    %3417 = vst [vmem:[#allocation1] ss:$9 sm:$0xff] %v3415
    %v3418 = vld [vmem:[#allocation1] sm:$0xff]
    %v3419 = vld [vmem:[#allocation1 + $0x9] sm:$0xff]
    %3422 = vmatpush.bf16.msra.mxu0 %v2689
    %3423 = vmatpush.bf16.msra.mxu0 %v2688
    %3424 = vmatpush.bf16.msra.mxu0 %v2687
    %3425 = vmatpush.bf16.msra.mxu0 %v2686
    %3426 = vmatpush.bf16.msra.mxu0 %v2685
    %3427 = vmatpush.bf16.msra.mxu0 %v2684
    %3428 = vmatpush.bf16.msra.mxu0 %v2683
    %3429 = vmatpush.bf16.msra.mxu0 %v2682
    %3430 = vmatmul.bf16.gmra.mxu0 %v3418
    %v3431 = vpop.f32.mrf.mxu0
    %v3432 = vadd.f32 %v2610, %v3431
    %v3433 = vpop.f32.mrf.mxu0
    %3434 = vdwg.mxu0
    %3435 = vmatpush.bf16.msra.mxu0 %v2697
    %3436 = vmatpush.bf16.msra.mxu0 %v2696
    %3437 = vmatpush.bf16.msra.mxu0 %v2695
    %3438 = vmatpush.bf16.msra.mxu0 %v2694
    %3439 = vmatpush.bf16.msra.mxu0 %v2693
    %3440 = vmatpush.bf16.msra.mxu0 %v2692
    %3441 = vmatpush.bf16.msra.mxu0 %v2691
    %3442 = vmatpush.bf16.msra.mxu0 %v2690
    %3443 = vmatmul.bf16.gmra.mxu0 %v3419
    %v3444 = vpop.f32.mrf.mxu0
    %v3445 = vadd.f32 %v3432, %v3444
    %v3446 = vpop.f32.mrf.mxu0
    %3447 = vdwg.mxu0
    %v3448 = vmax.f32 %v3445, 0.0
    %v3449 = vpack.c.bf16 %v3448, %v3448
    %3450 = vst.msk [vmem:[#allocation3] sm:$0x1] %vm2584, %v1943
    %3451 = vst.msk [vmem:[#allocation3] sm:$0x1] %vm2595, %v3220
    %3452 = vst.msk [vmem:[#allocation3 + $0x1] sm:$0x1] %vm2584, %v2159
    %v3454 = vrot.slane %v2194, 3
    %v3457 = vsel %vm1167, %v2194, %v3454
    %3459 = vrot.lane.b32.xlu0 %v3457, 64
    %v3460 = vpop.permute.xlu0 %3459
    %3462 = vst.msk [vmem:[#allocation3 + $0x1] sm:$0x1] %vm2595, %v3460
    %v3463 = vld [vmem:[#allocation3] sm:$0x3]
    %3465 = vst [vmem:[#allocation1] ss:$9 sm:$0xff] %v3463
    %v3466 = vld [vmem:[#allocation1] sm:$0xff]
    %v3467 = vld [vmem:[#allocation1 + $0x9] sm:$0xff]
    %3470 = vmatpush.bf16.msra.mxu0 %v2689
    %3471 = vmatpush.bf16.msra.mxu0 %v2688
    %3472 = vmatpush.bf16.msra.mxu0 %v2687
    %3473 = vmatpush.bf16.msra.mxu0 %v2686
    %3474 = vmatpush.bf16.msra.mxu0 %v2685
    %3475 = vmatpush.bf16.msra.mxu0 %v2684
    %3476 = vmatpush.bf16.msra.mxu0 %v2683
    %3477 = vmatpush.bf16.msra.mxu0 %v2682
    %3478 = vmatmul.bf16.gmra.mxu0 %v3466
    %v3479 = vpop.f32.mrf.mxu0
    %v3480 = vadd.f32 %v2610, %v3479
    %v3481 = vpop.f32.mrf.mxu0
    %3482 = vdwg.mxu0
    %3483 = vmatpush.bf16.msra.mxu0 %v2697
    %3484 = vmatpush.bf16.msra.mxu0 %v2696
    %3485 = vmatpush.bf16.msra.mxu0 %v2695
    %3486 = vmatpush.bf16.msra.mxu0 %v2694
    %3487 = vmatpush.bf16.msra.mxu0 %v2693
    %3488 = vmatpush.bf16.msra.mxu0 %v2692
    %3489 = vmatpush.bf16.msra.mxu0 %v2691
    %3490 = vmatpush.bf16.msra.mxu0 %v2690
    %3491 = vmatmul.bf16.gmra.mxu0 %v3467
    %v3492 = vpop.f32.mrf.mxu0
    %v3493 = vadd.f32 %v3480, %v3492
    %v3494 = vpop.f32.mrf.mxu0
    %3495 = vdwg.mxu0
    %v3496 = vmax.f32 %v3493, 0.0
    %v3497 = vpack.c.bf16 %v3496, %v3496
    %3498 = vst.msk [vmem:[#allocation3] sm:$0x1] %vm2584, %v1978
    %3499 = vst.msk [vmem:[#allocation3] sm:$0x1] %vm2595, %v3268
    %3500 = vst.msk [vmem:[#allocation3 + $0x1] sm:$0x1] %vm2584, %v2194
    %v3502 = vrot.slane %v2229, 3
    %v3505 = vsel %vm1167, %v2229, %v3502
    %3507 = vrot.lane.b32.xlu0 %v3505, 64
    %v3508 = vpop.permute.xlu0 %3507
    %3510 = vst.msk [vmem:[#allocation3 + $0x1] sm:$0x1] %vm2595, %v3508
    %v3511 = vld [vmem:[#allocation3] sm:$0x3]
    %3513 = vst [vmem:[#allocation1] ss:$9 sm:$0xff] %v3511
    %v3514 = vld [vmem:[#allocation1] sm:$0xff]
    %v3515 = vld [vmem:[#allocation1 + $0x9] sm:$0xff]
    %3518 = vmatpush.bf16.msra.mxu0 %v2689
    %3519 = vmatpush.bf16.msra.mxu0 %v2688
    %3520 = vmatpush.bf16.msra.mxu0 %v2687
    %3521 = vmatpush.bf16.msra.mxu0 %v2686
    %3522 = vmatpush.bf16.msra.mxu0 %v2685
    %3523 = vmatpush.bf16.msra.mxu0 %v2684
    %3524 = vmatpush.bf16.msra.mxu0 %v2683
    %3525 = vmatpush.bf16.msra.mxu0 %v2682
    %3526 = vmatmul.bf16.gmra.mxu0 %v3514
    %v3527 = vpop.f32.mrf.mxu0
    %v3528 = vadd.f32 %v2610, %v3527
    %v3529 = vpop.f32.mrf.mxu0
    %3530 = vdwg.mxu0
    %3531 = vmatpush.bf16.msra.mxu0 %v2697
    %3532 = vmatpush.bf16.msra.mxu0 %v2696
    %3533 = vmatpush.bf16.msra.mxu0 %v2695
    %3534 = vmatpush.bf16.msra.mxu0 %v2694
    %3535 = vmatpush.bf16.msra.mxu0 %v2693
    %3536 = vmatpush.bf16.msra.mxu0 %v2692
    %3537 = vmatpush.bf16.msra.mxu0 %v2691
    %3538 = vmatpush.bf16.msra.mxu0 %v2690
    %3539 = vmatmul.bf16.gmra.mxu0 %v3515
    %v3540 = vpop.f32.mrf.mxu0
    %v3541 = vadd.f32 %v3528, %v3540
    %v3542 = vpop.f32.mrf.mxu0
    %3543 = vdwg.mxu0
    %v3544 = vmax.f32 %v3541, 0.0
    %v3545 = vpack.c.bf16 %v3544, %v3544
    %3546 = vst.msk [vmem:[#allocation3] sm:$0x1] %vm2584, %v2013
    %3547 = vst.msk [vmem:[#allocation3] sm:$0x1] %vm2595, %v3316
    %3548 = vst.msk [vmem:[#allocation3 + $0x1] sm:$0x1] %vm2584, %v2229
    %v3550 = vrot.slane %v2264, 3
    %v3553 = vsel %vm1167, %v2264, %v3550
    %3555 = vrot.lane.b32.xlu0 %v3553, 64
    %v3556 = vpop.permute.xlu0 %3555
    %3558 = vst.msk [vmem:[#allocation3 + $0x1] sm:$0x1] %vm2595, %v3556
    %v3559 = vld [vmem:[#allocation3] sm:$0x3]
    %3561 = vst [vmem:[#allocation1] ss:$9 sm:$0xff] %v3559
    %v3562 = vld [vmem:[#allocation1] sm:$0xff]
    %v3563 = vld [vmem:[#allocation1 + $0x9] sm:$0xff]
    %3566 = vmatpush.bf16.msra.mxu0 %v2689
    %3567 = vmatpush.bf16.msra.mxu0 %v2688
    %3568 = vmatpush.bf16.msra.mxu0 %v2687
    %3569 = vmatpush.bf16.msra.mxu0 %v2686
    %3570 = vmatpush.bf16.msra.mxu0 %v2685
    %3571 = vmatpush.bf16.msra.mxu0 %v2684
    %3572 = vmatpush.bf16.msra.mxu0 %v2683
    %3573 = vmatpush.bf16.msra.mxu0 %v2682
    %3574 = vmatmul.bf16.gmra.mxu0 %v3562
    %v3575 = vpop.f32.mrf.mxu0
    %v3576 = vadd.f32 %v2610, %v3575
    %v3577 = vpop.f32.mrf.mxu0
    %3578 = vdwg.mxu0
    %3579 = vmatpush.bf16.msra.mxu0 %v2697
    %3580 = vmatpush.bf16.msra.mxu0 %v2696
    %3581 = vmatpush.bf16.msra.mxu0 %v2695
    %3582 = vmatpush.bf16.msra.mxu0 %v2694
    %3583 = vmatpush.bf16.msra.mxu0 %v2693
    %3584 = vmatpush.bf16.msra.mxu0 %v2692
    %3585 = vmatpush.bf16.msra.mxu0 %v2691
    %3586 = vmatpush.bf16.msra.mxu0 %v2690
    %3587 = vmatmul.bf16.gmra.mxu0 %v3563
    %v3588 = vpop.f32.mrf.mxu0
    %v3589 = vadd.f32 %v3576, %v3588
    %v3590 = vpop.f32.mrf.mxu0
    %3591 = vdwg.mxu0
    %v3592 = vmax.f32 %v3589, 0.0
    %v3593 = vpack.c.bf16 %v3592, %v3592
    %3594 = vst.msk [vmem:[#allocation3] sm:$0x1] %vm2584, %v2048
    %3595 = vst.msk [vmem:[#allocation3] sm:$0x1] %vm2595, %v3364
    %3596 = vst.msk [vmem:[#allocation3 + $0x1] sm:$0x1] %vm2584, %v2264
    %v3598 = vrot.slane %v2299, 3
    %v3601 = vsel %vm1167, %v2299, %v3598
    %3603 = vrot.lane.b32.xlu0 %v3601, 64
    %v3604 = vpop.permute.xlu0 %3603
    %3606 = vst.msk [vmem:[#allocation3 + $0x1] sm:$0x1] %vm2595, %v3604
    %v3607 = vld [vmem:[#allocation3] sm:$0x3]
    %3609 = vst [vmem:[#allocation1] ss:$9 sm:$0xff] %v3607
    %v3610 = vld [vmem:[#allocation1] sm:$0xff]
    %v3611 = vld [vmem:[#allocation1 + $0x9] sm:$0xff]
    %3614 = vmatpush.bf16.msra.mxu0 %v2689
    %3615 = vmatpush.bf16.msra.mxu0 %v2688
    %3616 = vmatpush.bf16.msra.mxu0 %v2687
    %3617 = vmatpush.bf16.msra.mxu0 %v2686
    %3618 = vmatpush.bf16.msra.mxu0 %v2685
    %3619 = vmatpush.bf16.msra.mxu0 %v2684
    %3620 = vmatpush.bf16.msra.mxu0 %v2683
    %3621 = vmatpush.bf16.msra.mxu0 %v2682
    %3622 = vmatmul.bf16.gmra.mxu0 %v3610
    %v3623 = vpop.f32.mrf.mxu0
    %v3624 = vadd.f32 %v2610, %v3623
    %v3625 = vpop.f32.mrf.mxu0
    %3626 = vdwg.mxu0
    %3627 = vmatpush.bf16.msra.mxu0 %v2697
    %3628 = vmatpush.bf16.msra.mxu0 %v2696
    %3629 = vmatpush.bf16.msra.mxu0 %v2695
    %3630 = vmatpush.bf16.msra.mxu0 %v2694
    %3631 = vmatpush.bf16.msra.mxu0 %v2693
    %3632 = vmatpush.bf16.msra.mxu0 %v2692
    %3633 = vmatpush.bf16.msra.mxu0 %v2691
    %3634 = vmatpush.bf16.msra.mxu0 %v2690
    %3635 = vmatmul.bf16.gmra.mxu0 %v3611
    %v3636 = vpop.f32.mrf.mxu0
    %v3637 = vadd.f32 %v3624, %v3636
    %v3638 = vpop.f32.mrf.mxu0
    %3639 = vdwg.mxu0
    %v3640 = vmax.f32 %v3637, 0.0
    %v3641 = vpack.c.bf16 %v3640, %v3640
    %3642 = vst.msk [vmem:[#allocation3] sm:$0x1] %vm2584, %v2083
    %3643 = vst.msk [vmem:[#allocation3] sm:$0x1] %vm2595, %v3412
    %3644 = vst.msk [vmem:[#allocation3 + $0x1] sm:$0x1] %vm2584, %v2299
    %v3646 = vrot.slane %v2334, 3
    %v3649 = vsel %vm1167, %v2334, %v3646
    %3651 = vrot.lane.b32.xlu0 %v3649, 64
    %v3652 = vpop.permute.xlu0 %3651
    %3654 = vst.msk [vmem:[#allocation3 + $0x1] sm:$0x1] %vm2595, %v3652
    %v3655 = vld [vmem:[#allocation3] sm:$0x3]
    %3657 = vst [vmem:[#allocation1] ss:$9 sm:$0xff] %v3655
    %v3658 = vld [vmem:[#allocation1] sm:$0xff]
    %v3659 = vld [vmem:[#allocation1 + $0x9] sm:$0xff]
    %3662 = vmatpush.bf16.msra.mxu0 %v2689
    %3663 = vmatpush.bf16.msra.mxu0 %v2688
    %3664 = vmatpush.bf16.msra.mxu0 %v2687
    %3665 = vmatpush.bf16.msra.mxu0 %v2686
    %3666 = vmatpush.bf16.msra.mxu0 %v2685
    %3667 = vmatpush.bf16.msra.mxu0 %v2684
    %3668 = vmatpush.bf16.msra.mxu0 %v2683
    %3669 = vmatpush.bf16.msra.mxu0 %v2682
    %3670 = vmatmul.bf16.gmra.mxu0 %v3658
    %v3671 = vpop.f32.mrf.mxu0
    %v3672 = vadd.f32 %v2610, %v3671
    %v3673 = vpop.f32.mrf.mxu0
    %3674 = vdwg.mxu0
    %3675 = vmatpush.bf16.msra.mxu0 %v2697
    %3676 = vmatpush.bf16.msra.mxu0 %v2696
    %3677 = vmatpush.bf16.msra.mxu0 %v2695
    %3678 = vmatpush.bf16.msra.mxu0 %v2694
    %3679 = vmatpush.bf16.msra.mxu0 %v2693
    %3680 = vmatpush.bf16.msra.mxu0 %v2692
    %3681 = vmatpush.bf16.msra.mxu0 %v2691
    %3682 = vmatpush.bf16.msra.mxu0 %v2690
    %3683 = vmatmul.bf16.gmra.mxu0 %v3659
    %v3684 = vpop.f32.mrf.mxu0
    %v3685 = vadd.f32 %v3672, %v3684
    %v3686 = vpop.f32.mrf.mxu0
    %3687 = vdwg.mxu0
    %v3688 = vmax.f32 %v3685, 0.0
    %v3689 = vpack.c.bf16 %v3688, %v3688
    %3690 = vst.msk [vmem:[#allocation3] sm:$0x1] %vm2584, %v2159
    %3691 = vst.msk [vmem:[#allocation3] sm:$0x1] %vm2595, %v3460
    %3692 = vst.msk [vmem:[#allocation3 + $0x1] sm:$0x1] %vm2584, %v2375
    %v3694 = vrot.slane %v2410, 3
    %v3697 = vsel %vm1167, %v2410, %v3694
    %3699 = vrot.lane.b32.xlu0 %v3697, 64
    %v3700 = vpop.permute.xlu0 %3699
    %3702 = vst.msk [vmem:[#allocation3 + $0x1] sm:$0x1] %vm2595, %v3700
    %v3703 = vld [vmem:[#allocation3] sm:$0x3]
    %3705 = vst [vmem:[#allocation1] ss:$9 sm:$0xff] %v3703
    %v3706 = vld [vmem:[#allocation1] sm:$0xff]
    %v3707 = vld [vmem:[#allocation1 + $0x9] sm:$0xff]
    %3710 = vmatpush.bf16.msra.mxu0 %v2689
    %3711 = vmatpush.bf16.msra.mxu0 %v2688
    %3712 = vmatpush.bf16.msra.mxu0 %v2687
    %3713 = vmatpush.bf16.msra.mxu0 %v2686
    %3714 = vmatpush.bf16.msra.mxu0 %v2685
    %3715 = vmatpush.bf16.msra.mxu0 %v2684
    %3716 = vmatpush.bf16.msra.mxu0 %v2683
    %3717 = vmatpush.bf16.msra.mxu0 %v2682
    %3718 = vmatmul.bf16.gmra.mxu0 %v3706
    %v3719 = vpop.f32.mrf.mxu0
    %v3720 = vadd.f32 %v2610, %v3719
    %v3721 = vpop.f32.mrf.mxu0
    %3722 = vdwg.mxu0
    %3723 = vmatpush.bf16.msra.mxu0 %v2697
    %3724 = vmatpush.bf16.msra.mxu0 %v2696
    %3725 = vmatpush.bf16.msra.mxu0 %v2695
    %3726 = vmatpush.bf16.msra.mxu0 %v2694
    %3727 = vmatpush.bf16.msra.mxu0 %v2693
    %3728 = vmatpush.bf16.msra.mxu0 %v2692
    %3729 = vmatpush.bf16.msra.mxu0 %v2691
    %3730 = vmatpush.bf16.msra.mxu0 %v2690
    %3731 = vmatmul.bf16.gmra.mxu0 %v3707
    %v3732 = vpop.f32.mrf.mxu0
    %v3733 = vadd.f32 %v3720, %v3732
    %v3734 = vpop.f32.mrf.mxu0
    %3735 = vdwg.mxu0
    %v3736 = vmax.f32 %v3733, 0.0
    %v3737 = vpack.c.bf16 %v3736, %v3736
    %3738 = vst.msk [vmem:[#allocation3] sm:$0x1] %vm2584, %v2194
    %3739 = vst.msk [vmem:[#allocation3] sm:$0x1] %vm2595, %v3508
    %3740 = vst.msk [vmem:[#allocation3 + $0x1] sm:$0x1] %vm2584, %v2410
    %v3742 = vrot.slane %v2445, 3
    %v3745 = vsel %vm1167, %v2445, %v3742
    %3747 = vrot.lane.b32.xlu0 %v3745, 64
    %v3748 = vpop.permute.xlu0 %3747
    %3750 = vst.msk [vmem:[#allocation3 + $0x1] sm:$0x1] %vm2595, %v3748
    %v3751 = vld [vmem:[#allocation3] sm:$0x3]
    %3753 = vst [vmem:[#allocation1] ss:$9 sm:$0xff] %v3751
    %v3754 = vld [vmem:[#allocation1] sm:$0xff]
    %v3755 = vld [vmem:[#allocation1 + $0x9] sm:$0xff]
    %3758 = vmatpush.bf16.msra.mxu0 %v2689
    %3759 = vmatpush.bf16.msra.mxu0 %v2688
    %3760 = vmatpush.bf16.msra.mxu0 %v2687
    %3761 = vmatpush.bf16.msra.mxu0 %v2686
    %3762 = vmatpush.bf16.msra.mxu0 %v2685
    %3763 = vmatpush.bf16.msra.mxu0 %v2684
    %3764 = vmatpush.bf16.msra.mxu0 %v2683
    %3765 = vmatpush.bf16.msra.mxu0 %v2682
    %3766 = vmatmul.bf16.gmra.mxu0 %v3754
    %v3767 = vpop.f32.mrf.mxu0
    %v3768 = vadd.f32 %v2610, %v3767
    %v3769 = vpop.f32.mrf.mxu0
    %3770 = vdwg.mxu0
    %3771 = vmatpush.bf16.msra.mxu0 %v2697
    %3772 = vmatpush.bf16.msra.mxu0 %v2696
    %3773 = vmatpush.bf16.msra.mxu0 %v2695
    %3774 = vmatpush.bf16.msra.mxu0 %v2694
    %3775 = vmatpush.bf16.msra.mxu0 %v2693
    %3776 = vmatpush.bf16.msra.mxu0 %v2692
    %3777 = vmatpush.bf16.msra.mxu0 %v2691
    %3778 = vmatpush.bf16.msra.mxu0 %v2690
    %3779 = vmatmul.bf16.gmra.mxu0 %v3755
    %v3780 = vpop.f32.mrf.mxu0
    %v3781 = vadd.f32 %v3768, %v3780
    %v3782 = vpop.f32.mrf.mxu0
    %3783 = vdwg.mxu0
    %v3784 = vmax.f32 %v3781, 0.0
    %v3785 = vpack.c.bf16 %v3784, %v3784
    %3786 = vst.msk [vmem:[#allocation3] sm:$0x1] %vm2584, %v2229
    %3787 = vst.msk [vmem:[#allocation3] sm:$0x1] %vm2595, %v3556
    %3788 = vst.msk [vmem:[#allocation3 + $0x1] sm:$0x1] %vm2584, %v2445
    %v3790 = vrot.slane %v2480, 3
    %v3793 = vsel %vm1167, %v2480, %v3790
    %3795 = vrot.lane.b32.xlu0 %v3793, 64
    %v3796 = vpop.permute.xlu0 %3795
    %3798 = vst.msk [vmem:[#allocation3 + $0x1] sm:$0x1] %vm2595, %v3796
    %v3799 = vld [vmem:[#allocation3] sm:$0x3]
    %3801 = vst [vmem:[#allocation1] ss:$9 sm:$0xff] %v3799
    %v3802 = vld [vmem:[#allocation1] sm:$0xff]
    %v3803 = vld [vmem:[#allocation1 + $0x9] sm:$0xff]
    %3806 = vmatpush.bf16.msra.mxu0 %v2689
    %3807 = vmatpush.bf16.msra.mxu0 %v2688
    %3808 = vmatpush.bf16.msra.mxu0 %v2687
    %3809 = vmatpush.bf16.msra.mxu0 %v2686
    %3810 = vmatpush.bf16.msra.mxu0 %v2685
    %3811 = vmatpush.bf16.msra.mxu0 %v2684
    %3812 = vmatpush.bf16.msra.mxu0 %v2683
    %3813 = vmatpush.bf16.msra.mxu0 %v2682
    %3814 = vmatmul.bf16.gmra.mxu0 %v3802
    %v3815 = vpop.f32.mrf.mxu0
    %v3816 = vadd.f32 %v2610, %v3815
    %v3817 = vpop.f32.mrf.mxu0
    %3818 = vdwg.mxu0
    %3819 = vmatpush.bf16.msra.mxu0 %v2697
    %3820 = vmatpush.bf16.msra.mxu0 %v2696
    %3821 = vmatpush.bf16.msra.mxu0 %v2695
    %3822 = vmatpush.bf16.msra.mxu0 %v2694
    %3823 = vmatpush.bf16.msra.mxu0 %v2693
    %3824 = vmatpush.bf16.msra.mxu0 %v2692
    %3825 = vmatpush.bf16.msra.mxu0 %v2691
    %3826 = vmatpush.bf16.msra.mxu0 %v2690
    %3827 = vmatmul.bf16.gmra.mxu0 %v3803
    %v3828 = vpop.f32.mrf.mxu0
    %v3829 = vadd.f32 %v3816, %v3828
    %v3830 = vpop.f32.mrf.mxu0
    %3831 = vdwg.mxu0
    %v3832 = vmax.f32 %v3829, 0.0
    %v3833 = vpack.c.bf16 %v3832, %v3832
    %3834 = vst.msk [vmem:[#allocation3] sm:$0x1] %vm2584, %v2264
    %3835 = vst.msk [vmem:[#allocation3] sm:$0x1] %vm2595, %v3604
    %3836 = vst.msk [vmem:[#allocation3 + $0x1] sm:$0x1] %vm2584, %v2480
    %v3838 = vrot.slane %v2515, 3
    %v3841 = vsel %vm1167, %v2515, %v3838
    %3843 = vrot.lane.b32.xlu0 %v3841, 64
    %v3844 = vpop.permute.xlu0 %3843
    %3846 = vst.msk [vmem:[#allocation3 + $0x1] sm:$0x1] %vm2595, %v3844
    %v3847 = vld [vmem:[#allocation3] sm:$0x3]
    %3849 = vst [vmem:[#allocation1] ss:$9 sm:$0xff] %v3847
    %v3850 = vld [vmem:[#allocation1] sm:$0xff]
    %v3851 = vld [vmem:[#allocation1 + $0x9] sm:$0xff]
    %3854 = vmatpush.bf16.msra.mxu0 %v2689
    %3855 = vmatpush.bf16.msra.mxu0 %v2688
    %3856 = vmatpush.bf16.msra.mxu0 %v2687
    %3857 = vmatpush.bf16.msra.mxu0 %v2686
    %3858 = vmatpush.bf16.msra.mxu0 %v2685
    %3859 = vmatpush.bf16.msra.mxu0 %v2684
    %3860 = vmatpush.bf16.msra.mxu0 %v2683
    %3861 = vmatpush.bf16.msra.mxu0 %v2682
    %3862 = vmatmul.bf16.gmra.mxu0 %v3850
    %v3863 = vpop.f32.mrf.mxu0
    %v3864 = vadd.f32 %v2610, %v3863
    %v3865 = vpop.f32.mrf.mxu0
    %3866 = vdwg.mxu0
    %3867 = vmatpush.bf16.msra.mxu0 %v2697
    %3868 = vmatpush.bf16.msra.mxu0 %v2696
    %3869 = vmatpush.bf16.msra.mxu0 %v2695
    %3870 = vmatpush.bf16.msra.mxu0 %v2694
    %3871 = vmatpush.bf16.msra.mxu0 %v2693
    %3872 = vmatpush.bf16.msra.mxu0 %v2692
    %3873 = vmatpush.bf16.msra.mxu0 %v2691
    %3874 = vmatpush.bf16.msra.mxu0 %v2690
    %3875 = vmatmul.bf16.gmra.mxu0 %v3851
    %v3876 = vpop.f32.mrf.mxu0
    %v3877 = vadd.f32 %v3864, %v3876
    %v3878 = vpop.f32.mrf.mxu0
    %3879 = vdwg.mxu0
    %v3880 = vmax.f32 %v3877, 0.0
    %v3881 = vpack.c.bf16 %v3880, %v3880
    %3882 = vst.msk [vmem:[#allocation3] sm:$0x1] %vm2584, %v2299
    %3883 = vst.msk [vmem:[#allocation3] sm:$0x1] %vm2595, %v3652
    %3884 = vst.msk [vmem:[#allocation3 + $0x1] sm:$0x1] %vm2584, %v2515
    %v3886 = vrot.slane %v2550, 3
    %v3889 = vsel %vm1167, %v2550, %v3886
    %3891 = vrot.lane.b32.xlu0 %v3889, 64
    %v3892 = vpop.permute.xlu0 %3891
    %3894 = vst.msk [vmem:[#allocation3 + $0x1] sm:$0x1] %vm2595, %v3892
    %v3895 = vld [vmem:[#allocation3] sm:$0x3]
    %3897 = vst [vmem:[#allocation1] ss:$9 sm:$0xff] %v3895
    %v3898 = vld [vmem:[#allocation1] sm:$0xff]
    %v3899 = vld [vmem:[#allocation1 + $0x9] sm:$0xff]
    %3902 = vmatpush.bf16.msra.mxu0 %v2689
    %3903 = vmatpush.bf16.msra.mxu0 %v2688
    %3904 = vmatpush.bf16.msra.mxu0 %v2687
    %3905 = vmatpush.bf16.msra.mxu0 %v2686
    %3906 = vmatpush.bf16.msra.mxu0 %v2685
    %3907 = vmatpush.bf16.msra.mxu0 %v2684
    %3908 = vmatpush.bf16.msra.mxu0 %v2683
    %3909 = vmatpush.bf16.msra.mxu0 %v2682
    %3910 = vmatmul.bf16.gmra.mxu0 %v3898
    %v3911 = vpop.f32.mrf.mxu0
    %v3912 = vadd.f32 %v2610, %v3911
    %v3913 = vpop.f32.mrf.mxu0
    %3914 = vdwg.mxu0
    %3915 = vmatpush.bf16.msra.mxu0 %v2697
    %3916 = vmatpush.bf16.msra.mxu0 %v2696
    %3917 = vmatpush.bf16.msra.mxu0 %v2695
    %3918 = vmatpush.bf16.msra.mxu0 %v2694
    %3919 = vmatpush.bf16.msra.mxu0 %v2693
    %3920 = vmatpush.bf16.msra.mxu0 %v2692
    %3921 = vmatpush.bf16.msra.mxu0 %v2691
    %3922 = vmatpush.bf16.msra.mxu0 %v2690
    %3923 = vmatmul.bf16.gmra.mxu0 %v3899
    %v3924 = vpop.f32.mrf.mxu0
    %v3925 = vadd.f32 %v3912, %v3924
    %v3926 = vpop.f32.mrf.mxu0
    %3927 = vdwg.mxu0
    %v3928 = vmax.f32 %v3925, 0.0
    %v3929 = vpack.c.bf16 %v3928, %v3928
    %3930 = vst.msk [vmem:[#allocation4] sm:$0x1] %vm2584, %v2741
    %v3932 = vrot.slane %v2798, 3
    %v3935 = vsel %vm1167, %v2798, %v3932
    %3937 = vrot.lane.b32.xlu0 %v3935, 64
    %v3938 = vpop.permute.xlu0 %3937
    %3940 = vst.msk [vmem:[#allocation4] sm:$0x1] %vm2595, %v3938
    %3941 = vst.msk [vmem:[#allocation4 + $0x1] sm:$0x1] %vm2584, %v2855
    %v3943 = vrot.slane %v2912, 3
    %v3946 = vsel %vm1167, %v2912, %v3943
    %3948 = vrot.lane.b32.xlu0 %v3946, 64
    %v3949 = vpop.permute.xlu0 %3948
    %3951 = vst.msk [vmem:[#allocation4 + $0x1] sm:$0x1] %vm2595, %v3949
    %3952 = vst.msk [vmem:[#allocation4 + $0x2] sm:$0x1] %vm2584, %v2969
    %v3954 = vrot.slane %v3017, 3
    %v3957 = vsel %vm1167, %v3017, %v3954
    %3959 = vrot.lane.b32.xlu0 %v3957, 64
    %v3960 = vpop.permute.xlu0 %3959
    %3962 = vst.msk [vmem:[#allocation4 + $0x2] sm:$0x1] %vm2595, %v3960
    %3963 = vst.msk [vmem:[#allocation4 + $0x3] sm:$0x1] %vm2584, %v3065
    %v3965 = vrot.slane %v3113, 3
    %v3968 = vsel %vm1167, %v3113, %v3965
    %3970 = vrot.lane.b32.xlu0 %v3968, 64
    %v3971 = vpop.permute.xlu0 %3970
    %3973 = vst.msk [vmem:[#allocation4 + $0x3] sm:$0x1] %vm2595, %v3971
    %3974 = vst.msk [vmem:[#allocation4 + $0x4] sm:$0x1] %vm2584, %v3161
    %v3976 = vrot.slane %v3209, 3
    %v3979 = vsel %vm1167, %v3209, %v3976
    %3981 = vrot.lane.b32.xlu0 %v3979, 64
    %v3982 = vpop.permute.xlu0 %3981
    %3984 = vst.msk [vmem:[#allocation4 + $0x4] sm:$0x1] %vm2595, %v3982
    %3985 = vst.msk [vmem:[#allocation4 + $0x5] sm:$0x1] %vm2584, %v3257
    %v3987 = vrot.slane %v3305, 3
    %v3990 = vsel %vm1167, %v3305, %v3987
    %3992 = vrot.lane.b32.xlu0 %v3990, 64
    %v3993 = vpop.permute.xlu0 %3992
    %3995 = vst.msk [vmem:[#allocation4 + $0x5] sm:$0x1] %vm2595, %v3993
    %3996 = vst.msk [vmem:[#allocation4 + $0x6] sm:$0x1] %vm2584, %v3353
    %v3998 = vrot.slane %v3401, 3
    %v4001 = vsel %vm1167, %v3401, %v3998
    %4003 = vrot.lane.b32.xlu0 %v4001, 64
    %v4004 = vpop.permute.xlu0 %4003
    %4006 = vst.msk [vmem:[#allocation4 + $0x6] sm:$0x1] %vm2595, %v4004
    %4007 = vst.msk [vmem:[#allocation4 + $0x7] sm:$0x1] %vm2584, %v3449
    %v4009 = vrot.slane %v3497, 3
    %v4012 = vsel %vm1167, %v3497, %v4009
    %4014 = vrot.lane.b32.xlu0 %v4012, 64
    %v4015 = vpop.permute.xlu0 %4014
    %4017 = vst.msk [vmem:[#allocation4 + $0x7] sm:$0x1] %vm2595, %v4015
    %4018 = vst.msk [vmem:[#allocation4 + $0x8] sm:$0x1] %vm2584, %v3545
    %v4020 = vrot.slane %v3593, 3
    %v4023 = vsel %vm1167, %v3593, %v4020
    %4025 = vrot.lane.b32.xlu0 %v4023, 64
    %v4026 = vpop.permute.xlu0 %4025
    %4028 = vst.msk [vmem:[#allocation4 + $0x8] sm:$0x1] %vm2595, %v4026
    %4029 = vst.msk [vmem:[#allocation4 + $0x9] sm:$0x1] %vm2584, %v3641
    %v4031 = vrot.slane %v3689, 3
    %v4034 = vsel %vm1167, %v3689, %v4031
    %4036 = vrot.lane.b32.xlu0 %v4034, 64
    %v4037 = vpop.permute.xlu0 %4036
    %4039 = vst.msk [vmem:[#allocation4 + $0x9] sm:$0x1] %vm2595, %v4037
    %4040 = vst.msk [vmem:[#allocation4 + $0xa] sm:$0x1] %vm2584, %v3737
    %v4042 = vrot.slane %v3785, 3
    %v4045 = vsel %vm1167, %v3785, %v4042
    %4047 = vrot.lane.b32.xlu0 %v4045, 64
    %v4048 = vpop.permute.xlu0 %4047
    %4050 = vst.msk [vmem:[#allocation4 + $0xa] sm:$0x1] %vm2595, %v4048
    %4051 = vst.msk [vmem:[#allocation4 + $0xb] sm:$0x1] %vm2584, %v3833
    %v4053 = vrot.slane %v3881, 3
    %v4056 = vsel %vm1167, %v3881, %v4053
    %4058 = vrot.lane.b32.xlu0 %v4056, 64
    %v4059 = vpop.permute.xlu0 %4058
    %4061 = vst.msk [vmem:[#allocation4 + $0xb] sm:$0x1] %vm2595, %v4059
    %4062 = vst.msk [vmem:[#allocation4 + $0xc] sm:$0x1] %vm2584, %v3929
    %v4063 = vld [vmem:[#allocation4] sm:$0xff]
    %v4064 = vld [vmem:[#allocation4 + $0x8] sm:$0x1f]
    %v4065 = vld [vmem:[#allocation10] sm:$0xff]
    %v4066 = vld [vmem:[#allocation10 + $0x8] sm:$0xff]
    %v4067 = vld [vmem:[#allocation10 + $0x10] sm:$0xff]
    %v4068 = vld [vmem:[#allocation10 + $0x18] sm:$0xff]
    %v4069 = vld [vmem:[#allocation10 + $0x20] sm:$0xff]
    %v4070 = vld [vmem:[#allocation10 + $0x28] sm:$0xff]
    %v4071 = vld [vmem:[#allocation10 + $0x30] sm:$0xff]
    %v4072 = vld [vmem:[#allocation10 + $0x38] sm:$0xff]
    %v4073 = vld [vmem:[#allocation10 + $0x40] sm:$0xff]
    %v4074 = vld [vmem:[#allocation10 + $0x48] sm:$0xff]
    %v4075 = vld [vmem:[#allocation10 + $0x50] sm:$0xff]
    %v4076 = vld [vmem:[#allocation10 + $0x58] sm:$0xff]
    %v4077 = vld [vmem:[#allocation10 + $0x60] sm:$0xff]
    %v4078 = vld [vmem:[#allocation10 + $0x68] sm:$0xff]
    %v4079 = vld [vmem:[#allocation10 + $0x70] sm:$0xff]
    %v4080 = vld [vmem:[#allocation10 + $0x78] sm:$0xff]
    %v4081 = vld [vmem:[#allocation10 + $0x80] sm:$0xff]
    %v4082 = vld [vmem:[#allocation10 + $0x88] sm:$0xff]
    %v4083 = vld [vmem:[#allocation10 + $0x90] sm:$0xff]
    %v4084 = vld [vmem:[#allocation10 + $0x98] sm:$0xff]
    %v4085 = vld [vmem:[#allocation10 + $0xa0] sm:$0xff]
    %v4086 = vld [vmem:[#allocation10 + $0xa8] sm:$0xff]
    %v4087 = vld [vmem:[#allocation10 + $0xb0] sm:$0xff]
    %v4088 = vld [vmem:[#allocation10 + $0xb8] sm:$0xff]
    %v4089 = vld [vmem:[#allocation10 + $0xc0] sm:$0xff]
    %v4090 = vld [vmem:[#allocation10 + $0xc8] sm:$0xff]
    %v4091 = vld [vmem:[#allocation10 + $0xd0] sm:$0xff]
    %v4092 = vld [vmem:[#allocation10 + $0xd8] sm:$0xff]
    %v4093 = vld [vmem:[#allocation10 + $0xe0] sm:$0xff]
    %v4094 = vld [vmem:[#allocation10 + $0xe8] sm:$0xff]
    %v4095 = vld [vmem:[#allocation10 + $0xf0] sm:$0xff]
    %v4096 = vld [vmem:[#allocation10 + $0xf8] sm:$0xff]
    %v4097 = vld [vmem:[#allocation10 + $0x100] sm:$0xff]
    %v4098 = vld [vmem:[#allocation10 + $0x108] sm:$0xff]
    %v4099 = vld [vmem:[#allocation10 + $0x110] sm:$0xff]
    %v4100 = vld [vmem:[#allocation10 + $0x118] sm:$0xff]
    %v4101 = vld [vmem:[#allocation10 + $0x120] sm:$0xff]
    %v4102 = vld [vmem:[#allocation10 + $0x128] sm:$0xff]
    %v4103 = vld [vmem:[#allocation10 + $0x130] sm:$0xff]
    %v4104 = vld [vmem:[#allocation10 + $0x138] sm:$0xff]
    %v4105 = vld [vmem:[#allocation10 + $0x140] sm:$0xff]
    %v4106 = vld [vmem:[#allocation10 + $0x148] sm:$0xff]
    %v4107 = vld [vmem:[#allocation10 + $0x150] sm:$0xff]
    %v4108 = vld [vmem:[#allocation10 + $0x158] sm:$0xff]
    %v4109 = vld [vmem:[#allocation10 + $0x160] sm:$0xff]
    %v4110 = vld [vmem:[#allocation10 + $0x168] sm:$0xff]
    %v4111 = vld [vmem:[#allocation10 + $0x170] sm:$0xff]
    %v4112 = vld [vmem:[#allocation10 + $0x178] sm:$0xff]
    %v4113 = vld [vmem:[#allocation10 + $0x180] sm:$0xff]
    %v4114 = vld [vmem:[#allocation10 + $0x188] sm:$0xff]
    %v4115 = vld [vmem:[#allocation10 + $0x190] sm:$0xff]
    %v4116 = vld [vmem:[#allocation10 + $0x198] sm:$0xff]
    %v4117 = vld [vmem:[#allocation10 + $0x1a0] sm:$0xff]
    %v4118 = vld [vmem:[#allocation10 + $0x1a8] sm:$0xff]
    %v4119 = vld [vmem:[#allocation10 + $0x1b0] sm:$0xff]
    %v4120 = vld [vmem:[#allocation10 + $0x1b8] sm:$0xff]
    %v4121 = vld [vmem:[#allocation10 + $0x1c0] sm:$0xff]
    %v4122 = vld [vmem:[#allocation10 + $0x1c8] sm:$0xff]
    %v4123 = vld [vmem:[#allocation10 + $0x1d0] sm:$0xff]
    %v4124 = vld [vmem:[#allocation10 + $0x1d8] sm:$0xff]
    %v4125 = vld [vmem:[#allocation10 + $0x1e0] sm:$0xff]
    %v4126 = vld [vmem:[#allocation10 + $0x1e8] sm:$0xff]
    %v4127 = vld [vmem:[#allocation10 + $0x1f0] sm:$0xff]
    %v4128 = vld [vmem:[#allocation10 + $0x1f8] sm:$0xff]
    %v4129 = vld [vmem:[#allocation10 + $0x200] sm:$0xff]
    %v4130 = vld [vmem:[#allocation10 + $0x208] sm:$0xff]
    %v4131 = vld [vmem:[#allocation10 + $0x210] sm:$0xff]
    %v4132 = vld [vmem:[#allocation10 + $0x218] sm:$0xff]
    %v4133 = vld [vmem:[#allocation10 + $0x220] sm:$0xff]
    %v4134 = vld [vmem:[#allocation10 + $0x228] sm:$0xff]
    %v4135 = vld [vmem:[#allocation10 + $0x230] sm:$0xff]
    %v4136 = vld [vmem:[#allocation10 + $0x238] sm:$0xff]
    %v4137 = vld [vmem:[#allocation10 + $0x240] sm:$0xff]
    %v4138 = vld [vmem:[#allocation10 + $0x248] sm:$0xff]
    %v4139 = vld [vmem:[#allocation10 + $0x250] sm:$0xff]
    %v4140 = vld [vmem:[#allocation10 + $0x258] sm:$0xff]
    %v4141 = vld [vmem:[#allocation10 + $0x260] sm:$0xff]
    %v4142 = vld [vmem:[#allocation10 + $0x268] sm:$0xff]
    %v4143 = vld [vmem:[#allocation10 + $0x270] sm:$0xff]
    %v4144 = vld [vmem:[#allocation10 + $0x278] sm:$0xff]
    %v4145 = vld [vmem:[#allocation10 + $0x280] sm:$0xff]
    %v4146 = vld [vmem:[#allocation10 + $0x288] sm:$0xff]
    %v4147 = vld [vmem:[#allocation10 + $0x290] sm:$0xff]
    %v4148 = vld [vmem:[#allocation10 + $0x298] sm:$0xff]
    %v4149 = vld [vmem:[#allocation10 + $0x2a0] sm:$0xff]
    %v4150 = vld [vmem:[#allocation10 + $0x2a8] sm:$0xff]
    %v4151 = vld [vmem:[#allocation10 + $0x2b0] sm:$0xff]
    %v4152 = vld [vmem:[#allocation10 + $0x2b8] sm:$0xff]
    %v4153 = vld [vmem:[#allocation10 + $0x2c0] sm:$0xff]
    %v4154 = vld [vmem:[#allocation10 + $0x2c8] sm:$0xff]
    %v4155 = vld [vmem:[#allocation10 + $0x2d0] sm:$0xff]
    %v4156 = vld [vmem:[#allocation10 + $0x2d8] sm:$0xff]
    %v4157 = vld [vmem:[#allocation10 + $0x2e0] sm:$0xff]
    %v4158 = vld [vmem:[#allocation10 + $0x2e8] sm:$0xff]
    %v4159 = vld [vmem:[#allocation10 + $0x2f0] sm:$0xff]
    %v4160 = vld [vmem:[#allocation10 + $0x2f8] sm:$0xff]
    %v4161 = vld [vmem:[#allocation10 + $0x300] sm:$0xff]
    %v4162 = vld [vmem:[#allocation10 + $0x308] sm:$0xff]
    %v4163 = vld [vmem:[#allocation10 + $0x310] sm:$0xff]
    %v4164 = vld [vmem:[#allocation10 + $0x318] sm:$0xff]
    %v4165 = vld [vmem:[#allocation10 + $0x320] sm:$0xff]
    %v4166 = vld [vmem:[#allocation10 + $0x328] sm:$0xff]
    %v4167 = vld [vmem:[#allocation10 + $0x330] sm:$0xff]
    %v4168 = vld [vmem:[#allocation10 + $0x338] sm:$0xff]
    %v4169 = vld [vmem:[#allocation10 + $0x340] sm:$0xff]
    %v4170 = vld [vmem:[#allocation10 + $0x348] sm:$0xff]
    %v4171 = vld [vmem:[#allocation10 + $0x350] sm:$0xff]
    %v4172 = vld [vmem:[#allocation10 + $0x358] sm:$0xff]
    %v4173 = vld [vmem:[#allocation10 + $0x360] sm:$0xff]
    %v4174 = vld [vmem:[#allocation10 + $0x368] sm:$0xff]
    %v4175 = vld [vmem:[#allocation10 + $0x370] sm:$0xff]
    %v4176 = vld [vmem:[#allocation10 + $0x378] sm:$0xff]
    %v4177 = vld [vmem:[#allocation10 + $0x380] sm:$0xff]
    %v4178 = vld [vmem:[#allocation10 + $0x388] sm:$0xff]
    %v4179 = vld [vmem:[#allocation10 + $0x390] sm:$0xff]
    %v4180 = vld [vmem:[#allocation10 + $0x398] sm:$0xff]
    %v4181 = vld [vmem:[#allocation10 + $0x3a0] sm:$0xff]
    %v4182 = vld [vmem:[#allocation10 + $0x3a8] sm:$0xff]
    %v4183 = vld [vmem:[#allocation10 + $0x3b0] sm:$0xff]
    %v4184 = vld [vmem:[#allocation10 + $0x3b8] sm:$0xff]
    %v4185 = vld [vmem:[#allocation10 + $0x3c0] sm:$0xff]
    %v4186 = vld [vmem:[#allocation10 + $0x3c8] sm:$0xff]
    %v4187 = vld [vmem:[#allocation10 + $0x3d0] sm:$0xff]
    %v4188 = vld [vmem:[#allocation10 + $0x3d8] sm:$0xff]
    %v4189 = vld [vmem:[#allocation10 + $0x3e0] sm:$0xff]
    %v4190 = vld [vmem:[#allocation10 + $0x3e8] sm:$0xff]
    %v4191 = vld [vmem:[#allocation10 + $0x3f0] sm:$0xff]
    %v4192 = vld [vmem:[#allocation10 + $0x3f8] sm:$0xff]
    %v4193 = vld [vmem:[#allocation10 + $0x400] sm:$0xff]
    %v4194 = vld [vmem:[#allocation10 + $0x408] sm:$0xff]
    %v4195 = vld [vmem:[#allocation10 + $0x410] sm:$0xff]
    %v4196 = vld [vmem:[#allocation10 + $0x418] sm:$0xff]
    %v4197 = vld [vmem:[#allocation10 + $0x420] sm:$0xff]
    %v4198 = vld [vmem:[#allocation10 + $0x428] sm:$0xff]
    %v4199 = vld [vmem:[#allocation10 + $0x430] sm:$0xff]
    %v4200 = vld [vmem:[#allocation10 + $0x438] sm:$0xff]
    %v4201 = vld [vmem:[#allocation10 + $0x440] sm:$0xff]
    %v4202 = vld [vmem:[#allocation10 + $0x448] sm:$0xff]
    %v4203 = vld [vmem:[#allocation10 + $0x450] sm:$0xff]
    %v4204 = vld [vmem:[#allocation10 + $0x458] sm:$0xff]
    %v4205 = vld [vmem:[#allocation10 + $0x460] sm:$0xff]
    %v4206 = vld [vmem:[#allocation10 + $0x468] sm:$0xff]
    %v4207 = vld [vmem:[#allocation10 + $0x470] sm:$0xff]
    %v4208 = vld [vmem:[#allocation10 + $0x478] sm:$0xff]
    %v4209 = vld [vmem:[#allocation10 + $0x480] sm:$0xff]
    %v4210 = vld [vmem:[#allocation10 + $0x488] sm:$0xff]
    %v4211 = vld [vmem:[#allocation10 + $0x490] sm:$0xff]
    %v4212 = vld [vmem:[#allocation10 + $0x498] sm:$0xff]
    %v4213 = vld [vmem:[#allocation10 + $0x4a0] sm:$0xff]
    %v4214 = vld [vmem:[#allocation10 + $0x4a8] sm:$0xff]
    %v4215 = vld [vmem:[#allocation10 + $0x4b0] sm:$0xff]
    %v4216 = vld [vmem:[#allocation10 + $0x4b8] sm:$0xff]
    %v4217 = vld [vmem:[#allocation10 + $0x4c0] sm:$0xff]
    %v4218 = vld [vmem:[#allocation10 + $0x4c8] sm:$0xff]
    %v4219 = vld [vmem:[#allocation10 + $0x4d0] sm:$0xff]
    %v4220 = vld [vmem:[#allocation10 + $0x4d8] sm:$0xff]
    %v4221 = vld [vmem:[#allocation10 + $0x4e0] sm:$0xff]
    %v4222 = vld [vmem:[#allocation10 + $0x4e8] sm:$0xff]
    %v4223 = vld [vmem:[#allocation10 + $0x4f0] sm:$0xff]
    %v4224 = vld [vmem:[#allocation10 + $0x4f8] sm:$0xff]
    %v4225 = vld [vmem:[#allocation10 + $0x500] sm:$0xff]
    %v4226 = vld [vmem:[#allocation10 + $0x508] sm:$0xff]
    %v4227 = vld [vmem:[#allocation10 + $0x510] sm:$0xff]
    %v4228 = vld [vmem:[#allocation10 + $0x518] sm:$0xff]
    %v4229 = vld [vmem:[#allocation10 + $0x520] sm:$0xff]
    %v4230 = vld [vmem:[#allocation10 + $0x528] sm:$0xff]
    %v4231 = vld [vmem:[#allocation10 + $0x530] sm:$0xff]
    %v4232 = vld [vmem:[#allocation10 + $0x538] sm:$0xff]
    %v4233 = vld [vmem:[#allocation10 + $0x540] sm:$0xff]
    %v4234 = vld [vmem:[#allocation10 + $0x548] sm:$0xff]
    %v4235 = vld [vmem:[#allocation10 + $0x550] sm:$0xff]
    %v4236 = vld [vmem:[#allocation10 + $0x558] sm:$0xff]
    %v4237 = vld [vmem:[#allocation10 + $0x560] sm:$0xff]
    %v4238 = vld [vmem:[#allocation10 + $0x568] sm:$0xff]
    %v4239 = vld [vmem:[#allocation10 + $0x570] sm:$0xff]
    %v4240 = vld [vmem:[#allocation10 + $0x578] sm:$0xff]
    %v4241 = vld [vmem:[#allocation10 + $0x580] sm:$0xff]
    %v4242 = vld [vmem:[#allocation10 + $0x588] sm:$0xff]
    %v4243 = vld [vmem:[#allocation10 + $0x590] sm:$0xff]
    %v4244 = vld [vmem:[#allocation10 + $0x598] sm:$0xff]
    %v4245 = vld [vmem:[#allocation10 + $0x5a0] sm:$0xff]
    %v4246 = vld [vmem:[#allocation10 + $0x5a8] sm:$0xff]
    %v4247 = vld [vmem:[#allocation10 + $0x5b0] sm:$0xff]
    %v4248 = vld [vmem:[#allocation10 + $0x5b8] sm:$0xff]
    %v4249 = vld [vmem:[#allocation10 + $0x5c0] sm:$0xff]
    %v4250 = vld [vmem:[#allocation10 + $0x5c8] sm:$0xff]
    %v4251 = vld [vmem:[#allocation10 + $0x5d0] sm:$0xff]
    %v4252 = vld [vmem:[#allocation10 + $0x5d8] sm:$0xff]
    %v4253 = vld [vmem:[#allocation10 + $0x5e0] sm:$0xff]
    %v4254 = vld [vmem:[#allocation10 + $0x5e8] sm:$0xff]
    %v4255 = vld [vmem:[#allocation10 + $0x5f0] sm:$0xff]
    %v4256 = vld [vmem:[#allocation10 + $0x5f8] sm:$0xff]
    %v4257 = vld [vmem:[#allocation10 + $0x600] sm:$0xff]
    %v4258 = vld [vmem:[#allocation10 + $0x608] sm:$0xff]
    %v4259 = vld [vmem:[#allocation10 + $0x610] sm:$0xff]
    %v4260 = vld [vmem:[#allocation10 + $0x618] sm:$0xff]
    %v4261 = vld [vmem:[#allocation10 + $0x620] sm:$0xff]
    %v4262 = vld [vmem:[#allocation10 + $0x628] sm:$0xff]
    %v4263 = vld [vmem:[#allocation10 + $0x630] sm:$0xff]
    %v4264 = vld [vmem:[#allocation10 + $0x638] sm:$0xff]
    %v4265 = vld [vmem:[#allocation10 + $0x640] sm:$0xff]
    %v4266 = vld [vmem:[#allocation10 + $0x648] sm:$0xff]
    %v4267 = vld [vmem:[#allocation10 + $0x650] sm:$0xff]
    %v4268 = vld [vmem:[#allocation10 + $0x658] sm:$0xff]
    %v4269 = vld [vmem:[#allocation10 + $0x660] sm:$0xff]
    %v4270 = vld [vmem:[#allocation10 + $0x668] sm:$0xff]
    %v4271 = vld [vmem:[#allocation10 + $0x670] sm:$0xff]
    %v4272 = vld [vmem:[#allocation10 + $0x678] sm:$0xff]
    %v4273 = vld [vmem:[#allocation10 + $0x680] sm:$0xff]
    %v4274 = vld [vmem:[#allocation10 + $0x688] sm:$0xff]
    %v4275 = vld [vmem:[#allocation10 + $0x690] sm:$0xff]
    %v4276 = vld [vmem:[#allocation10 + $0x698] sm:$0xff]
    %v4277 = vld [vmem:[#allocation10 + $0x6a0] sm:$0xff]
    %v4278 = vld [vmem:[#allocation10 + $0x6a8] sm:$0xff]
    %v4279 = vld [vmem:[#allocation10 + $0x6b0] sm:$0xff]
    %v4280 = vld [vmem:[#allocation10 + $0x6b8] sm:$0xff]
    %v4281 = vld [vmem:[#allocation10 + $0x6c0] sm:$0xff]
    %v4282 = vld [vmem:[#allocation10 + $0x6c8] sm:$0xff]
    %v4283 = vld [vmem:[#allocation10 + $0x6d0] sm:$0xff]
    %v4284 = vld [vmem:[#allocation10 + $0x6d8] sm:$0xff]
    %v4285 = vld [vmem:[#allocation10 + $0x6e0] sm:$0xff]
    %v4286 = vld [vmem:[#allocation10 + $0x6e8] sm:$0xff]
    %v4287 = vld [vmem:[#allocation10 + $0x6f0] sm:$0xff]
    %v4288 = vld [vmem:[#allocation10 + $0x6f8] sm:$0xff]
    %v4289 = vld [vmem:[#allocation10 + $0x700] sm:$0xff]
    %v4290 = vld [vmem:[#allocation10 + $0x708] sm:$0xff]
    %v4291 = vld [vmem:[#allocation10 + $0x710] sm:$0xff]
    %v4292 = vld [vmem:[#allocation10 + $0x718] sm:$0xff]
    %v4293 = vld [vmem:[#allocation10 + $0x720] sm:$0xff]
    %v4294 = vld [vmem:[#allocation10 + $0x728] sm:$0xff]
    %v4295 = vld [vmem:[#allocation10 + $0x730] sm:$0xff]
    %v4296 = vld [vmem:[#allocation10 + $0x738] sm:$0xff]
    %v4297 = vld [vmem:[#allocation10 + $0x740] sm:$0xff]
    %v4298 = vld [vmem:[#allocation10 + $0x748] sm:$0xff]
    %v4299 = vld [vmem:[#allocation10 + $0x750] sm:$0xff]
    %v4300 = vld [vmem:[#allocation10 + $0x758] sm:$0xff]
    %v4301 = vld [vmem:[#allocation10 + $0x760] sm:$0xff]
    %v4302 = vld [vmem:[#allocation10 + $0x768] sm:$0xff]
    %v4303 = vld [vmem:[#allocation10 + $0x770] sm:$0xff]
    %v4304 = vld [vmem:[#allocation10 + $0x778] sm:$0xff]
    %v4305 = vld [vmem:[#allocation10 + $0x780] sm:$0xff]
    %v4306 = vld [vmem:[#allocation10 + $0x788] sm:$0xff]
    %v4307 = vld [vmem:[#allocation10 + $0x790] sm:$0xff]
    %v4308 = vld [vmem:[#allocation10 + $0x798] sm:$0xff]
    %v4309 = vld [vmem:[#allocation10 + $0x7a0] sm:$0xff]
    %v4310 = vld [vmem:[#allocation10 + $0x7a8] sm:$0xff]
    %v4311 = vld [vmem:[#allocation10 + $0x7b0] sm:$0xff]
    %v4312 = vld [vmem:[#allocation10 + $0x7b8] sm:$0xff]
    %v4313 = vld [vmem:[#allocation10 + $0x7c0] sm:$0xff]
    %v4314 = vld [vmem:[#allocation10 + $0x7c8] sm:$0xff]
    %v4315 = vld [vmem:[#allocation10 + $0x7d0] sm:$0xff]
    %v4316 = vld [vmem:[#allocation10 + $0x7d8] sm:$0xff]
    %v4317 = vld [vmem:[#allocation10 + $0x7e0] sm:$0xff]
    %v4318 = vld [vmem:[#allocation10 + $0x7e8] sm:$0xff]
    %v4319 = vld [vmem:[#allocation10 + $0x7f0] sm:$0xff]
    %v4320 = vld [vmem:[#allocation10 + $0x7f8] sm:$0xff]
    %v4321 = vld [vmem:[#allocation10 + $0x800] sm:$0xff]
    %v4322 = vld [vmem:[#allocation10 + $0x808] sm:$0xff]
    %v4323 = vld [vmem:[#allocation10 + $0x810] sm:$0xff]
    %v4324 = vld [vmem:[#allocation10 + $0x818] sm:$0xff]
    %v4325 = vld [vmem:[#allocation10 + $0x820] sm:$0xff]
    %v4326 = vld [vmem:[#allocation10 + $0x828] sm:$0xff]
    %v4327 = vld [vmem:[#allocation10 + $0x830] sm:$0xff]
    %v4328 = vld [vmem:[#allocation10 + $0x838] sm:$0xff]
    %v4329 = vld [vmem:[#allocation10 + $0x840] sm:$0xff]
    %v4330 = vld [vmem:[#allocation10 + $0x848] sm:$0xff]
    %v4331 = vld [vmem:[#allocation10 + $0x850] sm:$0xff]
    %v4332 = vld [vmem:[#allocation10 + $0x858] sm:$0xff]
    %v4333 = vld [vmem:[#allocation10 + $0x860] sm:$0xff]
    %v4334 = vld [vmem:[#allocation10 + $0x868] sm:$0xff]
    %v4335 = vld [vmem:[#allocation10 + $0x870] sm:$0xff]
    %v4336 = vld [vmem:[#allocation10 + $0x878] sm:$0xff]
    %v4337 = vld [vmem:[#allocation10 + $0x880] sm:$0xff]
    %v4338 = vld [vmem:[#allocation10 + $0x888] sm:$0xff]
    %v4339 = vld [vmem:[#allocation10 + $0x890] sm:$0xff]
    %v4340 = vld [vmem:[#allocation10 + $0x898] sm:$0xff]
    %v4341 = vld [vmem:[#allocation10 + $0x8a0] sm:$0xff]
    %v4342 = vld [vmem:[#allocation10 + $0x8a8] sm:$0xff]
    %v4343 = vld [vmem:[#allocation10 + $0x8b0] sm:$0xff]
    %v4344 = vld [vmem:[#allocation10 + $0x8b8] sm:$0xff]
    %v4345 = vld [vmem:[#allocation10 + $0x8c0] sm:$0xff]
    %v4346 = vld [vmem:[#allocation10 + $0x8c8] sm:$0xff]
    %v4347 = vld [vmem:[#allocation10 + $0x8d0] sm:$0xff]
    %v4348 = vld [vmem:[#allocation10 + $0x8d8] sm:$0xff]
    %v4349 = vld [vmem:[#allocation10 + $0x8e0] sm:$0xff]
    %v4350 = vld [vmem:[#allocation10 + $0x8e8] sm:$0xff]
    %v4351 = vld [vmem:[#allocation10 + $0x8f0] sm:$0xff]
    %v4352 = vld [vmem:[#allocation10 + $0x8f8] sm:$0xff]
    %v4353 = vld [vmem:[#allocation10 + $0x900] sm:$0xff]
    %v4354 = vld [vmem:[#allocation10 + $0x908] sm:$0xff]
    %v4355 = vld [vmem:[#allocation10 + $0x910] sm:$0xff]
    %v4356 = vld [vmem:[#allocation10 + $0x918] sm:$0xff]
    %v4357 = vld [vmem:[#allocation10 + $0x920] sm:$0xff]
    %v4358 = vld [vmem:[#allocation10 + $0x928] sm:$0xff]
    %v4359 = vld [vmem:[#allocation10 + $0x930] sm:$0xff]
    %v4360 = vld [vmem:[#allocation10 + $0x938] sm:$0xff]
    %v4361 = vld [vmem:[#allocation10 + $0x940] sm:$0xff]
    %v4362 = vld [vmem:[#allocation10 + $0x948] sm:$0xff]
    %v4363 = vld [vmem:[#allocation10 + $0x950] sm:$0xff]
    %v4364 = vld [vmem:[#allocation10 + $0x958] sm:$0xff]
    %v4365 = vld [vmem:[#allocation10 + $0x960] sm:$0xff]
    %v4366 = vld [vmem:[#allocation10 + $0x968] sm:$0xff]
    %v4367 = vld [vmem:[#allocation10 + $0x970] sm:$0xff]
    %v4368 = vld [vmem:[#allocation10 + $0x978] sm:$0xff]
    %v4369 = vld [vmem:[#allocation10 + $0x980] sm:$0xff]
    %v4370 = vld [vmem:[#allocation10 + $0x988] sm:$0xff]
    %v4371 = vld [vmem:[#allocation10 + $0x990] sm:$0xff]
    %v4372 = vld [vmem:[#allocation10 + $0x998] sm:$0xff]
    %v4373 = vld [vmem:[#allocation10 + $0x9a0] sm:$0xff]
    %v4374 = vld [vmem:[#allocation10 + $0x9a8] sm:$0xff]
    %v4375 = vld [vmem:[#allocation10 + $0x9b0] sm:$0xff]
    %v4376 = vld [vmem:[#allocation10 + $0x9b8] sm:$0xff]
    %v4377 = vld [vmem:[#allocation10 + $0x9c0] sm:$0xff]
    %v4378 = vld [vmem:[#allocation10 + $0x9c8] sm:$0xff]
    %v4379 = vld [vmem:[#allocation10 + $0x9d0] sm:$0xff]
    %v4380 = vld [vmem:[#allocation10 + $0x9d8] sm:$0xff]
    %v4381 = vld [vmem:[#allocation10 + $0x9e0] sm:$0xff]
    %v4382 = vld [vmem:[#allocation10 + $0x9e8] sm:$0xff]
    %v4383 = vld [vmem:[#allocation10 + $0x9f0] sm:$0xff]
    %v4384 = vld [vmem:[#allocation10 + $0x9f8] sm:$0xff]
    %v4385 = vld [vmem:[#allocation10 + $0xa00] sm:$0xff]
    %v4386 = vld [vmem:[#allocation10 + $0xa08] sm:$0xff]
    %v4387 = vld [vmem:[#allocation10 + $0xa10] sm:$0xff]
    %v4388 = vld [vmem:[#allocation10 + $0xa18] sm:$0xff]
    %v4389 = vld [vmem:[#allocation10 + $0xa20] sm:$0xff]
    %v4390 = vld [vmem:[#allocation10 + $0xa28] sm:$0xff]
    %v4391 = vld [vmem:[#allocation10 + $0xa30] sm:$0xff]
    %v4392 = vld [vmem:[#allocation10 + $0xa38] sm:$0xff]
    %v4393 = vld [vmem:[#allocation10 + $0xa40] sm:$0xff]
    %v4394 = vld [vmem:[#allocation10 + $0xa48] sm:$0xff]
    %v4395 = vld [vmem:[#allocation10 + $0xa50] sm:$0xff]
    %v4396 = vld [vmem:[#allocation10 + $0xa58] sm:$0xff]
    %v4397 = vld [vmem:[#allocation10 + $0xa60] sm:$0xff]
    %v4398 = vld [vmem:[#allocation10 + $0xa68] sm:$0xff]
    %v4399 = vld [vmem:[#allocation10 + $0xa70] sm:$0xff]
    %v4400 = vld [vmem:[#allocation10 + $0xa78] sm:$0xff]
    %v4401 = vld [vmem:[#allocation10 + $0xa80] sm:$0xff]
    %v4402 = vld [vmem:[#allocation10 + $0xa88] sm:$0xff]
    %v4403 = vld [vmem:[#allocation10 + $0xa90] sm:$0xff]
    %v4404 = vld [vmem:[#allocation10 + $0xa98] sm:$0xff]
    %v4405 = vld [vmem:[#allocation10 + $0xaa0] sm:$0xff]
    %v4406 = vld [vmem:[#allocation10 + $0xaa8] sm:$0xff]
    %v4407 = vld [vmem:[#allocation10 + $0xab0] sm:$0xff]
    %v4408 = vld [vmem:[#allocation10 + $0xab8] sm:$0xff]
    %v4409 = vld [vmem:[#allocation10 + $0xac0] sm:$0xff]
    %v4410 = vld [vmem:[#allocation10 + $0xac8] sm:$0xff]
    %v4411 = vld [vmem:[#allocation10 + $0xad0] sm:$0xff]
    %v4412 = vld [vmem:[#allocation10 + $0xad8] sm:$0xff]
    %v4413 = vld [vmem:[#allocation10 + $0xae0] sm:$0xff]
    %v4414 = vld [vmem:[#allocation10 + $0xae8] sm:$0xff]
    %v4415 = vld [vmem:[#allocation10 + $0xaf0] sm:$0xff]
    %v4416 = vld [vmem:[#allocation10 + $0xaf8] sm:$0xff]
    %v4417 = vld [vmem:[#allocation10 + $0xb00] sm:$0xff]
    %v4418 = vld [vmem:[#allocation10 + $0xb08] sm:$0xff]
    %v4419 = vld [vmem:[#allocation10 + $0xb10] sm:$0xff]
    %v4420 = vld [vmem:[#allocation10 + $0xb18] sm:$0xff]
    %v4421 = vld [vmem:[#allocation10 + $0xb20] sm:$0xff]
    %v4422 = vld [vmem:[#allocation10 + $0xb28] sm:$0xff]
    %v4423 = vld [vmem:[#allocation10 + $0xb30] sm:$0xff]
    %v4424 = vld [vmem:[#allocation10 + $0xb38] sm:$0xff]
    %v4425 = vld [vmem:[#allocation10 + $0xb40] sm:$0xff]
    %v4426 = vld [vmem:[#allocation10 + $0xb48] sm:$0xff]
    %v4427 = vld [vmem:[#allocation10 + $0xb50] sm:$0xff]
    %v4428 = vld [vmem:[#allocation10 + $0xb58] sm:$0xff]
    %v4429 = vld [vmem:[#allocation10 + $0xb60] sm:$0xff]
    %v4430 = vld [vmem:[#allocation10 + $0xb68] sm:$0xff]
    %v4431 = vld [vmem:[#allocation10 + $0xb70] sm:$0xff]
    %v4432 = vld [vmem:[#allocation10 + $0xb78] sm:$0xff]
    %v4433 = vld [vmem:[#allocation10 + $0xb80] sm:$0xff]
    %v4434 = vld [vmem:[#allocation10 + $0xb88] sm:$0xff]
    %v4435 = vld [vmem:[#allocation10 + $0xb90] sm:$0xff]
    %v4436 = vld [vmem:[#allocation10 + $0xb98] sm:$0xff]
    %v4437 = vld [vmem:[#allocation10 + $0xba0] sm:$0xff]
    %v4438 = vld [vmem:[#allocation10 + $0xba8] sm:$0xff]
    %v4439 = vld [vmem:[#allocation10 + $0xbb0] sm:$0xff]
    %v4440 = vld [vmem:[#allocation10 + $0xbb8] sm:$0xff]
    %v4441 = vld [vmem:[#allocation10 + $0xbc0] sm:$0xff]
    %v4442 = vld [vmem:[#allocation10 + $0xbc8] sm:$0xff]
    %v4443 = vld [vmem:[#allocation10 + $0xbd0] sm:$0xff]
    %v4444 = vld [vmem:[#allocation10 + $0xbd8] sm:$0xff]
    %v4445 = vld [vmem:[#allocation10 + $0xbe0] sm:$0xff]
    %v4446 = vld [vmem:[#allocation10 + $0xbe8] sm:$0xff]
    %v4447 = vld [vmem:[#allocation10 + $0xbf0] sm:$0xff]
    %v4448 = vld [vmem:[#allocation10 + $0xbf8] sm:$0xff]
    %v4449 = vld [vmem:[#allocation10 + $0xc00] sm:$0xff]
    %v4450 = vld [vmem:[#allocation10 + $0xc08] sm:$0xff]
    %v4451 = vld [vmem:[#allocation10 + $0xc10] sm:$0xff]
    %v4452 = vld [vmem:[#allocation10 + $0xc18] sm:$0xff]
    %v4453 = vld [vmem:[#allocation10 + $0xc20] sm:$0xff]
    %v4454 = vld [vmem:[#allocation10 + $0xc28] sm:$0xff]
    %v4455 = vld [vmem:[#allocation10 + $0xc30] sm:$0xff]
    %v4456 = vld [vmem:[#allocation10 + $0xc38] sm:$0xff]
    %v4457 = vld [vmem:[#allocation10 + $0xc40] sm:$0xff]
    %v4458 = vld [vmem:[#allocation10 + $0xc48] sm:$0xff]
    %v4459 = vld [vmem:[#allocation10 + $0xc50] sm:$0xff]
    %v4460 = vld [vmem:[#allocation10 + $0xc58] sm:$0xff]
    %v4461 = vld [vmem:[#allocation10 + $0xc60] sm:$0xff]
    %v4462 = vld [vmem:[#allocation10 + $0xc68] sm:$0xff]
    %v4463 = vld [vmem:[#allocation10 + $0xc70] sm:$0xff]
    %v4464 = vld [vmem:[#allocation10 + $0xc78] sm:$0xff]
    %v4465 = vld [vmem:[#allocation12] sm:$0xf]
    %v4467 = vperm.slane %v4465, 0
    %v4468 = vperm.slane %v4465, 1
    %v4469 = vperm.slane %v4465, 2
    %v4470 = vperm.slane %v4465, 3
    %4476 = vst [vmem:[#allocation1] ss:$9 sm:$0xff] %v4063
    %v4477 = vld [vmem:[#allocation1] sm:$0xff]
    %v4478 = vld [vmem:[#allocation1 + $0x9] sm:$0xff]
    %v4479 = vld [vmem:[#allocation1 + $0x12] sm:$0xff]
    %v4480 = vld [vmem:[#allocation1 + $0x1b] sm:$0xff]
    %v4481 = vld [vmem:[#allocation1 + $0x24] sm:$0xff]
    %v4482 = vld [vmem:[#allocation1 + $0x2d] sm:$0xff]
    %v4483 = vld [vmem:[#allocation1 + $0x36] sm:$0xff]
    %v4484 = vld [vmem:[#allocation1 + $0x3f] sm:$0xff]
    %4486 = vst [vmem:[#allocation1] ss:$9 sm:$0xff] %v4064
    %v4487 = vld [vmem:[#allocation1] sm:$0xff]
    %v4488 = vld [vmem:[#allocation1 + $0x9] sm:$0xff]
    %v4489 = vld [vmem:[#allocation1 + $0x12] sm:$0xff]
    %v4490 = vld [vmem:[#allocation1 + $0x1b] sm:$0xff]
    %v4491 = vld [vmem:[#allocation1 + $0x24] sm:$0xff]
    %v4904 = vunpack.c.l.b16 %v4065
    %v4905 = vunpack.c.h.b16 %v4065
    %v4906 = vunpack.c.l.b16 %v4066
    %v4907 = vunpack.c.h.b16 %v4066
    %v4908 = vunpack.c.l.b16 %v4067
    %v4909 = vunpack.c.h.b16 %v4067
    %v4910 = vunpack.c.l.b16 %v4068
    %v4911 = vunpack.c.h.b16 %v4068
    %v4912 = vunpack.c.l.b16 %v4069
    %v4913 = vunpack.c.h.b16 %v4069
    %v4914 = vunpack.c.l.b16 %v4070
    %v4915 = vunpack.c.h.b16 %v4070
    %v4916 = vunpack.c.l.b16 %v4071
    %v4917 = vunpack.c.h.b16 %v4071
    %v4918 = vunpack.c.l.b16 %v4072
    %v4919 = vunpack.c.h.b16 %v4072
    %v4920 = vunpack.c.l.b16 %v4073
    %v4921 = vunpack.c.h.b16 %v4073
    %v4922 = vunpack.c.l.b16 %v4074
    %v4923 = vunpack.c.h.b16 %v4074
    %v4924 = vunpack.c.l.b16 %v4075
    %v4925 = vunpack.c.h.b16 %v4075
    %v4926 = vunpack.c.l.b16 %v4076
    %v4927 = vunpack.c.h.b16 %v4076
    %v4928 = vunpack.c.l.b16 %v4077
    %v4929 = vunpack.c.h.b16 %v4077
    %v4930 = vunpack.c.l.b16 %v4078
    %v4931 = vunpack.c.h.b16 %v4078
    %v4932 = vunpack.c.l.b16 %v4079
    %v4933 = vunpack.c.h.b16 %v4079
    %v4934 = vunpack.c.l.b16 %v4080
    %v4935 = vunpack.c.h.b16 %v4080
    %v4936 = vunpack.c.l.b16 %v4081
    %v4937 = vunpack.c.h.b16 %v4081
    %v4938 = vunpack.c.l.b16 %v4082
    %v4939 = vunpack.c.h.b16 %v4082
    %v4940 = vunpack.c.l.b16 %v4083
    %v4941 = vunpack.c.h.b16 %v4083
    %v4942 = vunpack.c.l.b16 %v4084
    %v4943 = vunpack.c.h.b16 %v4084
    %v4944 = vunpack.c.l.b16 %v4085
    %v4945 = vunpack.c.h.b16 %v4085
    %v4946 = vunpack.c.l.b16 %v4086
    %v4947 = vunpack.c.h.b16 %v4086
    %v4948 = vunpack.c.l.b16 %v4087
    %v4949 = vunpack.c.h.b16 %v4087
    %v4950 = vunpack.c.l.b16 %v4088
    %v4951 = vunpack.c.h.b16 %v4088
    %v4952 = vunpack.c.l.b16 %v4089
    %v4953 = vunpack.c.h.b16 %v4089
    %v4954 = vunpack.c.l.b16 %v4090
    %v4955 = vunpack.c.h.b16 %v4090
    %v4956 = vunpack.c.l.b16 %v4091
    %v4957 = vunpack.c.h.b16 %v4091
    %v4958 = vunpack.c.l.b16 %v4092
    %v4959 = vunpack.c.h.b16 %v4092
    %v4960 = vunpack.c.l.b16 %v4093
    %v4961 = vunpack.c.h.b16 %v4093
    %v4962 = vunpack.c.l.b16 %v4094
    %v4963 = vunpack.c.h.b16 %v4094
    %v4964 = vunpack.c.l.b16 %v4095
    %v4965 = vunpack.c.h.b16 %v4095
    %v4966 = vunpack.c.l.b16 %v4096
    %v4967 = vunpack.c.h.b16 %v4096
    %v4968 = vunpack.c.l.b16 %v4097
    %v4969 = vunpack.c.h.b16 %v4097
    %v4970 = vunpack.c.l.b16 %v4098
    %v4971 = vunpack.c.h.b16 %v4098
    %v4972 = vunpack.c.l.b16 %v4099
    %v4973 = vunpack.c.h.b16 %v4099
    %v4974 = vunpack.c.l.b16 %v4100
    %v4975 = vunpack.c.h.b16 %v4100
    %v4976 = vunpack.c.l.b16 %v4101
    %v4977 = vunpack.c.h.b16 %v4101
    %v4978 = vunpack.c.l.b16 %v4102
    %v4979 = vunpack.c.h.b16 %v4102
    %v4980 = vunpack.c.l.b16 %v4103
    %v4981 = vunpack.c.h.b16 %v4103
    %v4982 = vunpack.c.l.b16 %v4104
    %v4983 = vunpack.c.h.b16 %v4104
    %v4984 = vunpack.c.l.b16 %v4105
    %v4985 = vunpack.c.h.b16 %v4105
    %v4986 = vunpack.c.l.b16 %v4106
    %v4987 = vunpack.c.h.b16 %v4106
    %v4988 = vunpack.c.l.b16 %v4107
    %v4989 = vunpack.c.h.b16 %v4107
    %v4990 = vunpack.c.l.b16 %v4108
    %v4991 = vunpack.c.h.b16 %v4108
    %v4992 = vunpack.c.l.b16 %v4109
    %v4993 = vunpack.c.h.b16 %v4109
    %v4994 = vunpack.c.l.b16 %v4110
    %v4995 = vunpack.c.h.b16 %v4110
    %v4996 = vunpack.c.l.b16 %v4111
    %v4997 = vunpack.c.h.b16 %v4111
    %v4998 = vunpack.c.l.b16 %v4112
    %v4999 = vunpack.c.h.b16 %v4112
    %v5000 = vunpack.c.l.b16 %v4113
    %v5001 = vunpack.c.h.b16 %v4113
    %v5002 = vunpack.c.l.b16 %v4114
    %v5003 = vunpack.c.h.b16 %v4114
    %v5004 = vunpack.c.l.b16 %v4115
    %v5005 = vunpack.c.h.b16 %v4115
    %v5006 = vunpack.c.l.b16 %v4116
    %v5007 = vunpack.c.h.b16 %v4116
    %v5008 = vunpack.c.l.b16 %v4117
    %v5009 = vunpack.c.h.b16 %v4117
    %v5010 = vunpack.c.l.b16 %v4118
    %v5011 = vunpack.c.h.b16 %v4118
    %v5012 = vunpack.c.l.b16 %v4119
    %v5013 = vunpack.c.h.b16 %v4119
    %v5014 = vunpack.c.l.b16 %v4120
    %v5015 = vunpack.c.h.b16 %v4120
    %v5016 = vunpack.c.l.b16 %v4121
    %v5017 = vunpack.c.h.b16 %v4121
    %v5018 = vunpack.c.l.b16 %v4122
    %v5019 = vunpack.c.h.b16 %v4122
    %v5020 = vunpack.c.l.b16 %v4123
    %v5021 = vunpack.c.h.b16 %v4123
    %v5022 = vunpack.c.l.b16 %v4124
    %v5023 = vunpack.c.h.b16 %v4124
    %v5024 = vunpack.c.l.b16 %v4125
    %v5025 = vunpack.c.h.b16 %v4125
    %v5026 = vunpack.c.l.b16 %v4126
    %v5027 = vunpack.c.h.b16 %v4126
    %v5028 = vunpack.c.l.b16 %v4127
    %v5029 = vunpack.c.h.b16 %v4127
    %v5030 = vunpack.c.l.b16 %v4128
    %v5031 = vunpack.c.h.b16 %v4128
    %v5032 = vunpack.c.l.b16 %v4129
    %v5033 = vunpack.c.h.b16 %v4129
    %v5034 = vunpack.c.l.b16 %v4130
    %v5035 = vunpack.c.h.b16 %v4130
    %v5036 = vunpack.c.l.b16 %v4131
    %v5037 = vunpack.c.h.b16 %v4131
    %v5038 = vunpack.c.l.b16 %v4132
    %v5039 = vunpack.c.h.b16 %v4132
    %v5040 = vunpack.c.l.b16 %v4133
    %v5041 = vunpack.c.h.b16 %v4133
    %v5042 = vunpack.c.l.b16 %v4134
    %v5043 = vunpack.c.h.b16 %v4134
    %v5044 = vunpack.c.l.b16 %v4135
    %v5045 = vunpack.c.h.b16 %v4135
    %v5046 = vunpack.c.l.b16 %v4136
    %v5047 = vunpack.c.h.b16 %v4136
    %v5048 = vunpack.c.l.b16 %v4137
    %v5049 = vunpack.c.h.b16 %v4137
    %v5050 = vunpack.c.l.b16 %v4138
    %v5051 = vunpack.c.h.b16 %v4138
    %v5052 = vunpack.c.l.b16 %v4139
    %v5053 = vunpack.c.h.b16 %v4139
    %v5054 = vunpack.c.l.b16 %v4140
    %v5055 = vunpack.c.h.b16 %v4140
    %v5056 = vunpack.c.l.b16 %v4141
    %v5057 = vunpack.c.h.b16 %v4141
    %v5058 = vunpack.c.l.b16 %v4142
    %v5059 = vunpack.c.h.b16 %v4142
    %v5060 = vunpack.c.l.b16 %v4143
    %v5061 = vunpack.c.h.b16 %v4143
    %v5062 = vunpack.c.l.b16 %v4144
    %v5063 = vunpack.c.h.b16 %v4144
    %v5064 = vunpack.c.l.b16 %v4145
    %v5065 = vunpack.c.h.b16 %v4145
    %v5066 = vunpack.c.l.b16 %v4146
    %v5067 = vunpack.c.h.b16 %v4146
    %v5068 = vunpack.c.l.b16 %v4147
    %v5069 = vunpack.c.h.b16 %v4147
    %v5070 = vunpack.c.l.b16 %v4148
    %v5071 = vunpack.c.h.b16 %v4148
    %v5072 = vunpack.c.l.b16 %v4149
    %v5073 = vunpack.c.h.b16 %v4149
    %v5074 = vunpack.c.l.b16 %v4150
    %v5075 = vunpack.c.h.b16 %v4150
    %v5076 = vunpack.c.l.b16 %v4151
    %v5077 = vunpack.c.h.b16 %v4151
    %v5078 = vunpack.c.l.b16 %v4152
    %v5079 = vunpack.c.h.b16 %v4152
    %v5080 = vunpack.c.l.b16 %v4153
    %v5081 = vunpack.c.h.b16 %v4153
    %v5082 = vunpack.c.l.b16 %v4154
    %v5083 = vunpack.c.h.b16 %v4154
    %v5084 = vunpack.c.l.b16 %v4155
    %v5085 = vunpack.c.h.b16 %v4155
    %v5086 = vunpack.c.l.b16 %v4156
    %v5087 = vunpack.c.h.b16 %v4156
    %v5088 = vunpack.c.l.b16 %v4157
    %v5089 = vunpack.c.h.b16 %v4157
    %v5090 = vunpack.c.l.b16 %v4158
    %v5091 = vunpack.c.h.b16 %v4158
    %v5092 = vunpack.c.l.b16 %v4159
    %v5093 = vunpack.c.h.b16 %v4159
    %v5094 = vunpack.c.l.b16 %v4160
    %v5095 = vunpack.c.h.b16 %v4160
    %v5096 = vunpack.c.l.b16 %v4161
    %v5097 = vunpack.c.h.b16 %v4161
    %v5098 = vunpack.c.l.b16 %v4162
    %v5099 = vunpack.c.h.b16 %v4162
    %v5100 = vunpack.c.l.b16 %v4163
    %v5101 = vunpack.c.h.b16 %v4163
    %v5102 = vunpack.c.l.b16 %v4164
    %v5103 = vunpack.c.h.b16 %v4164
    %v5104 = vunpack.c.l.b16 %v4165
    %v5105 = vunpack.c.h.b16 %v4165
    %v5106 = vunpack.c.l.b16 %v4166
    %v5107 = vunpack.c.h.b16 %v4166
    %v5108 = vunpack.c.l.b16 %v4167
    %v5109 = vunpack.c.h.b16 %v4167
    %v5110 = vunpack.c.l.b16 %v4168
    %v5111 = vunpack.c.h.b16 %v4168
    %v5112 = vunpack.c.l.b16 %v4169
    %v5113 = vunpack.c.h.b16 %v4169
    %v5114 = vunpack.c.l.b16 %v4170
    %v5115 = vunpack.c.h.b16 %v4170
    %v5116 = vunpack.c.l.b16 %v4171
    %v5117 = vunpack.c.h.b16 %v4171
    %v5118 = vunpack.c.l.b16 %v4172
    %v5119 = vunpack.c.h.b16 %v4172
    %v5120 = vunpack.c.l.b16 %v4173
    %v5121 = vunpack.c.h.b16 %v4173
    %v5122 = vunpack.c.l.b16 %v4174
    %v5123 = vunpack.c.h.b16 %v4174
    %v5124 = vunpack.c.l.b16 %v4175
    %v5125 = vunpack.c.h.b16 %v4175
    %v5126 = vunpack.c.l.b16 %v4176
    %v5127 = vunpack.c.h.b16 %v4176
    %v5128 = vunpack.c.l.b16 %v4177
    %v5129 = vunpack.c.h.b16 %v4177
    %v5130 = vunpack.c.l.b16 %v4178
    %v5131 = vunpack.c.h.b16 %v4178
    %v5132 = vunpack.c.l.b16 %v4179
    %v5133 = vunpack.c.h.b16 %v4179
    %v5134 = vunpack.c.l.b16 %v4180
    %v5135 = vunpack.c.h.b16 %v4180
    %v5136 = vunpack.c.l.b16 %v4181
    %v5137 = vunpack.c.h.b16 %v4181
    %v5138 = vunpack.c.l.b16 %v4182
    %v5139 = vunpack.c.h.b16 %v4182
    %v5140 = vunpack.c.l.b16 %v4183
    %v5141 = vunpack.c.h.b16 %v4183
    %v5142 = vunpack.c.l.b16 %v4184
    %v5143 = vunpack.c.h.b16 %v4184
    %v5144 = vunpack.c.l.b16 %v4185
    %v5145 = vunpack.c.h.b16 %v4185
    %v5146 = vunpack.c.l.b16 %v4186
    %v5147 = vunpack.c.h.b16 %v4186
    %v5148 = vunpack.c.l.b16 %v4187
    %v5149 = vunpack.c.h.b16 %v4187
    %v5150 = vunpack.c.l.b16 %v4188
    %v5151 = vunpack.c.h.b16 %v4188
    %v5152 = vunpack.c.l.b16 %v4189
    %v5153 = vunpack.c.h.b16 %v4189
    %v5154 = vunpack.c.l.b16 %v4190
    %v5155 = vunpack.c.h.b16 %v4190
    %v5156 = vunpack.c.l.b16 %v4191
    %v5157 = vunpack.c.h.b16 %v4191
    %v5158 = vunpack.c.l.b16 %v4192
    %v5159 = vunpack.c.h.b16 %v4192
    %v5160 = vunpack.c.l.b16 %v4193
    %v5161 = vunpack.c.h.b16 %v4193
    %v5162 = vunpack.c.l.b16 %v4194
    %v5163 = vunpack.c.h.b16 %v4194
    %v5164 = vunpack.c.l.b16 %v4195
    %v5165 = vunpack.c.h.b16 %v4195
    %v5166 = vunpack.c.l.b16 %v4196
    %v5167 = vunpack.c.h.b16 %v4196
    %v5168 = vunpack.c.l.b16 %v4197
    %v5169 = vunpack.c.h.b16 %v4197
    %v5170 = vunpack.c.l.b16 %v4198
    %v5171 = vunpack.c.h.b16 %v4198
    %v5172 = vunpack.c.l.b16 %v4199
    %v5173 = vunpack.c.h.b16 %v4199
    %v5174 = vunpack.c.l.b16 %v4200
    %v5175 = vunpack.c.h.b16 %v4200
    %v5176 = vunpack.c.l.b16 %v4201
    %v5177 = vunpack.c.h.b16 %v4201
    %v5178 = vunpack.c.l.b16 %v4202
    %v5179 = vunpack.c.h.b16 %v4202
    %v5180 = vunpack.c.l.b16 %v4203
    %v5181 = vunpack.c.h.b16 %v4203
    %v5182 = vunpack.c.l.b16 %v4204
    %v5183 = vunpack.c.h.b16 %v4204
    %v5184 = vunpack.c.l.b16 %v4205
    %v5185 = vunpack.c.h.b16 %v4205
    %v5186 = vunpack.c.l.b16 %v4206
    %v5187 = vunpack.c.h.b16 %v4206
    %v5188 = vunpack.c.l.b16 %v4207
    %v5189 = vunpack.c.h.b16 %v4207
    %v5190 = vunpack.c.l.b16 %v4208
    %v5191 = vunpack.c.h.b16 %v4208
    %v5192 = vunpack.c.l.b16 %v4209
    %v5193 = vunpack.c.h.b16 %v4209
    %v5194 = vunpack.c.l.b16 %v4210
    %v5195 = vunpack.c.h.b16 %v4210
    %v5196 = vunpack.c.l.b16 %v4211
    %v5197 = vunpack.c.h.b16 %v4211
    %v5198 = vunpack.c.l.b16 %v4212
    %v5199 = vunpack.c.h.b16 %v4212
    %v5200 = vunpack.c.l.b16 %v4213
    %v5201 = vunpack.c.h.b16 %v4213
    %v5202 = vunpack.c.l.b16 %v4214
    %v5203 = vunpack.c.h.b16 %v4214
    %v5204 = vunpack.c.l.b16 %v4215
    %v5205 = vunpack.c.h.b16 %v4215
    %v5206 = vunpack.c.l.b16 %v4216
    %v5207 = vunpack.c.h.b16 %v4216
    %v5208 = vunpack.c.l.b16 %v4217
    %v5209 = vunpack.c.h.b16 %v4217
    %v5210 = vunpack.c.l.b16 %v4218
    %v5211 = vunpack.c.h.b16 %v4218
    %v5212 = vunpack.c.l.b16 %v4219
    %v5213 = vunpack.c.h.b16 %v4219
    %v5214 = vunpack.c.l.b16 %v4220
    %v5215 = vunpack.c.h.b16 %v4220
    %v5216 = vunpack.c.l.b16 %v4221
    %v5217 = vunpack.c.h.b16 %v4221
    %v5218 = vunpack.c.l.b16 %v4222
    %v5219 = vunpack.c.h.b16 %v4222
    %v5220 = vunpack.c.l.b16 %v4223
    %v5221 = vunpack.c.h.b16 %v4223
    %v5222 = vunpack.c.l.b16 %v4224
    %v5223 = vunpack.c.h.b16 %v4224
    %v5224 = vunpack.c.l.b16 %v4225
    %v5225 = vunpack.c.h.b16 %v4225
    %v5226 = vunpack.c.l.b16 %v4226
    %v5227 = vunpack.c.h.b16 %v4226
    %v5228 = vunpack.c.l.b16 %v4227
    %v5229 = vunpack.c.h.b16 %v4227
    %v5230 = vunpack.c.l.b16 %v4228
    %v5231 = vunpack.c.h.b16 %v4228
    %v5232 = vunpack.c.l.b16 %v4229
    %v5233 = vunpack.c.h.b16 %v4229
    %v5234 = vunpack.c.l.b16 %v4230
    %v5235 = vunpack.c.h.b16 %v4230
    %v5236 = vunpack.c.l.b16 %v4231
    %v5237 = vunpack.c.h.b16 %v4231
    %v5238 = vunpack.c.l.b16 %v4232
    %v5239 = vunpack.c.h.b16 %v4232
    %v5240 = vunpack.c.l.b16 %v4233
    %v5241 = vunpack.c.h.b16 %v4233
    %v5242 = vunpack.c.l.b16 %v4234
    %v5243 = vunpack.c.h.b16 %v4234
    %v5244 = vunpack.c.l.b16 %v4235
    %v5245 = vunpack.c.h.b16 %v4235
    %v5246 = vunpack.c.l.b16 %v4236
    %v5247 = vunpack.c.h.b16 %v4236
    %v5248 = vunpack.c.l.b16 %v4237
    %v5249 = vunpack.c.h.b16 %v4237
    %v5250 = vunpack.c.l.b16 %v4238
    %v5251 = vunpack.c.h.b16 %v4238
    %v5252 = vunpack.c.l.b16 %v4239
    %v5253 = vunpack.c.h.b16 %v4239
    %v5254 = vunpack.c.l.b16 %v4240
    %v5255 = vunpack.c.h.b16 %v4240
    %v5256 = vunpack.c.l.b16 %v4241
    %v5257 = vunpack.c.h.b16 %v4241
    %v5258 = vunpack.c.l.b16 %v4242
    %v5259 = vunpack.c.h.b16 %v4242
    %v5260 = vunpack.c.l.b16 %v4243
    %v5261 = vunpack.c.h.b16 %v4243
    %v5262 = vunpack.c.l.b16 %v4244
    %v5263 = vunpack.c.h.b16 %v4244
    %v5264 = vunpack.c.l.b16 %v4245
    %v5265 = vunpack.c.h.b16 %v4245
    %v5266 = vunpack.c.l.b16 %v4246
    %v5267 = vunpack.c.h.b16 %v4246
    %v5268 = vunpack.c.l.b16 %v4247
    %v5269 = vunpack.c.h.b16 %v4247
    %v5270 = vunpack.c.l.b16 %v4248
    %v5271 = vunpack.c.h.b16 %v4248
    %v5272 = vunpack.c.l.b16 %v4249
    %v5273 = vunpack.c.h.b16 %v4249
    %v5274 = vunpack.c.l.b16 %v4250
    %v5275 = vunpack.c.h.b16 %v4250
    %v5276 = vunpack.c.l.b16 %v4251
    %v5277 = vunpack.c.h.b16 %v4251
    %v5278 = vunpack.c.l.b16 %v4252
    %v5279 = vunpack.c.h.b16 %v4252
    %v5280 = vunpack.c.l.b16 %v4253
    %v5281 = vunpack.c.h.b16 %v4253
    %v5282 = vunpack.c.l.b16 %v4254
    %v5283 = vunpack.c.h.b16 %v4254
    %v5284 = vunpack.c.l.b16 %v4255
    %v5285 = vunpack.c.h.b16 %v4255
    %v5286 = vunpack.c.l.b16 %v4256
    %v5287 = vunpack.c.h.b16 %v4256
    %v5288 = vunpack.c.l.b16 %v4257
    %v5289 = vunpack.c.h.b16 %v4257
    %v5290 = vunpack.c.l.b16 %v4258
    %v5291 = vunpack.c.h.b16 %v4258
    %v5292 = vunpack.c.l.b16 %v4259
    %v5293 = vunpack.c.h.b16 %v4259
    %v5294 = vunpack.c.l.b16 %v4260
    %v5295 = vunpack.c.h.b16 %v4260
    %v5296 = vunpack.c.l.b16 %v4261
    %v5297 = vunpack.c.h.b16 %v4261
    %v5298 = vunpack.c.l.b16 %v4262
    %v5299 = vunpack.c.h.b16 %v4262
    %v5300 = vunpack.c.l.b16 %v4263
    %v5301 = vunpack.c.h.b16 %v4263
    %v5302 = vunpack.c.l.b16 %v4264
    %v5303 = vunpack.c.h.b16 %v4264
    %v5304 = vunpack.c.l.b16 %v4265
    %v5305 = vunpack.c.h.b16 %v4265
    %v5306 = vunpack.c.l.b16 %v4266
    %v5307 = vunpack.c.h.b16 %v4266
    %v5308 = vunpack.c.l.b16 %v4267
    %v5309 = vunpack.c.h.b16 %v4267
    %v5310 = vunpack.c.l.b16 %v4268
    %v5311 = vunpack.c.h.b16 %v4268
    %v5312 = vunpack.c.l.b16 %v4269
    %v5313 = vunpack.c.h.b16 %v4269
    %v5314 = vunpack.c.l.b16 %v4270
    %v5315 = vunpack.c.h.b16 %v4270
    %v5316 = vunpack.c.l.b16 %v4271
    %v5317 = vunpack.c.h.b16 %v4271
    %v5318 = vunpack.c.l.b16 %v4272
    %v5319 = vunpack.c.h.b16 %v4272
    %v5320 = vunpack.c.l.b16 %v4273
    %v5321 = vunpack.c.h.b16 %v4273
    %v5322 = vunpack.c.l.b16 %v4274
    %v5323 = vunpack.c.h.b16 %v4274
    %v5324 = vunpack.c.l.b16 %v4275
    %v5325 = vunpack.c.h.b16 %v4275
    %v5326 = vunpack.c.l.b16 %v4276
    %v5327 = vunpack.c.h.b16 %v4276
    %v5328 = vunpack.c.l.b16 %v4277
    %v5329 = vunpack.c.h.b16 %v4277
    %v5330 = vunpack.c.l.b16 %v4278
    %v5331 = vunpack.c.h.b16 %v4278
    %v5332 = vunpack.c.l.b16 %v4279
    %v5333 = vunpack.c.h.b16 %v4279
    %v5334 = vunpack.c.l.b16 %v4280
    %v5335 = vunpack.c.h.b16 %v4280
    %v5336 = vunpack.c.l.b16 %v4281
    %v5337 = vunpack.c.h.b16 %v4281
    %v5338 = vunpack.c.l.b16 %v4282
    %v5339 = vunpack.c.h.b16 %v4282
    %v5340 = vunpack.c.l.b16 %v4283
    %v5341 = vunpack.c.h.b16 %v4283
    %v5342 = vunpack.c.l.b16 %v4284
    %v5343 = vunpack.c.h.b16 %v4284
    %v5344 = vunpack.c.l.b16 %v4285
    %v5345 = vunpack.c.h.b16 %v4285
    %v5346 = vunpack.c.l.b16 %v4286
    %v5347 = vunpack.c.h.b16 %v4286
    %v5348 = vunpack.c.l.b16 %v4287
    %v5349 = vunpack.c.h.b16 %v4287
    %v5350 = vunpack.c.l.b16 %v4288
    %v5351 = vunpack.c.h.b16 %v4288
    %v5352 = vunpack.c.l.b16 %v4289
    %v5353 = vunpack.c.h.b16 %v4289
    %v5354 = vunpack.c.l.b16 %v4290
    %v5355 = vunpack.c.h.b16 %v4290
    %v5356 = vunpack.c.l.b16 %v4291
    %v5357 = vunpack.c.h.b16 %v4291
    %v5358 = vunpack.c.l.b16 %v4292
    %v5359 = vunpack.c.h.b16 %v4292
    %v5360 = vunpack.c.l.b16 %v4293
    %v5361 = vunpack.c.h.b16 %v4293
    %v5362 = vunpack.c.l.b16 %v4294
    %v5363 = vunpack.c.h.b16 %v4294
    %v5364 = vunpack.c.l.b16 %v4295
    %v5365 = vunpack.c.h.b16 %v4295
    %v5366 = vunpack.c.l.b16 %v4296
    %v5367 = vunpack.c.h.b16 %v4296
    %v5368 = vunpack.c.l.b16 %v4297
    %v5369 = vunpack.c.h.b16 %v4297
    %v5370 = vunpack.c.l.b16 %v4298
    %v5371 = vunpack.c.h.b16 %v4298
    %v5372 = vunpack.c.l.b16 %v4299
    %v5373 = vunpack.c.h.b16 %v4299
    %v5374 = vunpack.c.l.b16 %v4300
    %v5375 = vunpack.c.h.b16 %v4300
    %v5376 = vunpack.c.l.b16 %v4301
    %v5377 = vunpack.c.h.b16 %v4301
    %v5378 = vunpack.c.l.b16 %v4302
    %v5379 = vunpack.c.h.b16 %v4302
    %v5380 = vunpack.c.l.b16 %v4303
    %v5381 = vunpack.c.h.b16 %v4303
    %v5382 = vunpack.c.l.b16 %v4304
    %v5383 = vunpack.c.h.b16 %v4304
    %v5384 = vunpack.c.l.b16 %v4305
    %v5385 = vunpack.c.h.b16 %v4305
    %v5386 = vunpack.c.l.b16 %v4306
    %v5387 = vunpack.c.h.b16 %v4306
    %v5388 = vunpack.c.l.b16 %v4307
    %v5389 = vunpack.c.h.b16 %v4307
    %v5390 = vunpack.c.l.b16 %v4308
    %v5391 = vunpack.c.h.b16 %v4308
    %v5392 = vunpack.c.l.b16 %v4309
    %v5393 = vunpack.c.h.b16 %v4309
    %v5394 = vunpack.c.l.b16 %v4310
    %v5395 = vunpack.c.h.b16 %v4310
    %v5396 = vunpack.c.l.b16 %v4311
    %v5397 = vunpack.c.h.b16 %v4311
    %v5398 = vunpack.c.l.b16 %v4312
    %v5399 = vunpack.c.h.b16 %v4312
    %v5400 = vunpack.c.l.b16 %v4313
    %v5401 = vunpack.c.h.b16 %v4313
    %v5402 = vunpack.c.l.b16 %v4314
    %v5403 = vunpack.c.h.b16 %v4314
    %v5404 = vunpack.c.l.b16 %v4315
    %v5405 = vunpack.c.h.b16 %v4315
    %v5406 = vunpack.c.l.b16 %v4316
    %v5407 = vunpack.c.h.b16 %v4316
    %v5408 = vunpack.c.l.b16 %v4317
    %v5409 = vunpack.c.h.b16 %v4317
    %v5410 = vunpack.c.l.b16 %v4318
    %v5411 = vunpack.c.h.b16 %v4318
    %v5412 = vunpack.c.l.b16 %v4319
    %v5413 = vunpack.c.h.b16 %v4319
    %v5414 = vunpack.c.l.b16 %v4320
    %v5415 = vunpack.c.h.b16 %v4320
    %v5416 = vunpack.c.l.b16 %v4321
    %v5417 = vunpack.c.h.b16 %v4321
    %v5418 = vunpack.c.l.b16 %v4322
    %v5419 = vunpack.c.h.b16 %v4322
    %v5420 = vunpack.c.l.b16 %v4323
    %v5421 = vunpack.c.h.b16 %v4323
    %v5422 = vunpack.c.l.b16 %v4324
    %v5423 = vunpack.c.h.b16 %v4324
    %v5424 = vunpack.c.l.b16 %v4325
    %v5425 = vunpack.c.h.b16 %v4325
    %v5426 = vunpack.c.l.b16 %v4326
    %v5427 = vunpack.c.h.b16 %v4326
    %v5428 = vunpack.c.l.b16 %v4327
    %v5429 = vunpack.c.h.b16 %v4327
    %v5430 = vunpack.c.l.b16 %v4328
    %v5431 = vunpack.c.h.b16 %v4328
    %v5432 = vunpack.c.l.b16 %v4329
    %v5433 = vunpack.c.h.b16 %v4329
    %v5434 = vunpack.c.l.b16 %v4330
    %v5435 = vunpack.c.h.b16 %v4330
    %v5436 = vunpack.c.l.b16 %v4331
    %v5437 = vunpack.c.h.b16 %v4331
    %v5438 = vunpack.c.l.b16 %v4332
    %v5439 = vunpack.c.h.b16 %v4332
    %v5440 = vunpack.c.l.b16 %v4333
    %v5441 = vunpack.c.h.b16 %v4333
    %v5442 = vunpack.c.l.b16 %v4334
    %v5443 = vunpack.c.h.b16 %v4334
    %v5444 = vunpack.c.l.b16 %v4335
    %v5445 = vunpack.c.h.b16 %v4335
    %v5446 = vunpack.c.l.b16 %v4336
    %v5447 = vunpack.c.h.b16 %v4336
    %v5448 = vunpack.c.l.b16 %v4337
    %v5449 = vunpack.c.h.b16 %v4337
    %v5450 = vunpack.c.l.b16 %v4338
    %v5451 = vunpack.c.h.b16 %v4338
    %v5452 = vunpack.c.l.b16 %v4339
    %v5453 = vunpack.c.h.b16 %v4339
    %v5454 = vunpack.c.l.b16 %v4340
    %v5455 = vunpack.c.h.b16 %v4340
    %v5456 = vunpack.c.l.b16 %v4341
    %v5457 = vunpack.c.h.b16 %v4341
    %v5458 = vunpack.c.l.b16 %v4342
    %v5459 = vunpack.c.h.b16 %v4342
    %v5460 = vunpack.c.l.b16 %v4343
    %v5461 = vunpack.c.h.b16 %v4343
    %v5462 = vunpack.c.l.b16 %v4344
    %v5463 = vunpack.c.h.b16 %v4344
    %v5464 = vunpack.c.l.b16 %v4345
    %v5465 = vunpack.c.h.b16 %v4345
    %v5466 = vunpack.c.l.b16 %v4346
    %v5467 = vunpack.c.h.b16 %v4346
    %v5468 = vunpack.c.l.b16 %v4347
    %v5469 = vunpack.c.h.b16 %v4347
    %v5470 = vunpack.c.l.b16 %v4348
    %v5471 = vunpack.c.h.b16 %v4348
    %v5472 = vunpack.c.l.b16 %v4349
    %v5473 = vunpack.c.h.b16 %v4349
    %v5474 = vunpack.c.l.b16 %v4350
    %v5475 = vunpack.c.h.b16 %v4350
    %v5476 = vunpack.c.l.b16 %v4351
    %v5477 = vunpack.c.h.b16 %v4351
    %v5478 = vunpack.c.l.b16 %v4352
    %v5479 = vunpack.c.h.b16 %v4352
    %v5480 = vunpack.c.l.b16 %v4353
    %v5481 = vunpack.c.h.b16 %v4353
    %v5482 = vunpack.c.l.b16 %v4354
    %v5483 = vunpack.c.h.b16 %v4354
    %v5484 = vunpack.c.l.b16 %v4355
    %v5485 = vunpack.c.h.b16 %v4355
    %v5486 = vunpack.c.l.b16 %v4356
    %v5487 = vunpack.c.h.b16 %v4356
    %v5488 = vunpack.c.l.b16 %v4357
    %v5489 = vunpack.c.h.b16 %v4357
    %v5490 = vunpack.c.l.b16 %v4358
    %v5491 = vunpack.c.h.b16 %v4358
    %v5492 = vunpack.c.l.b16 %v4359
    %v5493 = vunpack.c.h.b16 %v4359
    %v5494 = vunpack.c.l.b16 %v4360
    %v5495 = vunpack.c.h.b16 %v4360
    %v5496 = vunpack.c.l.b16 %v4361
    %v5497 = vunpack.c.h.b16 %v4361
    %v5498 = vunpack.c.l.b16 %v4362
    %v5499 = vunpack.c.h.b16 %v4362
    %v5500 = vunpack.c.l.b16 %v4363
    %v5501 = vunpack.c.h.b16 %v4363
    %v5502 = vunpack.c.l.b16 %v4364
    %v5503 = vunpack.c.h.b16 %v4364
    %v5504 = vunpack.c.l.b16 %v4365
    %v5505 = vunpack.c.h.b16 %v4365
    %v5506 = vunpack.c.l.b16 %v4366
    %v5507 = vunpack.c.h.b16 %v4366
    %v5508 = vunpack.c.l.b16 %v4367
    %v5509 = vunpack.c.h.b16 %v4367
    %v5510 = vunpack.c.l.b16 %v4368
    %v5511 = vunpack.c.h.b16 %v4368
    %v5512 = vunpack.c.l.b16 %v4369
    %v5513 = vunpack.c.h.b16 %v4369
    %v5514 = vunpack.c.l.b16 %v4370
    %v5515 = vunpack.c.h.b16 %v4370
    %v5516 = vunpack.c.l.b16 %v4371
    %v5517 = vunpack.c.h.b16 %v4371
    %v5518 = vunpack.c.l.b16 %v4372
    %v5519 = vunpack.c.h.b16 %v4372
    %v5520 = vunpack.c.l.b16 %v4373
    %v5521 = vunpack.c.h.b16 %v4373
    %v5522 = vunpack.c.l.b16 %v4374
    %v5523 = vunpack.c.h.b16 %v4374
    %v5524 = vunpack.c.l.b16 %v4375
    %v5525 = vunpack.c.h.b16 %v4375
    %v5526 = vunpack.c.l.b16 %v4376
    %v5527 = vunpack.c.h.b16 %v4376
    %v5528 = vunpack.c.l.b16 %v4377
    %v5529 = vunpack.c.h.b16 %v4377
    %v5530 = vunpack.c.l.b16 %v4378
    %v5531 = vunpack.c.h.b16 %v4378
    %v5532 = vunpack.c.l.b16 %v4379
    %v5533 = vunpack.c.h.b16 %v4379
    %v5534 = vunpack.c.l.b16 %v4380
    %v5535 = vunpack.c.h.b16 %v4380
    %v5536 = vunpack.c.l.b16 %v4381
    %v5537 = vunpack.c.h.b16 %v4381
    %v5538 = vunpack.c.l.b16 %v4382
    %v5539 = vunpack.c.h.b16 %v4382
    %v5540 = vunpack.c.l.b16 %v4383
    %v5541 = vunpack.c.h.b16 %v4383
    %v5542 = vunpack.c.l.b16 %v4384
    %v5543 = vunpack.c.h.b16 %v4384
    %v5544 = vunpack.c.l.b16 %v4385
    %v5545 = vunpack.c.h.b16 %v4385
    %v5546 = vunpack.c.l.b16 %v4386
    %v5547 = vunpack.c.h.b16 %v4386
    %v5548 = vunpack.c.l.b16 %v4387
    %v5549 = vunpack.c.h.b16 %v4387
    %v5550 = vunpack.c.l.b16 %v4388
    %v5551 = vunpack.c.h.b16 %v4388
    %v5552 = vunpack.c.l.b16 %v4389
    %v5553 = vunpack.c.h.b16 %v4389
    %v5554 = vunpack.c.l.b16 %v4390
    %v5555 = vunpack.c.h.b16 %v4390
    %v5556 = vunpack.c.l.b16 %v4391
    %v5557 = vunpack.c.h.b16 %v4391
    %v5558 = vunpack.c.l.b16 %v4392
    %v5559 = vunpack.c.h.b16 %v4392
    %v5560 = vunpack.c.l.b16 %v4393
    %v5561 = vunpack.c.h.b16 %v4393
    %v5562 = vunpack.c.l.b16 %v4394
    %v5563 = vunpack.c.h.b16 %v4394
    %v5564 = vunpack.c.l.b16 %v4395
    %v5565 = vunpack.c.h.b16 %v4395
    %v5566 = vunpack.c.l.b16 %v4396
    %v5567 = vunpack.c.h.b16 %v4396
    %v5568 = vunpack.c.l.b16 %v4397
    %v5569 = vunpack.c.h.b16 %v4397
    %v5570 = vunpack.c.l.b16 %v4398
    %v5571 = vunpack.c.h.b16 %v4398
    %v5572 = vunpack.c.l.b16 %v4399
    %v5573 = vunpack.c.h.b16 %v4399
    %v5574 = vunpack.c.l.b16 %v4400
    %v5575 = vunpack.c.h.b16 %v4400
    %v5576 = vunpack.c.l.b16 %v4401
    %v5577 = vunpack.c.h.b16 %v4401
    %v5578 = vunpack.c.l.b16 %v4402
    %v5579 = vunpack.c.h.b16 %v4402
    %v5580 = vunpack.c.l.b16 %v4403
    %v5581 = vunpack.c.h.b16 %v4403
    %v5582 = vunpack.c.l.b16 %v4404
    %v5583 = vunpack.c.h.b16 %v4404
    %v5584 = vunpack.c.l.b16 %v4405
    %v5585 = vunpack.c.h.b16 %v4405
    %v5586 = vunpack.c.l.b16 %v4406
    %v5587 = vunpack.c.h.b16 %v4406
    %v5588 = vunpack.c.l.b16 %v4407
    %v5589 = vunpack.c.h.b16 %v4407
    %v5590 = vunpack.c.l.b16 %v4408
    %v5591 = vunpack.c.h.b16 %v4408
    %v5592 = vunpack.c.l.b16 %v4409
    %v5593 = vunpack.c.h.b16 %v4409
    %v5594 = vunpack.c.l.b16 %v4410
    %v5595 = vunpack.c.h.b16 %v4410
    %v5596 = vunpack.c.l.b16 %v4411
    %v5597 = vunpack.c.h.b16 %v4411
    %v5598 = vunpack.c.l.b16 %v4412
    %v5599 = vunpack.c.h.b16 %v4412
    %v5600 = vunpack.c.l.b16 %v4413
    %v5601 = vunpack.c.h.b16 %v4413
    %v5602 = vunpack.c.l.b16 %v4414
    %v5603 = vunpack.c.h.b16 %v4414
    %v5604 = vunpack.c.l.b16 %v4415
    %v5605 = vunpack.c.h.b16 %v4415
    %v5606 = vunpack.c.l.b16 %v4416
    %v5607 = vunpack.c.h.b16 %v4416
    %v5608 = vunpack.c.l.b16 %v4417
    %v5609 = vunpack.c.h.b16 %v4417
    %v5610 = vunpack.c.l.b16 %v4418
    %v5611 = vunpack.c.h.b16 %v4418
    %v5612 = vunpack.c.l.b16 %v4419
    %v5613 = vunpack.c.h.b16 %v4419
    %v5614 = vunpack.c.l.b16 %v4420
    %v5615 = vunpack.c.h.b16 %v4420
    %v5616 = vunpack.c.l.b16 %v4421
    %v5617 = vunpack.c.h.b16 %v4421
    %v5618 = vunpack.c.l.b16 %v4422
    %v5619 = vunpack.c.h.b16 %v4422
    %v5620 = vunpack.c.l.b16 %v4423
    %v5621 = vunpack.c.h.b16 %v4423
    %v5622 = vunpack.c.l.b16 %v4424
    %v5623 = vunpack.c.h.b16 %v4424
    %v5624 = vunpack.c.l.b16 %v4425
    %v5625 = vunpack.c.h.b16 %v4425
    %v5626 = vunpack.c.l.b16 %v4426
    %v5627 = vunpack.c.h.b16 %v4426
    %v5628 = vunpack.c.l.b16 %v4427
    %v5629 = vunpack.c.h.b16 %v4427
    %v5630 = vunpack.c.l.b16 %v4428
    %v5631 = vunpack.c.h.b16 %v4428
    %v5632 = vunpack.c.l.b16 %v4429
    %v5633 = vunpack.c.h.b16 %v4429
    %v5634 = vunpack.c.l.b16 %v4430
    %v5635 = vunpack.c.h.b16 %v4430
    %v5636 = vunpack.c.l.b16 %v4431
    %v5637 = vunpack.c.h.b16 %v4431
    %v5638 = vunpack.c.l.b16 %v4432
    %v5639 = vunpack.c.h.b16 %v4432
    %v5640 = vunpack.c.l.b16 %v4433
    %v5641 = vunpack.c.h.b16 %v4433
    %v5642 = vunpack.c.l.b16 %v4434
    %v5643 = vunpack.c.h.b16 %v4434
    %v5644 = vunpack.c.l.b16 %v4435
    %v5645 = vunpack.c.h.b16 %v4435
    %v5646 = vunpack.c.l.b16 %v4436
    %v5647 = vunpack.c.h.b16 %v4436
    %v5648 = vunpack.c.l.b16 %v4437
    %v5649 = vunpack.c.h.b16 %v4437
    %v5650 = vunpack.c.l.b16 %v4438
    %v5651 = vunpack.c.h.b16 %v4438
    %v5652 = vunpack.c.l.b16 %v4439
    %v5653 = vunpack.c.h.b16 %v4439
    %v5654 = vunpack.c.l.b16 %v4440
    %v5655 = vunpack.c.h.b16 %v4440
    %v5656 = vunpack.c.l.b16 %v4441
    %v5657 = vunpack.c.h.b16 %v4441
    %v5658 = vunpack.c.l.b16 %v4442
    %v5659 = vunpack.c.h.b16 %v4442
    %v5660 = vunpack.c.l.b16 %v4443
    %v5661 = vunpack.c.h.b16 %v4443
    %v5662 = vunpack.c.l.b16 %v4444
    %v5663 = vunpack.c.h.b16 %v4444
    %v5664 = vunpack.c.l.b16 %v4445
    %v5665 = vunpack.c.h.b16 %v4445
    %v5666 = vunpack.c.l.b16 %v4446
    %v5667 = vunpack.c.h.b16 %v4446
    %v5668 = vunpack.c.l.b16 %v4447
    %v5669 = vunpack.c.h.b16 %v4447
    %v5670 = vunpack.c.l.b16 %v4448
    %v5671 = vunpack.c.h.b16 %v4448
    %v5672 = vunpack.c.l.b16 %v4449
    %v5673 = vunpack.c.h.b16 %v4449
    %v5674 = vunpack.c.l.b16 %v4450
    %v5675 = vunpack.c.h.b16 %v4450
    %v5676 = vunpack.c.l.b16 %v4451
    %v5677 = vunpack.c.h.b16 %v4451
    %v5678 = vunpack.c.l.b16 %v4452
    %v5679 = vunpack.c.h.b16 %v4452
    %v5680 = vunpack.c.l.b16 %v4453
    %v5681 = vunpack.c.h.b16 %v4453
    %v5682 = vunpack.c.l.b16 %v4454
    %v5683 = vunpack.c.h.b16 %v4454
    %v5684 = vunpack.c.l.b16 %v4455
    %v5685 = vunpack.c.h.b16 %v4455
    %v5686 = vunpack.c.l.b16 %v4456
    %v5687 = vunpack.c.h.b16 %v4456
    %v5688 = vunpack.c.l.b16 %v4457
    %v5689 = vunpack.c.h.b16 %v4457
    %v5690 = vunpack.c.l.b16 %v4458
    %v5691 = vunpack.c.h.b16 %v4458
    %v5692 = vunpack.c.l.b16 %v4459
    %v5693 = vunpack.c.h.b16 %v4459
    %v5694 = vunpack.c.l.b16 %v4460
    %v5695 = vunpack.c.h.b16 %v4460
    %v5696 = vunpack.c.l.b16 %v4461
    %v5697 = vunpack.c.h.b16 %v4461
    %v5698 = vunpack.c.l.b16 %v4462
    %v5699 = vunpack.c.h.b16 %v4462
    %v5700 = vunpack.c.l.b16 %v4463
    %v5701 = vunpack.c.h.b16 %v4463
    %v5702 = vunpack.c.l.b16 %v4464
    %v5703 = vunpack.c.h.b16 %v4464
    %v5704 = vpack.c.b16 %v4908, %v4904
    %v5705 = vpack.c.b16 %v4909, %v4905
    %v5706 = vpack.c.b16 %v4910, %v4906
    %v5707 = vpack.c.b16 %v4911, %v4907
    %v5708 = vpack.c.b16 %v4916, %v4912
    %v5709 = vpack.c.b16 %v4917, %v4913
    %v5710 = vpack.c.b16 %v4918, %v4914
    %v5711 = vpack.c.b16 %v4919, %v4915
    %v5712 = vpack.c.b16 %v4924, %v4920
    %v5713 = vpack.c.b16 %v4925, %v4921
    %v5714 = vpack.c.b16 %v4926, %v4922
    %v5715 = vpack.c.b16 %v4927, %v4923
    %v5716 = vpack.c.b16 %v4932, %v4928
    %v5717 = vpack.c.b16 %v4933, %v4929
    %v5718 = vpack.c.b16 %v4934, %v4930
    %v5719 = vpack.c.b16 %v4935, %v4931
    %v5720 = vpack.c.b16 %v4940, %v4936
    %v5721 = vpack.c.b16 %v4941, %v4937
    %v5722 = vpack.c.b16 %v4942, %v4938
    %v5723 = vpack.c.b16 %v4943, %v4939
    %v5724 = vpack.c.b16 %v4948, %v4944
    %v5725 = vpack.c.b16 %v4949, %v4945
    %v5726 = vpack.c.b16 %v4950, %v4946
    %v5727 = vpack.c.b16 %v4951, %v4947
    %v5728 = vpack.c.b16 %v4956, %v4952
    %v5729 = vpack.c.b16 %v4957, %v4953
    %v5730 = vpack.c.b16 %v4958, %v4954
    %v5731 = vpack.c.b16 %v4959, %v4955
    %v5732 = vpack.c.b16 %v4964, %v4960
    %v5733 = vpack.c.b16 %v4965, %v4961
    %v5734 = vpack.c.b16 %v4966, %v4962
    %v5735 = vpack.c.b16 %v4967, %v4963
    %v5736 = vpack.c.b16 %v4972, %v4968
    %v5737 = vpack.c.b16 %v4973, %v4969
    %v5738 = vpack.c.b16 %v4974, %v4970
    %v5739 = vpack.c.b16 %v4975, %v4971
    %v5740 = vpack.c.b16 %v4980, %v4976
    %v5741 = vpack.c.b16 %v4981, %v4977
    %v5742 = vpack.c.b16 %v4982, %v4978
    %v5743 = vpack.c.b16 %v4983, %v4979
    %v5744 = vpack.c.b16 %v4988, %v4984
    %v5745 = vpack.c.b16 %v4989, %v4985
    %v5746 = vpack.c.b16 %v4990, %v4986
    %v5747 = vpack.c.b16 %v4991, %v4987
    %v5748 = vpack.c.b16 %v4996, %v4992
    %v5749 = vpack.c.b16 %v4997, %v4993
    %v5750 = vpack.c.b16 %v4998, %v4994
    %v5751 = vpack.c.b16 %v4999, %v4995
    %v5752 = vpack.c.b16 %v5004, %v5000
    %v5753 = vpack.c.b16 %v5005, %v5001
    %v5754 = vpack.c.b16 %v5006, %v5002
    %v5755 = vpack.c.b16 %v5007, %v5003
    %v5756 = vpack.c.b16 %v5012, %v5008
    %v5757 = vpack.c.b16 %v5013, %v5009
    %v5758 = vpack.c.b16 %v5014, %v5010
    %v5759 = vpack.c.b16 %v5015, %v5011
    %v5760 = vpack.c.b16 %v5020, %v5016
    %v5761 = vpack.c.b16 %v5021, %v5017
    %v5762 = vpack.c.b16 %v5022, %v5018
    %v5763 = vpack.c.b16 %v5023, %v5019
    %v5764 = vpack.c.b16 %v5028, %v5024
    %v5765 = vpack.c.b16 %v5029, %v5025
    %v5766 = vpack.c.b16 %v5030, %v5026
    %v5767 = vpack.c.b16 %v5031, %v5027
    %v5768 = vpack.c.b16 %v5036, %v5032
    %v5769 = vpack.c.b16 %v5037, %v5033
    %v5770 = vpack.c.b16 %v5038, %v5034
    %v5771 = vpack.c.b16 %v5039, %v5035
    %v5772 = vpack.c.b16 %v5044, %v5040
    %v5773 = vpack.c.b16 %v5045, %v5041
    %v5774 = vpack.c.b16 %v5046, %v5042
    %v5775 = vpack.c.b16 %v5047, %v5043
    %v5776 = vpack.c.b16 %v5052, %v5048
    %v5777 = vpack.c.b16 %v5053, %v5049
    %v5778 = vpack.c.b16 %v5054, %v5050
    %v5779 = vpack.c.b16 %v5055, %v5051
    %v5780 = vpack.c.b16 %v5060, %v5056
    %v5781 = vpack.c.b16 %v5061, %v5057
    %v5782 = vpack.c.b16 %v5062, %v5058
    %v5783 = vpack.c.b16 %v5063, %v5059
    %v5784 = vpack.c.b16 %v5068, %v5064
    %v5785 = vpack.c.b16 %v5069, %v5065
    %v5786 = vpack.c.b16 %v5070, %v5066
    %v5787 = vpack.c.b16 %v5071, %v5067
    %v5788 = vpack.c.b16 %v5076, %v5072
    %v5789 = vpack.c.b16 %v5077, %v5073
    %v5790 = vpack.c.b16 %v5078, %v5074
    %v5791 = vpack.c.b16 %v5079, %v5075
    %v5792 = vpack.c.b16 %v5084, %v5080
    %v5793 = vpack.c.b16 %v5085, %v5081
    %v5794 = vpack.c.b16 %v5086, %v5082
    %v5795 = vpack.c.b16 %v5087, %v5083
    %v5796 = vpack.c.b16 %v5092, %v5088
    %v5797 = vpack.c.b16 %v5093, %v5089
    %v5798 = vpack.c.b16 %v5094, %v5090
    %v5799 = vpack.c.b16 %v5095, %v5091
    %v5800 = vpack.c.b16 %v5100, %v5096
    %v5801 = vpack.c.b16 %v5101, %v5097
    %v5802 = vpack.c.b16 %v5102, %v5098
    %v5803 = vpack.c.b16 %v5103, %v5099
    %v5804 = vpack.c.b16 %v5108, %v5104
    %v5805 = vpack.c.b16 %v5109, %v5105
    %v5806 = vpack.c.b16 %v5110, %v5106
    %v5807 = vpack.c.b16 %v5111, %v5107
    %v5808 = vpack.c.b16 %v5116, %v5112
    %v5809 = vpack.c.b16 %v5117, %v5113
    %v5810 = vpack.c.b16 %v5118, %v5114
    %v5811 = vpack.c.b16 %v5119, %v5115
    %v5812 = vpack.c.b16 %v5124, %v5120
    %v5813 = vpack.c.b16 %v5125, %v5121
    %v5814 = vpack.c.b16 %v5126, %v5122
    %v5815 = vpack.c.b16 %v5127, %v5123
    %v5816 = vpack.c.b16 %v5132, %v5128
    %v5817 = vpack.c.b16 %v5133, %v5129
    %v5818 = vpack.c.b16 %v5134, %v5130
    %v5819 = vpack.c.b16 %v5135, %v5131
    %v5820 = vpack.c.b16 %v5140, %v5136
    %v5821 = vpack.c.b16 %v5141, %v5137
    %v5822 = vpack.c.b16 %v5142, %v5138
    %v5823 = vpack.c.b16 %v5143, %v5139
    %v5824 = vpack.c.b16 %v5148, %v5144
    %v5825 = vpack.c.b16 %v5149, %v5145
    %v5826 = vpack.c.b16 %v5150, %v5146
    %v5827 = vpack.c.b16 %v5151, %v5147
    %v5828 = vpack.c.b16 %v5156, %v5152
    %v5829 = vpack.c.b16 %v5157, %v5153
    %v5830 = vpack.c.b16 %v5158, %v5154
    %v5831 = vpack.c.b16 %v5159, %v5155
    %v5832 = vpack.c.b16 %v5164, %v5160
    %v5833 = vpack.c.b16 %v5165, %v5161
    %v5834 = vpack.c.b16 %v5166, %v5162
    %v5835 = vpack.c.b16 %v5167, %v5163
    %v5836 = vpack.c.b16 %v5172, %v5168
    %v5837 = vpack.c.b16 %v5173, %v5169
    %v5838 = vpack.c.b16 %v5174, %v5170
    %v5839 = vpack.c.b16 %v5175, %v5171
    %v5840 = vpack.c.b16 %v5180, %v5176
    %v5841 = vpack.c.b16 %v5181, %v5177
    %v5842 = vpack.c.b16 %v5182, %v5178
    %v5843 = vpack.c.b16 %v5183, %v5179
    %v5844 = vpack.c.b16 %v5188, %v5184
    %v5845 = vpack.c.b16 %v5189, %v5185
    %v5846 = vpack.c.b16 %v5190, %v5186
    %v5847 = vpack.c.b16 %v5191, %v5187
    %v5848 = vpack.c.b16 %v5196, %v5192
    %v5849 = vpack.c.b16 %v5197, %v5193
    %v5850 = vpack.c.b16 %v5198, %v5194
    %v5851 = vpack.c.b16 %v5199, %v5195
    %v5852 = vpack.c.b16 %v5204, %v5200
    %v5853 = vpack.c.b16 %v5205, %v5201
    %v5854 = vpack.c.b16 %v5206, %v5202
    %v5855 = vpack.c.b16 %v5207, %v5203
    %v5856 = vpack.c.b16 %v5212, %v5208
    %v5857 = vpack.c.b16 %v5213, %v5209
    %v5858 = vpack.c.b16 %v5214, %v5210
    %v5859 = vpack.c.b16 %v5215, %v5211
    %v5860 = vpack.c.b16 %v5220, %v5216
    %v5861 = vpack.c.b16 %v5221, %v5217
    %v5862 = vpack.c.b16 %v5222, %v5218
    %v5863 = vpack.c.b16 %v5223, %v5219
    %v5864 = vpack.c.b16 %v5228, %v5224
    %v5865 = vpack.c.b16 %v5229, %v5225
    %v5866 = vpack.c.b16 %v5230, %v5226
    %v5867 = vpack.c.b16 %v5231, %v5227
    %v5868 = vpack.c.b16 %v5236, %v5232
    %v5869 = vpack.c.b16 %v5237, %v5233
    %v5870 = vpack.c.b16 %v5238, %v5234
    %v5871 = vpack.c.b16 %v5239, %v5235
    %v5872 = vpack.c.b16 %v5244, %v5240
    %v5873 = vpack.c.b16 %v5245, %v5241
    %v5874 = vpack.c.b16 %v5246, %v5242
    %v5875 = vpack.c.b16 %v5247, %v5243
    %v5876 = vpack.c.b16 %v5252, %v5248
    %v5877 = vpack.c.b16 %v5253, %v5249
    %v5878 = vpack.c.b16 %v5254, %v5250
    %v5879 = vpack.c.b16 %v5255, %v5251
    %v5880 = vpack.c.b16 %v5260, %v5256
    %v5881 = vpack.c.b16 %v5261, %v5257
    %v5882 = vpack.c.b16 %v5262, %v5258
    %v5883 = vpack.c.b16 %v5263, %v5259
    %v5884 = vpack.c.b16 %v5268, %v5264
    %v5885 = vpack.c.b16 %v5269, %v5265
    %v5886 = vpack.c.b16 %v5270, %v5266
    %v5887 = vpack.c.b16 %v5271, %v5267
    %v5888 = vpack.c.b16 %v5276, %v5272
    %v5889 = vpack.c.b16 %v5277, %v5273
    %v5890 = vpack.c.b16 %v5278, %v5274
    %v5891 = vpack.c.b16 %v5279, %v5275
    %v5892 = vpack.c.b16 %v5284, %v5280
    %v5893 = vpack.c.b16 %v5285, %v5281
    %v5894 = vpack.c.b16 %v5286, %v5282
    %v5895 = vpack.c.b16 %v5287, %v5283
    %v5896 = vpack.c.b16 %v5292, %v5288
    %v5897 = vpack.c.b16 %v5293, %v5289
    %v5898 = vpack.c.b16 %v5294, %v5290
    %v5899 = vpack.c.b16 %v5295, %v5291
    %v5900 = vpack.c.b16 %v5300, %v5296
    %v5901 = vpack.c.b16 %v5301, %v5297
    %v5902 = vpack.c.b16 %v5302, %v5298
    %v5903 = vpack.c.b16 %v5303, %v5299
    %v5904 = vpack.c.b16 %v5308, %v5304
    %v5905 = vpack.c.b16 %v5309, %v5305
    %v5906 = vpack.c.b16 %v5310, %v5306
    %v5907 = vpack.c.b16 %v5311, %v5307
    %v5908 = vpack.c.b16 %v5316, %v5312
    %v5909 = vpack.c.b16 %v5317, %v5313
    %v5910 = vpack.c.b16 %v5318, %v5314
    %v5911 = vpack.c.b16 %v5319, %v5315
    %v5912 = vpack.c.b16 %v5324, %v5320
    %v5913 = vpack.c.b16 %v5325, %v5321
    %v5914 = vpack.c.b16 %v5326, %v5322
    %v5915 = vpack.c.b16 %v5327, %v5323
    %v5916 = vpack.c.b16 %v5332, %v5328
    %v5917 = vpack.c.b16 %v5333, %v5329
    %v5918 = vpack.c.b16 %v5334, %v5330
    %v5919 = vpack.c.b16 %v5335, %v5331
    %v5920 = vpack.c.b16 %v5340, %v5336
    %v5921 = vpack.c.b16 %v5341, %v5337
    %v5922 = vpack.c.b16 %v5342, %v5338
    %v5923 = vpack.c.b16 %v5343, %v5339
    %v5924 = vpack.c.b16 %v5348, %v5344
    %v5925 = vpack.c.b16 %v5349, %v5345
    %v5926 = vpack.c.b16 %v5350, %v5346
    %v5927 = vpack.c.b16 %v5351, %v5347
    %v5928 = vpack.c.b16 %v5356, %v5352
    %v5929 = vpack.c.b16 %v5357, %v5353
    %v5930 = vpack.c.b16 %v5358, %v5354
    %v5931 = vpack.c.b16 %v5359, %v5355
    %v5932 = vpack.c.b16 %v5364, %v5360
    %v5933 = vpack.c.b16 %v5365, %v5361
    %v5934 = vpack.c.b16 %v5366, %v5362
    %v5935 = vpack.c.b16 %v5367, %v5363
    %v5936 = vpack.c.b16 %v5372, %v5368
    %v5937 = vpack.c.b16 %v5373, %v5369
    %v5938 = vpack.c.b16 %v5374, %v5370
    %v5939 = vpack.c.b16 %v5375, %v5371
    %v5940 = vpack.c.b16 %v5380, %v5376
    %v5941 = vpack.c.b16 %v5381, %v5377
    %v5942 = vpack.c.b16 %v5382, %v5378
    %v5943 = vpack.c.b16 %v5383, %v5379
    %v5944 = vpack.c.b16 %v5388, %v5384
    %v5945 = vpack.c.b16 %v5389, %v5385
    %v5946 = vpack.c.b16 %v5390, %v5386
    %v5947 = vpack.c.b16 %v5391, %v5387
    %v5948 = vpack.c.b16 %v5396, %v5392
    %v5949 = vpack.c.b16 %v5397, %v5393
    %v5950 = vpack.c.b16 %v5398, %v5394
    %v5951 = vpack.c.b16 %v5399, %v5395
    %v5952 = vpack.c.b16 %v5404, %v5400
    %v5953 = vpack.c.b16 %v5405, %v5401
    %v5954 = vpack.c.b16 %v5406, %v5402
    %v5955 = vpack.c.b16 %v5407, %v5403
    %v5956 = vpack.c.b16 %v5412, %v5408
    %v5957 = vpack.c.b16 %v5413, %v5409
    %v5958 = vpack.c.b16 %v5414, %v5410
    %v5959 = vpack.c.b16 %v5415, %v5411
    %v5960 = vpack.c.b16 %v5420, %v5416
    %v5961 = vpack.c.b16 %v5421, %v5417
    %v5962 = vpack.c.b16 %v5422, %v5418
    %v5963 = vpack.c.b16 %v5423, %v5419
    %v5964 = vpack.c.b16 %v5428, %v5424
    %v5965 = vpack.c.b16 %v5429, %v5425
    %v5966 = vpack.c.b16 %v5430, %v5426
    %v5967 = vpack.c.b16 %v5431, %v5427
    %v5968 = vpack.c.b16 %v5436, %v5432
    %v5969 = vpack.c.b16 %v5437, %v5433
    %v5970 = vpack.c.b16 %v5438, %v5434
    %v5971 = vpack.c.b16 %v5439, %v5435
    %v5972 = vpack.c.b16 %v5444, %v5440
    %v5973 = vpack.c.b16 %v5445, %v5441
    %v5974 = vpack.c.b16 %v5446, %v5442
    %v5975 = vpack.c.b16 %v5447, %v5443
    %v5976 = vpack.c.b16 %v5452, %v5448
    %v5977 = vpack.c.b16 %v5453, %v5449
    %v5978 = vpack.c.b16 %v5454, %v5450
    %v5979 = vpack.c.b16 %v5455, %v5451
    %v5980 = vpack.c.b16 %v5460, %v5456
    %v5981 = vpack.c.b16 %v5461, %v5457
    %v5982 = vpack.c.b16 %v5462, %v5458
    %v5983 = vpack.c.b16 %v5463, %v5459
    %v5984 = vpack.c.b16 %v5468, %v5464
    %v5985 = vpack.c.b16 %v5469, %v5465
    %v5986 = vpack.c.b16 %v5470, %v5466
    %v5987 = vpack.c.b16 %v5471, %v5467
    %v5988 = vpack.c.b16 %v5476, %v5472
    %v5989 = vpack.c.b16 %v5477, %v5473
    %v5990 = vpack.c.b16 %v5478, %v5474
    %v5991 = vpack.c.b16 %v5479, %v5475
    %v5992 = vpack.c.b16 %v5484, %v5480
    %v5993 = vpack.c.b16 %v5485, %v5481
    %v5994 = vpack.c.b16 %v5486, %v5482
    %v5995 = vpack.c.b16 %v5487, %v5483
    %v5996 = vpack.c.b16 %v5492, %v5488
    %v5997 = vpack.c.b16 %v5493, %v5489
    %v5998 = vpack.c.b16 %v5494, %v5490
    %v5999 = vpack.c.b16 %v5495, %v5491
    %v6000 = vpack.c.b16 %v5500, %v5496
    %v6001 = vpack.c.b16 %v5501, %v5497
    %v6002 = vpack.c.b16 %v5502, %v5498
    %v6003 = vpack.c.b16 %v5503, %v5499
    %v6004 = vpack.c.b16 %v5508, %v5504
    %v6005 = vpack.c.b16 %v5509, %v5505
    %v6006 = vpack.c.b16 %v5510, %v5506
    %v6007 = vpack.c.b16 %v5511, %v5507
    %v6008 = vpack.c.b16 %v5516, %v5512
    %v6009 = vpack.c.b16 %v5517, %v5513
    %v6010 = vpack.c.b16 %v5518, %v5514
    %v6011 = vpack.c.b16 %v5519, %v5515
    %v6012 = vpack.c.b16 %v5524, %v5520
    %v6013 = vpack.c.b16 %v5525, %v5521
    %v6014 = vpack.c.b16 %v5526, %v5522
    %v6015 = vpack.c.b16 %v5527, %v5523
    %v6016 = vpack.c.b16 %v5532, %v5528
    %v6017 = vpack.c.b16 %v5533, %v5529
    %v6018 = vpack.c.b16 %v5534, %v5530
    %v6019 = vpack.c.b16 %v5535, %v5531
    %v6020 = vpack.c.b16 %v5540, %v5536
    %v6021 = vpack.c.b16 %v5541, %v5537
    %v6022 = vpack.c.b16 %v5542, %v5538
    %v6023 = vpack.c.b16 %v5543, %v5539
    %v6024 = vpack.c.b16 %v5548, %v5544
    %v6025 = vpack.c.b16 %v5549, %v5545
    %v6026 = vpack.c.b16 %v5550, %v5546
    %v6027 = vpack.c.b16 %v5551, %v5547
    %v6028 = vpack.c.b16 %v5556, %v5552
    %v6029 = vpack.c.b16 %v5557, %v5553
    %v6030 = vpack.c.b16 %v5558, %v5554
    %v6031 = vpack.c.b16 %v5559, %v5555
    %v6032 = vpack.c.b16 %v5564, %v5560
    %v6033 = vpack.c.b16 %v5565, %v5561
    %v6034 = vpack.c.b16 %v5566, %v5562
    %v6035 = vpack.c.b16 %v5567, %v5563
    %v6036 = vpack.c.b16 %v5572, %v5568
    %v6037 = vpack.c.b16 %v5573, %v5569
    %v6038 = vpack.c.b16 %v5574, %v5570
    %v6039 = vpack.c.b16 %v5575, %v5571
    %v6040 = vpack.c.b16 %v5580, %v5576
    %v6041 = vpack.c.b16 %v5581, %v5577
    %v6042 = vpack.c.b16 %v5582, %v5578
    %v6043 = vpack.c.b16 %v5583, %v5579
    %v6044 = vpack.c.b16 %v5588, %v5584
    %v6045 = vpack.c.b16 %v5589, %v5585
    %v6046 = vpack.c.b16 %v5590, %v5586
    %v6047 = vpack.c.b16 %v5591, %v5587
    %v6048 = vpack.c.b16 %v5596, %v5592
    %v6049 = vpack.c.b16 %v5597, %v5593
    %v6050 = vpack.c.b16 %v5598, %v5594
    %v6051 = vpack.c.b16 %v5599, %v5595
    %v6052 = vpack.c.b16 %v5604, %v5600
    %v6053 = vpack.c.b16 %v5605, %v5601
    %v6054 = vpack.c.b16 %v5606, %v5602
    %v6055 = vpack.c.b16 %v5607, %v5603
    %v6056 = vpack.c.b16 %v5612, %v5608
    %v6057 = vpack.c.b16 %v5613, %v5609
    %v6058 = vpack.c.b16 %v5614, %v5610
    %v6059 = vpack.c.b16 %v5615, %v5611
    %v6060 = vpack.c.b16 %v5620, %v5616
    %v6061 = vpack.c.b16 %v5621, %v5617
    %v6062 = vpack.c.b16 %v5622, %v5618
    %v6063 = vpack.c.b16 %v5623, %v5619
    %v6064 = vpack.c.b16 %v5628, %v5624
    %v6065 = vpack.c.b16 %v5629, %v5625
    %v6066 = vpack.c.b16 %v5630, %v5626
    %v6067 = vpack.c.b16 %v5631, %v5627
    %v6068 = vpack.c.b16 %v5636, %v5632
    %v6069 = vpack.c.b16 %v5637, %v5633
    %v6070 = vpack.c.b16 %v5638, %v5634
    %v6071 = vpack.c.b16 %v5639, %v5635
    %v6072 = vpack.c.b16 %v5644, %v5640
    %v6073 = vpack.c.b16 %v5645, %v5641
    %v6074 = vpack.c.b16 %v5646, %v5642
    %v6075 = vpack.c.b16 %v5647, %v5643
    %v6076 = vpack.c.b16 %v5652, %v5648
    %v6077 = vpack.c.b16 %v5653, %v5649
    %v6078 = vpack.c.b16 %v5654, %v5650
    %v6079 = vpack.c.b16 %v5655, %v5651
    %v6080 = vpack.c.b16 %v5660, %v5656
    %v6081 = vpack.c.b16 %v5661, %v5657
    %v6082 = vpack.c.b16 %v5662, %v5658
    %v6083 = vpack.c.b16 %v5663, %v5659
    %v6084 = vpack.c.b16 %v5668, %v5664
    %v6085 = vpack.c.b16 %v5669, %v5665
    %v6086 = vpack.c.b16 %v5670, %v5666
    %v6087 = vpack.c.b16 %v5671, %v5667
    %v6088 = vpack.c.b16 %v5676, %v5672
    %v6089 = vpack.c.b16 %v5677, %v5673
    %v6090 = vpack.c.b16 %v5678, %v5674
    %v6091 = vpack.c.b16 %v5679, %v5675
    %v6092 = vpack.c.b16 %v5684, %v5680
    %v6093 = vpack.c.b16 %v5685, %v5681
    %v6094 = vpack.c.b16 %v5686, %v5682
    %v6095 = vpack.c.b16 %v5687, %v5683
    %v6096 = vpack.c.b16 %v5692, %v5688
    %v6097 = vpack.c.b16 %v5693, %v5689
    %v6098 = vpack.c.b16 %v5694, %v5690
    %v6099 = vpack.c.b16 %v5695, %v5691
    %v6100 = vpack.c.b16 %v5700, %v5696
    %v6101 = vpack.c.b16 %v5701, %v5697
    %v6102 = vpack.c.b16 %v5702, %v5698
    %v6103 = vpack.c.b16 %v5703, %v5699
    %vm6504 = vcmask 523264
    %v6505 = vsel %vm6504, %v4491, 0
    %6507 = vmatpush.bf16.msra.mxu0 %v5732
    %6508 = vmatpush.bf16.msra.mxu0 %v5728
    %6509 = vmatpush.bf16.msra.mxu0 %v5724
    %6510 = vmatpush.bf16.msra.mxu0 %v5720
    %6511 = vmatpush.bf16.msra.mxu0 %v5716
    %6512 = vmatpush.bf16.msra.mxu0 %v5712
    %6513 = vmatpush.bf16.msra.mxu0 %v5708
    %6514 = vmatpush.bf16.msra.mxu0 %v5704
    %6515 = vmatmul.bf16.gmra.mxu0 %v4477
    %v6516 = vpop.f32.mrf.mxu0
    %v6517 = vadd.f32 %v4467, %v6516
    %v6518 = vpop.f32.mrf.mxu0
    %6519 = vdwg.mxu0
    %6520 = vmatpush.bf16.msra.mxu0 %v5764
    %6521 = vmatpush.bf16.msra.mxu0 %v5760
    %6522 = vmatpush.bf16.msra.mxu0 %v5756
    %6523 = vmatpush.bf16.msra.mxu0 %v5752
    %6524 = vmatpush.bf16.msra.mxu0 %v5748
    %6525 = vmatpush.bf16.msra.mxu0 %v5744
    %6526 = vmatpush.bf16.msra.mxu0 %v5740
    %6527 = vmatpush.bf16.msra.mxu0 %v5736
    %6528 = vmatmul.bf16.gmra.mxu0 %v4478
    %v6529 = vpop.f32.mrf.mxu0
    %v6530 = vadd.f32 %v6517, %v6529
    %v6531 = vpop.f32.mrf.mxu0
    %6532 = vdwg.mxu0
    %6533 = vmatpush.bf16.msra.mxu0 %v5796
    %6534 = vmatpush.bf16.msra.mxu0 %v5792
    %6535 = vmatpush.bf16.msra.mxu0 %v5788
    %6536 = vmatpush.bf16.msra.mxu0 %v5784
    %6537 = vmatpush.bf16.msra.mxu0 %v5780
    %6538 = vmatpush.bf16.msra.mxu0 %v5776
    %6539 = vmatpush.bf16.msra.mxu0 %v5772
    %6540 = vmatpush.bf16.msra.mxu0 %v5768
    %6541 = vmatmul.bf16.gmra.mxu0 %v4479
    %v6542 = vpop.f32.mrf.mxu0
    %v6543 = vadd.f32 %v6530, %v6542
    %v6544 = vpop.f32.mrf.mxu0
    %6545 = vdwg.mxu0
    %6546 = vmatpush.bf16.msra.mxu0 %v5828
    %6547 = vmatpush.bf16.msra.mxu0 %v5824
    %6548 = vmatpush.bf16.msra.mxu0 %v5820
    %6549 = vmatpush.bf16.msra.mxu0 %v5816
    %6550 = vmatpush.bf16.msra.mxu0 %v5812
    %6551 = vmatpush.bf16.msra.mxu0 %v5808
    %6552 = vmatpush.bf16.msra.mxu0 %v5804
    %6553 = vmatpush.bf16.msra.mxu0 %v5800
    %6554 = vmatmul.bf16.gmra.mxu0 %v4480
    %v6555 = vpop.f32.mrf.mxu0
    %v6556 = vadd.f32 %v6543, %v6555
    %v6557 = vpop.f32.mrf.mxu0
    %6558 = vdwg.mxu0
    %6559 = vmatpush.bf16.msra.mxu0 %v5860
    %6560 = vmatpush.bf16.msra.mxu0 %v5856
    %6561 = vmatpush.bf16.msra.mxu0 %v5852
    %6562 = vmatpush.bf16.msra.mxu0 %v5848
    %6563 = vmatpush.bf16.msra.mxu0 %v5844
    %6564 = vmatpush.bf16.msra.mxu0 %v5840
    %6565 = vmatpush.bf16.msra.mxu0 %v5836
    %6566 = vmatpush.bf16.msra.mxu0 %v5832
    %6567 = vmatmul.bf16.gmra.mxu0 %v4481
    %v6568 = vpop.f32.mrf.mxu0
    %v6569 = vadd.f32 %v6556, %v6568
    %v6570 = vpop.f32.mrf.mxu0
    %6571 = vdwg.mxu0
    %6572 = vmatpush.bf16.msra.mxu0 %v5892
    %6573 = vmatpush.bf16.msra.mxu0 %v5888
    %6574 = vmatpush.bf16.msra.mxu0 %v5884
    %6575 = vmatpush.bf16.msra.mxu0 %v5880
    %6576 = vmatpush.bf16.msra.mxu0 %v5876
    %6577 = vmatpush.bf16.msra.mxu0 %v5872
    %6578 = vmatpush.bf16.msra.mxu0 %v5868
    %6579 = vmatpush.bf16.msra.mxu0 %v5864
    %6580 = vmatmul.bf16.gmra.mxu0 %v4482
    %v6581 = vpop.f32.mrf.mxu0
    %v6582 = vadd.f32 %v6569, %v6581
    %v6583 = vpop.f32.mrf.mxu0
    %6584 = vdwg.mxu0
    %6585 = vmatpush.bf16.msra.mxu0 %v5924
    %6586 = vmatpush.bf16.msra.mxu0 %v5920
    %6587 = vmatpush.bf16.msra.mxu0 %v5916
    %6588 = vmatpush.bf16.msra.mxu0 %v5912
    %6589 = vmatpush.bf16.msra.mxu0 %v5908
    %6590 = vmatpush.bf16.msra.mxu0 %v5904
    %6591 = vmatpush.bf16.msra.mxu0 %v5900
    %6592 = vmatpush.bf16.msra.mxu0 %v5896
    %6593 = vmatmul.bf16.gmra.mxu0 %v4483
    %v6594 = vpop.f32.mrf.mxu0
    %v6595 = vadd.f32 %v6582, %v6594
    %v6596 = vpop.f32.mrf.mxu0
    %6597 = vdwg.mxu0
    %6598 = vmatpush.bf16.msra.mxu0 %v5956
    %6599 = vmatpush.bf16.msra.mxu0 %v5952
    %6600 = vmatpush.bf16.msra.mxu0 %v5948
    %6601 = vmatpush.bf16.msra.mxu0 %v5944
    %6602 = vmatpush.bf16.msra.mxu0 %v5940
    %6603 = vmatpush.bf16.msra.mxu0 %v5936
    %6604 = vmatpush.bf16.msra.mxu0 %v5932
    %6605 = vmatpush.bf16.msra.mxu0 %v5928
    %6606 = vmatmul.bf16.gmra.mxu0 %v4484
    %v6607 = vpop.f32.mrf.mxu0
    %v6608 = vadd.f32 %v6595, %v6607
    %v6609 = vpop.f32.mrf.mxu0
    %6610 = vdwg.mxu0
    %6611 = vmatpush.bf16.msra.mxu0 %v5988
    %6612 = vmatpush.bf16.msra.mxu0 %v5984
    %6613 = vmatpush.bf16.msra.mxu0 %v5980
    %6614 = vmatpush.bf16.msra.mxu0 %v5976
    %6615 = vmatpush.bf16.msra.mxu0 %v5972
    %6616 = vmatpush.bf16.msra.mxu0 %v5968
    %6617 = vmatpush.bf16.msra.mxu0 %v5964
    %6618 = vmatpush.bf16.msra.mxu0 %v5960
    %6619 = vmatmul.bf16.gmra.mxu0 %v4487
    %v6620 = vpop.f32.mrf.mxu0
    %v6621 = vadd.f32 %v6608, %v6620
    %v6622 = vpop.f32.mrf.mxu0
    %6623 = vdwg.mxu0
    %6624 = vmatpush.bf16.msra.mxu0 %v6020
    %6625 = vmatpush.bf16.msra.mxu0 %v6016
    %6626 = vmatpush.bf16.msra.mxu0 %v6012
    %6627 = vmatpush.bf16.msra.mxu0 %v6008
    %6628 = vmatpush.bf16.msra.mxu0 %v6004
    %6629 = vmatpush.bf16.msra.mxu0 %v6000
    %6630 = vmatpush.bf16.msra.mxu0 %v5996
    %6631 = vmatpush.bf16.msra.mxu0 %v5992
    %6632 = vmatmul.bf16.gmra.mxu0 %v4488
    %v6633 = vpop.f32.mrf.mxu0
    %v6634 = vadd.f32 %v6621, %v6633
    %v6635 = vpop.f32.mrf.mxu0
    %6636 = vdwg.mxu0
    %6637 = vmatpush.bf16.msra.mxu0 %v6052
    %6638 = vmatpush.bf16.msra.mxu0 %v6048
    %6639 = vmatpush.bf16.msra.mxu0 %v6044
    %6640 = vmatpush.bf16.msra.mxu0 %v6040
    %6641 = vmatpush.bf16.msra.mxu0 %v6036
    %6642 = vmatpush.bf16.msra.mxu0 %v6032
    %6643 = vmatpush.bf16.msra.mxu0 %v6028
    %6644 = vmatpush.bf16.msra.mxu0 %v6024
    %6645 = vmatmul.bf16.gmra.mxu0 %v4489
    %v6646 = vpop.f32.mrf.mxu0
    %v6647 = vadd.f32 %v6634, %v6646
    %v6648 = vpop.f32.mrf.mxu0
    %6649 = vdwg.mxu0
    %6650 = vmatpush.bf16.msra.mxu0 %v6084
    %6651 = vmatpush.bf16.msra.mxu0 %v6080
    %6652 = vmatpush.bf16.msra.mxu0 %v6076
    %6653 = vmatpush.bf16.msra.mxu0 %v6072
    %6654 = vmatpush.bf16.msra.mxu0 %v6068
    %6655 = vmatpush.bf16.msra.mxu0 %v6064
    %6656 = vmatpush.bf16.msra.mxu0 %v6060
    %6657 = vmatpush.bf16.msra.mxu0 %v6056
    %6658 = vmatmul.bf16.gmra.mxu0 %v4490
    %v6659 = vpop.f32.mrf.mxu0
    %v6660 = vadd.f32 %v6647, %v6659
    %v6661 = vpop.f32.mrf.mxu0
    %6662 = vdwg.mxu0
    %6663 = vmatpush.bf16.msra.mxu0 0
    %6664 = vmatpush.bf16.msra.mxu0 0
    %6665 = vmatpush.bf16.msra.mxu0 0
    %6666 = vmatpush.bf16.msra.mxu0 0
    %6667 = vmatpush.bf16.msra.mxu0 %v6100
    %6668 = vmatpush.bf16.msra.mxu0 %v6096
    %6669 = vmatpush.bf16.msra.mxu0 %v6092
    %6670 = vmatpush.bf16.msra.mxu0 %v6088
    %6671 = vmatmul.bf16.gmra.mxu0 %v6505
    %v6672 = vpop.f32.mrf.mxu0
    %v6673 = vadd.f32 %v6660, %v6672
    %v6674 = vpop.f32.mrf.mxu0
    %6675 = vdwg.mxu0
    %6676 = vmatpush.bf16.msra.mxu0 %v5733
    %6677 = vmatpush.bf16.msra.mxu0 %v5729
    %6678 = vmatpush.bf16.msra.mxu0 %v5725
    %6679 = vmatpush.bf16.msra.mxu0 %v5721
    %6680 = vmatpush.bf16.msra.mxu0 %v5717
    %6681 = vmatpush.bf16.msra.mxu0 %v5713
    %6682 = vmatpush.bf16.msra.mxu0 %v5709
    %6683 = vmatpush.bf16.msra.mxu0 %v5705
    %6684 = vmatmul.bf16.gmra.mxu0 %v4477
    %v6685 = vpop.f32.mrf.mxu0
    %v6686 = vadd.f32 %v4468, %v6685
    %v6687 = vpop.f32.mrf.mxu0
    %6688 = vdwg.mxu0
    %6689 = vmatpush.bf16.msra.mxu0 %v5765
    %6690 = vmatpush.bf16.msra.mxu0 %v5761
    %6691 = vmatpush.bf16.msra.mxu0 %v5757
    %6692 = vmatpush.bf16.msra.mxu0 %v5753
    %6693 = vmatpush.bf16.msra.mxu0 %v5749
    %6694 = vmatpush.bf16.msra.mxu0 %v5745
    %6695 = vmatpush.bf16.msra.mxu0 %v5741
    %6696 = vmatpush.bf16.msra.mxu0 %v5737
    %6697 = vmatmul.bf16.gmra.mxu0 %v4478
    %v6698 = vpop.f32.mrf.mxu0
    %v6699 = vadd.f32 %v6686, %v6698
    %v6700 = vpop.f32.mrf.mxu0
    %6701 = vdwg.mxu0
    %6702 = vmatpush.bf16.msra.mxu0 %v5797
    %6703 = vmatpush.bf16.msra.mxu0 %v5793
    %6704 = vmatpush.bf16.msra.mxu0 %v5789
    %6705 = vmatpush.bf16.msra.mxu0 %v5785
    %6706 = vmatpush.bf16.msra.mxu0 %v5781
    %6707 = vmatpush.bf16.msra.mxu0 %v5777
    %6708 = vmatpush.bf16.msra.mxu0 %v5773
    %6709 = vmatpush.bf16.msra.mxu0 %v5769
    %6710 = vmatmul.bf16.gmra.mxu0 %v4479
    %v6711 = vpop.f32.mrf.mxu0
    %v6712 = vadd.f32 %v6699, %v6711
    %v6713 = vpop.f32.mrf.mxu0
    %6714 = vdwg.mxu0
    %6715 = vmatpush.bf16.msra.mxu0 %v5829
    %6716 = vmatpush.bf16.msra.mxu0 %v5825
    %6717 = vmatpush.bf16.msra.mxu0 %v5821
    %6718 = vmatpush.bf16.msra.mxu0 %v5817
    %6719 = vmatpush.bf16.msra.mxu0 %v5813
    %6720 = vmatpush.bf16.msra.mxu0 %v5809
    %6721 = vmatpush.bf16.msra.mxu0 %v5805
    %6722 = vmatpush.bf16.msra.mxu0 %v5801
    %6723 = vmatmul.bf16.gmra.mxu0 %v4480
    %v6724 = vpop.f32.mrf.mxu0
    %v6725 = vadd.f32 %v6712, %v6724
    %v6726 = vpop.f32.mrf.mxu0
    %6727 = vdwg.mxu0
    %6728 = vmatpush.bf16.msra.mxu0 %v5861
    %6729 = vmatpush.bf16.msra.mxu0 %v5857
    %6730 = vmatpush.bf16.msra.mxu0 %v5853
    %6731 = vmatpush.bf16.msra.mxu0 %v5849
    %6732 = vmatpush.bf16.msra.mxu0 %v5845
    %6733 = vmatpush.bf16.msra.mxu0 %v5841
    %6734 = vmatpush.bf16.msra.mxu0 %v5837
    %6735 = vmatpush.bf16.msra.mxu0 %v5833
    %6736 = vmatmul.bf16.gmra.mxu0 %v4481
    %v6737 = vpop.f32.mrf.mxu0
    %v6738 = vadd.f32 %v6725, %v6737
    %v6739 = vpop.f32.mrf.mxu0
    %6740 = vdwg.mxu0
    %6741 = vmatpush.bf16.msra.mxu0 %v5893
    %6742 = vmatpush.bf16.msra.mxu0 %v5889
    %6743 = vmatpush.bf16.msra.mxu0 %v5885
    %6744 = vmatpush.bf16.msra.mxu0 %v5881
    %6745 = vmatpush.bf16.msra.mxu0 %v5877
    %6746 = vmatpush.bf16.msra.mxu0 %v5873
    %6747 = vmatpush.bf16.msra.mxu0 %v5869
    %6748 = vmatpush.bf16.msra.mxu0 %v5865
    %6749 = vmatmul.bf16.gmra.mxu0 %v4482
    %v6750 = vpop.f32.mrf.mxu0
    %v6751 = vadd.f32 %v6738, %v6750
    %v6752 = vpop.f32.mrf.mxu0
    %6753 = vdwg.mxu0
    %6754 = vmatpush.bf16.msra.mxu0 %v5925
    %6755 = vmatpush.bf16.msra.mxu0 %v5921
    %6756 = vmatpush.bf16.msra.mxu0 %v5917
    %6757 = vmatpush.bf16.msra.mxu0 %v5913
    %6758 = vmatpush.bf16.msra.mxu0 %v5909
    %6759 = vmatpush.bf16.msra.mxu0 %v5905
    %6760 = vmatpush.bf16.msra.mxu0 %v5901
    %6761 = vmatpush.bf16.msra.mxu0 %v5897
    %6762 = vmatmul.bf16.gmra.mxu0 %v4483
    %v6763 = vpop.f32.mrf.mxu0
    %v6764 = vadd.f32 %v6751, %v6763
    %v6765 = vpop.f32.mrf.mxu0
    %6766 = vdwg.mxu0
    %6767 = vmatpush.bf16.msra.mxu0 %v5957
    %6768 = vmatpush.bf16.msra.mxu0 %v5953
    %6769 = vmatpush.bf16.msra.mxu0 %v5949
    %6770 = vmatpush.bf16.msra.mxu0 %v5945
    %6771 = vmatpush.bf16.msra.mxu0 %v5941
    %6772 = vmatpush.bf16.msra.mxu0 %v5937
    %6773 = vmatpush.bf16.msra.mxu0 %v5933
    %6774 = vmatpush.bf16.msra.mxu0 %v5929
    %6775 = vmatmul.bf16.gmra.mxu0 %v4484
    %v6776 = vpop.f32.mrf.mxu0
    %v6777 = vadd.f32 %v6764, %v6776
    %v6778 = vpop.f32.mrf.mxu0
    %6779 = vdwg.mxu0
    %6780 = vmatpush.bf16.msra.mxu0 %v5989
    %6781 = vmatpush.bf16.msra.mxu0 %v5985
    %6782 = vmatpush.bf16.msra.mxu0 %v5981
    %6783 = vmatpush.bf16.msra.mxu0 %v5977
    %6784 = vmatpush.bf16.msra.mxu0 %v5973
    %6785 = vmatpush.bf16.msra.mxu0 %v5969
    %6786 = vmatpush.bf16.msra.mxu0 %v5965
    %6787 = vmatpush.bf16.msra.mxu0 %v5961
    %6788 = vmatmul.bf16.gmra.mxu0 %v4487
    %v6789 = vpop.f32.mrf.mxu0
    %v6790 = vadd.f32 %v6777, %v6789
    %v6791 = vpop.f32.mrf.mxu0
    %6792 = vdwg.mxu0
    %6793 = vmatpush.bf16.msra.mxu0 %v6021
    %6794 = vmatpush.bf16.msra.mxu0 %v6017
    %6795 = vmatpush.bf16.msra.mxu0 %v6013
    %6796 = vmatpush.bf16.msra.mxu0 %v6009
    %6797 = vmatpush.bf16.msra.mxu0 %v6005
    %6798 = vmatpush.bf16.msra.mxu0 %v6001
    %6799 = vmatpush.bf16.msra.mxu0 %v5997
    %6800 = vmatpush.bf16.msra.mxu0 %v5993
    %6801 = vmatmul.bf16.gmra.mxu0 %v4488
    %v6802 = vpop.f32.mrf.mxu0
    %v6803 = vadd.f32 %v6790, %v6802
    %v6804 = vpop.f32.mrf.mxu0
    %6805 = vdwg.mxu0
    %6806 = vmatpush.bf16.msra.mxu0 %v6053
    %6807 = vmatpush.bf16.msra.mxu0 %v6049
    %6808 = vmatpush.bf16.msra.mxu0 %v6045
    %6809 = vmatpush.bf16.msra.mxu0 %v6041
    %6810 = vmatpush.bf16.msra.mxu0 %v6037
    %6811 = vmatpush.bf16.msra.mxu0 %v6033
    %6812 = vmatpush.bf16.msra.mxu0 %v6029
    %6813 = vmatpush.bf16.msra.mxu0 %v6025
    %6814 = vmatmul.bf16.gmra.mxu0 %v4489
    %v6815 = vpop.f32.mrf.mxu0
    %v6816 = vadd.f32 %v6803, %v6815
    %v6817 = vpop.f32.mrf.mxu0
    %6818 = vdwg.mxu0
    %6819 = vmatpush.bf16.msra.mxu0 %v6085
    %6820 = vmatpush.bf16.msra.mxu0 %v6081
    %6821 = vmatpush.bf16.msra.mxu0 %v6077
    %6822 = vmatpush.bf16.msra.mxu0 %v6073
    %6823 = vmatpush.bf16.msra.mxu0 %v6069
    %6824 = vmatpush.bf16.msra.mxu0 %v6065
    %6825 = vmatpush.bf16.msra.mxu0 %v6061
    %6826 = vmatpush.bf16.msra.mxu0 %v6057
    %6827 = vmatmul.bf16.gmra.mxu0 %v4490
    %v6828 = vpop.f32.mrf.mxu0
    %v6829 = vadd.f32 %v6816, %v6828
    %v6830 = vpop.f32.mrf.mxu0
    %6831 = vdwg.mxu0
    %6832 = vmatpush.bf16.msra.mxu0 0
    %6833 = vmatpush.bf16.msra.mxu0 0
    %6834 = vmatpush.bf16.msra.mxu0 0
    %6835 = vmatpush.bf16.msra.mxu0 0
    %6836 = vmatpush.bf16.msra.mxu0 %v6101
    %6837 = vmatpush.bf16.msra.mxu0 %v6097
    %6838 = vmatpush.bf16.msra.mxu0 %v6093
    %6839 = vmatpush.bf16.msra.mxu0 %v6089
    %6840 = vmatmul.bf16.gmra.mxu0 %v6505
    %v6841 = vpop.f32.mrf.mxu0
    %v6842 = vadd.f32 %v6829, %v6841
    %v6843 = vpop.f32.mrf.mxu0
    %6844 = vdwg.mxu0
    %6845 = vmatpush.bf16.msra.mxu0 %v5734
    %6846 = vmatpush.bf16.msra.mxu0 %v5730
    %6847 = vmatpush.bf16.msra.mxu0 %v5726
    %6848 = vmatpush.bf16.msra.mxu0 %v5722
    %6849 = vmatpush.bf16.msra.mxu0 %v5718
    %6850 = vmatpush.bf16.msra.mxu0 %v5714
    %6851 = vmatpush.bf16.msra.mxu0 %v5710
    %6852 = vmatpush.bf16.msra.mxu0 %v5706
    %6853 = vmatmul.bf16.gmra.mxu0 %v4477
    %v6854 = vpop.f32.mrf.mxu0
    %v6855 = vadd.f32 %v4469, %v6854
    %v6856 = vpop.f32.mrf.mxu0
    %6857 = vdwg.mxu0
    %6858 = vmatpush.bf16.msra.mxu0 %v5766
    %6859 = vmatpush.bf16.msra.mxu0 %v5762
    %6860 = vmatpush.bf16.msra.mxu0 %v5758
    %6861 = vmatpush.bf16.msra.mxu0 %v5754
    %6862 = vmatpush.bf16.msra.mxu0 %v5750
    %6863 = vmatpush.bf16.msra.mxu0 %v5746
    %6864 = vmatpush.bf16.msra.mxu0 %v5742
    %6865 = vmatpush.bf16.msra.mxu0 %v5738
    %6866 = vmatmul.bf16.gmra.mxu0 %v4478
    %v6867 = vpop.f32.mrf.mxu0
    %v6868 = vadd.f32 %v6855, %v6867
    %v6869 = vpop.f32.mrf.mxu0
    %6870 = vdwg.mxu0
    %6871 = vmatpush.bf16.msra.mxu0 %v5798
    %6872 = vmatpush.bf16.msra.mxu0 %v5794
    %6873 = vmatpush.bf16.msra.mxu0 %v5790
    %6874 = vmatpush.bf16.msra.mxu0 %v5786
    %6875 = vmatpush.bf16.msra.mxu0 %v5782
    %6876 = vmatpush.bf16.msra.mxu0 %v5778
    %6877 = vmatpush.bf16.msra.mxu0 %v5774
    %6878 = vmatpush.bf16.msra.mxu0 %v5770
    %6879 = vmatmul.bf16.gmra.mxu0 %v4479
    %v6880 = vpop.f32.mrf.mxu0
    %v6881 = vadd.f32 %v6868, %v6880
    %v6882 = vpop.f32.mrf.mxu0
    %6883 = vdwg.mxu0
    %6884 = vmatpush.bf16.msra.mxu0 %v5830
    %6885 = vmatpush.bf16.msra.mxu0 %v5826
    %6886 = vmatpush.bf16.msra.mxu0 %v5822
    %6887 = vmatpush.bf16.msra.mxu0 %v5818
    %6888 = vmatpush.bf16.msra.mxu0 %v5814
    %6889 = vmatpush.bf16.msra.mxu0 %v5810
    %6890 = vmatpush.bf16.msra.mxu0 %v5806
    %6891 = vmatpush.bf16.msra.mxu0 %v5802
    %6892 = vmatmul.bf16.gmra.mxu0 %v4480
    %v6893 = vpop.f32.mrf.mxu0
    %v6894 = vadd.f32 %v6881, %v6893
    %v6895 = vpop.f32.mrf.mxu0
    %6896 = vdwg.mxu0
    %6897 = vmatpush.bf16.msra.mxu0 %v5862
    %6898 = vmatpush.bf16.msra.mxu0 %v5858
    %6899 = vmatpush.bf16.msra.mxu0 %v5854
    %6900 = vmatpush.bf16.msra.mxu0 %v5850
    %6901 = vmatpush.bf16.msra.mxu0 %v5846
    %6902 = vmatpush.bf16.msra.mxu0 %v5842
    %6903 = vmatpush.bf16.msra.mxu0 %v5838
    %6904 = vmatpush.bf16.msra.mxu0 %v5834
    %6905 = vmatmul.bf16.gmra.mxu0 %v4481
    %v6906 = vpop.f32.mrf.mxu0
    %v6907 = vadd.f32 %v6894, %v6906
    %v6908 = vpop.f32.mrf.mxu0
    %6909 = vdwg.mxu0
    %6910 = vmatpush.bf16.msra.mxu0 %v5894
    %6911 = vmatpush.bf16.msra.mxu0 %v5890
    %6912 = vmatpush.bf16.msra.mxu0 %v5886
    %6913 = vmatpush.bf16.msra.mxu0 %v5882
    %6914 = vmatpush.bf16.msra.mxu0 %v5878
    %6915 = vmatpush.bf16.msra.mxu0 %v5874
    %6916 = vmatpush.bf16.msra.mxu0 %v5870
    %6917 = vmatpush.bf16.msra.mxu0 %v5866
    %6918 = vmatmul.bf16.gmra.mxu0 %v4482
    %v6919 = vpop.f32.mrf.mxu0
    %v6920 = vadd.f32 %v6907, %v6919
    %v6921 = vpop.f32.mrf.mxu0
    %6922 = vdwg.mxu0
    %6923 = vmatpush.bf16.msra.mxu0 %v5926
    %6924 = vmatpush.bf16.msra.mxu0 %v5922
    %6925 = vmatpush.bf16.msra.mxu0 %v5918
    %6926 = vmatpush.bf16.msra.mxu0 %v5914
    %6927 = vmatpush.bf16.msra.mxu0 %v5910
    %6928 = vmatpush.bf16.msra.mxu0 %v5906
    %6929 = vmatpush.bf16.msra.mxu0 %v5902
    %6930 = vmatpush.bf16.msra.mxu0 %v5898
    %6931 = vmatmul.bf16.gmra.mxu0 %v4483
    %v6932 = vpop.f32.mrf.mxu0
    %v6933 = vadd.f32 %v6920, %v6932
    %v6934 = vpop.f32.mrf.mxu0
    %6935 = vdwg.mxu0
    %6936 = vmatpush.bf16.msra.mxu0 %v5958
    %6937 = vmatpush.bf16.msra.mxu0 %v5954
    %6938 = vmatpush.bf16.msra.mxu0 %v5950
    %6939 = vmatpush.bf16.msra.mxu0 %v5946
    %6940 = vmatpush.bf16.msra.mxu0 %v5942
    %6941 = vmatpush.bf16.msra.mxu0 %v5938
    %6942 = vmatpush.bf16.msra.mxu0 %v5934
    %6943 = vmatpush.bf16.msra.mxu0 %v5930
    %6944 = vmatmul.bf16.gmra.mxu0 %v4484
    %v6945 = vpop.f32.mrf.mxu0
    %v6946 = vadd.f32 %v6933, %v6945
    %v6947 = vpop.f32.mrf.mxu0
    %6948 = vdwg.mxu0
    %6949 = vmatpush.bf16.msra.mxu0 %v5990
    %6950 = vmatpush.bf16.msra.mxu0 %v5986
    %6951 = vmatpush.bf16.msra.mxu0 %v5982
    %6952 = vmatpush.bf16.msra.mxu0 %v5978
    %6953 = vmatpush.bf16.msra.mxu0 %v5974
    %6954 = vmatpush.bf16.msra.mxu0 %v5970
    %6955 = vmatpush.bf16.msra.mxu0 %v5966
    %6956 = vmatpush.bf16.msra.mxu0 %v5962
    %6957 = vmatmul.bf16.gmra.mxu0 %v4487
    %v6958 = vpop.f32.mrf.mxu0
    %v6959 = vadd.f32 %v6946, %v6958
    %v6960 = vpop.f32.mrf.mxu0
    %6961 = vdwg.mxu0
    %6962 = vmatpush.bf16.msra.mxu0 %v6022
    %6963 = vmatpush.bf16.msra.mxu0 %v6018
    %6964 = vmatpush.bf16.msra.mxu0 %v6014
    %6965 = vmatpush.bf16.msra.mxu0 %v6010
    %6966 = vmatpush.bf16.msra.mxu0 %v6006
    %6967 = vmatpush.bf16.msra.mxu0 %v6002
    %6968 = vmatpush.bf16.msra.mxu0 %v5998
    %6969 = vmatpush.bf16.msra.mxu0 %v5994
    %6970 = vmatmul.bf16.gmra.mxu0 %v4488
    %v6971 = vpop.f32.mrf.mxu0
    %v6972 = vadd.f32 %v6959, %v6971
    %v6973 = vpop.f32.mrf.mxu0
    %6974 = vdwg.mxu0
    %6975 = vmatpush.bf16.msra.mxu0 %v6054
    %6976 = vmatpush.bf16.msra.mxu0 %v6050
    %6977 = vmatpush.bf16.msra.mxu0 %v6046
    %6978 = vmatpush.bf16.msra.mxu0 %v6042
    %6979 = vmatpush.bf16.msra.mxu0 %v6038
    %6980 = vmatpush.bf16.msra.mxu0 %v6034
    %6981 = vmatpush.bf16.msra.mxu0 %v6030
    %6982 = vmatpush.bf16.msra.mxu0 %v6026
    %6983 = vmatmul.bf16.gmra.mxu0 %v4489
    %v6984 = vpop.f32.mrf.mxu0
    %v6985 = vadd.f32 %v6972, %v6984
    %v6986 = vpop.f32.mrf.mxu0
    %6987 = vdwg.mxu0
    %6988 = vmatpush.bf16.msra.mxu0 %v6086
    %6989 = vmatpush.bf16.msra.mxu0 %v6082
    %6990 = vmatpush.bf16.msra.mxu0 %v6078
    %6991 = vmatpush.bf16.msra.mxu0 %v6074
    %6992 = vmatpush.bf16.msra.mxu0 %v6070
    %6993 = vmatpush.bf16.msra.mxu0 %v6066
    %6994 = vmatpush.bf16.msra.mxu0 %v6062
    %6995 = vmatpush.bf16.msra.mxu0 %v6058
    %6996 = vmatmul.bf16.gmra.mxu0 %v4490
    %v6997 = vpop.f32.mrf.mxu0
    %v6998 = vadd.f32 %v6985, %v6997
    %v6999 = vpop.f32.mrf.mxu0
    %7000 = vdwg.mxu0
    %7001 = vmatpush.bf16.msra.mxu0 0
    %7002 = vmatpush.bf16.msra.mxu0 0
    %7003 = vmatpush.bf16.msra.mxu0 0
    %7004 = vmatpush.bf16.msra.mxu0 0
    %7005 = vmatpush.bf16.msra.mxu0 %v6102
    %7006 = vmatpush.bf16.msra.mxu0 %v6098
    %7007 = vmatpush.bf16.msra.mxu0 %v6094
    %7008 = vmatpush.bf16.msra.mxu0 %v6090
    %7009 = vmatmul.bf16.gmra.mxu0 %v6505
    %v7010 = vpop.f32.mrf.mxu0
    %v7011 = vadd.f32 %v6998, %v7010
    %v7012 = vpop.f32.mrf.mxu0
    %7013 = vdwg.mxu0
    %7014 = vmatpush.bf16.msra.mxu0 %v5735
    %7015 = vmatpush.bf16.msra.mxu0 %v5731
    %7016 = vmatpush.bf16.msra.mxu0 %v5727
    %7017 = vmatpush.bf16.msra.mxu0 %v5723
    %7018 = vmatpush.bf16.msra.mxu0 %v5719
    %7019 = vmatpush.bf16.msra.mxu0 %v5715
    %7020 = vmatpush.bf16.msra.mxu0 %v5711
    %7021 = vmatpush.bf16.msra.mxu0 %v5707
    %7022 = vmatmul.bf16.gmra.mxu0 %v4477
    %v7023 = vpop.f32.mrf.mxu0
    %v7024 = vadd.f32 %v4470, %v7023
    %v7025 = vpop.f32.mrf.mxu0
    %7026 = vdwg.mxu0
    %7027 = vmatpush.bf16.msra.mxu0 %v5767
    %7028 = vmatpush.bf16.msra.mxu0 %v5763
    %7029 = vmatpush.bf16.msra.mxu0 %v5759
    %7030 = vmatpush.bf16.msra.mxu0 %v5755
    %7031 = vmatpush.bf16.msra.mxu0 %v5751
    %7032 = vmatpush.bf16.msra.mxu0 %v5747
    %7033 = vmatpush.bf16.msra.mxu0 %v5743
    %7034 = vmatpush.bf16.msra.mxu0 %v5739
    %7035 = vmatmul.bf16.gmra.mxu0 %v4478
    %v7036 = vpop.f32.mrf.mxu0
    %v7037 = vadd.f32 %v7024, %v7036
    %v7038 = vpop.f32.mrf.mxu0
    %7039 = vdwg.mxu0
    %7040 = vmatpush.bf16.msra.mxu0 %v5799
    %7041 = vmatpush.bf16.msra.mxu0 %v5795
    %7042 = vmatpush.bf16.msra.mxu0 %v5791
    %7043 = vmatpush.bf16.msra.mxu0 %v5787
    %7044 = vmatpush.bf16.msra.mxu0 %v5783
    %7045 = vmatpush.bf16.msra.mxu0 %v5779
    %7046 = vmatpush.bf16.msra.mxu0 %v5775
    %7047 = vmatpush.bf16.msra.mxu0 %v5771
    %7048 = vmatmul.bf16.gmra.mxu0 %v4479
    %v7049 = vpop.f32.mrf.mxu0
    %v7050 = vadd.f32 %v7037, %v7049
    %v7051 = vpop.f32.mrf.mxu0
    %7052 = vdwg.mxu0
    %7053 = vmatpush.bf16.msra.mxu0 %v5831
    %7054 = vmatpush.bf16.msra.mxu0 %v5827
    %7055 = vmatpush.bf16.msra.mxu0 %v5823
    %7056 = vmatpush.bf16.msra.mxu0 %v5819
    %7057 = vmatpush.bf16.msra.mxu0 %v5815
    %7058 = vmatpush.bf16.msra.mxu0 %v5811
    %7059 = vmatpush.bf16.msra.mxu0 %v5807
    %7060 = vmatpush.bf16.msra.mxu0 %v5803
    %7061 = vmatmul.bf16.gmra.mxu0 %v4480
    %v7062 = vpop.f32.mrf.mxu0
    %v7063 = vadd.f32 %v7050, %v7062
    %v7064 = vpop.f32.mrf.mxu0
    %7065 = vdwg.mxu0
    %7066 = vmatpush.bf16.msra.mxu0 %v5863
    %7067 = vmatpush.bf16.msra.mxu0 %v5859
    %7068 = vmatpush.bf16.msra.mxu0 %v5855
    %7069 = vmatpush.bf16.msra.mxu0 %v5851
    %7070 = vmatpush.bf16.msra.mxu0 %v5847
    %7071 = vmatpush.bf16.msra.mxu0 %v5843
    %7072 = vmatpush.bf16.msra.mxu0 %v5839
    %7073 = vmatpush.bf16.msra.mxu0 %v5835
    %7074 = vmatmul.bf16.gmra.mxu0 %v4481
    %v7075 = vpop.f32.mrf.mxu0
    %v7076 = vadd.f32 %v7063, %v7075
    %v7077 = vpop.f32.mrf.mxu0
    %7078 = vdwg.mxu0
    %7079 = vmatpush.bf16.msra.mxu0 %v5895
    %7080 = vmatpush.bf16.msra.mxu0 %v5891
    %7081 = vmatpush.bf16.msra.mxu0 %v5887
    %7082 = vmatpush.bf16.msra.mxu0 %v5883
    %7083 = vmatpush.bf16.msra.mxu0 %v5879
    %7084 = vmatpush.bf16.msra.mxu0 %v5875
    %7085 = vmatpush.bf16.msra.mxu0 %v5871
    %7086 = vmatpush.bf16.msra.mxu0 %v5867
    %7087 = vmatmul.bf16.gmra.mxu0 %v4482
    %v7088 = vpop.f32.mrf.mxu0
    %v7089 = vadd.f32 %v7076, %v7088
    %v7090 = vpop.f32.mrf.mxu0
    %7091 = vdwg.mxu0
    %7092 = vmatpush.bf16.msra.mxu0 %v5927
    %7093 = vmatpush.bf16.msra.mxu0 %v5923
    %7094 = vmatpush.bf16.msra.mxu0 %v5919
    %7095 = vmatpush.bf16.msra.mxu0 %v5915
    %7096 = vmatpush.bf16.msra.mxu0 %v5911
    %7097 = vmatpush.bf16.msra.mxu0 %v5907
    %7098 = vmatpush.bf16.msra.mxu0 %v5903
    %7099 = vmatpush.bf16.msra.mxu0 %v5899
    %7100 = vmatmul.bf16.gmra.mxu0 %v4483
    %v7101 = vpop.f32.mrf.mxu0
    %v7102 = vadd.f32 %v7089, %v7101
    %v7103 = vpop.f32.mrf.mxu0
    %7104 = vdwg.mxu0
    %7105 = vmatpush.bf16.msra.mxu0 %v5959
    %7106 = vmatpush.bf16.msra.mxu0 %v5955
    %7107 = vmatpush.bf16.msra.mxu0 %v5951
    %7108 = vmatpush.bf16.msra.mxu0 %v5947
    %7109 = vmatpush.bf16.msra.mxu0 %v5943
    %7110 = vmatpush.bf16.msra.mxu0 %v5939
    %7111 = vmatpush.bf16.msra.mxu0 %v5935
    %7112 = vmatpush.bf16.msra.mxu0 %v5931
    %7113 = vmatmul.bf16.gmra.mxu0 %v4484
    %v7114 = vpop.f32.mrf.mxu0
    %v7115 = vadd.f32 %v7102, %v7114
    %v7116 = vpop.f32.mrf.mxu0
    %7117 = vdwg.mxu0
    %7118 = vmatpush.bf16.msra.mxu0 %v5991
    %7119 = vmatpush.bf16.msra.mxu0 %v5987
    %7120 = vmatpush.bf16.msra.mxu0 %v5983
    %7121 = vmatpush.bf16.msra.mxu0 %v5979
    %7122 = vmatpush.bf16.msra.mxu0 %v5975
    %7123 = vmatpush.bf16.msra.mxu0 %v5971
    %7124 = vmatpush.bf16.msra.mxu0 %v5967
    %7125 = vmatpush.bf16.msra.mxu0 %v5963
    %7126 = vmatmul.bf16.gmra.mxu0 %v4487
    %v7127 = vpop.f32.mrf.mxu0
    %v7128 = vadd.f32 %v7115, %v7127
    %v7129 = vpop.f32.mrf.mxu0
    %7130 = vdwg.mxu0
    %7131 = vmatpush.bf16.msra.mxu0 %v6023
    %7132 = vmatpush.bf16.msra.mxu0 %v6019
    %7133 = vmatpush.bf16.msra.mxu0 %v6015
    %7134 = vmatpush.bf16.msra.mxu0 %v6011
    %7135 = vmatpush.bf16.msra.mxu0 %v6007
    %7136 = vmatpush.bf16.msra.mxu0 %v6003
    %7137 = vmatpush.bf16.msra.mxu0 %v5999
    %7138 = vmatpush.bf16.msra.mxu0 %v5995
    %7139 = vmatmul.bf16.gmra.mxu0 %v4488
    %v7140 = vpop.f32.mrf.mxu0
    %v7141 = vadd.f32 %v7128, %v7140
    %v7142 = vpop.f32.mrf.mxu0
    %7143 = vdwg.mxu0
    %7144 = vmatpush.bf16.msra.mxu0 %v6055
    %7145 = vmatpush.bf16.msra.mxu0 %v6051
    %7146 = vmatpush.bf16.msra.mxu0 %v6047
    %7147 = vmatpush.bf16.msra.mxu0 %v6043
    %7148 = vmatpush.bf16.msra.mxu0 %v6039
    %7149 = vmatpush.bf16.msra.mxu0 %v6035
    %7150 = vmatpush.bf16.msra.mxu0 %v6031
    %7151 = vmatpush.bf16.msra.mxu0 %v6027
    %7152 = vmatmul.bf16.gmra.mxu0 %v4489
    %v7153 = vpop.f32.mrf.mxu0
    %v7154 = vadd.f32 %v7141, %v7153
    %v7155 = vpop.f32.mrf.mxu0
    %7156 = vdwg.mxu0
    %7157 = vmatpush.bf16.msra.mxu0 %v6087
    %7158 = vmatpush.bf16.msra.mxu0 %v6083
    %7159 = vmatpush.bf16.msra.mxu0 %v6079
    %7160 = vmatpush.bf16.msra.mxu0 %v6075
    %7161 = vmatpush.bf16.msra.mxu0 %v6071
    %7162 = vmatpush.bf16.msra.mxu0 %v6067
    %7163 = vmatpush.bf16.msra.mxu0 %v6063
    %7164 = vmatpush.bf16.msra.mxu0 %v6059
    %7165 = vmatmul.bf16.gmra.mxu0 %v4490
    %v7166 = vpop.f32.mrf.mxu0
    %v7167 = vadd.f32 %v7154, %v7166
    %v7168 = vpop.f32.mrf.mxu0
    %7169 = vdwg.mxu0
    %7170 = vmatpush.bf16.msra.mxu0 0
    %7171 = vmatpush.bf16.msra.mxu0 0
    %7172 = vmatpush.bf16.msra.mxu0 0
    %7173 = vmatpush.bf16.msra.mxu0 0
    %7174 = vmatpush.bf16.msra.mxu0 %v6103
    %7175 = vmatpush.bf16.msra.mxu0 %v6099
    %7176 = vmatpush.bf16.msra.mxu0 %v6095
    %7177 = vmatpush.bf16.msra.mxu0 %v6091
    %7178 = vmatmul.bf16.gmra.mxu0 %v6505
    %v7179 = vpop.f32.mrf.mxu0
    %v7180 = vadd.f32 %v7167, %v7179
    %v7181 = vpop.f32.mrf.mxu0
    %7182 = vdwg.mxu0
    %v7183 = vmax.f32 %v6673, 0.0
    %v7184 = vmax.f32 %v6842, 0.0
    %v7185 = vmax.f32 %v7011, 0.0
    %v7186 = vmax.f32 %v7180, 0.0
    %v7187 = vpack.c.bf16 %v7183, %v7183
    %v7188 = vpack.c.bf16 %v7184, %v7184
    %v7189 = vpack.c.bf16 %v7185, %v7185
    %v7190 = vpack.c.bf16 %v7186, %v7186
    %v7191 = vld [vmem:[#allocation13] sm:$0xf]
    %v7192 = vld [vmem:[#allocation13 + $0x4] sm:$0xf]
    %v7193 = vld [vmem:[#allocation13 + $0x8] sm:$0xf]
    %v7194 = vld [vmem:[#allocation13 + $0xc] sm:$0xf]
    %v7195 = vld [vmem:[#allocation13 + $0x10] sm:$0xf]
    %v7196 = vld [vmem:[#allocation13 + $0x14] sm:$0xf]
    %v7197 = vld [vmem:[#allocation13 + $0x18] sm:$0xf]
    %v7198 = vld [vmem:[#allocation13 + $0x1c] sm:$0xf]
    %v7199 = vld [vmem:[#allocation13 + $0x20] sm:$0xf]
    %v7200 = vld [vmem:[#allocation13 + $0x24] sm:$0xf]
    %v7201 = vld [vmem:[#allocation13 + $0x28] sm:$0xf]
    %v7202 = vld [vmem:[#allocation13 + $0x2c] sm:$0xf]
    %v7203 = vld [vmem:[#allocation13 + $0x30] sm:$0xf]
    %v7204 = vld [vmem:[#allocation13 + $0x34] sm:$0xf]
    %v7205 = vld [vmem:[#allocation13 + $0x38] sm:$0xf]
    %v7206 = vld [vmem:[#allocation13 + $0x3c] sm:$0xf]
    %v7207 = vld [vmem:[#allocation13 + $0x40] sm:$0xf]
    %v7208 = vld [vmem:[#allocation13 + $0x44] sm:$0xf]
    %v7209 = vld [vmem:[#allocation13 + $0x48] sm:$0xf]
    %v7210 = vld [vmem:[#allocation13 + $0x4c] sm:$0xf]
    %v7211 = vld [vmem:[#allocation13 + $0x50] sm:$0xf]
    %v7212 = vld [vmem:[#allocation13 + $0x54] sm:$0xf]
    %v7213 = vld [vmem:[#allocation13 + $0x58] sm:$0xf]
    %v7214 = vld [vmem:[#allocation13 + $0x5c] sm:$0xf]
    %v7215 = vld [vmem:[#allocation13 + $0x60] sm:$0xf]
    %v7216 = vld [vmem:[#allocation13 + $0x64] sm:$0xf]
    %v7217 = vld [vmem:[#allocation13 + $0x68] sm:$0xf]
    %v7218 = vld [vmem:[#allocation13 + $0x6c] sm:$0xf]
    %v7219 = vld [vmem:[#allocation13 + $0x70] sm:$0xf]
    %v7220 = vld [vmem:[#allocation13 + $0x74] sm:$0xf]
    %v7221 = vld [vmem:[#allocation13 + $0x78] sm:$0xf]
    %v7222 = vld [vmem:[#allocation13 + $0x7c] sm:$0xf]
    %v7223 = vld [vmem:[#allocation13 + $0x80] sm:$0xf]
    %v7224 = vld [vmem:[#allocation13 + $0x84] sm:$0xf]
    %v7225 = vld [vmem:[#allocation13 + $0x88] sm:$0xf]
    %v7226 = vld [vmem:[#allocation13 + $0x8c] sm:$0xf]
    %v7227 = vld [vmem:[#allocation13 + $0x90] sm:$0xf]
    %v7228 = vld [vmem:[#allocation13 + $0x94] sm:$0xf]
    %v7229 = vld [vmem:[#allocation13 + $0x98] sm:$0xf]
    %v7230 = vld [vmem:[#allocation13 + $0x9c] sm:$0xf]
    %v7231 = vld [vmem:[#allocation13 + $0xa0] sm:$0xf]
    %v7232 = vld [vmem:[#allocation13 + $0xa4] sm:$0xf]
    %v7233 = vld [vmem:[#allocation13 + $0xa8] sm:$0xf]
    %v7234 = vld [vmem:[#allocation13 + $0xac] sm:$0xf]
    %v7235 = vld [vmem:[#allocation13 + $0xb0] sm:$0xf]
    %v7236 = vld [vmem:[#allocation13 + $0xb4] sm:$0xf]
    %v7237 = vld [vmem:[#allocation13 + $0xb8] sm:$0xf]
    %v7238 = vld [vmem:[#allocation13 + $0xbc] sm:$0xf]
    %v7239 = vld [vmem:[#allocation13 + $0xc0] sm:$0xf]
    %v7240 = vld [vmem:[#allocation13 + $0xc4] sm:$0xf]
    %v7241 = vld [vmem:[#allocation13 + $0xc8] sm:$0xf]
    %v7242 = vld [vmem:[#allocation13 + $0xcc] sm:$0xf]
    %v7243 = vld [vmem:[#allocation13 + $0xd0] sm:$0xf]
    %v7244 = vld [vmem:[#allocation13 + $0xd4] sm:$0xf]
    %v7245 = vld [vmem:[#allocation13 + $0xd8] sm:$0xf]
    %v7246 = vld [vmem:[#allocation13 + $0xdc] sm:$0xf]
    %v7247 = vld [vmem:[#allocation13 + $0xe0] sm:$0xf]
    %v7248 = vld [vmem:[#allocation13 + $0xe4] sm:$0xf]
    %v7249 = vld [vmem:[#allocation13 + $0xe8] sm:$0xf]
    %v7250 = vld [vmem:[#allocation13 + $0xec] sm:$0xf]
    %v7251 = vld [vmem:[#allocation13 + $0xf0] sm:$0xf]
    %v7252 = vld [vmem:[#allocation13 + $0xf4] sm:$0xf]
    %v7253 = vld [vmem:[#allocation13 + $0xf8] sm:$0xf]
    %v7254 = vld [vmem:[#allocation13 + $0xfc] sm:$0xf]
    %v7255 = vld [vmem:[#allocation15] sm:$0x1]
    %v7257 = vperm.slane %v7255, 0
    %v7323 = vunpack.c.l.b16 %v7191
    %v7324 = vunpack.c.l.b16 %v7192
    %v7325 = vunpack.c.l.b16 %v7193
    %v7326 = vunpack.c.l.b16 %v7194
    %v7327 = vunpack.c.l.b16 %v7195
    %v7328 = vunpack.c.l.b16 %v7196
    %v7329 = vunpack.c.l.b16 %v7197
    %v7330 = vunpack.c.l.b16 %v7198
    %v7331 = vunpack.c.l.b16 %v7199
    %v7332 = vunpack.c.l.b16 %v7200
    %v7333 = vunpack.c.l.b16 %v7201
    %v7334 = vunpack.c.l.b16 %v7202
    %v7335 = vunpack.c.l.b16 %v7203
    %v7336 = vunpack.c.l.b16 %v7204
    %v7337 = vunpack.c.l.b16 %v7205
    %v7338 = vunpack.c.l.b16 %v7206
    %v7339 = vunpack.c.l.b16 %v7207
    %v7340 = vunpack.c.l.b16 %v7208
    %v7341 = vunpack.c.l.b16 %v7209
    %v7342 = vunpack.c.l.b16 %v7210
    %v7343 = vunpack.c.l.b16 %v7211
    %v7344 = vunpack.c.l.b16 %v7212
    %v7345 = vunpack.c.l.b16 %v7213
    %v7346 = vunpack.c.l.b16 %v7214
    %v7347 = vunpack.c.l.b16 %v7215
    %v7348 = vunpack.c.l.b16 %v7216
    %v7349 = vunpack.c.l.b16 %v7217
    %v7350 = vunpack.c.l.b16 %v7218
    %v7351 = vunpack.c.l.b16 %v7219
    %v7352 = vunpack.c.l.b16 %v7220
    %v7353 = vunpack.c.l.b16 %v7221
    %v7354 = vunpack.c.l.b16 %v7222
    %v7355 = vunpack.c.l.b16 %v7223
    %v7356 = vunpack.c.l.b16 %v7224
    %v7357 = vunpack.c.l.b16 %v7225
    %v7358 = vunpack.c.l.b16 %v7226
    %v7359 = vunpack.c.l.b16 %v7227
    %v7360 = vunpack.c.l.b16 %v7228
    %v7361 = vunpack.c.l.b16 %v7229
    %v7362 = vunpack.c.l.b16 %v7230
    %v7363 = vunpack.c.l.b16 %v7231
    %v7364 = vunpack.c.l.b16 %v7232
    %v7365 = vunpack.c.l.b16 %v7233
    %v7366 = vunpack.c.l.b16 %v7234
    %v7367 = vunpack.c.l.b16 %v7235
    %v7368 = vunpack.c.l.b16 %v7236
    %v7369 = vunpack.c.l.b16 %v7237
    %v7370 = vunpack.c.l.b16 %v7238
    %v7371 = vunpack.c.l.b16 %v7239
    %v7372 = vunpack.c.l.b16 %v7240
    %v7373 = vunpack.c.l.b16 %v7241
    %v7374 = vunpack.c.l.b16 %v7242
    %v7375 = vunpack.c.l.b16 %v7243
    %v7376 = vunpack.c.l.b16 %v7244
    %v7377 = vunpack.c.l.b16 %v7245
    %v7378 = vunpack.c.l.b16 %v7246
    %v7379 = vunpack.c.l.b16 %v7247
    %v7380 = vunpack.c.l.b16 %v7248
    %v7381 = vunpack.c.l.b16 %v7249
    %v7382 = vunpack.c.l.b16 %v7250
    %v7383 = vunpack.c.l.b16 %v7251
    %v7384 = vunpack.c.l.b16 %v7252
    %v7385 = vunpack.c.l.b16 %v7253
    %v7386 = vunpack.c.l.b16 %v7254
    %v7387 = vpack.c.b16 %v7324, %v7323
    %v7388 = vpack.c.b16 %v7326, %v7325
    %v7389 = vpack.c.b16 %v7328, %v7327
    %v7390 = vpack.c.b16 %v7330, %v7329
    %v7391 = vpack.c.b16 %v7332, %v7331
    %v7392 = vpack.c.b16 %v7334, %v7333
    %v7393 = vpack.c.b16 %v7336, %v7335
    %v7394 = vpack.c.b16 %v7338, %v7337
    %v7395 = vpack.c.b16 %v7340, %v7339
    %v7396 = vpack.c.b16 %v7342, %v7341
    %v7397 = vpack.c.b16 %v7344, %v7343
    %v7398 = vpack.c.b16 %v7346, %v7345
    %v7399 = vpack.c.b16 %v7348, %v7347
    %v7400 = vpack.c.b16 %v7350, %v7349
    %v7401 = vpack.c.b16 %v7352, %v7351
    %v7402 = vpack.c.b16 %v7354, %v7353
    %v7403 = vpack.c.b16 %v7356, %v7355
    %v7404 = vpack.c.b16 %v7358, %v7357
    %v7405 = vpack.c.b16 %v7360, %v7359
    %v7406 = vpack.c.b16 %v7362, %v7361
    %v7407 = vpack.c.b16 %v7364, %v7363
    %v7408 = vpack.c.b16 %v7366, %v7365
    %v7409 = vpack.c.b16 %v7368, %v7367
    %v7410 = vpack.c.b16 %v7370, %v7369
    %v7411 = vpack.c.b16 %v7372, %v7371
    %v7412 = vpack.c.b16 %v7374, %v7373
    %v7413 = vpack.c.b16 %v7376, %v7375
    %v7414 = vpack.c.b16 %v7378, %v7377
    %v7415 = vpack.c.b16 %v7380, %v7379
    %v7416 = vpack.c.b16 %v7382, %v7381
    %v7417 = vpack.c.b16 %v7384, %v7383
    %v7418 = vpack.c.b16 %v7386, %v7385
    %7451 = vmatpush.bf16.msra.mxu0 %v7394
    %7452 = vmatpush.bf16.msra.mxu0 %v7393
    %7453 = vmatpush.bf16.msra.mxu0 %v7392
    %7454 = vmatpush.bf16.msra.mxu0 %v7391
    %7455 = vmatpush.bf16.msra.mxu0 %v7390
    %7456 = vmatpush.bf16.msra.mxu0 %v7389
    %7457 = vmatpush.bf16.msra.mxu0 %v7388
    %7458 = vmatpush.bf16.msra.mxu0 %v7387
    %7459 = vmatmul.bf16.gmra.mxu0 %v7187
    %v7460 = vpop.f32.mrf.mxu0
    %v7461 = vadd.f32 %v7257, %v7460
    %v7462 = vpop.f32.mrf.mxu0
    %7463 = vdwg.mxu0
    %7464 = vmatpush.bf16.msra.mxu0 %v7402
    %7465 = vmatpush.bf16.msra.mxu0 %v7401
    %7466 = vmatpush.bf16.msra.mxu0 %v7400
    %7467 = vmatpush.bf16.msra.mxu0 %v7399
    %7468 = vmatpush.bf16.msra.mxu0 %v7398
    %7469 = vmatpush.bf16.msra.mxu0 %v7397
    %7470 = vmatpush.bf16.msra.mxu0 %v7396
    %7471 = vmatpush.bf16.msra.mxu0 %v7395
    %7472 = vmatmul.bf16.gmra.mxu0 %v7188
    %v7473 = vpop.f32.mrf.mxu0
    %v7474 = vadd.f32 %v7461, %v7473
    %v7475 = vpop.f32.mrf.mxu0
    %7476 = vdwg.mxu0
    %7477 = vmatpush.bf16.msra.mxu0 %v7410
    %7478 = vmatpush.bf16.msra.mxu0 %v7409
    %7479 = vmatpush.bf16.msra.mxu0 %v7408
    %7480 = vmatpush.bf16.msra.mxu0 %v7407
    %7481 = vmatpush.bf16.msra.mxu0 %v7406
    %7482 = vmatpush.bf16.msra.mxu0 %v7405
    %7483 = vmatpush.bf16.msra.mxu0 %v7404
    %7484 = vmatpush.bf16.msra.mxu0 %v7403
    %7485 = vmatmul.bf16.gmra.mxu0 %v7189
    %v7486 = vpop.f32.mrf.mxu0
    %v7487 = vadd.f32 %v7474, %v7486
    %v7488 = vpop.f32.mrf.mxu0
    %7489 = vdwg.mxu0
    %7490 = vmatpush.bf16.msra.mxu0 %v7418
    %7491 = vmatpush.bf16.msra.mxu0 %v7417
    %7492 = vmatpush.bf16.msra.mxu0 %v7416
    %7493 = vmatpush.bf16.msra.mxu0 %v7415
    %7494 = vmatpush.bf16.msra.mxu0 %v7414
    %7495 = vmatpush.bf16.msra.mxu0 %v7413
    %7496 = vmatpush.bf16.msra.mxu0 %v7412
    %7497 = vmatpush.bf16.msra.mxu0 %v7411
    %7498 = vmatmul.bf16.gmra.mxu0 %v7190
    %v7499 = vpop.f32.mrf.mxu0
    %v7500 = vadd.f32 %v7487, %v7499
    %v7501 = vpop.f32.mrf.mxu0
    %7502 = vdwg.mxu0
    %v7503 = vlaneseq
    %v7504 = vand.u32 %v7503, 127
    %vm7505 = vcmp.lt.s32.totalorder %v7504, 6
    %v7506 = vsel %vm7505, %v7500, -1e+30
    %v7507 = vsel %vm167, %v7506, -inf
    %7508 = vmax.xlane.f32.xlu0 %v7507
    %v7509 = vpop.xlane.xlu0 %7508
    %v7510 = vsub.f32 %v7506, %v7509
    %v7511 = vmul.f32 %v7510, 1.442695
    %v7512 = vpow.pop %v7511
    %v7513 = vsel %vm167, %v7512, 0.0
    %7514 = vadd.xlane.f32.xlu0 %v7513
    %v7515 = vpop.xlane.xlu0 %7514
    %v7516 = vrcp.pop %v7515
    %v7517 = vmul.f32 %v7515, %v7516
    %v7518 = vsub.f32 1.0, %v7517
    %v7519 = vmul.f32 %v7516, %v7518
    %v7520 = vadd.f32 %v7516, %v7519
    %vm7521 = vweird.f32 %v7515
    %vm7522 = vweird.f32 %v7516
    %vm7523 = vmor %vm7521, %vm7522
    %v7524 = vsel %vm7523, %v7516, %v7520
    %v7525 = vand.u32 2147483647, %v7515
    %vm7526 = vcmp.eq.f32.partialorder %v7525, 8.507059e+37
    %v7527 = vand.u32 %v7515, 2147483648
    %v7528 = vor.u32 1.1754944e-38, %v7527
    %v7529 = vsel %vm7526, %v7528, %v7524
    %v7530 = vmul.f32 %v7512, %v7529
    %vm7531 = vcmp.eq.s32.totalorder %v7504, 6
    %v7532 = vsel %vm7531, %v7500, 0.0
    %v7533 = vsel %vm7505, %v7530, %v7532
    %7534 = vst [vmem:[%s11] sm:$0x3] %v7533
    // Predicated region
    $region74: #{vmpo_qec_forward.1} parent=1 // pred_check
      _
    $region75: #{vmpo_qec_forward.1} parent=1 // pred_check_branch
      %7536 = sbr.rel (0) target = $region77
    $region76: #{vmpo_qec_forward.1} parent=1 // pred_region
      _
    $region77: #{vmpo_qec_forward.1} parent=1 // pred_fallthru
      _
    // Predicated region
    $region78: #{vmpo_qec_forward.1} parent=1 // pred_check
      _
    $region79: #{vmpo_qec_forward.1} parent=1 // pred_check_branch
      %7538 = sbr.rel (0) target = $region81
    $region80: #{vmpo_qec_forward.1} parent=1 // pred_region
      _
    $region81: #{vmpo_qec_forward.1} parent=1 // pred_fallthru
      _
    %7539 = vsyncpa [#allocation6], 1
    %7540 = vsyncpa [#allocation8], 1
    %7541 = vsyncpa [#allocation11], 1
    %7542 = vsyncpa [#allocation14], 1

</llo_original>
